<compile_context>
chip_gen: v5e
topology: v5e:2x2
jax: 0.10.0
libtpu: 0.0.40
codegen_flags: <defaults>
</compile_context>

<pallas_src>
import functools

import jax
import jax.numpy as jnp
from jax import lax
from jax.experimental import pallas as pl
from jax.experimental.pallas import tpu as pltpu

C = 128          # in_channels = out_channels = 128 (fixed by the module)
N_LAYERS = 9     # conv1, 3, 5, 7, 9, 11, 13, 15, 17
KH = KW = 3


def _res_block_kernel(alpha_ref, x_ref, w_ref, o_ref, pad_ref, res_ref, *, H, W):
    """Fused Res_Block128 forward for one NHWC image.

    alpha_ref: (8,)  f32 SMEM              PReLU slopes (relu2..relu16)
    x_ref:     (1, H, W, C) f32 VMEM       input image
    w_ref:     (9, 9*C, C) bf16 VMEM       weights, K rows ordered (dy, dx, cin)
    o_ref:     (1, H, W, C) f32 VMEM       output image
    pad_ref:   (H+2, W+2, C) bf16 VMEM     zero-halo activation buffer
    res_ref:   (H, W, C) f32 VMEM          current residual (res2/res3/res4)
    """
    # Zero only the 1-wide halo ring; the interior is fully rewritten each layer.
    zrow = jnp.zeros((1, W + 2, C), jnp.bfloat16)
    zcol = jnp.zeros((H + 2, 1, C), jnp.bfloat16)
    pad_ref[0:1, :, :] = zrow
    pad_ref[H + 1:H + 2, :, :] = zrow
    pad_ref[:, 0:1, :] = zcol
    pad_ref[:, W + 1:W + 2, :] = zcol

    # Activation enters the halo buffer in bf16 (MXU input precision).
    pad_ref[1:H + 1, 1:W + 1, :] = x_ref[0].astype(jnp.bfloat16)

    def im2col():
        """Build the (H*W, 9*C) bf16 patch; K ordered (dy, dx, cin)."""
        padv = pad_ref[...]                                    # (H+2, W+2, C) bf16
        # dx packing hoisted out of the dy loop: 3 shifted copies per layer.
        taps = [padv[:, dx:dx + W, :] for dx in range(KW)]     # each (H+2, W, C)
        # dy taps are leading-dim slices of the already-shifted copies (cheap).
        patch = jnp.concatenate(
            [taps[dx][dy:dy + H] for dy in range(KH) for dx in range(KW)],
            axis=-1)                                           # (H, W, 9*C)
        return patch.reshape(H * W, KH * KW * C)

    for l in range(N_LAYERS):
        # One K=1152 MXU matmul per conv; f32 accumulation inside the MXU.
        y = jnp.dot(im2col(), w_ref[l],
                    preferred_element_type=jnp.float32).reshape(H, W, C)

        if l < 8:                                   # PReLU (conv17 has none)
            a = alpha_ref[l]
            y = jnp.where(y >= 0, y, a * y)

        if l == 1:                                  # + res1 (= x), becomes res2
            y = y + x_ref[0]
            res_ref[...] = y
        elif l in (3, 5):                           # + res2/res3, becomes res3/res4
            y = y + res_ref[...]
            res_ref[...] = y
        elif l == 7:                                # + res4
            y = y + res_ref[...]
        elif l == 8:                                # conv17 + res1
            y = y + x_ref[0]

        if l < 8:
            # Next layer's input (halo ring stays zero; interior store only).
            pad_ref[1:H + 1, 1:W + 1, :] = y.astype(jnp.bfloat16)
        else:
            o_ref[0] = y.astype(o_ref.dtype)


def res_block128_forward(x_nhwc, params):
    """Fused forward in NHWC layout; a single pallas_call for the whole block."""
    N, H, W, Cc = x_nhwc.shape
    assert Cc == C

    conv_ids = [1, 3, 5, 7, 9, 11, 13, 15, 17]
    # HWIO (3,3,C,C) -> (9*C, C); row index = dy*3C + dx*C + cin (matches im2col).
    w_stack = jnp.stack([params[f"w{i}"] for i in conv_ids], axis=0)
    w_stack = w_stack.reshape(N_LAYERS, KH * KW * C, C).astype(jnp.bfloat16)
    alphas = jnp.concatenate(
        [params[f"a{i}"].reshape(1) for i in [2, 4, 6, 8, 10, 12, 14, 16]]
    ).astype(jnp.float32)

    kernel = functools.partial(_res_block_kernel, H=H, W=W)
    return pl.pallas_call(
        kernel,
        out_shape=jax.ShapeDtypeStruct((N, H, W, C), x_nhwc.dtype),
        grid=(N,),
        in_specs=[
            pl.BlockSpec(memory_space=pltpu.MemorySpace.SMEM),               # PReLU slopes
            pl.BlockSpec((1, H, W, C), lambda n: (n, 0, 0, 0)),              # x (per image)
            # Constant index_map -> weights DMA'd once, VMEM-resident across grid.
            pl.BlockSpec((N_LAYERS, KH * KW * C, C), lambda n: (0, 0, 0)),
        ],
        out_specs=pl.BlockSpec((1, H, W, C), lambda n: (n, 0, 0, 0)),
        scratch_shapes=[
            pltpu.VMEM((H + 2, W + 2, C), jnp.bfloat16),   # halo'd activation (bf16)
            pltpu.VMEM((H, W, C), jnp.float32),            # current residual
        ],
        compiler_params=pltpu.CompilerParams(
            dimension_semantics=("parallel",),
            # ~6 MB actually used at 8x8; explicit limit gives headroom for
            # larger images without hitting the 16 MiB v5e scoped default.
            vmem_limit_bytes=32 * 1024 * 1024),
    )(alphas, x_nhwc, w_stack)


def res_block128_forward_nchw(x_nchw, params):
    """PyTorch-layout entry point: NCHW in / NCHW out."""
    x_nhwc = jnp.transpose(x_nchw, (0, 2, 3, 1))
    out = res_block128_forward(x_nhwc, params)
    return jnp.transpose(out, (0, 3, 1, 2))


# ---------------- pure-JAX f32 reference (for correctness check) ----------------
def _conv_ref(x, w):
    return lax.conv_general_dilated(x, w, (1, 1), "SAME",
                                    dimension_numbers=("NHWC", "HWIO", "NHWC"))


def _prelu(x, a):
    return jnp.where(x >= 0, x, a * x)


def res_block128_reference(x, p):
    res1 = x
    out = _prelu(_conv_ref(_prelu(_conv_ref(x, p["w1"]), p["a2"]), p["w3"]), p["a4"]) + res1
    res2 = out
    out = _prelu(_conv_ref(_prelu(_conv_ref(out, p["w5"]), p["a6"]), p["w7"]), p["a8"]) + res2
    res3 = out
    out = _prelu(_conv_ref(_prelu(_conv_ref(out, p["w9"]), p["a10"]), p["w11"]), p["a12"]) + res3
    res4 = out
    out = _prelu(_conv_ref(_prelu(_conv_ref(out, p["w13"]), p["a14"]), p["w15"]), p["a16"]) + res4
    out = _conv_ref(out, p["w17"]) + res1
    return out


def init_params(key):
    """Deterministic synthetic parameters (shapes from Res_Block128.__init__)."""
    params = {}
    conv_ids = [1, 3, 5, 7, 9, 11, 13, 15, 17]
    keys = jax.random.split(key, len(conv_ids))
    for k, cid in zip(keys, conv_ids):
        # HWIO weights, small scale to keep activations bounded through 9 layers.
        params[f"w{cid}"] = jax.random.normal(k, (3, 3, C, C), jnp.float32) * 0.02
    for aid in [2, 4, 6, 8, 10, 12, 14, 16]:
        params[f"a{aid}"] = jnp.full((1,), 0.25, jnp.float32)  # nn.PReLU default init
    return params


if __name__ == "__main__":
    key = jax.random.PRNGKey(0)
    k_x, k_p = jax.random.split(key)

    N, H, W = 2, 8, 8
    x_nchw = jax.random.normal(k_x, (N, C, H, W), jnp.float32)   # PyTorch-style input
    params = init_params(k_p)

    out_nchw = jax.block_until_ready(res_block128_forward_nchw(x_nchw, params))

    x_nhwc = jnp.transpose(x_nchw, (0, 2, 3, 1))
    ref_nchw = jnp.transpose(res_block128_reference(x_nhwc, params), (0, 3, 1, 2))
    ref_nchw = jax.block_until_ready(ref_nchw)

    assert out_nchw.shape == (N, C, H, W)
    max_err = float(jnp.max(jnp.abs(out_nchw - ref_nchw)))
    # bf16 MXU inputs with f32 accumulation across 9 chained convs -> loosened tol.
    if max_err > 5e-2:
        raise AssertionError(f"mismatch vs reference, max abs err = {max_err}")

    print("KERNEL_OK")
</pallas_src>

<mosaic_0001>
module attributes {stable_mosaic.version = 11 : i64} {
  func.func @_res_block_kernel(%arg0: i32, %arg1: memref<8xf32, #tpu.memory_space<smem>>, %arg2: memref<1x8x8x128xf32, #tpu.memory_space<vmem>>, %arg3: memref<9x1152x128xbf16, #tpu.memory_space<vmem>>, %arg4: memref<1x8x8x128xf32, #tpu.memory_space<vmem>>, %arg5: memref<10x10x128xbf16, #tpu.memory_space<vmem>>, %arg6: memref<8x8x128xf32, #tpu.memory_space<vmem>>) attributes {dimension_semantics = [#tpu.dimension_semantics<parallel>], iteration_bounds = array<i64: 2>, scalar_prefetch = 0 : i64, scratch_operands = 2 : i64, tpu.core_type = #tpu.core_type<tc>, window_params = [{transform_indices = @transform_0, window_bounds = array<i64: 8>}, {transform_indices = @transform_1, window_bounds = array<i64: 1, 8, 8, 128>}, {pipeline_mode = #tpu.pipeline_mode<synchronous>, transform_indices = @transform_2, window_bounds = array<i64: 9, 1152, 128>}, {transform_indices = @transform_3, window_bounds = array<i64: 1, 8, 8, 128>}]} {
    %cst = arith.constant 0.000000e+00 : bf16
    %0 = vector.broadcast %cst : bf16 to vector<1x10x128xbf16>
    %cst_0 = arith.constant 0.000000e+00 : bf16
    %1 = vector.broadcast %cst_0 : bf16 to vector<10x1x128xbf16>
    %c0 = arith.constant 0 : index
    %c0_1 = arith.constant 0 : index
    %c0_2 = arith.constant 0 : index
    %2 = vector.load %arg5[%c0, %c0_1, %c0_2] : memref<10x10x128xbf16, #tpu.memory_space<vmem>>, vector<1x10x128xbf16>
    tpu.vector_store %arg5[%c0, %c0_1, %c0_2], %0 {strides = array<i32>} : memref<10x10x128xbf16, #tpu.memory_space<vmem>>, vector<1x10x128xbf16>,
    %c9 = arith.constant 9 : index
    %c0_3 = arith.constant 0 : index
    %c0_4 = arith.constant 0 : index
    %3 = vector.load %arg5[%c9, %c0_3, %c0_4] : memref<10x10x128xbf16, #tpu.memory_space<vmem>>, vector<1x10x128xbf16>
    tpu.vector_store %arg5[%c9, %c0_3, %c0_4], %0 {strides = array<i32>} : memref<10x10x128xbf16, #tpu.memory_space<vmem>>, vector<1x10x128xbf16>,
    %c0_5 = arith.constant 0 : index
    %c0_6 = arith.constant 0 : index
    %c0_7 = arith.constant 0 : index
    %4 = vector.load %arg5[%c0_5, %c0_6, %c0_7] : memref<10x10x128xbf16, #tpu.memory_space<vmem>>, vector<10x1x128xbf16>
    tpu.vector_store %arg5[%c0_5, %c0_6, %c0_7], %1 {strides = array<i32>} : memref<10x10x128xbf16, #tpu.memory_space<vmem>>, vector<10x1x128xbf16>,
    %c0_8 = arith.constant 0 : index
    %c9_9 = arith.constant 9 : index
    %c0_10 = arith.constant 0 : index
    %5 = vector.load %arg5[%c0_8, %c9_9, %c0_10] : memref<10x10x128xbf16, #tpu.memory_space<vmem>>, vector<10x1x128xbf16>
    tpu.vector_store %arg5[%c0_8, %c9_9, %c0_10], %1 {strides = array<i32>} : memref<10x10x128xbf16, #tpu.memory_space<vmem>>, vector<10x1x128xbf16>,
    %c0_11 = arith.constant 0 : index
    %c0_12 = arith.constant 0 : index
    %c0_13 = arith.constant 0 : index
    %c0_14 = arith.constant 0 : index
    %6 = vector.load %arg2[%c0_11, %c0_12, %c0_13, %c0_14] : memref<1x8x8x128xf32, #tpu.memory_space<vmem>>, vector<1x8x8x128xf32>
    %7 = vector.shape_cast %6 : vector<1x8x8x128xf32> to vector<8x8x128xf32>
    %8 = arith.truncf %7 : vector<8x8x128xf32> to vector<8x8x128xbf16>
    %c1 = arith.constant 1 : index
    %c1_15 = arith.constant 1 : index
    %c0_16 = arith.constant 0 : index
    %9 = vector.load %arg5[%c1, %c1_15, %c0_16] : memref<10x10x128xbf16, #tpu.memory_space<vmem>>, vector<8x8x128xbf16>
    tpu.vector_store %arg5[%c1, %c1_15, %c0_16], %8 {strides = array<i32>} : memref<10x10x128xbf16, #tpu.memory_space<vmem>>, vector<8x8x128xbf16>,
    %c0_17 = arith.constant 0 : index
    %c0_18 = arith.constant 0 : index
    %c0_19 = arith.constant 0 : index
    %10 = vector.load %arg5[%c0_17, %c0_18, %c0_19] : memref<10x10x128xbf16, #tpu.memory_space<vmem>>, vector<10x10x128xbf16>
    %11 = vector.extract_strided_slice %10 {offsets = [0, 0, 0], sizes = [10, 8, 128], strides = [1, 1, 1]} : vector<10x10x128xbf16> to vector<10x8x128xbf16>
    %12 = vector.extract_strided_slice %10 {offsets = [0, 1, 0], sizes = [10, 8, 128], strides = [1, 1, 1]} : vector<10x10x128xbf16> to vector<10x8x128xbf16>
    %13 = vector.extract_strided_slice %10 {offsets = [0, 2, 0], sizes = [10, 8, 128], strides = [1, 1, 1]} : vector<10x10x128xbf16> to vector<10x8x128xbf16>
    %14 = vector.extract_strided_slice %11 {offsets = [0, 0, 0], sizes = [8, 8, 128], strides = [1, 1, 1]} : vector<10x8x128xbf16> to vector<8x8x128xbf16>
    %15 = vector.extract_strided_slice %12 {offsets = [0, 0, 0], sizes = [8, 8, 128], strides = [1, 1, 1]} : vector<10x8x128xbf16> to vector<8x8x128xbf16>
    %16 = vector.extract_strided_slice %13 {offsets = [0, 0, 0], sizes = [8, 8, 128], strides = [1, 1, 1]} : vector<10x8x128xbf16> to vector<8x8x128xbf16>
    %17 = vector.extract_strided_slice %11 {offsets = [1, 0, 0], sizes = [8, 8, 128], strides = [1, 1, 1]} : vector<10x8x128xbf16> to vector<8x8x128xbf16>
    %18 = vector.extract_strided_slice %12 {offsets = [1, 0, 0], sizes = [8, 8, 128], strides = [1, 1, 1]} : vector<10x8x128xbf16> to vector<8x8x128xbf16>
    %19 = vector.extract_strided_slice %13 {offsets = [1, 0, 0], sizes = [8, 8, 128], strides = [1, 1, 1]} : vector<10x8x128xbf16> to vector<8x8x128xbf16>
    %20 = vector.extract_strided_slice %11 {offsets = [2, 0, 0], sizes = [8, 8, 128], strides = [1, 1, 1]} : vector<10x8x128xbf16> to vector<8x8x128xbf16>
    %21 = vector.extract_strided_slice %12 {offsets = [2, 0, 0], sizes = [8, 8, 128], strides = [1, 1, 1]} : vector<10x8x128xbf16> to vector<8x8x128xbf16>
    %22 = vector.extract_strided_slice %13 {offsets = [2, 0, 0], sizes = [8, 8, 128], strides = [1, 1, 1]} : vector<10x8x128xbf16> to vector<8x8x128xbf16>
    %23 = tpu.concatenate %14, %15, %16, %17, %18, %19, %20, %21, %22 in 2 : vector<8x8x128xbf16>, vector<8x8x128xbf16>, vector<8x8x128xbf16>, vector<8x8x128xbf16>, vector<8x8x128xbf16>, vector<8x8x128xbf16>, vector<8x8x128xbf16>, vector<8x8x128xbf16>, vector<8x8x128xbf16> -> vector<8x8x1152xbf16>
    %24 = vector.shape_cast %23 : vector<8x8x1152xbf16> to vector<64x1152xbf16>
    %c0_20 = arith.constant 0 : index
    %c0_21 = arith.constant 0 : index
    %c0_22 = arith.constant 0 : index
    %25 = vector.load %arg3[%c0_20, %c0_21, %c0_22] : memref<9x1152x128xbf16, #tpu.memory_space<vmem>>, vector<1x1152x128xbf16>
    %26 = vector.shape_cast %25 : vector<1x1152x128xbf16> to vector<1152x128xbf16>
    %cst_23 = arith.constant dense<0.000000e+00> : vector<64x128xf32>
    %27 = tpu.matmul %24, %26, %cst_23 {dimension_numbers = #tpu.dot_dimension_numbers<[1], [0], [0], [1], [0, 0, 1, 1], [], []>} : vector<64x1152xbf16>, vector<1152x128xbf16>, vector<64x128xf32> -> vector<64x128xf32>
    %28 = vector.shape_cast %27 : vector<64x128xf32> to vector<8x8x128xf32>
    %c0_24 = arith.constant 0 : index
    %29 = memref.load %arg1[%c0_24] : memref<8xf32, #tpu.memory_space<smem>>
    %cst_25 = arith.constant 0.000000e+00 : f32
    %30 = vector.broadcast %cst_25 : f32 to vector<8x8x128xf32>
    %31 = arith.cmpf oge, %28, %30 : vector<8x8x128xf32>
    %32 = vector.broadcast %29 : f32 to vector<8x8x128xf32>
    %33 = arith.mulf %32, %28 : vector<8x8x128xf32>
    %34 = arith.select %31, %28, %33 : vector<8x8x128xi1>, vector<8x8x128xf32>
    %35 = arith.truncf %34 : vector<8x8x128xf32> to vector<8x8x128xbf16>
    %c1_26 = arith.constant 1 : index
    %c1_27 = arith.constant 1 : index
    %c0_28 = arith.constant 0 : index
    %36 = vector.load %arg5[%c1_26, %c1_27, %c0_28] : memref<10x10x128xbf16, #tpu.memory_space<vmem>>, vector<8x8x128xbf16>
    tpu.vector_store %arg5[%c1_26, %c1_27, %c0_28], %35 {strides = array<i32>} : memref<10x10x128xbf16, #tpu.memory_space<vmem>>, vector<8x8x128xbf16>,
    %c0_29 = arith.constant 0 : index
    %c0_30 = arith.constant 0 : index
    %c0_31 = arith.constant 0 : index
    %37 = vector.load %arg5[%c0_29, %c0_30, %c0_31] : memref<10x10x128xbf16, #tpu.memory_space<vmem>>, vector<10x10x128xbf16>
    %38 = vector.extract_strided_slice %37 {offsets = [0, 0, 0], sizes = [10, 8, 128], strides = [1, 1, 1]} : vector<10x10x128xbf16> to vector<10x8x128xbf16>
    %39 = vector.extract_strided_slice %37 {offsets = [0, 1, 0], sizes = [10, 8, 128], strides = [1, 1, 1]} : vector<10x10x128xbf16> to vector<10x8x128xbf16>
    %40 = vector.extract_strided_slice %37 {offsets = [0, 2, 0], sizes = [10, 8, 128], strides = [1, 1, 1]} : vector<10x10x128xbf16> to vector<10x8x128xbf16>
    %41 = vector.extract_strided_slice %38 {offsets = [0, 0, 0], sizes = [8, 8, 128], strides = [1, 1, 1]} : vector<10x8x128xbf16> to vector<8x8x128xbf16>
    %42 = vector.extract_strided_slice %39 {offsets = [0, 0, 0], sizes = [8, 8, 128], strides = [1, 1, 1]} : vector<10x8x128xbf16> to vector<8x8x128xbf16>
    %43 = vector.extract_strided_slice %40 {offsets = [0, 0, 0], sizes = [8, 8, 128], strides = [1, 1, 1]} : vector<10x8x128xbf16> to vector<8x8x128xbf16>
    %44 = vector.extract_strided_slice %38 {offsets = [1, 0, 0], sizes = [8, 8, 128], strides = [1, 1, 1]} : vector<10x8x128xbf16> to vector<8x8x128xbf16>
    %45 = vector.extract_strided_slice %39 {offsets = [1, 0, 0], sizes = [8, 8, 128], strides = [1, 1, 1]} : vector<10x8x128xbf16> to vector<8x8x128xbf16>
    %46 = vector.extract_strided_slice %40 {offsets = [1, 0, 0], sizes = [8, 8, 128], strides = [1, 1, 1]} : vector<10x8x128xbf16> to vector<8x8x128xbf16>
    %47 = vector.extract_strided_slice %38 {offsets = [2, 0, 0], sizes = [8, 8, 128], strides = [1, 1, 1]} : vector<10x8x128xbf16> to vector<8x8x128xbf16>
    %48 = vector.extract_strided_slice %39 {offsets = [2, 0, 0], sizes = [8, 8, 128], strides = [1, 1, 1]} : vector<10x8x128xbf16> to vector<8x8x128xbf16>
    %49 = vector.extract_strided_slice %40 {offsets = [2, 0, 0], sizes = [8, 8, 128], strides = [1, 1, 1]} : vector<10x8x128xbf16> to vector<8x8x128xbf16>
    %50 = tpu.concatenate %41, %42, %43, %44, %45, %46, %47, %48, %49 in 2 : vector<8x8x128xbf16>, vector<8x8x128xbf16>, vector<8x8x128xbf16>, vector<8x8x128xbf16>, vector<8x8x128xbf16>, vector<8x8x128xbf16>, vector<8x8x128xbf16>, vector<8x8x128xbf16>, vector<8x8x128xbf16> -> vector<8x8x1152xbf16>
    %51 = vector.shape_cast %50 : vector<8x8x1152xbf16> to vector<64x1152xbf16>
    %c1_32 = arith.constant 1 : index
    %c0_33 = arith.constant 0 : index
    %c0_34 = arith.constant 0 : index
    %52 = vector.load %arg3[%c1_32, %c0_33, %c0_34] : memref<9x1152x128xbf16, #tpu.memory_space<vmem>>, vector<1x1152x128xbf16>
    %53 = vector.shape_cast %52 : vector<1x1152x128xbf16> to vector<1152x128xbf16>
    %cst_35 = arith.constant dense<0.000000e+00> : vector<64x128xf32>
    %54 = tpu.matmul %51, %53, %cst_35 {dimension_numbers = #tpu.dot_dimension_numbers<[1], [0], [0], [1], [0, 0, 1, 1], [], []>} : vector<64x1152xbf16>, vector<1152x128xbf16>, vector<64x128xf32> -> vector<64x128xf32>
    %55 = vector.shape_cast %54 : vector<64x128xf32> to vector<8x8x128xf32>
    %c1_36 = arith.constant 1 : index
    %56 = memref.load %arg1[%c1_36] : memref<8xf32, #tpu.memory_space<smem>>
    %cst_37 = arith.constant 0.000000e+00 : f32
    %57 = vector.broadcast %cst_37 : f32 to vector<8x8x128xf32>
    %58 = arith.cmpf oge, %55, %57 : vector<8x8x128xf32>
    %59 = vector.broadcast %56 : f32 to vector<8x8x128xf32>
    %60 = arith.mulf %59, %55 : vector<8x8x128xf32>
    %61 = arith.select %58, %55, %60 : vector<8x8x128xi1>, vector<8x8x128xf32>
    %c0_38 = arith.constant 0 : index
    %c0_39 = arith.constant 0 : index
    %c0_40 = arith.constant 0 : index
    %c0_41 = arith.constant 0 : index
    %62 = vector.load %arg2[%c0_38, %c0_39, %c0_40, %c0_41] : memref<1x8x8x128xf32, #tpu.memory_space<vmem>>, vector<1x8x8x128xf32>
    %63 = vector.shape_cast %62 : vector<1x8x8x128xf32> to vector<8x8x128xf32>
    %64 = arith.addf %61, %63 : vector<8x8x128xf32>
    %c0_42 = arith.constant 0 : index
    %c0_43 = arith.constant 0 : index
    %c0_44 = arith.constant 0 : index
    %65 = vector.load %arg6[%c0_42, %c0_43, %c0_44] : memref<8x8x128xf32, #tpu.memory_space<vmem>>, vector<8x8x128xf32>
    tpu.vector_store %arg6[%c0_42, %c0_43, %c0_44], %64 {strides = array<i32>} : memref<8x8x128xf32, #tpu.memory_space<vmem>>, vector<8x8x128xf32>,
    %66 = arith.truncf %64 : vector<8x8x128xf32> to vector<8x8x128xbf16>
    %c1_45 = arith.constant 1 : index
    %c1_46 = arith.constant 1 : index
    %c0_47 = arith.constant 0 : index
    %67 = vector.load %arg5[%c1_45, %c1_46, %c0_47] : memref<10x10x128xbf16, #tpu.memory_space<vmem>>, vector<8x8x128xbf16>
    tpu.vector_store %arg5[%c1_45, %c1_46, %c0_47], %66 {strides = array<i32>} : memref<10x10x128xbf16, #tpu.memory_space<vmem>>, vector<8x8x128xbf16>,
    %c0_48 = arith.constant 0 : index
    %c0_49 = arith.constant 0 : index
    %c0_50 = arith.constant 0 : index
    %68 = vector.load %arg5[%c0_48, %c0_49, %c0_50] : memref<10x10x128xbf16, #tpu.memory_space<vmem>>, vector<10x10x128xbf16>
    %69 = vector.extract_strided_slice %68 {offsets = [0, 0, 0], sizes = [10, 8, 128], strides = [1, 1, 1]} : vector<10x10x128xbf16> to vector<10x8x128xbf16>
    %70 = vector.extract_strided_slice %68 {offsets = [0, 1, 0], sizes = [10, 8, 128], strides = [1, 1, 1]} : vector<10x10x128xbf16> to vector<10x8x128xbf16>
    %71 = vector.extract_strided_slice %68 {offsets = [0, 2, 0], sizes = [10, 8, 128], strides = [1, 1, 1]} : vector<10x10x128xbf16> to vector<10x8x128xbf16>
    %72 = vector.extract_strided_slice %69 {offsets = [0, 0, 0], sizes = [8, 8, 128], strides = [1, 1, 1]} : vector<10x8x128xbf16> to vector<8x8x128xbf16>
    %73 = vector.extract_strided_slice %70 {offsets = [0, 0, 0], sizes = [8, 8, 128], strides = [1, 1, 1]} : vector<10x8x128xbf16> to vector<8x8x128xbf16>
    %74 = vector.extract_strided_slice %71 {offsets = [0, 0, 0], sizes = [8, 8, 128], strides = [1, 1, 1]} : vector<10x8x128xbf16> to vector<8x8x128xbf16>
    %75 = vector.extract_strided_slice %69 {offsets = [1, 0, 0], sizes = [8, 8, 128], strides = [1, 1, 1]} : vector<10x8x128xbf16> to vector<8x8x128xbf16>
    %76 = vector.extract_strided_slice %70 {offsets = [1, 0, 0], sizes = [8, 8, 128], strides = [1, 1, 1]} : vector<10x8x128xbf16> to vector<8x8x128xbf16>
    %77 = vector.extract_strided_slice %71 {offsets = [1, 0, 0], sizes = [8, 8, 128], strides = [1, 1, 1]} : vector<10x8x128xbf16> to vector<8x8x128xbf16>
    %78 = vector.extract_strided_slice %69 {offsets = [2, 0, 0], sizes = [8, 8, 128], strides = [1, 1, 1]} : vector<10x8x128xbf16> to vector<8x8x128xbf16>
    %79 = vector.extract_strided_slice %70 {offsets = [2, 0, 0], sizes = [8, 8, 128], strides = [1, 1, 1]} : vector<10x8x128xbf16> to vector<8x8x128xbf16>
    %80 = vector.extract_strided_slice %71 {offsets = [2, 0, 0], sizes = [8, 8, 128], strides = [1, 1, 1]} : vector<10x8x128xbf16> to vector<8x8x128xbf16>
    %81 = tpu.concatenate %72, %73, %74, %75, %76, %77, %78, %79, %80 in 2 : vector<8x8x128xbf16>, vector<8x8x128xbf16>, vector<8x8x128xbf16>, vector<8x8x128xbf16>, vector<8x8x128xbf16>, vector<8x8x128xbf16>, vector<8x8x128xbf16>, vector<8x8x128xbf16>, vector<8x8x128xbf16> -> vector<8x8x1152xbf16>
    %82 = vector.shape_cast %81 : vector<8x8x1152xbf16> to vector<64x1152xbf16>
    %c2 = arith.constant 2 : index
    %c0_51 = arith.constant 0 : index
    %c0_52 = arith.constant 0 : index
    %83 = vector.load %arg3[%c2, %c0_51, %c0_52] : memref<9x1152x128xbf16, #tpu.memory_space<vmem>>, vector<1x1152x128xbf16>
    %84 = vector.shape_cast %83 : vector<1x1152x128xbf16> to vector<1152x128xbf16>
    %cst_53 = arith.constant dense<0.000000e+00> : vector<64x128xf32>
    %85 = tpu.matmul %82, %84, %cst_53 {dimension_numbers = #tpu.dot_dimension_numbers<[1], [0], [0], [1], [0, 0, 1, 1], [], []>} : vector<64x1152xbf16>, vector<1152x128xbf16>, vector<64x128xf32> -> vector<64x128xf32>
    %86 = vector.shape_cast %85 : vector<64x128xf32> to vector<8x8x128xf32>
    %c2_54 = arith.constant 2 : index
    %87 = memref.load %arg1[%c2_54] : memref<8xf32, #tpu.memory_space<smem>>
    %cst_55 = arith.constant 0.000000e+00 : f32
    %88 = vector.broadcast %cst_55 : f32 to vector<8x8x128xf32>
    %89 = arith.cmpf oge, %86, %88 : vector<8x8x128xf32>
    %90 = vector.broadcast %87 : f32 to vector<8x8x128xf32>
    %91 = arith.mulf %90, %86 : vector<8x8x128xf32>
    %92 = arith.select %89, %86, %91 : vector<8x8x128xi1>, vector<8x8x128xf32>
    %93 = arith.truncf %92 : vector<8x8x128xf32> to vector<8x8x128xbf16>
    %c1_56 = arith.constant 1 : index
    %c1_57 = arith.constant 1 : index
    %c0_58 = arith.constant 0 : index
    %94 = vector.load %arg5[%c1_56, %c1_57, %c0_58] : memref<10x10x128xbf16, #tpu.memory_space<vmem>>, vector<8x8x128xbf16>
    tpu.vector_store %arg5[%c1_56, %c1_57, %c0_58], %93 {strides = array<i32>} : memref<10x10x128xbf16, #tpu.memory_space<vmem>>, vector<8x8x128xbf16>,
    %c0_59 = arith.constant 0 : index
    %c0_60 = arith.constant 0 : index
    %c0_61 = arith.constant 0 : index
    %95 = vector.load %arg5[%c0_59, %c0_60, %c0_61] : memref<10x10x128xbf16, #tpu.memory_space<vmem>>, vector<10x10x128xbf16>
    %96 = vector.extract_strided_slice %95 {offsets = [0, 0, 0], sizes = [10, 8, 128], strides = [1, 1, 1]} : vector<10x10x128xbf16> to vector<10x8x128xbf16>
    %97 = vector.extract_strided_slice %95 {offsets = [0, 1, 0], sizes = [10, 8, 128], strides = [1, 1, 1]} : vector<10x10x128xbf16> to vector<10x8x128xbf16>
    %98 = vector.extract_strided_slice %95 {offsets = [0, 2, 0], sizes = [10, 8, 128], strides = [1, 1, 1]} : vector<10x10x128xbf16> to vector<10x8x128xbf16>
    %99 = vector.extract_strided_slice %96 {offsets = [0, 0, 0], sizes = [8, 8, 128], strides = [1, 1, 1]} : vector<10x8x128xbf16> to vector<8x8x128xbf16>
    %100 = vector.extract_strided_slice %97 {offsets = [0, 0, 0], sizes = [8, 8, 128], strides = [1, 1, 1]} : vector<10x8x128xbf16> to vector<8x8x128xbf16>
    %101 = vector.extract_strided_slice %98 {offsets = [0, 0, 0], sizes = [8, 8, 128], strides = [1, 1, 1]} : vector<10x8x128xbf16> to vector<8x8x128xbf16>
    %102 = vector.extract_strided_slice %96 {offsets = [1, 0, 0], sizes = [8, 8, 128], strides = [1, 1, 1]} : vector<10x8x128xbf16> to vector<8x8x128xbf16>
    %103 = vector.extract_strided_slice %97 {offsets = [1, 0, 0], sizes = [8, 8, 128], strides = [1, 1, 1]} : vector<10x8x128xbf16> to vector<8x8x128xbf16>
    %104 = vector.extract_strided_slice %98 {offsets = [1, 0, 0], sizes = [8, 8, 128], strides = [1, 1, 1]} : vector<10x8x128xbf16> to vector<8x8x128xbf16>
    %105 = vector.extract_strided_slice %96 {offsets = [2, 0, 0], sizes = [8, 8, 128], strides = [1, 1, 1]} : vector<10x8x128xbf16> to vector<8x8x128xbf16>
    %106 = vector.extract_strided_slice %97 {offsets = [2, 0, 0], sizes = [8, 8, 128], strides = [1, 1, 1]} : vector<10x8x128xbf16> to vector<8x8x128xbf16>
    %107 = vector.extract_strided_slice %98 {offsets = [2, 0, 0], sizes = [8, 8, 128], strides = [1, 1, 1]} : vector<10x8x128xbf16> to vector<8x8x128xbf16>
    %108 = tpu.concatenate %99, %100, %101, %102, %103, %104, %105, %106, %107 in 2 : vector<8x8x128xbf16>, vector<8x8x128xbf16>, vector<8x8x128xbf16>, vector<8x8x128xbf16>, vector<8x8x128xbf16>, vector<8x8x128xbf16>, vector<8x8x128xbf16>, vector<8x8x128xbf16>, vector<8x8x128xbf16> -> vector<8x8x1152xbf16>
    %109 = vector.shape_cast %108 : vector<8x8x1152xbf16> to vector<64x1152xbf16>
    %c3 = arith.constant 3 : index
    %c0_62 = arith.constant 0 : index
    %c0_63 = arith.constant 0 : index
    %110 = vector.load %arg3[%c3, %c0_62, %c0_63] : memref<9x1152x128xbf16, #tpu.memory_space<vmem>>, vector<1x1152x128xbf16>
    %111 = vector.shape_cast %110 : vector<1x1152x128xbf16> to vector<1152x128xbf16>
    %cst_64 = arith.constant dense<0.000000e+00> : vector<64x128xf32>
    %112 = tpu.matmul %109, %111, %cst_64 {dimension_numbers = #tpu.dot_dimension_numbers<[1], [0], [0], [1], [0, 0, 1, 1], [], []>} : vector<64x1152xbf16>, vector<1152x128xbf16>, vector<64x128xf32> -> vector<64x128xf32>
    %113 = vector.shape_cast %112 : vector<64x128xf32> to vector<8x8x128xf32>
    %c3_65 = arith.constant 3 : index
    %114 = memref.load %arg1[%c3_65] : memref<8xf32, #tpu.memory_space<smem>>
    %cst_66 = arith.constant 0.000000e+00 : f32
    %115 = vector.broadcast %cst_66 : f32 to vector<8x8x128xf32>
    %116 = arith.cmpf oge, %113, %115 : vector<8x8x128xf32>
    %117 = vector.broadcast %114 : f32 to vector<8x8x128xf32>
    %118 = arith.mulf %117, %113 : vector<8x8x128xf32>
    %119 = arith.select %116, %113, %118 : vector<8x8x128xi1>, vector<8x8x128xf32>
    %c0_67 = arith.constant 0 : index
    %c0_68 = arith.constant 0 : index
    %c0_69 = arith.constant 0 : index
    %120 = vector.load %arg6[%c0_67, %c0_68, %c0_69] : memref<8x8x128xf32, #tpu.memory_space<vmem>>, vector<8x8x128xf32>
    %121 = arith.addf %119, %120 : vector<8x8x128xf32>
    %c0_70 = arith.constant 0 : index
    %c0_71 = arith.constant 0 : index
    %c0_72 = arith.constant 0 : index
    %122 = vector.load %arg6[%c0_70, %c0_71, %c0_72] : memref<8x8x128xf32, #tpu.memory_space<vmem>>, vector<8x8x128xf32>
    tpu.vector_store %arg6[%c0_70, %c0_71, %c0_72], %121 {strides = array<i32>} : memref<8x8x128xf32, #tpu.memory_space<vmem>>, vector<8x8x128xf32>,
    %123 = arith.truncf %121 : vector<8x8x128xf32> to vector<8x8x128xbf16>
    %c1_73 = arith.constant 1 : index
    %c1_74 = arith.constant 1 : index
    %c0_75 = arith.constant 0 : index
    %124 = vector.load %arg5[%c1_73, %c1_74, %c0_75] : memref<10x10x128xbf16, #tpu.memory_space<vmem>>, vector<8x8x128xbf16>
    tpu.vector_store %arg5[%c1_73, %c1_74, %c0_75], %123 {strides = array<i32>} : memref<10x10x128xbf16, #tpu.memory_space<vmem>>, vector<8x8x128xbf16>,
    %c0_76 = arith.constant 0 : index
    %c0_77 = arith.constant 0 : index
    %c0_78 = arith.constant 0 : index
    %125 = vector.load %arg5[%c0_76, %c0_77, %c0_78] : memref<10x10x128xbf16, #tpu.memory_space<vmem>>, vector<10x10x128xbf16>
    %126 = vector.extract_strided_slice %125 {offsets = [0, 0, 0], sizes = [10, 8, 128], strides = [1, 1, 1]} : vector<10x10x128xbf16> to vector<10x8x128xbf16>
    %127 = vector.extract_strided_slice %125 {offsets = [0, 1, 0], sizes = [10, 8, 128], strides = [1, 1, 1]} : vector<10x10x128xbf16> to vector<10x8x128xbf16>
    %128 = vector.extract_strided_slice %125 {offsets = [0, 2, 0], sizes = [10, 8, 128], strides = [1, 1, 1]} : vector<10x10x128xbf16> to vector<10x8x128xbf16>
    %129 = vector.extract_strided_slice %126 {offsets = [0, 0, 0], sizes = [8, 8, 128], strides = [1, 1, 1]} : vector<10x8x128xbf16> to vector<8x8x128xbf16>
    %130 = vector.extract_strided_slice %127 {offsets = [0, 0, 0], sizes = [8, 8, 128], strides = [1, 1, 1]} : vector<10x8x128xbf16> to vector<8x8x128xbf16>
    %131 = vector.extract_strided_slice %128 {offsets = [0, 0, 0], sizes = [8, 8, 128], strides = [1, 1, 1]} : vector<10x8x128xbf16> to vector<8x8x128xbf16>
    %132 = vector.extract_strided_slice %126 {offsets = [1, 0, 0], sizes = [8, 8, 128], strides = [1, 1, 1]} : vector<10x8x128xbf16> to vector<8x8x128xbf16>
    %133 = vector.extract_strided_slice %127 {offsets = [1, 0, 0], sizes = [8, 8, 128], strides = [1, 1, 1]} : vector<10x8x128xbf16> to vector<8x8x128xbf16>
    %134 = vector.extract_strided_slice %128 {offsets = [1, 0, 0], sizes = [8, 8, 128], strides = [1, 1, 1]} : vector<10x8x128xbf16> to vector<8x8x128xbf16>
    %135 = vector.extract_strided_slice %126 {offsets = [2, 0, 0], sizes = [8, 8, 128], strides = [1, 1, 1]} : vector<10x8x128xbf16> to vector<8x8x128xbf16>
    %136 = vector.extract_strided_slice %127 {offsets = [2, 0, 0], sizes = [8, 8, 128], strides = [1, 1, 1]} : vector<10x8x128xbf16> to vector<8x8x128xbf16>
    %137 = vector.extract_strided_slice %128 {offsets = [2, 0, 0], sizes = [8, 8, 128], strides = [1, 1, 1]} : vector<10x8x128xbf16> to vector<8x8x128xbf16>
    %138 = tpu.concatenate %129, %130, %131, %132, %133, %134, %135, %136, %137 in 2 : vector<8x8x128xbf16>, vector<8x8x128xbf16>, vector<8x8x128xbf16>, vector<8x8x128xbf16>, vector<8x8x128xbf16>, vector<8x8x128xbf16>, vector<8x8x128xbf16>, vector<8x8x128xbf16>, vector<8x8x128xbf16> -> vector<8x8x1152xbf16>
    %139 = vector.shape_cast %138 : vector<8x8x1152xbf16> to vector<64x1152xbf16>
    %c4 = arith.constant 4 : index
    %c0_79 = arith.constant 0 : index
    %c0_80 = arith.constant 0 : index
    %140 = vector.load %arg3[%c4, %c0_79, %c0_80] : memref<9x1152x128xbf16, #tpu.memory_space<vmem>>, vector<1x1152x128xbf16>
    %141 = vector.shape_cast %140 : vector<1x1152x128xbf16> to vector<1152x128xbf16>
    %cst_81 = arith.constant dense<0.000000e+00> : vector<64x128xf32>
    %142 = tpu.matmul %139, %141, %cst_81 {dimension_numbers = #tpu.dot_dimension_numbers<[1], [0], [0], [1], [0, 0, 1, 1], [], []>} : vector<64x1152xbf16>, vector<1152x128xbf16>, vector<64x128xf32> -> vector<64x128xf32>
    %143 = vector.shape_cast %142 : vector<64x128xf32> to vector<8x8x128xf32>
    %c4_82 = arith.constant 4 : index
    %144 = memref.load %arg1[%c4_82] : memref<8xf32, #tpu.memory_space<smem>>
    %cst_83 = arith.constant 0.000000e+00 : f32
    %145 = vector.broadcast %cst_83 : f32 to vector<8x8x128xf32>
    %146 = arith.cmpf oge, %143, %145 : vector<8x8x128xf32>
    %147 = vector.broadcast %144 : f32 to vector<8x8x128xf32>
    %148 = arith.mulf %147, %143 : vector<8x8x128xf32>
    %149 = arith.select %146, %143, %148 : vector<8x8x128xi1>, vector<8x8x128xf32>
    %150 = arith.truncf %149 : vector<8x8x128xf32> to vector<8x8x128xbf16>
    %c1_84 = arith.constant 1 : index
    %c1_85 = arith.constant 1 : index
    %c0_86 = arith.constant 0 : index
    %151 = vector.load %arg5[%c1_84, %c1_85, %c0_86] : memref<10x10x128xbf16, #tpu.memory_space<vmem>>, vector<8x8x128xbf16>
    tpu.vector_store %arg5[%c1_84, %c1_85, %c0_86], %150 {strides = array<i32>} : memref<10x10x128xbf16, #tpu.memory_space<vmem>>, vector<8x8x128xbf16>,
    %c0_87 = arith.constant 0 : index
    %c0_88 = arith.constant 0 : index
    %c0_89 = arith.constant 0 : index
    %152 = vector.load %arg5[%c0_87, %c0_88, %c0_89] : memref<10x10x128xbf16, #tpu.memory_space<vmem>>, vector<10x10x128xbf16>
    %153 = vector.extract_strided_slice %152 {offsets = [0, 0, 0], sizes = [10, 8, 128], strides = [1, 1, 1]} : vector<10x10x128xbf16> to vector<10x8x128xbf16>
    %154 = vector.extract_strided_slice %152 {offsets = [0, 1, 0], sizes = [10, 8, 128], strides = [1, 1, 1]} : vector<10x10x128xbf16> to vector<10x8x128xbf16>
    %155 = vector.extract_strided_slice %152 {offsets = [0, 2, 0], sizes = [10, 8, 128], strides = [1, 1, 1]} : vector<10x10x128xbf16> to vector<10x8x128xbf16>
    %156 = vector.extract_strided_slice %153 {offsets = [0, 0, 0], sizes = [8, 8, 128], strides = [1, 1, 1]} : vector<10x8x128xbf16> to vector<8x8x128xbf16>
    %157 = vector.extract_strided_slice %154 {offsets = [0, 0, 0], sizes = [8, 8, 128], strides = [1, 1, 1]} : vector<10x8x128xbf16> to vector<8x8x128xbf16>
    %158 = vector.extract_strided_slice %155 {offsets = [0, 0, 0], sizes = [8, 8, 128], strides = [1, 1, 1]} : vector<10x8x128xbf16> to vector<8x8x128xbf16>
    %159 = vector.extract_strided_slice %153 {offsets = [1, 0, 0], sizes = [8, 8, 128], strides = [1, 1, 1]} : vector<10x8x128xbf16> to vector<8x8x128xbf16>
    %160 = vector.extract_strided_slice %154 {offsets = [1, 0, 0], sizes = [8, 8, 128], strides = [1, 1, 1]} : vector<10x8x128xbf16> to vector<8x8x128xbf16>
    %161 = vector.extract_strided_slice %155 {offsets = [1, 0, 0], sizes = [8, 8, 128], strides = [1, 1, 1]} : vector<10x8x128xbf16> to vector<8x8x128xbf16>
    %162 = vector.extract_strided_slice %153 {offsets = [2, 0, 0], sizes = [8, 8, 128], strides = [1, 1, 1]} : vector<10x8x128xbf16> to vector<8x8x128xbf16>
    %163 = vector.extract_strided_slice %154 {offsets = [2, 0, 0], sizes = [8, 8, 128], strides = [1, 1, 1]} : vector<10x8x128xbf16> to vector<8x8x128xbf16>
    %164 = vector.extract_strided_slice %155 {offsets = [2, 0, 0], sizes = [8, 8, 128], strides = [1, 1, 1]} : vector<10x8x128xbf16> to vector<8x8x128xbf16>
    %165 = tpu.concatenate %156, %157, %158, %159, %160, %161, %162, %163, %164 in 2 : vector<8x8x128xbf16>, vector<8x8x128xbf16>, vector<8x8x128xbf16>, vector<8x8x128xbf16>, vector<8x8x128xbf16>, vector<8x8x128xbf16>, vector<8x8x128xbf16>, vector<8x8x128xbf16>, vector<8x8x128xbf16> -> vector<8x8x1152xbf16>
    %166 = vector.shape_cast %165 : vector<8x8x1152xbf16> to vector<64x1152xbf16>
    %c5 = arith.constant 5 : index
    %c0_90 = arith.constant 0 : index
    %c0_91 = arith.constant 0 : index
    %167 = vector.load %arg3[%c5, %c0_90, %c0_91] : memref<9x1152x128xbf16, #tpu.memory_space<vmem>>, vector<1x1152x128xbf16>
    %168 = vector.shape_cast %167 : vector<1x1152x128xbf16> to vector<1152x128xbf16>
    %cst_92 = arith.constant dense<0.000000e+00> : vector<64x128xf32>
    %169 = tpu.matmul %166, %168, %cst_92 {dimension_numbers = #tpu.dot_dimension_numbers<[1], [0], [0], [1], [0, 0, 1, 1], [], []>} : vector<64x1152xbf16>, vector<1152x128xbf16>, vector<64x128xf32> -> vector<64x128xf32>
    %170 = vector.shape_cast %169 : vector<64x128xf32> to vector<8x8x128xf32>
    %c5_93 = arith.constant 5 : index
    %171 = memref.load %arg1[%c5_93] : memref<8xf32, #tpu.memory_space<smem>>
    %cst_94 = arith.constant 0.000000e+00 : f32
    %172 = vector.broadcast %cst_94 : f32 to vector<8x8x128xf32>
    %173 = arith.cmpf oge, %170, %172 : vector<8x8x128xf32>
    %174 = vector.broadcast %171 : f32 to vector<8x8x128xf32>
    %175 = arith.mulf %174, %170 : vector<8x8x128xf32>
    %176 = arith.select %173, %170, %175 : vector<8x8x128xi1>, vector<8x8x128xf32>
    %c0_95 = arith.constant 0 : index
    %c0_96 = arith.constant 0 : index
    %c0_97 = arith.constant 0 : index
    %177 = vector.load %arg6[%c0_95, %c0_96, %c0_97] : memref<8x8x128xf32, #tpu.memory_space<vmem>>, vector<8x8x128xf32>
    %178 = arith.addf %176, %177 : vector<8x8x128xf32>
    %c0_98 = arith.constant 0 : index
    %c0_99 = arith.constant 0 : index
    %c0_100 = arith.constant 0 : index
    %179 = vector.load %arg6[%c0_98, %c0_99, %c0_100] : memref<8x8x128xf32, #tpu.memory_space<vmem>>, vector<8x8x128xf32>
    tpu.vector_store %arg6[%c0_98, %c0_99, %c0_100], %178 {strides = array<i32>} : memref<8x8x128xf32, #tpu.memory_space<vmem>>, vector<8x8x128xf32>,
    %180 = arith.truncf %178 : vector<8x8x128xf32> to vector<8x8x128xbf16>
    %c1_101 = arith.constant 1 : index
    %c1_102 = arith.constant 1 : index
    %c0_103 = arith.constant 0 : index
    %181 = vector.load %arg5[%c1_101, %c1_102, %c0_103] : memref<10x10x128xbf16, #tpu.memory_space<vmem>>, vector<8x8x128xbf16>
    tpu.vector_store %arg5[%c1_101, %c1_102, %c0_103], %180 {strides = array<i32>} : memref<10x10x128xbf16, #tpu.memory_space<vmem>>, vector<8x8x128xbf16>,
    %c0_104 = arith.constant 0 : index
    %c0_105 = arith.constant 0 : index
    %c0_106 = arith.constant 0 : index
    %182 = vector.load %arg5[%c0_104, %c0_105, %c0_106] : memref<10x10x128xbf16, #tpu.memory_space<vmem>>, vector<10x10x128xbf16>
    %183 = vector.extract_strided_slice %182 {offsets = [0, 0, 0], sizes = [10, 8, 128], strides = [1, 1, 1]} : vector<10x10x128xbf16> to vector<10x8x128xbf16>
    %184 = vector.extract_strided_slice %182 {offsets = [0, 1, 0], sizes = [10, 8, 128], strides = [1, 1, 1]} : vector<10x10x128xbf16> to vector<10x8x128xbf16>
    %185 = vector.extract_strided_slice %182 {offsets = [0, 2, 0], sizes = [10, 8, 128], strides = [1, 1, 1]} : vector<10x10x128xbf16> to vector<10x8x128xbf16>
    %186 = vector.extract_strided_slice %183 {offsets = [0, 0, 0], sizes = [8, 8, 128], strides = [1, 1, 1]} : vector<10x8x128xbf16> to vector<8x8x128xbf16>
    %187 = vector.extract_strided_slice %184 {offsets = [0, 0, 0], sizes = [8, 8, 128], strides = [1, 1, 1]} : vector<10x8x128xbf16> to vector<8x8x128xbf16>
    %188 = vector.extract_strided_slice %185 {offsets = [0, 0, 0], sizes = [8, 8, 128], strides = [1, 1, 1]} : vector<10x8x128xbf16> to vector<8x8x128xbf16>
    %189 = vector.extract_strided_slice %183 {offsets = [1, 0, 0], sizes = [8, 8, 128], strides = [1, 1, 1]} : vector<10x8x128xbf16> to vector<8x8x128xbf16>
    %190 = vector.extract_strided_slice %184 {offsets = [1, 0, 0], sizes = [8, 8, 128], strides = [1, 1, 1]} : vector<10x8x128xbf16> to vector<8x8x128xbf16>
    %191 = vector.extract_strided_slice %185 {offsets = [1, 0, 0], sizes = [8, 8, 128], strides = [1, 1, 1]} : vector<10x8x128xbf16> to vector<8x8x128xbf16>
    %192 = vector.extract_strided_slice %183 {offsets = [2, 0, 0], sizes = [8, 8, 128], strides = [1, 1, 1]} : vector<10x8x128xbf16> to vector<8x8x128xbf16>
    %193 = vector.extract_strided_slice %184 {offsets = [2, 0, 0], sizes = [8, 8, 128], strides = [1, 1, 1]} : vector<10x8x128xbf16> to vector<8x8x128xbf16>
    %194 = vector.extract_strided_slice %185 {offsets = [2, 0, 0], sizes = [8, 8, 128], strides = [1, 1, 1]} : vector<10x8x128xbf16> to vector<8x8x128xbf16>
    %195 = tpu.concatenate %186, %187, %188, %189, %190, %191, %192, %193, %194 in 2 : vector<8x8x128xbf16>, vector<8x8x128xbf16>, vector<8x8x128xbf16>, vector<8x8x128xbf16>, vector<8x8x128xbf16>, vector<8x8x128xbf16>, vector<8x8x128xbf16>, vector<8x8x128xbf16>, vector<8x8x128xbf16> -> vector<8x8x1152xbf16>
    %196 = vector.shape_cast %195 : vector<8x8x1152xbf16> to vector<64x1152xbf16>
    %c6 = arith.constant 6 : index
    %c0_107 = arith.constant 0 : index
    %c0_108 = arith.constant 0 : index
    %197 = vector.load %arg3[%c6, %c0_107, %c0_108] : memref<9x1152x128xbf16, #tpu.memory_space<vmem>>, vector<1x1152x128xbf16>
    %198 = vector.shape_cast %197 : vector<1x1152x128xbf16> to vector<1152x128xbf16>
    %cst_109 = arith.constant dense<0.000000e+00> : vector<64x128xf32>
    %199 = tpu.matmul %196, %198, %cst_109 {dimension_numbers = #tpu.dot_dimension_numbers<[1], [0], [0], [1], [0, 0, 1, 1], [], []>} : vector<64x1152xbf16>, vector<1152x128xbf16>, vector<64x128xf32> -> vector<64x128xf32>
    %200 = vector.shape_cast %199 : vector<64x128xf32> to vector<8x8x128xf32>
    %c6_110 = arith.constant 6 : index
    %201 = memref.load %arg1[%c6_110] : memref<8xf32, #tpu.memory_space<smem>>
    %cst_111 = arith.constant 0.000000e+00 : f32
    %202 = vector.broadcast %cst_111 : f32 to vector<8x8x128xf32>
    %203 = arith.cmpf oge, %200, %202 : vector<8x8x128xf32>
    %204 = vector.broadcast %201 : f32 to vector<8x8x128xf32>
    %205 = arith.mulf %204, %200 : vector<8x8x128xf32>
    %206 = arith.select %203, %200, %205 : vector<8x8x128xi1>, vector<8x8x128xf32>
    %207 = arith.truncf %206 : vector<8x8x128xf32> to vector<8x8x128xbf16>
    %c1_112 = arith.constant 1 : index
    %c1_113 = arith.constant 1 : index
    %c0_114 = arith.constant 0 : index
    %208 = vector.load %arg5[%c1_112, %c1_113, %c0_114] : memref<10x10x128xbf16, #tpu.memory_space<vmem>>, vector<8x8x128xbf16>
    tpu.vector_store %arg5[%c1_112, %c1_113, %c0_114], %207 {strides = array<i32>} : memref<10x10x128xbf16, #tpu.memory_space<vmem>>, vector<8x8x128xbf16>,
    %c0_115 = arith.constant 0 : index
    %c0_116 = arith.constant 0 : index
    %c0_117 = arith.constant 0 : index
    %209 = vector.load %arg5[%c0_115, %c0_116, %c0_117] : memref<10x10x128xbf16, #tpu.memory_space<vmem>>, vector<10x10x128xbf16>
    %210 = vector.extract_strided_slice %209 {offsets = [0, 0, 0], sizes = [10, 8, 128], strides = [1, 1, 1]} : vector<10x10x128xbf16> to vector<10x8x128xbf16>
    %211 = vector.extract_strided_slice %209 {offsets = [0, 1, 0], sizes = [10, 8, 128], strides = [1, 1, 1]} : vector<10x10x128xbf16> to vector<10x8x128xbf16>
    %212 = vector.extract_strided_slice %209 {offsets = [0, 2, 0], sizes = [10, 8, 128], strides = [1, 1, 1]} : vector<10x10x128xbf16> to vector<10x8x128xbf16>
    %213 = vector.extract_strided_slice %210 {offsets = [0, 0, 0], sizes = [8, 8, 128], strides = [1, 1, 1]} : vector<10x8x128xbf16> to vector<8x8x128xbf16>
    %214 = vector.extract_strided_slice %211 {offsets = [0, 0, 0], sizes = [8, 8, 128], strides = [1, 1, 1]} : vector<10x8x128xbf16> to vector<8x8x128xbf16>
    %215 = vector.extract_strided_slice %212 {offsets = [0, 0, 0], sizes = [8, 8, 128], strides = [1, 1, 1]} : vector<10x8x128xbf16> to vector<8x8x128xbf16>
    %216 = vector.extract_strided_slice %210 {offsets = [1, 0, 0], sizes = [8, 8, 128], strides = [1, 1, 1]} : vector<10x8x128xbf16> to vector<8x8x128xbf16>
    %217 = vector.extract_strided_slice %211 {offsets = [1, 0, 0], sizes = [8, 8, 128], strides = [1, 1, 1]} : vector<10x8x128xbf16> to vector<8x8x128xbf16>
    %218 = vector.extract_strided_slice %212 {offsets = [1, 0, 0], sizes = [8, 8, 128], strides = [1, 1, 1]} : vector<10x8x128xbf16> to vector<8x8x128xbf16>
    %219 = vector.extract_strided_slice %210 {offsets = [2, 0, 0], sizes = [8, 8, 128], strides = [1, 1, 1]} : vector<10x8x128xbf16> to vector<8x8x128xbf16>
    %220 = vector.extract_strided_slice %211 {offsets = [2, 0, 0], sizes = [8, 8, 128], strides = [1, 1, 1]} : vector<10x8x128xbf16> to vector<8x8x128xbf16>
    %221 = vector.extract_strided_slice %212 {offsets = [2, 0, 0], sizes = [8, 8, 128], strides = [1, 1, 1]} : vector<10x8x128xbf16> to vector<8x8x128xbf16>
    %222 = tpu.concatenate %213, %214, %215, %216, %217, %218, %219, %220, %221 in 2 : vector<8x8x128xbf16>, vector<8x8x128xbf16>, vector<8x8x128xbf16>, vector<8x8x128xbf16>, vector<8x8x128xbf16>, vector<8x8x128xbf16>, vector<8x8x128xbf16>, vector<8x8x128xbf16>, vector<8x8x128xbf16> -> vector<8x8x1152xbf16>
    %223 = vector.shape_cast %222 : vector<8x8x1152xbf16> to vector<64x1152xbf16>
    %c7 = arith.constant 7 : index
    %c0_118 = arith.constant 0 : index
    %c0_119 = arith.constant 0 : index
    %224 = vector.load %arg3[%c7, %c0_118, %c0_119] : memref<9x1152x128xbf16, #tpu.memory_space<vmem>>, vector<1x1152x128xbf16>
    %225 = vector.shape_cast %224 : vector<1x1152x128xbf16> to vector<1152x128xbf16>
    %cst_120 = arith.constant dense<0.000000e+00> : vector<64x128xf32>
    %226 = tpu.matmul %223, %225, %cst_120 {dimension_numbers = #tpu.dot_dimension_numbers<[1], [0], [0], [1], [0, 0, 1, 1], [], []>} : vector<64x1152xbf16>, vector<1152x128xbf16>, vector<64x128xf32> -> vector<64x128xf32>
    %227 = vector.shape_cast %226 : vector<64x128xf32> to vector<8x8x128xf32>
    %c7_121 = arith.constant 7 : index
    %228 = memref.load %arg1[%c7_121] : memref<8xf32, #tpu.memory_space<smem>>
    %cst_122 = arith.constant 0.000000e+00 : f32
    %229 = vector.broadcast %cst_122 : f32 to vector<8x8x128xf32>
    %230 = arith.cmpf oge, %227, %229 : vector<8x8x128xf32>
    %231 = vector.broadcast %228 : f32 to vector<8x8x128xf32>
    %232 = arith.mulf %231, %227 : vector<8x8x128xf32>
    %233 = arith.select %230, %227, %232 : vector<8x8x128xi1>, vector<8x8x128xf32>
    %c0_123 = arith.constant 0 : index
    %c0_124 = arith.constant 0 : index
    %c0_125 = arith.constant 0 : index
    %234 = vector.load %arg6[%c0_123, %c0_124, %c0_125] : memref<8x8x128xf32, #tpu.memory_space<vmem>>, vector<8x8x128xf32>
    %235 = arith.addf %233, %234 : vector<8x8x128xf32>
    %236 = arith.truncf %235 : vector<8x8x128xf32> to vector<8x8x128xbf16>
    %c1_126 = arith.constant 1 : index
    %c1_127 = arith.constant 1 : index
    %c0_128 = arith.constant 0 : index
    %237 = vector.load %arg5[%c1_126, %c1_127, %c0_128] : memref<10x10x128xbf16, #tpu.memory_space<vmem>>, vector<8x8x128xbf16>
    tpu.vector_store %arg5[%c1_126, %c1_127, %c0_128], %236 {strides = array<i32>} : memref<10x10x128xbf16, #tpu.memory_space<vmem>>, vector<8x8x128xbf16>,
    %c0_129 = arith.constant 0 : index
    %c0_130 = arith.constant 0 : index
    %c0_131 = arith.constant 0 : index
    %238 = vector.load %arg5[%c0_129, %c0_130, %c0_131] : memref<10x10x128xbf16, #tpu.memory_space<vmem>>, vector<10x10x128xbf16>
    %239 = vector.extract_strided_slice %238 {offsets = [0, 0, 0], sizes = [10, 8, 128], strides = [1, 1, 1]} : vector<10x10x128xbf16> to vector<10x8x128xbf16>
    %240 = vector.extract_strided_slice %238 {offsets = [0, 1, 0], sizes = [10, 8, 128], strides = [1, 1, 1]} : vector<10x10x128xbf16> to vector<10x8x128xbf16>
    %241 = vector.extract_strided_slice %238 {offsets = [0, 2, 0], sizes = [10, 8, 128], strides = [1, 1, 1]} : vector<10x10x128xbf16> to vector<10x8x128xbf16>
    %242 = vector.extract_strided_slice %239 {offsets = [0, 0, 0], sizes = [8, 8, 128], strides = [1, 1, 1]} : vector<10x8x128xbf16> to vector<8x8x128xbf16>
    %243 = vector.extract_strided_slice %240 {offsets = [0, 0, 0], sizes = [8, 8, 128], strides = [1, 1, 1]} : vector<10x8x128xbf16> to vector<8x8x128xbf16>
    %244 = vector.extract_strided_slice %241 {offsets = [0, 0, 0], sizes = [8, 8, 128], strides = [1, 1, 1]} : vector<10x8x128xbf16> to vector<8x8x128xbf16>
    %245 = vector.extract_strided_slice %239 {offsets = [1, 0, 0], sizes = [8, 8, 128], strides = [1, 1, 1]} : vector<10x8x128xbf16> to vector<8x8x128xbf16>
    %246 = vector.extract_strided_slice %240 {offsets = [1, 0, 0], sizes = [8, 8, 128], strides = [1, 1, 1]} : vector<10x8x128xbf16> to vector<8x8x128xbf16>
    %247 = vector.extract_strided_slice %241 {offsets = [1, 0, 0], sizes = [8, 8, 128], strides = [1, 1, 1]} : vector<10x8x128xbf16> to vector<8x8x128xbf16>
    %248 = vector.extract_strided_slice %239 {offsets = [2, 0, 0], sizes = [8, 8, 128], strides = [1, 1, 1]} : vector<10x8x128xbf16> to vector<8x8x128xbf16>
    %249 = vector.extract_strided_slice %240 {offsets = [2, 0, 0], sizes = [8, 8, 128], strides = [1, 1, 1]} : vector<10x8x128xbf16> to vector<8x8x128xbf16>
    %250 = vector.extract_strided_slice %241 {offsets = [2, 0, 0], sizes = [8, 8, 128], strides = [1, 1, 1]} : vector<10x8x128xbf16> to vector<8x8x128xbf16>
    %251 = tpu.concatenate %242, %243, %244, %245, %246, %247, %248, %249, %250 in 2 : vector<8x8x128xbf16>, vector<8x8x128xbf16>, vector<8x8x128xbf16>, vector<8x8x128xbf16>, vector<8x8x128xbf16>, vector<8x8x128xbf16>, vector<8x8x128xbf16>, vector<8x8x128xbf16>, vector<8x8x128xbf16> -> vector<8x8x1152xbf16>
    %252 = vector.shape_cast %251 : vector<8x8x1152xbf16> to vector<64x1152xbf16>
    %c8 = arith.constant 8 : index
    %c0_132 = arith.constant 0 : index
    %c0_133 = arith.constant 0 : index
    %253 = vector.load %arg3[%c8, %c0_132, %c0_133] : memref<9x1152x128xbf16, #tpu.memory_space<vmem>>, vector<1x1152x128xbf16>
    %254 = vector.shape_cast %253 : vector<1x1152x128xbf16> to vector<1152x128xbf16>
    %cst_134 = arith.constant dense<0.000000e+00> : vector<64x128xf32>
    %255 = tpu.matmul %252, %254, %cst_134 {dimension_numbers = #tpu.dot_dimension_numbers<[1], [0], [0], [1], [0, 0, 1, 1], [], []>} : vector<64x1152xbf16>, vector<1152x128xbf16>, vector<64x128xf32> -> vector<64x128xf32>
    %256 = vector.shape_cast %255 : vector<64x128xf32> to vector<8x8x128xf32>
    %c0_135 = arith.constant 0 : index
    %c0_136 = arith.constant 0 : index
    %c0_137 = arith.constant 0 : index
    %c0_138 = arith.constant 0 : index
    %257 = vector.load %arg2[%c0_135, %c0_136, %c0_137, %c0_138] : memref<1x8x8x128xf32, #tpu.memory_space<vmem>>, vector<1x8x8x128xf32>
    %258 = vector.shape_cast %257 : vector<1x8x8x128xf32> to vector<8x8x128xf32>
    %259 = arith.addf %256, %258 : vector<8x8x128xf32>
    %c0_139 = arith.constant 0 : index
    %c0_140 = arith.constant 0 : index
    %c0_141 = arith.constant 0 : index
    %c0_142 = arith.constant 0 : index
    %260 = vector.load %arg4[%c0_139, %c0_140, %c0_141, %c0_142] : memref<1x8x8x128xf32, #tpu.memory_space<vmem>>, vector<1x8x8x128xf32>
    %261 = vector.shape_cast %260 : vector<1x8x8x128xf32> to vector<8x8x128xf32>
    %262 = vector.shape_cast %259 : vector<8x8x128xf32> to vector<1x8x8x128xf32>
    tpu.vector_store %arg4[%c0_139, %c0_140, %c0_141, %c0_142], %262 {strides = array<i32>} : memref<1x8x8x128xf32, #tpu.memory_space<vmem>>, vector<1x8x8x128xf32>,
    return
  }
  func.func @transform_0(%arg0: i32) -> i32 {
    %c0_i32 = arith.constant 0 : i32
    %c0_i32_0 = arith.constant 0 : i32
    return %c0_i32 : i32
  }
  func.func @transform_1(%arg0: i32) -> (i32, i32, i32, i32) {
    %c0_i32 = arith.constant 0 : i32
    %c0_i32_0 = arith.constant 0 : i32
    %c0_i32_1 = arith.constant 0 : i32
    %c0_i32_2 = arith.constant 0 : i32
    return %arg0, %c0_i32, %c0_i32_0, %c0_i32_1 : i32, i32, i32, i32
  }
  func.func @transform_2(%arg0: i32) -> (i32, i32, i32) {
    %c0_i32 = arith.constant 0 : i32
    %c0_i32_0 = arith.constant 0 : i32
    %c0_i32_1 = arith.constant 0 : i32
    %c0_i32_2 = arith.constant 0 : i32
    return %c0_i32, %c0_i32_0, %c0_i32_1 : i32, i32, i32
  }
  func.func @transform_3(%arg0: i32) -> (i32, i32, i32, i32) {
    %c0_i32 = arith.constant 0 : i32
    %c0_i32_0 = arith.constant 0 : i32
    %c0_i32_1 = arith.constant 0 : i32
    %c0_i32_2 = arith.constant 0 : i32
    return %arg0, %c0_i32, %c0_i32_0, %c0_i32_1 : i32, i32, i32, i32
  }
}

</mosaic_0001>

<llo_original>
// kernel: tpu_custom_call.1
$region0: #{tpu_custom_call.1}
  #allocation0 [shape = 'u32[]', space=smem, size = 0x4, offset = 0x4, fixed_abs, tag = 'smem constant byte address 0x4 - core index']
  #allocation1 [shape = 'u32[72,128]{1,0:T(1,128)}', space=vmem, size = 0x9000, scoped, tag = 'internal scratch']
  #allocation2 [shape = 'bf16[10,10,128]{2,1,0:T(8,128)(2,1)}', space=vmem, size = 0xa000, scoped, tag = 'scratch operand']
  #allocation3 [shape = 'f32[8,8,128]{2,1,0:T(8,128)}', space=vmem, size = 0x8000, scoped, tag = 'scratch operand']
  %s0 = inlined_call_operand.hbm [shape: f32[8], index: 0, kind: input, shape index: {}]
  %s1 = inlined_call_operand.hbm [shape: f32[2,8,8,128], index: 1, kind: input, shape index: {}]
  %s2 = inlined_call_operand.hbm [shape: bf16[9,1152,128], index: 2, kind: input, shape index: {}]
  %s3 = inlined_call_operand.hbm [shape: f32[2,8,8,128], index: 3, kind: output, shape index: {}]
  %s4 = sld [smem:[#allocation0]]
  $region57: #{tpu_custom_call.1} parent=0
    _
  %s6 = ssub.s32 1, %s4
  %s7 = scalar_select 0, %s6, %s4
  $region1: #{tpu_custom_call.1} parent=0
    #allocation4 [shape = 'u8[512]{0}', space=smem, size = 0x200, scoped, tag = 'input window, operand 0, single buffered']
    #allocation5 [shape = 's32[2]{0}', space=sflag, size = 0x8, scoped, tag = 'scoped memory for tpu_custom_call.1']
    #allocation6 [shape = 's32[2]{0}', space=sflag, size = 0x8, scoped, tag = 'scoped memory for tpu_custom_call.1']
    #allocation7 [shape = 's32[2]{0}', space=sflag, size = 0x8, scoped, tag = 'scoped memory for tpu_custom_call.1']
    #allocation8 [shape = 'u8[65536]{0}', space=vmem, size = 0x10000, scoped, tag = 'input window, operand 1']
    #allocation9 [shape = 'u8[2654208]{0}', space=vmem, size = 0x288000, scoped, tag = 'input window, operand 2, single buffered']
    #allocation10 [shape = 's32[1]{0}', space=sflag, size = 0x4, scoped, tag = 'scoped memory for tpu_custom_call.1']
    #allocation11 [shape = 'u8[65536]{0}', space=vmem, size = 0x10000, scoped, tag = 'output window, operand 0']
    %8 = vsyncpa [#allocation7], 0
    %9 = vsyncpa [#allocation5], 0
    %s10 = scalar_lea.sflag [#allocation5], 1
    %11 = vsyncpa %s10, 0
    %12 = vsyncpa [#allocation10], 0
    %13 = vsyncpa [#allocation6], 0
    %s14 = scalar_lea.sflag [#allocation6], 1
    %15 = vsyncpa %s14, 0
    loop: start=0, step=1, limit=4
    $region2: #{tpu_custom_call.1} parent=1 // loop_pre_header
      _
    $region3: #{tpu_custom_call.1} parent=1 // loop_header
      %s17 = sphi 0, %s21
      %p18 = scmp.ge.s32.totalorder %s17, 4
      %s25 = sphi 0, %s25
      %s27 = sphi 0, %s25
      %s28 = sphi 0, %s27
      %s42 = sphi 0, %s28
      %s48 = sphi 0, %s50
      %s51 = sphi 0, %s48
      %s52 = sphi 0, %s51
      %s68 = sphi 0, %s52
      %s72 = sphi 0, %s72
      %s74 = sphi 0, %s72
      %s75 = sphi 0, %s74
      %s89 = sphi 0, %s75
      %s95 = sphi 0, %s97
      %s98 = sphi 0, %s95
      %s99 = sphi 0, %s98
      %s115 = sphi 0, %s99
    $region4: #{tpu_custom_call.1} parent=1 // loop_header_branch
      %20 = sbr.rel (%p18) target = $region8
    $region5: #{tpu_custom_call.1} parent=1 // loop_body
      %s22 = ssub.s32 %s17, 1
      %s23 = ssub.s32 %s17, 2
      %s24 = sadd.s32 %s17, 1
      %s26 = sadd.s32 %s25, 1
      %p29 = scmp.eq.s32.totalorder %s17, 1
      %p30 = scmp.ne.s32.totalorder %s25, %s27
      %p31 = scmp.eq.s32.totalorder %s17, 0
      %p32 = por %p30, %p31
      %p33 = scmp.ne.s32.totalorder %s25, %s27
      %p34 = scmp.eq.s32.totalorder %s22, 1
      %p35 = por %p33, %p34
      %p36 = scmp.ne.s32.totalorder %s27, %s28
      %p37 = scmp.eq.s32.totalorder %s22, 0
      %p38 = por %p36, %p37
      %p39 = scmp.ne.s32.totalorder %s27, %s28
      %p40 = scmp.eq.s32.totalorder %s23, 1
      %p41 = por %p39, %p40
      %p43 = scmp.ne.s32.totalorder %s28, %s42
      %p44 = scmp.eq.s32.totalorder %s23, 0
      %p45 = por %p43, %p44
      %s46 = ssub.s32 %s17, %s24
      %p47 = scmp.eq.s32.totalorder %s46, 0
      %s49 = sadd.s32 %s48, 1
      %s50 = scalar_select %p47, %s48, %s49
      %p53 = pneg %p47
      %p54 = scmp.eq.s32.totalorder %s17, 1
      %p55 = por %p53, %p54
      %p56 = scmp.ne.s32.totalorder %s48, %s51
      %p57 = scmp.eq.s32.totalorder %s17, 0
      %p58 = por %p56, %p57
      %p59 = scmp.ne.s32.totalorder %s48, %s51
      %p60 = scmp.eq.s32.totalorder %s22, 1
      %p61 = por %p59, %p60
      %p62 = scmp.ne.s32.totalorder %s51, %s52
      %p63 = scmp.eq.s32.totalorder %s22, 0
      %p64 = por %p62, %p63
      %p65 = scmp.ne.s32.totalorder %s51, %s52
      %p66 = scmp.eq.s32.totalorder %s23, 1
      %p67 = por %p65, %p66
      %p69 = scmp.ne.s32.totalorder %s52, %s68
      %p70 = scmp.eq.s32.totalorder %s23, 0
      %p71 = por %p69, %p70
      %s73 = sadd.s32 %s72, 1
      %p76 = scmp.eq.s32.totalorder %s17, 1
      %p77 = scmp.ne.s32.totalorder %s72, %s74
      %p78 = scmp.eq.s32.totalorder %s17, 0
      %p79 = por %p77, %p78
      %p80 = scmp.ne.s32.totalorder %s72, %s74
      %p81 = scmp.eq.s32.totalorder %s22, 1
      %p82 = por %p80, %p81
      %p83 = scmp.ne.s32.totalorder %s74, %s75
      %p84 = scmp.eq.s32.totalorder %s22, 0
      %p85 = por %p83, %p84
      %p86 = scmp.ne.s32.totalorder %s74, %s75
      %p87 = scmp.eq.s32.totalorder %s23, 1
      %p88 = por %p86, %p87
      %p90 = scmp.ne.s32.totalorder %s75, %s89
      %p91 = scmp.eq.s32.totalorder %s23, 0
      %p92 = por %p90, %p91
      %s93 = ssub.s32 %s17, %s24
      %p94 = scmp.eq.s32.totalorder %s93, 0
      %s96 = sadd.s32 %s95, 1
      %s97 = scalar_select %p94, %s95, %s96
      %p100 = pneg %p94
      %p101 = scmp.eq.s32.totalorder %s17, 1
      %p102 = por %p100, %p101
      %p103 = scmp.ne.s32.totalorder %s95, %s98
      %p104 = scmp.eq.s32.totalorder %s17, 0
      %p105 = por %p103, %p104
      %p106 = scmp.ne.s32.totalorder %s95, %s98
      %p107 = scmp.eq.s32.totalorder %s22, 1
      %p108 = por %p106, %p107
      %p109 = scmp.ne.s32.totalorder %s98, %s99
      %p110 = scmp.eq.s32.totalorder %s22, 0
      %p111 = por %p109, %p110
      %p112 = scmp.ne.s32.totalorder %s98, %s99
      %p113 = scmp.eq.s32.totalorder %s23, 1
      %p114 = por %p112, %p113
      %p116 = scmp.ne.s32.totalorder %s99, %s115
      %p117 = scmp.eq.s32.totalorder %s23, 0
      %p118 = por %p116, %p117
      %p119 = scmp.le.s32.totalorder 1, %s17
      %p120 = scmp.lt.s32.totalorder %s17, 3
      %p121 = pnand %p119, %p120
      %p122 = pneg %p121
      // Predicated region
      $region9: #{tpu_custom_call.1} parent=5 // pred_check
        _
      $region10: #{tpu_custom_call.1} parent=5 // pred_check_branch
        %124 = sbr.rel (%p121) target = $region12
      $region11: #{tpu_custom_call.1} parent=5 // pred_region
        %s125 = ssub.s32 %s17, 1
        // Predicated region
        $region13: #{tpu_custom_call.1} parent=11 // pred_check
          %p126 = pneg %p38
        $region14: #{tpu_custom_call.1} parent=11 // pred_check_branch
          %128 = sbr.rel (%p126) target = $region16
        $region15: #{tpu_custom_call.1} parent=11 // pred_region
          %130 = vsyncadd [#allocation7], 0
          %s132 = sshll.u32 %s0, 4
          %s133 = int_to_ptr.hbm [resolvable:$true] %s132
          %135 = dma.hbm_to_smem %s133, 16, [#allocation4], [#allocation7]
        $region16: #{tpu_custom_call.1} parent=11 // pred_fallthru
          _
        // Predicated region
        $region17: #{tpu_custom_call.1} parent=11 // pred_check
          %p136 = pneg %p85
        $region18: #{tpu_custom_call.1} parent=11 // pred_check_branch
          %138 = sbr.rel (%p136) target = $region20
        $region19: #{tpu_custom_call.1} parent=11 // pred_region
          %140 = vsyncadd [#allocation10], 0
          %s141 = sshll.u32 %s2, 4
          %s142 = int_to_ptr.hbm [resolvable:$true] %s141
          %s143 = sshll.u32 [#allocation9], 4
          %s144 = int_to_ptr.vmem [resolvable:$true] %s143
          %149 = dma.hbm_to_vmem [thread:$0]  %s142, 82944, %s144, [#allocation10], 64, 64, 4
        $region20: #{tpu_custom_call.1} parent=11 // pred_fallthru
          _
      $region12: #{tpu_custom_call.1} parent=5 // pred_fallthru
        _
      %p150 = scmp.lt.s32.totalorder %s17, 2
      // Predicated region
      $region21: #{tpu_custom_call.1} parent=5 // pred_check
        %p151 = pneg %p150
      $region22: #{tpu_custom_call.1} parent=5 // pred_check_branch
        %153 = sbr.rel (%p151) target = $region24
      $region23: #{tpu_custom_call.1} parent=5 // pred_region
        // Predicated region
        $region25: #{tpu_custom_call.1} parent=23 // pred_check
          %p154 = pneg %p58
        $region26: #{tpu_custom_call.1} parent=23 // pred_check_branch
          %156 = sbr.rel (%p154) target = $region28
        $region27: #{tpu_custom_call.1} parent=23 // pred_region
          %s157 = sand.u32 %s48, 1
          %s158 = scalar_lea.sflag [#allocation5], %s157
          %s159 = sand.u32 %s48, 1
          %s160 = smul.addr %s159, 64
          %s161 = scalar_lea.vmem [#allocation8], %s160
          %163 = vsyncadd %s158, 0
          %s164 = smul.addr %s17, 8
          %s165 = smul.addr %s164, 8
          %s166 = scalar_lea.hbm %s1, %s165
          %s167 = sshll.u32 %s166, 4
          %s168 = int_to_ptr.hbm [resolvable:$true] %s167
          %s169 = sshll.u32 %s161, 4
          %s170 = int_to_ptr.vmem [resolvable:$true] %s169
          %175 = dma.hbm_to_vmem [thread:$0]  %s168, 1024, %s170, %s158, 128, 128, 8
        $region28: #{tpu_custom_call.1} parent=23 // pred_fallthru
          _
      $region24: #{tpu_custom_call.1} parent=5 // pred_fallthru
        _
      %p176 = scmp.le.s32.totalorder 1, %s17
      %p177 = scmp.lt.s32.totalorder %s17, 3
      %p178 = pnand %p176, %p177
      %p179 = pneg %p178
      // Predicated region
      $region29: #{tpu_custom_call.1} parent=5 // pred_check
        _
      $region30: #{tpu_custom_call.1} parent=5 // pred_check_branch
        %181 = sbr.rel (%p178) target = $region32
      $region31: #{tpu_custom_call.1} parent=5 // pred_region
        %s182 = ssub.s32 %s17, 1
        // Predicated region
        $region33: #{tpu_custom_call.1} parent=31 // pred_check
          %p183 = pneg %p38
        $region34: #{tpu_custom_call.1} parent=31 // pred_check_branch
          %185 = sbr.rel (%p183) target = $region36
        $region35: #{tpu_custom_call.1} parent=31 // pred_region
          %187 = dma.done [#allocation7], 16
        $region36: #{tpu_custom_call.1} parent=31 // pred_fallthru
          _
        %s188 = sand.u32 %s51, 1
        %s189 = scalar_lea.sflag [#allocation5], %s188
        %s190 = sand.u32 %s51, 1
        %s191 = smul.addr %s190, 64
        %s192 = scalar_lea.vmem [#allocation8], %s191
        // Predicated region
        $region37: #{tpu_custom_call.1} parent=31 // pred_check
          %p193 = pneg %p64
        $region38: #{tpu_custom_call.1} parent=31 // pred_check_branch
          %195 = sbr.rel (%p193) target = $region40
        $region39: #{tpu_custom_call.1} parent=31 // pred_region
          %197 = dma.done %s189, 1024
        $region40: #{tpu_custom_call.1} parent=31 // pred_fallthru
          _
        // Predicated region
        $region41: #{tpu_custom_call.1} parent=31 // pred_check
          %p198 = pneg %p85
        $region42: #{tpu_custom_call.1} parent=31 // pred_check_branch
          %200 = sbr.rel (%p198) target = $region44
        $region43: #{tpu_custom_call.1} parent=31 // pred_region
          %202 = dma.done [#allocation10], 82944
        $region44: #{tpu_custom_call.1} parent=31 // pred_fallthru
          _
        %203 = sfence
        %p204 = pneg %p38
        %p205 = pneg %p35
        %s206 = sand.u32 %s51, 1
        %s207 = scalar_lea.sflag [#allocation5], %s206
        %s208 = sand.u32 %s51, 1
        %s209 = smul.addr %s208, 64
        %s210 = scalar_lea.vmem [#allocation8], %s209
        %p211 = pneg %p64
        %p212 = pneg %p61
        %p213 = pneg %p85
        %p214 = pneg %p82
        %p215 = pneg %p111
        %p216 = pneg %p108
        %s217 = sand.u32 %s98, 1
        %s218 = scalar_lea.sflag [#allocation6], %s217
        %s219 = sand.u32 %s98, 1
        %s220 = smul.addr %s219, 64
        %s221 = scalar_lea.vmem [#allocation11], %s220
        %223 = vst [vmem:[#allocation2] sm:$0xf] 0
        %224 = vst [vmem:[#allocation2 + $0x4] sm:$0x1] 0
        %s225 = scalar_lea.vmem [#allocation2], 72
        %226 = vst [vmem:[%s225] sm:$0xf] 0
        %227 = vst [vmem:[%s225 + $0x4] sm:$0x1] 0
        %vm228 = vcmask 1040384
        %vm229 = vsmask.f32 256
        %vm230 = vmand %vm228, %vm229
        %v231 = vld [vmem:[#allocation2] sm:$0x1]
        %v232 = vsel %vm230, 0, %v231
        %233 = vst [vmem:[#allocation2] sm:$0x1] %v232
        %v234 = vld [vmem:[#allocation2 + $0x8] sm:$0x1]
        %v235 = vsel %vm230, 0, %v234
        %236 = vst [vmem:[#allocation2 + $0x8] sm:$0x1] %v235
        %v237 = vld [vmem:[#allocation2 + $0x10] sm:$0x1]
        %v238 = vsel %vm230, 0, %v237
        %239 = vst [vmem:[#allocation2 + $0x10] sm:$0x1] %v238
        %v240 = vld [vmem:[#allocation2 + $0x18] sm:$0x1]
        %v241 = vsel %vm230, 0, %v240
        %242 = vst [vmem:[#allocation2 + $0x18] sm:$0x1] %v241
        %v243 = vld [vmem:[#allocation2 + $0x20] sm:$0x1]
        %v244 = vsel %vm230, 0, %v243
        %245 = vst [vmem:[#allocation2 + $0x20] sm:$0x1] %v244
        %v246 = vld [vmem:[#allocation2 + $0x28] sm:$0x1]
        %v247 = vsel %vm230, 0, %v246
        %248 = vst [vmem:[#allocation2 + $0x28] sm:$0x1] %v247
        %v249 = vld [vmem:[#allocation2 + $0x30] sm:$0x1]
        %v250 = vsel %vm230, 0, %v249
        %251 = vst [vmem:[#allocation2 + $0x30] sm:$0x1] %v250
        %v252 = vld [vmem:[#allocation2 + $0x38] sm:$0x1]
        %v253 = vsel %vm230, 0, %v252
        %254 = vst [vmem:[#allocation2 + $0x38] sm:$0x1] %v253
        %v255 = vld [vmem:[#allocation2 + $0x40] sm:$0x1]
        %v256 = vsel %vm230, 0, %v255
        %257 = vst [vmem:[#allocation2 + $0x40] sm:$0x1] %v256
        %v258 = vld [vmem:[#allocation2 + $0x48] sm:$0x1]
        %v259 = vsel %vm230, 0, %v258
        %260 = vst [vmem:[#allocation2 + $0x48] sm:$0x1] %v259
        %vm261 = vsmask.f32 7938
        %vm262 = vmand %vm228, %vm261
        %v263 = vld [vmem:[#allocation2 + $0x4] sm:$0x1]
        %v264 = vsel %vm262, 0, %v263
        %265 = vst [vmem:[#allocation2 + $0x4] sm:$0x1] %v264
        %v266 = vld [vmem:[#allocation2 + $0xc] sm:$0x1]
        %v267 = vsel %vm262, 0, %v266
        %268 = vst [vmem:[#allocation2 + $0xc] sm:$0x1] %v267
        %v269 = vld [vmem:[#allocation2 + $0x14] sm:$0x1]
        %v270 = vsel %vm262, 0, %v269
        %271 = vst [vmem:[#allocation2 + $0x14] sm:$0x1] %v270
        %v272 = vld [vmem:[#allocation2 + $0x1c] sm:$0x1]
        %v273 = vsel %vm262, 0, %v272
        %274 = vst [vmem:[#allocation2 + $0x1c] sm:$0x1] %v273
        %v275 = vld [vmem:[#allocation2 + $0x24] sm:$0x1]
        %v276 = vsel %vm262, 0, %v275
        %277 = vst [vmem:[#allocation2 + $0x24] sm:$0x1] %v276
        %v278 = vld [vmem:[#allocation2 + $0x2c] sm:$0x1]
        %v279 = vsel %vm262, 0, %v278
        %280 = vst [vmem:[#allocation2 + $0x2c] sm:$0x1] %v279
        %v281 = vld [vmem:[#allocation2 + $0x34] sm:$0x1]
        %v282 = vsel %vm262, 0, %v281
        %283 = vst [vmem:[#allocation2 + $0x34] sm:$0x1] %v282
        %v284 = vld [vmem:[#allocation2 + $0x3c] sm:$0x1]
        %v285 = vsel %vm262, 0, %v284
        %286 = vst [vmem:[#allocation2 + $0x3c] sm:$0x1] %v285
        %v287 = vld [vmem:[#allocation2 + $0x44] sm:$0x1]
        %v288 = vsel %vm262, 0, %v287
        %289 = vst [vmem:[#allocation2 + $0x44] sm:$0x1] %v288
        %v290 = vld [vmem:[#allocation2 + $0x4c] sm:$0x1]
        %v291 = vsel %vm262, 0, %v290
        %292 = vst [vmem:[#allocation2 + $0x4c] sm:$0x1] %v291
        %v293 = vld [vmem:[%s192] sm:$0xff]
        %v294 = vld [vmem:[%s192 + $0x8] sm:$0xff]
        %v295 = vld [vmem:[%s192 + $0x10] sm:$0xff]
        %v296 = vld [vmem:[%s192 + $0x18] sm:$0xff]
        %v297 = vld [vmem:[%s192 + $0x20] sm:$0xff]
        %v298 = vld [vmem:[%s192 + $0x28] sm:$0xff]
        %v299 = vld [vmem:[%s192 + $0x30] sm:$0xff]
        %v300 = vld [vmem:[%s192 + $0x38] sm:$0xff]
        %v301 = vpack.c.bf16 %v293, %v293
        %v302 = vpack.c.bf16 %v294, %v294
        %v303 = vpack.c.bf16 %v295, %v295
        %v304 = vpack.c.bf16 %v296, %v296
        %v305 = vpack.c.bf16 %v297, %v297
        %v306 = vpack.c.bf16 %v298, %v298
        %v307 = vpack.c.bf16 %v299, %v299
        %v308 = vpack.c.bf16 %v300, %v300
        %v310 = vshrl.u32 %v301, 16
        %v312 = vrot.slane %v310, 7
        %v313 = vshll.u32 %v301, 16
        %v315 = vor.u32 %v312, %v313
        %v316 = vrot.slane %v312, 4
        %v318 = vshrl.u32 %v302, 16
        %v320 = vrot.slane %v318, 7
        %v321 = vshll.u32 %v302, 16
        %v323 = vor.u32 %v320, %v321
        %v324 = vrot.slane %v320, 4
        %v326 = vshrl.u32 %v303, 16
        %v328 = vrot.slane %v326, 7
        %v329 = vshll.u32 %v303, 16
        %v331 = vor.u32 %v328, %v329
        %v332 = vrot.slane %v328, 4
        %v334 = vshrl.u32 %v304, 16
        %v336 = vrot.slane %v334, 7
        %v337 = vshll.u32 %v304, 16
        %v339 = vor.u32 %v336, %v337
        %v340 = vrot.slane %v336, 4
        %v342 = vshrl.u32 %v305, 16
        %v344 = vrot.slane %v342, 7
        %v345 = vshll.u32 %v305, 16
        %v347 = vor.u32 %v344, %v345
        %v348 = vrot.slane %v344, 4
        %v350 = vshrl.u32 %v306, 16
        %v352 = vrot.slane %v350, 7
        %v353 = vshll.u32 %v306, 16
        %v355 = vor.u32 %v352, %v353
        %v356 = vrot.slane %v352, 4
        %v358 = vshrl.u32 %v307, 16
        %v360 = vrot.slane %v358, 7
        %v361 = vshll.u32 %v307, 16
        %v363 = vor.u32 %v360, %v361
        %v364 = vrot.slane %v360, 4
        %v366 = vshrl.u32 %v308, 16
        %v368 = vrot.slane %v366, 7
        %v369 = vshll.u32 %v308, 16
        %v371 = vor.u32 %v368, %v369
        %v372 = vrot.slane %v368, 4
        %s389 = scalar_lea.vmem [#allocation2], 8
        %vm390 = vcmask 1043456
        %vm391 = vmand %vm390, %vm261
        %v392 = vld [vmem:[%s389] sm:$0xf]
        %v393 = vsel %vm391, %v315, %v392
        %394 = vst [vmem:[%s389] sm:$0xf] %v393
        %v395 = vld [vmem:[%s389 + $0x4] sm:$0x1]
        %v396 = vsel %vm230, %v316, %v395
        %397 = vst [vmem:[%s389 + $0x4] sm:$0x1] %v396
        %v398 = vld [vmem:[%s389 + $0x8] sm:$0xf]
        %v399 = vsel %vm391, %v323, %v398
        %400 = vst [vmem:[%s389 + $0x8] sm:$0xf] %v399
        %v401 = vld [vmem:[%s389 + $0xc] sm:$0x1]
        %v402 = vsel %vm230, %v324, %v401
        %403 = vst [vmem:[%s389 + $0xc] sm:$0x1] %v402
        %v404 = vld [vmem:[%s389 + $0x10] sm:$0xf]
        %v405 = vsel %vm391, %v331, %v404
        %406 = vst [vmem:[%s389 + $0x10] sm:$0xf] %v405
        %v407 = vld [vmem:[%s389 + $0x14] sm:$0x1]
        %v408 = vsel %vm230, %v332, %v407
        %409 = vst [vmem:[%s389 + $0x14] sm:$0x1] %v408
        %v410 = vld [vmem:[%s389 + $0x18] sm:$0xf]
        %v411 = vsel %vm391, %v339, %v410
        %412 = vst [vmem:[%s389 + $0x18] sm:$0xf] %v411
        %v413 = vld [vmem:[%s389 + $0x1c] sm:$0x1]
        %v414 = vsel %vm230, %v340, %v413
        %415 = vst [vmem:[%s389 + $0x1c] sm:$0x1] %v414
        %v416 = vld [vmem:[%s389 + $0x20] sm:$0xf]
        %v417 = vsel %vm391, %v347, %v416
        %418 = vst [vmem:[%s389 + $0x20] sm:$0xf] %v417
        %v419 = vld [vmem:[%s389 + $0x24] sm:$0x1]
        %v420 = vsel %vm230, %v348, %v419
        %421 = vst [vmem:[%s389 + $0x24] sm:$0x1] %v420
        %v422 = vld [vmem:[%s389 + $0x28] sm:$0xf]
        %v423 = vsel %vm391, %v355, %v422
        %424 = vst [vmem:[%s389 + $0x28] sm:$0xf] %v423
        %v425 = vld [vmem:[%s389 + $0x2c] sm:$0x1]
        %v426 = vsel %vm230, %v356, %v425
        %427 = vst [vmem:[%s389 + $0x2c] sm:$0x1] %v426
        %v428 = vld [vmem:[%s389 + $0x30] sm:$0xf]
        %v429 = vsel %vm391, %v363, %v428
        %430 = vst [vmem:[%s389 + $0x30] sm:$0xf] %v429
        %v431 = vld [vmem:[%s389 + $0x34] sm:$0x1]
        %v432 = vsel %vm230, %v364, %v431
        %433 = vst [vmem:[%s389 + $0x34] sm:$0x1] %v432
        %v434 = vld [vmem:[%s389 + $0x38] sm:$0xf]
        %v435 = vsel %vm391, %v371, %v434
        %436 = vst [vmem:[%s389 + $0x38] sm:$0xf] %v435
        %v437 = vld [vmem:[%s389 + $0x3c] sm:$0x1]
        %v438 = vsel %vm230, %v372, %v437
        %439 = vst [vmem:[%s389 + $0x3c] sm:$0x1] %v438
        %v440 = vld [vmem:[#allocation2] sm:$0xf]
        %v441 = vld [vmem:[#allocation2 + $0x4] sm:$0x1]
        %v442 = vld [vmem:[#allocation2 + $0x8] sm:$0xf]
        %v443 = vld [vmem:[#allocation2 + $0xc] sm:$0x1]
        %v444 = vld [vmem:[#allocation2 + $0x10] sm:$0xf]
        %v445 = vld [vmem:[#allocation2 + $0x14] sm:$0x1]
        %v446 = vld [vmem:[#allocation2 + $0x18] sm:$0xf]
        %v447 = vld [vmem:[#allocation2 + $0x1c] sm:$0x1]
        %v448 = vld [vmem:[#allocation2 + $0x20] sm:$0xf]
        %v449 = vld [vmem:[#allocation2 + $0x24] sm:$0x1]
        %v450 = vld [vmem:[#allocation2 + $0x28] sm:$0xf]
        %v451 = vld [vmem:[#allocation2 + $0x2c] sm:$0x1]
        %v452 = vld [vmem:[#allocation2 + $0x30] sm:$0xf]
        %v453 = vld [vmem:[#allocation2 + $0x34] sm:$0x1]
        %v454 = vld [vmem:[#allocation2 + $0x38] sm:$0xf]
        %v455 = vld [vmem:[#allocation2 + $0x3c] sm:$0x1]
        %v456 = vld [vmem:[#allocation2 + $0x40] sm:$0xf]
        %v457 = vld [vmem:[#allocation2 + $0x44] sm:$0x1]
        %v458 = vld [vmem:[#allocation2 + $0x48] sm:$0xf]
        %v459 = vld [vmem:[#allocation2 + $0x4c] sm:$0x1]
        %v476 = vunpack.c.l.b16 %v440
        %v477 = vunpack.c.l.b16 %v441
        %v478 = vunpack.c.l.b16 %v442
        %v479 = vunpack.c.l.b16 %v443
        %v480 = vunpack.c.l.b16 %v444
        %v481 = vunpack.c.l.b16 %v445
        %v482 = vunpack.c.l.b16 %v446
        %v483 = vunpack.c.l.b16 %v447
        %v484 = vunpack.c.l.b16 %v448
        %v485 = vunpack.c.l.b16 %v449
        %v486 = vunpack.c.l.b16 %v450
        %v487 = vunpack.c.l.b16 %v451
        %v488 = vunpack.c.l.b16 %v452
        %v489 = vunpack.c.l.b16 %v453
        %v490 = vunpack.c.l.b16 %v454
        %v491 = vunpack.c.l.b16 %v455
        %v492 = vpack.c.b16 %v477, %v476
        %v493 = vpack.c.b16 %v479, %v478
        %v494 = vpack.c.b16 %v481, %v480
        %v495 = vpack.c.b16 %v483, %v482
        %v496 = vpack.c.b16 %v485, %v484
        %v497 = vpack.c.b16 %v487, %v486
        %v498 = vpack.c.b16 %v489, %v488
        %v499 = vpack.c.b16 %v491, %v490
        %v501 = vshrl.u32 %v492, 16
        %v503 = vshll.u32 %v492, 16
        %v505 = vrot.slane %v503, 1
        %v506 = vor.u32 %v501, %v505
        %v508 = vshrl.u32 %v493, 16
        %v510 = vshll.u32 %v493, 16
        %v512 = vrot.slane %v510, 1
        %v513 = vor.u32 %v508, %v512
        %v515 = vshrl.u32 %v494, 16
        %v517 = vshll.u32 %v494, 16
        %v519 = vrot.slane %v517, 1
        %v520 = vor.u32 %v515, %v519
        %v522 = vshrl.u32 %v495, 16
        %v524 = vshll.u32 %v495, 16
        %v526 = vrot.slane %v524, 1
        %v527 = vor.u32 %v522, %v526
        %v529 = vshrl.u32 %v496, 16
        %v531 = vshll.u32 %v496, 16
        %v533 = vrot.slane %v531, 1
        %v534 = vor.u32 %v529, %v533
        %v536 = vshrl.u32 %v497, 16
        %v538 = vshll.u32 %v497, 16
        %v540 = vrot.slane %v538, 1
        %v541 = vor.u32 %v536, %v540
        %v543 = vshrl.u32 %v498, 16
        %v545 = vshll.u32 %v498, 16
        %v547 = vrot.slane %v545, 1
        %v548 = vor.u32 %v543, %v547
        %v550 = vshrl.u32 %v499, 16
        %v552 = vshll.u32 %v499, 16
        %v554 = vrot.slane %v552, 1
        %v555 = vor.u32 %v550, %v554
        %v556 = vrot.slane %v492, 1
        %v557 = vrot.slane %v493, 1
        %v558 = vrot.slane %v494, 1
        %v559 = vrot.slane %v495, 1
        %v560 = vrot.slane %v496, 1
        %v561 = vrot.slane %v497, 1
        %v562 = vrot.slane %v498, 1
        %v563 = vrot.slane %v499, 1
        %v566 = vunpack.c.l.b16 %v456
        %v567 = vunpack.c.l.b16 %v457
        %v568 = vpack.c.b16 %v567, %v566
        %v570 = vshrl.u32 %v568, 16
        %v572 = vshll.u32 %v568, 16
        %v574 = vrot.slane %v572, 1
        %v575 = vor.u32 %v570, %v574
        %v576 = vrot.slane %v568, 1
        %v579 = vunpack.c.l.b16 %v458
        %v580 = vunpack.c.l.b16 %v459
        %v581 = vpack.c.b16 %v580, %v579
        %v583 = vshrl.u32 %v581, 16
        %v585 = vshll.u32 %v581, 16
        %v587 = vrot.slane %v585, 1
        %v588 = vor.u32 %v583, %v587
        %v589 = vrot.slane %v581, 1
        %v590 = vunpack.c.l.b16 %v506
        %v591 = vunpack.c.l.b16 %v556
        %v592 = vunpack.c.l.b16 %v513
        %v593 = vunpack.c.l.b16 %v557
        %v594 = vunpack.c.l.b16 %v520
        %v595 = vunpack.c.l.b16 %v558
        %v596 = vunpack.c.l.b16 %v527
        %v597 = vunpack.c.l.b16 %v559
        %v598 = vunpack.c.l.b16 %v534
        %v599 = vunpack.c.l.b16 %v560
        %v600 = vunpack.c.l.b16 %v541
        %v601 = vunpack.c.l.b16 %v561
        %v602 = vunpack.c.l.b16 %v548
        %v603 = vunpack.c.l.b16 %v562
        %v604 = vunpack.c.l.b16 %v555
        %v605 = vunpack.c.l.b16 %v563
        %v606 = vunpack.c.l.b16 %v575
        %v607 = vunpack.c.l.b16 %v576
        %v608 = vunpack.c.l.b16 %v588
        %v609 = vunpack.c.l.b16 %v589
        %v610 = vld [vmem:[#allocation9] sm:$0xf]
        %v611 = vld [vmem:[#allocation9 + $0x4] sm:$0xf]
        %v612 = vld [vmem:[#allocation9 + $0x8] sm:$0xf]
        %v613 = vld [vmem:[#allocation9 + $0xc] sm:$0xf]
        %v614 = vld [vmem:[#allocation9 + $0x10] sm:$0xf]
        %v615 = vld [vmem:[#allocation9 + $0x14] sm:$0xf]
        %v616 = vld [vmem:[#allocation9 + $0x18] sm:$0xf]
        %v617 = vld [vmem:[#allocation9 + $0x1c] sm:$0xf]
        %v618 = vld [vmem:[#allocation9 + $0x20] sm:$0xf]
        %v619 = vld [vmem:[#allocation9 + $0x24] sm:$0xf]
        %v620 = vld [vmem:[#allocation9 + $0x28] sm:$0xf]
        %v621 = vld [vmem:[#allocation9 + $0x2c] sm:$0xf]
        %v622 = vld [vmem:[#allocation9 + $0x30] sm:$0xf]
        %v623 = vld [vmem:[#allocation9 + $0x34] sm:$0xf]
        %v624 = vld [vmem:[#allocation9 + $0x38] sm:$0xf]
        %v625 = vld [vmem:[#allocation9 + $0x3c] sm:$0xf]
        %v626 = vld [vmem:[#allocation9 + $0x40] sm:$0xf]
        %v627 = vld [vmem:[#allocation9 + $0x44] sm:$0xf]
        %v628 = vld [vmem:[#allocation9 + $0x48] sm:$0xf]
        %v629 = vld [vmem:[#allocation9 + $0x4c] sm:$0xf]
        %v630 = vld [vmem:[#allocation9 + $0x50] sm:$0xf]
        %v631 = vld [vmem:[#allocation9 + $0x54] sm:$0xf]
        %v632 = vld [vmem:[#allocation9 + $0x58] sm:$0xf]
        %v633 = vld [vmem:[#allocation9 + $0x5c] sm:$0xf]
        %v634 = vld [vmem:[#allocation9 + $0x60] sm:$0xf]
        %v635 = vld [vmem:[#allocation9 + $0x64] sm:$0xf]
        %v636 = vld [vmem:[#allocation9 + $0x68] sm:$0xf]
        %v637 = vld [vmem:[#allocation9 + $0x6c] sm:$0xf]
        %v638 = vld [vmem:[#allocation9 + $0x70] sm:$0xf]
        %v639 = vld [vmem:[#allocation9 + $0x74] sm:$0xf]
        %v640 = vld [vmem:[#allocation9 + $0x78] sm:$0xf]
        %v641 = vld [vmem:[#allocation9 + $0x7c] sm:$0xf]
        %v642 = vld [vmem:[#allocation9 + $0x80] sm:$0xf]
        %v643 = vld [vmem:[#allocation9 + $0x84] sm:$0xf]
        %v644 = vld [vmem:[#allocation9 + $0x88] sm:$0xf]
        %v645 = vld [vmem:[#allocation9 + $0x8c] sm:$0xf]
        %v646 = vld [vmem:[#allocation9 + $0x90] sm:$0xf]
        %v647 = vld [vmem:[#allocation9 + $0x94] sm:$0xf]
        %v648 = vld [vmem:[#allocation9 + $0x98] sm:$0xf]
        %v649 = vld [vmem:[#allocation9 + $0x9c] sm:$0xf]
        %v650 = vld [vmem:[#allocation9 + $0xa0] sm:$0xf]
        %v651 = vld [vmem:[#allocation9 + $0xa4] sm:$0xf]
        %v652 = vld [vmem:[#allocation9 + $0xa8] sm:$0xf]
        %v653 = vld [vmem:[#allocation9 + $0xac] sm:$0xf]
        %v654 = vld [vmem:[#allocation9 + $0xb0] sm:$0xf]
        %v655 = vld [vmem:[#allocation9 + $0xb4] sm:$0xf]
        %v656 = vld [vmem:[#allocation9 + $0xb8] sm:$0xf]
        %v657 = vld [vmem:[#allocation9 + $0xbc] sm:$0xf]
        %v658 = vld [vmem:[#allocation9 + $0xc0] sm:$0xf]
        %v659 = vld [vmem:[#allocation9 + $0xc4] sm:$0xf]
        %v660 = vld [vmem:[#allocation9 + $0xc8] sm:$0xf]
        %v661 = vld [vmem:[#allocation9 + $0xcc] sm:$0xf]
        %v662 = vld [vmem:[#allocation9 + $0xd0] sm:$0xf]
        %v663 = vld [vmem:[#allocation9 + $0xd4] sm:$0xf]
        %v664 = vld [vmem:[#allocation9 + $0xd8] sm:$0xf]
        %v665 = vld [vmem:[#allocation9 + $0xdc] sm:$0xf]
        %v666 = vld [vmem:[#allocation9 + $0xe0] sm:$0xf]
        %v667 = vld [vmem:[#allocation9 + $0xe4] sm:$0xf]
        %v668 = vld [vmem:[#allocation9 + $0xe8] sm:$0xf]
        %v669 = vld [vmem:[#allocation9 + $0xec] sm:$0xf]
        %v670 = vld [vmem:[#allocation9 + $0xf0] sm:$0xf]
        %v671 = vld [vmem:[#allocation9 + $0xf4] sm:$0xf]
        %v672 = vld [vmem:[#allocation9 + $0xf8] sm:$0xf]
        %v673 = vld [vmem:[#allocation9 + $0xfc] sm:$0xf]
        %v674 = vld [vmem:[#allocation9 + $0x100] sm:$0xf]
        %v675 = vld [vmem:[#allocation9 + $0x104] sm:$0xf]
        %v676 = vld [vmem:[#allocation9 + $0x108] sm:$0xf]
        %v677 = vld [vmem:[#allocation9 + $0x10c] sm:$0xf]
        %v678 = vld [vmem:[#allocation9 + $0x110] sm:$0xf]
        %v679 = vld [vmem:[#allocation9 + $0x114] sm:$0xf]
        %v680 = vld [vmem:[#allocation9 + $0x118] sm:$0xf]
        %v681 = vld [vmem:[#allocation9 + $0x11c] sm:$0xf]
        %v682 = vld [vmem:[#allocation9 + $0x120] sm:$0xf]
        %v683 = vld [vmem:[#allocation9 + $0x124] sm:$0xf]
        %v684 = vld [vmem:[#allocation9 + $0x128] sm:$0xf]
        %v685 = vld [vmem:[#allocation9 + $0x12c] sm:$0xf]
        %v686 = vld [vmem:[#allocation9 + $0x130] sm:$0xf]
        %v687 = vld [vmem:[#allocation9 + $0x134] sm:$0xf]
        %v688 = vld [vmem:[#allocation9 + $0x138] sm:$0xf]
        %v689 = vld [vmem:[#allocation9 + $0x13c] sm:$0xf]
        %v690 = vld [vmem:[#allocation9 + $0x140] sm:$0xf]
        %v691 = vld [vmem:[#allocation9 + $0x144] sm:$0xf]
        %v692 = vld [vmem:[#allocation9 + $0x148] sm:$0xf]
        %v693 = vld [vmem:[#allocation9 + $0x14c] sm:$0xf]
        %v694 = vld [vmem:[#allocation9 + $0x150] sm:$0xf]
        %v695 = vld [vmem:[#allocation9 + $0x154] sm:$0xf]
        %v696 = vld [vmem:[#allocation9 + $0x158] sm:$0xf]
        %v697 = vld [vmem:[#allocation9 + $0x15c] sm:$0xf]
        %v698 = vld [vmem:[#allocation9 + $0x160] sm:$0xf]
        %v699 = vld [vmem:[#allocation9 + $0x164] sm:$0xf]
        %v700 = vld [vmem:[#allocation9 + $0x168] sm:$0xf]
        %v701 = vld [vmem:[#allocation9 + $0x16c] sm:$0xf]
        %v702 = vld [vmem:[#allocation9 + $0x170] sm:$0xf]
        %v703 = vld [vmem:[#allocation9 + $0x174] sm:$0xf]
        %v704 = vld [vmem:[#allocation9 + $0x178] sm:$0xf]
        %v705 = vld [vmem:[#allocation9 + $0x17c] sm:$0xf]
        %v706 = vld [vmem:[#allocation9 + $0x180] sm:$0xf]
        %v707 = vld [vmem:[#allocation9 + $0x184] sm:$0xf]
        %v708 = vld [vmem:[#allocation9 + $0x188] sm:$0xf]
        %v709 = vld [vmem:[#allocation9 + $0x18c] sm:$0xf]
        %v710 = vld [vmem:[#allocation9 + $0x190] sm:$0xf]
        %v711 = vld [vmem:[#allocation9 + $0x194] sm:$0xf]
        %v712 = vld [vmem:[#allocation9 + $0x198] sm:$0xf]
        %v713 = vld [vmem:[#allocation9 + $0x19c] sm:$0xf]
        %v714 = vld [vmem:[#allocation9 + $0x1a0] sm:$0xf]
        %v715 = vld [vmem:[#allocation9 + $0x1a4] sm:$0xf]
        %v716 = vld [vmem:[#allocation9 + $0x1a8] sm:$0xf]
        %v717 = vld [vmem:[#allocation9 + $0x1ac] sm:$0xf]
        %v718 = vld [vmem:[#allocation9 + $0x1b0] sm:$0xf]
        %v719 = vld [vmem:[#allocation9 + $0x1b4] sm:$0xf]
        %v720 = vld [vmem:[#allocation9 + $0x1b8] sm:$0xf]
        %v721 = vld [vmem:[#allocation9 + $0x1bc] sm:$0xf]
        %v722 = vld [vmem:[#allocation9 + $0x1c0] sm:$0xf]
        %v723 = vld [vmem:[#allocation9 + $0x1c4] sm:$0xf]
        %v724 = vld [vmem:[#allocation9 + $0x1c8] sm:$0xf]
        %v725 = vld [vmem:[#allocation9 + $0x1cc] sm:$0xf]
        %v726 = vld [vmem:[#allocation9 + $0x1d0] sm:$0xf]
        %v727 = vld [vmem:[#allocation9 + $0x1d4] sm:$0xf]
        %v728 = vld [vmem:[#allocation9 + $0x1d8] sm:$0xf]
        %v729 = vld [vmem:[#allocation9 + $0x1dc] sm:$0xf]
        %v730 = vld [vmem:[#allocation9 + $0x1e0] sm:$0xf]
        %v731 = vld [vmem:[#allocation9 + $0x1e4] sm:$0xf]
        %v732 = vld [vmem:[#allocation9 + $0x1e8] sm:$0xf]
        %v733 = vld [vmem:[#allocation9 + $0x1ec] sm:$0xf]
        %v734 = vld [vmem:[#allocation9 + $0x1f0] sm:$0xf]
        %v735 = vld [vmem:[#allocation9 + $0x1f4] sm:$0xf]
        %v736 = vld [vmem:[#allocation9 + $0x1f8] sm:$0xf]
        %v737 = vld [vmem:[#allocation9 + $0x1fc] sm:$0xf]
        %v738 = vld [vmem:[#allocation9 + $0x200] sm:$0xf]
        %v739 = vld [vmem:[#allocation9 + $0x204] sm:$0xf]
        %v740 = vld [vmem:[#allocation9 + $0x208] sm:$0xf]
        %v741 = vld [vmem:[#allocation9 + $0x20c] sm:$0xf]
        %v742 = vld [vmem:[#allocation9 + $0x210] sm:$0xf]
        %v743 = vld [vmem:[#allocation9 + $0x214] sm:$0xf]
        %v744 = vld [vmem:[#allocation9 + $0x218] sm:$0xf]
        %v745 = vld [vmem:[#allocation9 + $0x21c] sm:$0xf]
        %v746 = vld [vmem:[#allocation9 + $0x220] sm:$0xf]
        %v747 = vld [vmem:[#allocation9 + $0x224] sm:$0xf]
        %v748 = vld [vmem:[#allocation9 + $0x228] sm:$0xf]
        %v749 = vld [vmem:[#allocation9 + $0x22c] sm:$0xf]
        %v750 = vld [vmem:[#allocation9 + $0x230] sm:$0xf]
        %v751 = vld [vmem:[#allocation9 + $0x234] sm:$0xf]
        %v752 = vld [vmem:[#allocation9 + $0x238] sm:$0xf]
        %v753 = vld [vmem:[#allocation9 + $0x23c] sm:$0xf]
        %v754 = vpack.c.b16 %v478, %v476
        %v755 = vpack.c.b16 %v592, %v590
        %v756 = vpack.c.b16 %v593, %v591
        %v757 = vpack.c.b16 %v480, %v478
        %v758 = vpack.c.b16 %v594, %v592
        %v759 = vpack.c.b16 %v595, %v593
        %v760 = vpack.c.b16 %v482, %v480
        %v761 = vpack.c.b16 %v596, %v594
        %v762 = vpack.c.b16 %v597, %v595
        %v763 = vpack.c.b16 %v484, %v482
        %v764 = vpack.c.b16 %v598, %v596
        %v765 = vpack.c.b16 %v599, %v597
        %v766 = vpack.c.b16 %v486, %v484
        %v767 = vpack.c.b16 %v600, %v598
        %v768 = vpack.c.b16 %v601, %v599
        %v769 = vpack.c.b16 %v488, %v486
        %v770 = vpack.c.b16 %v602, %v600
        %v771 = vpack.c.b16 %v603, %v601
        %v772 = vpack.c.b16 %v490, %v488
        %v773 = vpack.c.b16 %v604, %v602
        %v774 = vpack.c.b16 %v605, %v603
        %v775 = vpack.c.b16 %v566, %v490
        %v776 = vpack.c.b16 %v606, %v604
        %v777 = vpack.c.b16 %v607, %v605
        %v778 = vpack.c.b16 %v579, %v566
        %v779 = vpack.c.b16 %v608, %v606
        %v780 = vpack.c.b16 %v609, %v607
        %v952 = vunpack.c.l.b16 %v610
        %v953 = vunpack.c.l.b16 %v611
        %v954 = vunpack.c.l.b16 %v612
        %v955 = vunpack.c.l.b16 %v613
        %v956 = vunpack.c.l.b16 %v614
        %v957 = vunpack.c.l.b16 %v615
        %v958 = vunpack.c.l.b16 %v616
        %v959 = vunpack.c.l.b16 %v617
        %v960 = vunpack.c.l.b16 %v618
        %v961 = vunpack.c.l.b16 %v619
        %v962 = vunpack.c.l.b16 %v620
        %v963 = vunpack.c.l.b16 %v621
        %v964 = vunpack.c.l.b16 %v622
        %v965 = vunpack.c.l.b16 %v623
        %v966 = vunpack.c.l.b16 %v624
        %v967 = vunpack.c.l.b16 %v625
        %v968 = vunpack.c.l.b16 %v626
        %v969 = vunpack.c.l.b16 %v627
        %v970 = vunpack.c.l.b16 %v628
        %v971 = vunpack.c.l.b16 %v629
        %v972 = vunpack.c.l.b16 %v630
        %v973 = vunpack.c.l.b16 %v631
        %v974 = vunpack.c.l.b16 %v632
        %v975 = vunpack.c.l.b16 %v633
        %v976 = vunpack.c.l.b16 %v634
        %v977 = vunpack.c.l.b16 %v635
        %v978 = vunpack.c.l.b16 %v636
        %v979 = vunpack.c.l.b16 %v637
        %v980 = vunpack.c.l.b16 %v638
        %v981 = vunpack.c.l.b16 %v639
        %v982 = vunpack.c.l.b16 %v640
        %v983 = vunpack.c.l.b16 %v641
        %v984 = vunpack.c.l.b16 %v642
        %v985 = vunpack.c.l.b16 %v643
        %v986 = vunpack.c.l.b16 %v644
        %v987 = vunpack.c.l.b16 %v645
        %v988 = vunpack.c.l.b16 %v646
        %v989 = vunpack.c.l.b16 %v647
        %v990 = vunpack.c.l.b16 %v648
        %v991 = vunpack.c.l.b16 %v649
        %v992 = vunpack.c.l.b16 %v650
        %v993 = vunpack.c.l.b16 %v651
        %v994 = vunpack.c.l.b16 %v652
        %v995 = vunpack.c.l.b16 %v653
        %v996 = vunpack.c.l.b16 %v654
        %v997 = vunpack.c.l.b16 %v655
        %v998 = vunpack.c.l.b16 %v656
        %v999 = vunpack.c.l.b16 %v657
        %v1000 = vunpack.c.l.b16 %v658
        %v1001 = vunpack.c.l.b16 %v659
        %v1002 = vunpack.c.l.b16 %v660
        %v1003 = vunpack.c.l.b16 %v661
        %v1004 = vunpack.c.l.b16 %v662
        %v1005 = vunpack.c.l.b16 %v663
        %v1006 = vunpack.c.l.b16 %v664
        %v1007 = vunpack.c.l.b16 %v665
        %v1008 = vunpack.c.l.b16 %v666
        %v1009 = vunpack.c.l.b16 %v667
        %v1010 = vunpack.c.l.b16 %v668
        %v1011 = vunpack.c.l.b16 %v669
        %v1012 = vunpack.c.l.b16 %v670
        %v1013 = vunpack.c.l.b16 %v671
        %v1014 = vunpack.c.l.b16 %v672
        %v1015 = vunpack.c.l.b16 %v673
        %v1016 = vunpack.c.l.b16 %v674
        %v1017 = vunpack.c.l.b16 %v675
        %v1018 = vunpack.c.l.b16 %v676
        %v1019 = vunpack.c.l.b16 %v677
        %v1020 = vunpack.c.l.b16 %v678
        %v1021 = vunpack.c.l.b16 %v679
        %v1022 = vunpack.c.l.b16 %v680
        %v1023 = vunpack.c.l.b16 %v681
        %v1024 = vunpack.c.l.b16 %v682
        %v1025 = vunpack.c.l.b16 %v683
        %v1026 = vunpack.c.l.b16 %v684
        %v1027 = vunpack.c.l.b16 %v685
        %v1028 = vunpack.c.l.b16 %v686
        %v1029 = vunpack.c.l.b16 %v687
        %v1030 = vunpack.c.l.b16 %v688
        %v1031 = vunpack.c.l.b16 %v689
        %v1032 = vunpack.c.l.b16 %v690
        %v1033 = vunpack.c.l.b16 %v691
        %v1034 = vunpack.c.l.b16 %v692
        %v1035 = vunpack.c.l.b16 %v693
        %v1036 = vunpack.c.l.b16 %v694
        %v1037 = vunpack.c.l.b16 %v695
        %v1038 = vunpack.c.l.b16 %v696
        %v1039 = vunpack.c.l.b16 %v697
        %v1040 = vunpack.c.l.b16 %v698
        %v1041 = vunpack.c.l.b16 %v699
        %v1042 = vunpack.c.l.b16 %v700
        %v1043 = vunpack.c.l.b16 %v701
        %v1044 = vunpack.c.l.b16 %v702
        %v1045 = vunpack.c.l.b16 %v703
        %v1046 = vunpack.c.l.b16 %v704
        %v1047 = vunpack.c.l.b16 %v705
        %v1048 = vunpack.c.l.b16 %v706
        %v1049 = vunpack.c.l.b16 %v707
        %v1050 = vunpack.c.l.b16 %v708
        %v1051 = vunpack.c.l.b16 %v709
        %v1052 = vunpack.c.l.b16 %v710
        %v1053 = vunpack.c.l.b16 %v711
        %v1054 = vunpack.c.l.b16 %v712
        %v1055 = vunpack.c.l.b16 %v713
        %v1056 = vunpack.c.l.b16 %v714
        %v1057 = vunpack.c.l.b16 %v715
        %v1058 = vunpack.c.l.b16 %v716
        %v1059 = vunpack.c.l.b16 %v717
        %v1060 = vunpack.c.l.b16 %v718
        %v1061 = vunpack.c.l.b16 %v719
        %v1062 = vunpack.c.l.b16 %v720
        %v1063 = vunpack.c.l.b16 %v721
        %v1064 = vunpack.c.l.b16 %v722
        %v1065 = vunpack.c.l.b16 %v723
        %v1066 = vunpack.c.l.b16 %v724
        %v1067 = vunpack.c.l.b16 %v725
        %v1068 = vunpack.c.l.b16 %v726
        %v1069 = vunpack.c.l.b16 %v727
        %v1070 = vunpack.c.l.b16 %v728
        %v1071 = vunpack.c.l.b16 %v729
        %v1072 = vunpack.c.l.b16 %v730
        %v1073 = vunpack.c.l.b16 %v731
        %v1074 = vunpack.c.l.b16 %v732
        %v1075 = vunpack.c.l.b16 %v733
        %v1076 = vunpack.c.l.b16 %v734
        %v1077 = vunpack.c.l.b16 %v735
        %v1078 = vunpack.c.l.b16 %v736
        %v1079 = vunpack.c.l.b16 %v737
        %v1080 = vunpack.c.l.b16 %v738
        %v1081 = vunpack.c.l.b16 %v739
        %v1082 = vunpack.c.l.b16 %v740
        %v1083 = vunpack.c.l.b16 %v741
        %v1084 = vunpack.c.l.b16 %v742
        %v1085 = vunpack.c.l.b16 %v743
        %v1086 = vunpack.c.l.b16 %v744
        %v1087 = vunpack.c.l.b16 %v745
        %v1088 = vunpack.c.l.b16 %v746
        %v1089 = vunpack.c.l.b16 %v747
        %v1090 = vunpack.c.l.b16 %v748
        %v1091 = vunpack.c.l.b16 %v749
        %v1092 = vunpack.c.l.b16 %v750
        %v1093 = vunpack.c.l.b16 %v751
        %v1094 = vunpack.c.l.b16 %v752
        %v1095 = vunpack.c.l.b16 %v753
        %v1096 = vpack.c.b16 %v953, %v952
        %v1097 = vpack.c.b16 %v955, %v954
        %v1098 = vpack.c.b16 %v957, %v956
        %v1099 = vpack.c.b16 %v959, %v958
        %v1100 = vpack.c.b16 %v961, %v960
        %v1101 = vpack.c.b16 %v963, %v962
        %v1102 = vpack.c.b16 %v965, %v964
        %v1103 = vpack.c.b16 %v967, %v966
        %v1104 = vpack.c.b16 %v969, %v968
        %v1105 = vpack.c.b16 %v971, %v970
        %v1106 = vpack.c.b16 %v973, %v972
        %v1107 = vpack.c.b16 %v975, %v974
        %v1108 = vpack.c.b16 %v977, %v976
        %v1109 = vpack.c.b16 %v979, %v978
        %v1110 = vpack.c.b16 %v981, %v980
        %v1111 = vpack.c.b16 %v983, %v982
        %v1112 = vpack.c.b16 %v985, %v984
        %v1113 = vpack.c.b16 %v987, %v986
        %v1114 = vpack.c.b16 %v989, %v988
        %v1115 = vpack.c.b16 %v991, %v990
        %v1116 = vpack.c.b16 %v993, %v992
        %v1117 = vpack.c.b16 %v995, %v994
        %v1118 = vpack.c.b16 %v997, %v996
        %v1119 = vpack.c.b16 %v999, %v998
        %v1120 = vpack.c.b16 %v1001, %v1000
        %v1121 = vpack.c.b16 %v1003, %v1002
        %v1122 = vpack.c.b16 %v1005, %v1004
        %v1123 = vpack.c.b16 %v1007, %v1006
        %v1124 = vpack.c.b16 %v1009, %v1008
        %v1125 = vpack.c.b16 %v1011, %v1010
        %v1126 = vpack.c.b16 %v1013, %v1012
        %v1127 = vpack.c.b16 %v1015, %v1014
        %v1128 = vpack.c.b16 %v1017, %v1016
        %v1129 = vpack.c.b16 %v1019, %v1018
        %v1130 = vpack.c.b16 %v1021, %v1020
        %v1131 = vpack.c.b16 %v1023, %v1022
        %v1132 = vpack.c.b16 %v1025, %v1024
        %v1133 = vpack.c.b16 %v1027, %v1026
        %v1134 = vpack.c.b16 %v1029, %v1028
        %v1135 = vpack.c.b16 %v1031, %v1030
        %v1136 = vpack.c.b16 %v1033, %v1032
        %v1137 = vpack.c.b16 %v1035, %v1034
        %v1138 = vpack.c.b16 %v1037, %v1036
        %v1139 = vpack.c.b16 %v1039, %v1038
        %v1140 = vpack.c.b16 %v1041, %v1040
        %v1141 = vpack.c.b16 %v1043, %v1042
        %v1142 = vpack.c.b16 %v1045, %v1044
        %v1143 = vpack.c.b16 %v1047, %v1046
        %v1144 = vpack.c.b16 %v1049, %v1048
        %v1145 = vpack.c.b16 %v1051, %v1050
        %v1146 = vpack.c.b16 %v1053, %v1052
        %v1147 = vpack.c.b16 %v1055, %v1054
        %v1148 = vpack.c.b16 %v1057, %v1056
        %v1149 = vpack.c.b16 %v1059, %v1058
        %v1150 = vpack.c.b16 %v1061, %v1060
        %v1151 = vpack.c.b16 %v1063, %v1062
        %v1152 = vpack.c.b16 %v1065, %v1064
        %v1153 = vpack.c.b16 %v1067, %v1066
        %v1154 = vpack.c.b16 %v1069, %v1068
        %v1155 = vpack.c.b16 %v1071, %v1070
        %v1156 = vpack.c.b16 %v1073, %v1072
        %v1157 = vpack.c.b16 %v1075, %v1074
        %v1158 = vpack.c.b16 %v1077, %v1076
        %v1159 = vpack.c.b16 %v1079, %v1078
        %v1160 = vpack.c.b16 %v1081, %v1080
        %v1161 = vpack.c.b16 %v1083, %v1082
        %v1162 = vpack.c.b16 %v1085, %v1084
        %v1163 = vpack.c.b16 %v1087, %v1086
        %v1164 = vpack.c.b16 %v1089, %v1088
        %v1165 = vpack.c.b16 %v1091, %v1090
        %v1166 = vpack.c.b16 %v1093, %v1092
        %v1167 = vpack.c.b16 %v1095, %v1094
        %1240 = vmatpush.bf16.msra.mxu0 %v1103
        %1241 = vmatpush.bf16.msra.mxu0 %v1102
        %1242 = vmatpush.bf16.msra.mxu0 %v1101
        %1243 = vmatpush.bf16.msra.mxu0 %v1100
        %1244 = vmatpush.bf16.msra.mxu0 %v1099
        %1245 = vmatpush.bf16.msra.mxu0 %v1098
        %1246 = vmatpush.bf16.msra.mxu0 %v1097
        %1247 = vmatpush.bf16.msra.mxu0 %v1096
        %1248 = vmatmul.bf16.gmra.mxu0 %v754
        %v1249 = vpop.f32.mrf.mxu0
        %v1250 = vadd.f32 0.0, %v1249
        %v1251 = vpop.f32.mrf.mxu0
        %v1252 = vadd.f32 0.0, %v1251
        %1253 = vmatmul.bf16.gmra.mxu0 %v760
        %v1254 = vpop.f32.mrf.mxu0
        %v1255 = vadd.f32 0.0, %v1254
        %v1256 = vpop.f32.mrf.mxu0
        %v1257 = vadd.f32 0.0, %v1256
        %1258 = vmatmul.bf16.gmra.mxu0 %v766
        %v1259 = vpop.f32.mrf.mxu0
        %v1260 = vadd.f32 0.0, %v1259
        %v1261 = vpop.f32.mrf.mxu0
        %v1262 = vadd.f32 0.0, %v1261
        %1263 = vmatmul.bf16.gmra.mxu0 %v772
        %v1264 = vpop.f32.mrf.mxu0
        %v1265 = vadd.f32 0.0, %v1264
        %v1266 = vpop.f32.mrf.mxu0
        %v1267 = vadd.f32 0.0, %v1266
        %1268 = vdwg.mxu0
        %1269 = vmatpush.bf16.msra.mxu0 %v1111
        %1270 = vmatpush.bf16.msra.mxu0 %v1110
        %1271 = vmatpush.bf16.msra.mxu0 %v1109
        %1272 = vmatpush.bf16.msra.mxu0 %v1108
        %1273 = vmatpush.bf16.msra.mxu0 %v1107
        %1274 = vmatpush.bf16.msra.mxu0 %v1106
        %1275 = vmatpush.bf16.msra.mxu0 %v1105
        %1276 = vmatpush.bf16.msra.mxu0 %v1104
        %1277 = vmatmul.bf16.gmra.mxu0 %v755
        %v1278 = vpop.f32.mrf.mxu0
        %v1279 = vadd.f32 %v1250, %v1278
        %v1280 = vpop.f32.mrf.mxu0
        %v1281 = vadd.f32 %v1252, %v1280
        %1282 = vmatmul.bf16.gmra.mxu0 %v761
        %v1283 = vpop.f32.mrf.mxu0
        %v1284 = vadd.f32 %v1255, %v1283
        %v1285 = vpop.f32.mrf.mxu0
        %v1286 = vadd.f32 %v1257, %v1285
        %1287 = vmatmul.bf16.gmra.mxu0 %v767
        %v1288 = vpop.f32.mrf.mxu0
        %v1289 = vadd.f32 %v1260, %v1288
        %v1290 = vpop.f32.mrf.mxu0
        %v1291 = vadd.f32 %v1262, %v1290
        %1292 = vmatmul.bf16.gmra.mxu0 %v773
        %v1293 = vpop.f32.mrf.mxu0
        %v1294 = vadd.f32 %v1265, %v1293
        %v1295 = vpop.f32.mrf.mxu0
        %v1296 = vadd.f32 %v1267, %v1295
        %1297 = vdwg.mxu0
        %1298 = vmatpush.bf16.msra.mxu0 %v1119
        %1299 = vmatpush.bf16.msra.mxu0 %v1118
        %1300 = vmatpush.bf16.msra.mxu0 %v1117
        %1301 = vmatpush.bf16.msra.mxu0 %v1116
        %1302 = vmatpush.bf16.msra.mxu0 %v1115
        %1303 = vmatpush.bf16.msra.mxu0 %v1114
        %1304 = vmatpush.bf16.msra.mxu0 %v1113
        %1305 = vmatpush.bf16.msra.mxu0 %v1112
        %1306 = vmatmul.bf16.gmra.mxu0 %v756
        %v1307 = vpop.f32.mrf.mxu0
        %v1308 = vadd.f32 %v1279, %v1307
        %v1309 = vpop.f32.mrf.mxu0
        %v1310 = vadd.f32 %v1281, %v1309
        %1311 = vmatmul.bf16.gmra.mxu0 %v762
        %v1312 = vpop.f32.mrf.mxu0
        %v1313 = vadd.f32 %v1284, %v1312
        %v1314 = vpop.f32.mrf.mxu0
        %v1315 = vadd.f32 %v1286, %v1314
        %1316 = vmatmul.bf16.gmra.mxu0 %v768
        %v1317 = vpop.f32.mrf.mxu0
        %v1318 = vadd.f32 %v1289, %v1317
        %v1319 = vpop.f32.mrf.mxu0
        %v1320 = vadd.f32 %v1291, %v1319
        %1321 = vmatmul.bf16.gmra.mxu0 %v774
        %v1322 = vpop.f32.mrf.mxu0
        %v1323 = vadd.f32 %v1294, %v1322
        %v1324 = vpop.f32.mrf.mxu0
        %v1325 = vadd.f32 %v1296, %v1324
        %1326 = vdwg.mxu0
        %1327 = vmatpush.bf16.msra.mxu0 %v1127
        %1328 = vmatpush.bf16.msra.mxu0 %v1126
        %1329 = vmatpush.bf16.msra.mxu0 %v1125
        %1330 = vmatpush.bf16.msra.mxu0 %v1124
        %1331 = vmatpush.bf16.msra.mxu0 %v1123
        %1332 = vmatpush.bf16.msra.mxu0 %v1122
        %1333 = vmatpush.bf16.msra.mxu0 %v1121
        %1334 = vmatpush.bf16.msra.mxu0 %v1120
        %1335 = vmatmul.bf16.gmra.mxu0 %v757
        %v1336 = vpop.f32.mrf.mxu0
        %v1337 = vadd.f32 %v1308, %v1336
        %v1338 = vpop.f32.mrf.mxu0
        %v1339 = vadd.f32 %v1310, %v1338
        %1340 = vmatmul.bf16.gmra.mxu0 %v763
        %v1341 = vpop.f32.mrf.mxu0
        %v1342 = vadd.f32 %v1313, %v1341
        %v1343 = vpop.f32.mrf.mxu0
        %v1344 = vadd.f32 %v1315, %v1343
        %1345 = vmatmul.bf16.gmra.mxu0 %v769
        %v1346 = vpop.f32.mrf.mxu0
        %v1347 = vadd.f32 %v1318, %v1346
        %v1348 = vpop.f32.mrf.mxu0
        %v1349 = vadd.f32 %v1320, %v1348
        %1350 = vmatmul.bf16.gmra.mxu0 %v775
        %v1351 = vpop.f32.mrf.mxu0
        %v1352 = vadd.f32 %v1323, %v1351
        %v1353 = vpop.f32.mrf.mxu0
        %v1354 = vadd.f32 %v1325, %v1353
        %1355 = vdwg.mxu0
        %1356 = vmatpush.bf16.msra.mxu0 %v1135
        %1357 = vmatpush.bf16.msra.mxu0 %v1134
        %1358 = vmatpush.bf16.msra.mxu0 %v1133
        %1359 = vmatpush.bf16.msra.mxu0 %v1132
        %1360 = vmatpush.bf16.msra.mxu0 %v1131
        %1361 = vmatpush.bf16.msra.mxu0 %v1130
        %1362 = vmatpush.bf16.msra.mxu0 %v1129
        %1363 = vmatpush.bf16.msra.mxu0 %v1128
        %1364 = vmatmul.bf16.gmra.mxu0 %v758
        %v1365 = vpop.f32.mrf.mxu0
        %v1366 = vadd.f32 %v1337, %v1365
        %v1367 = vpop.f32.mrf.mxu0
        %v1368 = vadd.f32 %v1339, %v1367
        %1369 = vmatmul.bf16.gmra.mxu0 %v764
        %v1370 = vpop.f32.mrf.mxu0
        %v1371 = vadd.f32 %v1342, %v1370
        %v1372 = vpop.f32.mrf.mxu0
        %v1373 = vadd.f32 %v1344, %v1372
        %1374 = vmatmul.bf16.gmra.mxu0 %v770
        %v1375 = vpop.f32.mrf.mxu0
        %v1376 = vadd.f32 %v1347, %v1375
        %v1377 = vpop.f32.mrf.mxu0
        %v1378 = vadd.f32 %v1349, %v1377
        %1379 = vmatmul.bf16.gmra.mxu0 %v776
        %v1380 = vpop.f32.mrf.mxu0
        %v1381 = vadd.f32 %v1352, %v1380
        %v1382 = vpop.f32.mrf.mxu0
        %v1383 = vadd.f32 %v1354, %v1382
        %1384 = vdwg.mxu0
        %1385 = vmatpush.bf16.msra.mxu0 %v1143
        %1386 = vmatpush.bf16.msra.mxu0 %v1142
        %1387 = vmatpush.bf16.msra.mxu0 %v1141
        %1388 = vmatpush.bf16.msra.mxu0 %v1140
        %1389 = vmatpush.bf16.msra.mxu0 %v1139
        %1390 = vmatpush.bf16.msra.mxu0 %v1138
        %1391 = vmatpush.bf16.msra.mxu0 %v1137
        %1392 = vmatpush.bf16.msra.mxu0 %v1136
        %1393 = vmatmul.bf16.gmra.mxu0 %v759
        %v1394 = vpop.f32.mrf.mxu0
        %v1395 = vadd.f32 %v1366, %v1394
        %v1396 = vpop.f32.mrf.mxu0
        %v1397 = vadd.f32 %v1368, %v1396
        %1398 = vmatmul.bf16.gmra.mxu0 %v765
        %v1399 = vpop.f32.mrf.mxu0
        %v1400 = vadd.f32 %v1371, %v1399
        %v1401 = vpop.f32.mrf.mxu0
        %v1402 = vadd.f32 %v1373, %v1401
        %1403 = vmatmul.bf16.gmra.mxu0 %v771
        %v1404 = vpop.f32.mrf.mxu0
        %v1405 = vadd.f32 %v1376, %v1404
        %v1406 = vpop.f32.mrf.mxu0
        %v1407 = vadd.f32 %v1378, %v1406
        %1408 = vmatmul.bf16.gmra.mxu0 %v777
        %v1409 = vpop.f32.mrf.mxu0
        %v1410 = vadd.f32 %v1381, %v1409
        %v1411 = vpop.f32.mrf.mxu0
        %v1412 = vadd.f32 %v1383, %v1411
        %1413 = vdwg.mxu0
        %1414 = vmatpush.bf16.msra.mxu0 %v1151
        %1415 = vmatpush.bf16.msra.mxu0 %v1150
        %1416 = vmatpush.bf16.msra.mxu0 %v1149
        %1417 = vmatpush.bf16.msra.mxu0 %v1148
        %1418 = vmatpush.bf16.msra.mxu0 %v1147
        %1419 = vmatpush.bf16.msra.mxu0 %v1146
        %1420 = vmatpush.bf16.msra.mxu0 %v1145
        %1421 = vmatpush.bf16.msra.mxu0 %v1144
        %1422 = vmatmul.bf16.gmra.mxu0 %v760
        %v1423 = vpop.f32.mrf.mxu0
        %v1424 = vadd.f32 %v1395, %v1423
        %v1425 = vpop.f32.mrf.mxu0
        %v1426 = vadd.f32 %v1397, %v1425
        %1427 = vmatmul.bf16.gmra.mxu0 %v766
        %v1428 = vpop.f32.mrf.mxu0
        %v1429 = vadd.f32 %v1400, %v1428
        %v1430 = vpop.f32.mrf.mxu0
        %v1431 = vadd.f32 %v1402, %v1430
        %1432 = vmatmul.bf16.gmra.mxu0 %v772
        %v1433 = vpop.f32.mrf.mxu0
        %v1434 = vadd.f32 %v1405, %v1433
        %v1435 = vpop.f32.mrf.mxu0
        %v1436 = vadd.f32 %v1407, %v1435
        %1437 = vmatmul.bf16.gmra.mxu0 %v778
        %v1438 = vpop.f32.mrf.mxu0
        %v1439 = vadd.f32 %v1410, %v1438
        %v1440 = vpop.f32.mrf.mxu0
        %v1441 = vadd.f32 %v1412, %v1440
        %1442 = vdwg.mxu0
        %1443 = vmatpush.bf16.msra.mxu0 %v1159
        %1444 = vmatpush.bf16.msra.mxu0 %v1158
        %1445 = vmatpush.bf16.msra.mxu0 %v1157
        %1446 = vmatpush.bf16.msra.mxu0 %v1156
        %1447 = vmatpush.bf16.msra.mxu0 %v1155
        %1448 = vmatpush.bf16.msra.mxu0 %v1154
        %1449 = vmatpush.bf16.msra.mxu0 %v1153
        %1450 = vmatpush.bf16.msra.mxu0 %v1152
        %1451 = vmatmul.bf16.gmra.mxu0 %v761
        %v1452 = vpop.f32.mrf.mxu0
        %v1453 = vadd.f32 %v1424, %v1452
        %v1454 = vpop.f32.mrf.mxu0
        %v1455 = vadd.f32 %v1426, %v1454
        %1456 = vmatmul.bf16.gmra.mxu0 %v767
        %v1457 = vpop.f32.mrf.mxu0
        %v1458 = vadd.f32 %v1429, %v1457
        %v1459 = vpop.f32.mrf.mxu0
        %v1460 = vadd.f32 %v1431, %v1459
        %1461 = vmatmul.bf16.gmra.mxu0 %v773
        %v1462 = vpop.f32.mrf.mxu0
        %v1463 = vadd.f32 %v1434, %v1462
        %v1464 = vpop.f32.mrf.mxu0
        %v1465 = vadd.f32 %v1436, %v1464
        %1466 = vmatmul.bf16.gmra.mxu0 %v779
        %v1467 = vpop.f32.mrf.mxu0
        %v1468 = vadd.f32 %v1439, %v1467
        %v1469 = vpop.f32.mrf.mxu0
        %v1470 = vadd.f32 %v1441, %v1469
        %1471 = vdwg.mxu0
        %1472 = vmatpush.bf16.msra.mxu0 %v1167
        %1473 = vmatpush.bf16.msra.mxu0 %v1166
        %1474 = vmatpush.bf16.msra.mxu0 %v1165
        %1475 = vmatpush.bf16.msra.mxu0 %v1164
        %1476 = vmatpush.bf16.msra.mxu0 %v1163
        %1477 = vmatpush.bf16.msra.mxu0 %v1162
        %1478 = vmatpush.bf16.msra.mxu0 %v1161
        %1479 = vmatpush.bf16.msra.mxu0 %v1160
        %1480 = vmatmul.bf16.gmra.mxu0 %v762
        %v1481 = vpop.f32.mrf.mxu0
        %v1482 = vadd.f32 %v1453, %v1481
        %v1483 = vpop.f32.mrf.mxu0
        %v1484 = vadd.f32 %v1455, %v1483
        %1485 = vmatmul.bf16.gmra.mxu0 %v768
        %v1486 = vpop.f32.mrf.mxu0
        %v1487 = vadd.f32 %v1458, %v1486
        %v1488 = vpop.f32.mrf.mxu0
        %v1489 = vadd.f32 %v1460, %v1488
        %1490 = vmatmul.bf16.gmra.mxu0 %v774
        %v1491 = vpop.f32.mrf.mxu0
        %v1492 = vadd.f32 %v1463, %v1491
        %v1493 = vpop.f32.mrf.mxu0
        %v1494 = vadd.f32 %v1465, %v1493
        %1495 = vmatmul.bf16.gmra.mxu0 %v780
        %v1496 = vpop.f32.mrf.mxu0
        %v1497 = vadd.f32 %v1468, %v1496
        %v1498 = vpop.f32.mrf.mxu0
        %v1499 = vadd.f32 %v1470, %v1498
        %1500 = vdwg.mxu0
        %s1501 = sld [smem:[#allocation4]]
        %vm1502 = vcmp.ge.f32.partialorder %v1482, 0.0
        %vm1503 = vcmp.ge.f32.partialorder %v1484, 0.0
        %vm1504 = vcmp.ge.f32.partialorder %v1487, 0.0
        %vm1505 = vcmp.ge.f32.partialorder %v1489, 0.0
        %vm1506 = vcmp.ge.f32.partialorder %v1492, 0.0
        %vm1507 = vcmp.ge.f32.partialorder %v1494, 0.0
        %vm1508 = vcmp.ge.f32.partialorder %v1497, 0.0
        %vm1509 = vcmp.ge.f32.partialorder %v1499, 0.0
        %v1510 = vstv %s1501
        %v1511 = vmul.f32 %v1510, %v1482
        %v1512 = vmul.f32 %v1510, %v1484
        %v1513 = vmul.f32 %v1510, %v1487
        %v1514 = vmul.f32 %v1510, %v1489
        %v1515 = vmul.f32 %v1510, %v1492
        %v1516 = vmul.f32 %v1510, %v1494
        %v1517 = vmul.f32 %v1510, %v1497
        %v1518 = vmul.f32 %v1510, %v1499
        %v1519 = vsel %vm1502, %v1482, %v1511
        %v1520 = vsel %vm1503, %v1484, %v1512
        %v1521 = vsel %vm1504, %v1487, %v1513
        %v1522 = vsel %vm1505, %v1489, %v1514
        %v1523 = vsel %vm1506, %v1492, %v1515
        %v1524 = vsel %vm1507, %v1494, %v1516
        %v1525 = vsel %vm1508, %v1497, %v1517
        %v1526 = vsel %vm1509, %v1499, %v1518
        %v1527 = vpack.c.bf16 %v1519, %v1519
        %v1528 = vpack.c.bf16 %v1520, %v1520
        %v1529 = vpack.c.bf16 %v1521, %v1521
        %v1530 = vpack.c.bf16 %v1522, %v1522
        %v1531 = vpack.c.bf16 %v1523, %v1523
        %v1532 = vpack.c.bf16 %v1524, %v1524
        %v1533 = vpack.c.bf16 %v1525, %v1525
        %v1534 = vpack.c.bf16 %v1526, %v1526
        %v1536 = vshrl.u32 %v1527, 16
        %v1538 = vrot.slane %v1536, 7
        %v1539 = vshll.u32 %v1527, 16
        %v1541 = vor.u32 %v1538, %v1539
        %v1542 = vrot.slane %v1538, 4
        %v1544 = vshrl.u32 %v1528, 16
        %v1546 = vrot.slane %v1544, 7
        %v1547 = vshll.u32 %v1528, 16
        %v1549 = vor.u32 %v1546, %v1547
        %v1550 = vrot.slane %v1546, 4
        %v1552 = vshrl.u32 %v1529, 16
        %v1554 = vrot.slane %v1552, 7
        %v1555 = vshll.u32 %v1529, 16
        %v1557 = vor.u32 %v1554, %v1555
        %v1558 = vrot.slane %v1554, 4
        %v1560 = vshrl.u32 %v1530, 16
        %v1562 = vrot.slane %v1560, 7
        %v1563 = vshll.u32 %v1530, 16
        %v1565 = vor.u32 %v1562, %v1563
        %v1566 = vrot.slane %v1562, 4
        %v1568 = vshrl.u32 %v1531, 16
        %v1570 = vrot.slane %v1568, 7
        %v1571 = vshll.u32 %v1531, 16
        %v1573 = vor.u32 %v1570, %v1571
        %v1574 = vrot.slane %v1570, 4
        %v1576 = vshrl.u32 %v1532, 16
        %v1578 = vrot.slane %v1576, 7
        %v1579 = vshll.u32 %v1532, 16
        %v1581 = vor.u32 %v1578, %v1579
        %v1582 = vrot.slane %v1578, 4
        %v1584 = vshrl.u32 %v1533, 16
        %v1586 = vrot.slane %v1584, 7
        %v1587 = vshll.u32 %v1533, 16
        %v1589 = vor.u32 %v1586, %v1587
        %v1590 = vrot.slane %v1586, 4
        %v1592 = vshrl.u32 %v1534, 16
        %v1594 = vrot.slane %v1592, 7
        %v1595 = vshll.u32 %v1534, 16
        %v1597 = vor.u32 %v1594, %v1595
        %v1598 = vrot.slane %v1594, 4
        %v1615 = vld [vmem:[%s389] sm:$0xf]
        %v1616 = vsel %vm391, %v1541, %v1615
        %1617 = vst [vmem:[%s389] sm:$0xf] %v1616
        %v1618 = vld [vmem:[%s389 + $0x4] sm:$0x1]
        %v1619 = vsel %vm230, %v1542, %v1618
        %1620 = vst [vmem:[%s389 + $0x4] sm:$0x1] %v1619
        %v1621 = vld [vmem:[%s389 + $0x8] sm:$0xf]
        %v1622 = vsel %vm391, %v1549, %v1621
        %1623 = vst [vmem:[%s389 + $0x8] sm:$0xf] %v1622
        %v1624 = vld [vmem:[%s389 + $0xc] sm:$0x1]
        %v1625 = vsel %vm230, %v1550, %v1624
        %1626 = vst [vmem:[%s389 + $0xc] sm:$0x1] %v1625
        %v1627 = vld [vmem:[%s389 + $0x10] sm:$0xf]
        %v1628 = vsel %vm391, %v1557, %v1627
        %1629 = vst [vmem:[%s389 + $0x10] sm:$0xf] %v1628
        %v1630 = vld [vmem:[%s389 + $0x14] sm:$0x1]
        %v1631 = vsel %vm230, %v1558, %v1630
        %1632 = vst [vmem:[%s389 + $0x14] sm:$0x1] %v1631
        %v1633 = vld [vmem:[%s389 + $0x18] sm:$0xf]
        %v1634 = vsel %vm391, %v1565, %v1633
        %1635 = vst [vmem:[%s389 + $0x18] sm:$0xf] %v1634
        %v1636 = vld [vmem:[%s389 + $0x1c] sm:$0x1]
        %v1637 = vsel %vm230, %v1566, %v1636
        %1638 = vst [vmem:[%s389 + $0x1c] sm:$0x1] %v1637
        %v1639 = vld [vmem:[%s389 + $0x20] sm:$0xf]
        %v1640 = vsel %vm391, %v1573, %v1639
        %1641 = vst [vmem:[%s389 + $0x20] sm:$0xf] %v1640
        %v1642 = vld [vmem:[%s389 + $0x24] sm:$0x1]
        %v1643 = vsel %vm230, %v1574, %v1642
        %1644 = vst [vmem:[%s389 + $0x24] sm:$0x1] %v1643
        %v1645 = vld [vmem:[%s389 + $0x28] sm:$0xf]
        %v1646 = vsel %vm391, %v1581, %v1645
        %1647 = vst [vmem:[%s389 + $0x28] sm:$0xf] %v1646
        %v1648 = vld [vmem:[%s389 + $0x2c] sm:$0x1]
        %v1649 = vsel %vm230, %v1582, %v1648
        %1650 = vst [vmem:[%s389 + $0x2c] sm:$0x1] %v1649
        %v1651 = vld [vmem:[%s389 + $0x30] sm:$0xf]
        %v1652 = vsel %vm391, %v1589, %v1651
        %1653 = vst [vmem:[%s389 + $0x30] sm:$0xf] %v1652
        %v1654 = vld [vmem:[%s389 + $0x34] sm:$0x1]
        %v1655 = vsel %vm230, %v1590, %v1654
        %1656 = vst [vmem:[%s389 + $0x34] sm:$0x1] %v1655
        %v1657 = vld [vmem:[%s389 + $0x38] sm:$0xf]
        %v1658 = vsel %vm391, %v1597, %v1657
        %1659 = vst [vmem:[%s389 + $0x38] sm:$0xf] %v1658
        %v1660 = vld [vmem:[%s389 + $0x3c] sm:$0x1]
        %v1661 = vsel %vm230, %v1598, %v1660
        %1662 = vst [vmem:[%s389 + $0x3c] sm:$0x1] %v1661
        %v1663 = vld [vmem:[#allocation2] sm:$0xf]
        %v1664 = vld [vmem:[#allocation2 + $0x4] sm:$0x1]
        %v1665 = vld [vmem:[#allocation2 + $0x8] sm:$0xf]
        %v1666 = vld [vmem:[#allocation2 + $0xc] sm:$0x1]
        %v1667 = vld [vmem:[#allocation2 + $0x10] sm:$0xf]
        %v1668 = vld [vmem:[#allocation2 + $0x14] sm:$0x1]
        %v1669 = vld [vmem:[#allocation2 + $0x18] sm:$0xf]
        %v1670 = vld [vmem:[#allocation2 + $0x1c] sm:$0x1]
        %v1671 = vld [vmem:[#allocation2 + $0x20] sm:$0xf]
        %v1672 = vld [vmem:[#allocation2 + $0x24] sm:$0x1]
        %v1673 = vld [vmem:[#allocation2 + $0x28] sm:$0xf]
        %v1674 = vld [vmem:[#allocation2 + $0x2c] sm:$0x1]
        %v1675 = vld [vmem:[#allocation2 + $0x30] sm:$0xf]
        %v1676 = vld [vmem:[#allocation2 + $0x34] sm:$0x1]
        %v1677 = vld [vmem:[#allocation2 + $0x38] sm:$0xf]
        %v1678 = vld [vmem:[#allocation2 + $0x3c] sm:$0x1]
        %v1679 = vld [vmem:[#allocation2 + $0x40] sm:$0xf]
        %v1680 = vld [vmem:[#allocation2 + $0x44] sm:$0x1]
        %v1681 = vld [vmem:[#allocation2 + $0x48] sm:$0xf]
        %v1682 = vld [vmem:[#allocation2 + $0x4c] sm:$0x1]
        %v1699 = vunpack.c.l.b16 %v1663
        %v1700 = vunpack.c.l.b16 %v1664
        %v1701 = vunpack.c.l.b16 %v1665
        %v1702 = vunpack.c.l.b16 %v1666
        %v1703 = vunpack.c.l.b16 %v1667
        %v1704 = vunpack.c.l.b16 %v1668
        %v1705 = vunpack.c.l.b16 %v1669
        %v1706 = vunpack.c.l.b16 %v1670
        %v1707 = vunpack.c.l.b16 %v1671
        %v1708 = vunpack.c.l.b16 %v1672
        %v1709 = vunpack.c.l.b16 %v1673
        %v1710 = vunpack.c.l.b16 %v1674
        %v1711 = vunpack.c.l.b16 %v1675
        %v1712 = vunpack.c.l.b16 %v1676
        %v1713 = vunpack.c.l.b16 %v1677
        %v1714 = vunpack.c.l.b16 %v1678
        %v1715 = vpack.c.b16 %v1700, %v1699
        %v1716 = vpack.c.b16 %v1702, %v1701
        %v1717 = vpack.c.b16 %v1704, %v1703
        %v1718 = vpack.c.b16 %v1706, %v1705
        %v1719 = vpack.c.b16 %v1708, %v1707
        %v1720 = vpack.c.b16 %v1710, %v1709
        %v1721 = vpack.c.b16 %v1712, %v1711
        %v1722 = vpack.c.b16 %v1714, %v1713
        %v1724 = vshrl.u32 %v1715, 16
        %v1726 = vshll.u32 %v1715, 16
        %v1728 = vrot.slane %v1726, 1
        %v1729 = vor.u32 %v1724, %v1728
        %v1731 = vshrl.u32 %v1716, 16
        %v1733 = vshll.u32 %v1716, 16
        %v1735 = vrot.slane %v1733, 1
        %v1736 = vor.u32 %v1731, %v1735
        %v1738 = vshrl.u32 %v1717, 16
        %v1740 = vshll.u32 %v1717, 16
        %v1742 = vrot.slane %v1740, 1
        %v1743 = vor.u32 %v1738, %v1742
        %v1745 = vshrl.u32 %v1718, 16
        %v1747 = vshll.u32 %v1718, 16
        %v1749 = vrot.slane %v1747, 1
        %v1750 = vor.u32 %v1745, %v1749
        %v1752 = vshrl.u32 %v1719, 16
        %v1754 = vshll.u32 %v1719, 16
        %v1756 = vrot.slane %v1754, 1
        %v1757 = vor.u32 %v1752, %v1756
        %v1759 = vshrl.u32 %v1720, 16
        %v1761 = vshll.u32 %v1720, 16
        %v1763 = vrot.slane %v1761, 1
        %v1764 = vor.u32 %v1759, %v1763
        %v1766 = vshrl.u32 %v1721, 16
        %v1768 = vshll.u32 %v1721, 16
        %v1770 = vrot.slane %v1768, 1
        %v1771 = vor.u32 %v1766, %v1770
        %v1773 = vshrl.u32 %v1722, 16
        %v1775 = vshll.u32 %v1722, 16
        %v1777 = vrot.slane %v1775, 1
        %v1778 = vor.u32 %v1773, %v1777
        %v1779 = vrot.slane %v1715, 1
        %v1780 = vrot.slane %v1716, 1
        %v1781 = vrot.slane %v1717, 1
        %v1782 = vrot.slane %v1718, 1
        %v1783 = vrot.slane %v1719, 1
        %v1784 = vrot.slane %v1720, 1
        %v1785 = vrot.slane %v1721, 1
        %v1786 = vrot.slane %v1722, 1
        %v1789 = vunpack.c.l.b16 %v1679
        %v1790 = vunpack.c.l.b16 %v1680
        %v1791 = vpack.c.b16 %v1790, %v1789
        %v1793 = vshrl.u32 %v1791, 16
        %v1795 = vshll.u32 %v1791, 16
        %v1797 = vrot.slane %v1795, 1
        %v1798 = vor.u32 %v1793, %v1797
        %v1799 = vrot.slane %v1791, 1
        %v1802 = vunpack.c.l.b16 %v1681
        %v1803 = vunpack.c.l.b16 %v1682
        %v1804 = vpack.c.b16 %v1803, %v1802
        %v1806 = vshrl.u32 %v1804, 16
        %v1808 = vshll.u32 %v1804, 16
        %v1810 = vrot.slane %v1808, 1
        %v1811 = vor.u32 %v1806, %v1810
        %v1812 = vrot.slane %v1804, 1
        %v1813 = vunpack.c.l.b16 %v1729
        %v1814 = vunpack.c.l.b16 %v1779
        %v1815 = vunpack.c.l.b16 %v1736
        %v1816 = vunpack.c.l.b16 %v1780
        %v1817 = vunpack.c.l.b16 %v1743
        %v1818 = vunpack.c.l.b16 %v1781
        %v1819 = vunpack.c.l.b16 %v1750
        %v1820 = vunpack.c.l.b16 %v1782
        %v1821 = vunpack.c.l.b16 %v1757
        %v1822 = vunpack.c.l.b16 %v1783
        %v1823 = vunpack.c.l.b16 %v1764
        %v1824 = vunpack.c.l.b16 %v1784
        %v1825 = vunpack.c.l.b16 %v1771
        %v1826 = vunpack.c.l.b16 %v1785
        %v1827 = vunpack.c.l.b16 %v1778
        %v1828 = vunpack.c.l.b16 %v1786
        %v1829 = vunpack.c.l.b16 %v1798
        %v1830 = vunpack.c.l.b16 %v1799
        %v1831 = vunpack.c.l.b16 %v1811
        %v1832 = vunpack.c.l.b16 %v1812
        %s1833 = scalar_lea.vmem [#allocation9], 576
        %v1834 = vld [vmem:[%s1833] sm:$0xf]
        %v1835 = vld [vmem:[%s1833 + $0x4] sm:$0xf]
        %v1836 = vld [vmem:[%s1833 + $0x8] sm:$0xf]
        %v1837 = vld [vmem:[%s1833 + $0xc] sm:$0xf]
        %v1838 = vld [vmem:[%s1833 + $0x10] sm:$0xf]
        %v1839 = vld [vmem:[%s1833 + $0x14] sm:$0xf]
        %v1840 = vld [vmem:[%s1833 + $0x18] sm:$0xf]
        %v1841 = vld [vmem:[%s1833 + $0x1c] sm:$0xf]
        %v1842 = vld [vmem:[%s1833 + $0x20] sm:$0xf]
        %v1843 = vld [vmem:[%s1833 + $0x24] sm:$0xf]
        %v1844 = vld [vmem:[%s1833 + $0x28] sm:$0xf]
        %v1845 = vld [vmem:[%s1833 + $0x2c] sm:$0xf]
        %v1846 = vld [vmem:[%s1833 + $0x30] sm:$0xf]
        %v1847 = vld [vmem:[%s1833 + $0x34] sm:$0xf]
        %v1848 = vld [vmem:[%s1833 + $0x38] sm:$0xf]
        %v1849 = vld [vmem:[%s1833 + $0x3c] sm:$0xf]
        %v1850 = vld [vmem:[%s1833 + $0x40] sm:$0xf]
        %v1851 = vld [vmem:[%s1833 + $0x44] sm:$0xf]
        %v1852 = vld [vmem:[%s1833 + $0x48] sm:$0xf]
        %v1853 = vld [vmem:[%s1833 + $0x4c] sm:$0xf]
        %v1854 = vld [vmem:[%s1833 + $0x50] sm:$0xf]
        %v1855 = vld [vmem:[%s1833 + $0x54] sm:$0xf]
        %v1856 = vld [vmem:[%s1833 + $0x58] sm:$0xf]
        %v1857 = vld [vmem:[%s1833 + $0x5c] sm:$0xf]
        %v1858 = vld [vmem:[%s1833 + $0x60] sm:$0xf]
        %v1859 = vld [vmem:[%s1833 + $0x64] sm:$0xf]
        %v1860 = vld [vmem:[%s1833 + $0x68] sm:$0xf]
        %v1861 = vld [vmem:[%s1833 + $0x6c] sm:$0xf]
        %v1862 = vld [vmem:[%s1833 + $0x70] sm:$0xf]
        %v1863 = vld [vmem:[%s1833 + $0x74] sm:$0xf]
        %v1864 = vld [vmem:[%s1833 + $0x78] sm:$0xf]
        %v1865 = vld [vmem:[%s1833 + $0x7c] sm:$0xf]
        %v1866 = vld [vmem:[%s1833 + $0x80] sm:$0xf]
        %v1867 = vld [vmem:[%s1833 + $0x84] sm:$0xf]
        %v1868 = vld [vmem:[%s1833 + $0x88] sm:$0xf]
        %v1869 = vld [vmem:[%s1833 + $0x8c] sm:$0xf]
        %v1870 = vld [vmem:[%s1833 + $0x90] sm:$0xf]
        %v1871 = vld [vmem:[%s1833 + $0x94] sm:$0xf]
        %v1872 = vld [vmem:[%s1833 + $0x98] sm:$0xf]
        %v1873 = vld [vmem:[%s1833 + $0x9c] sm:$0xf]
        %v1874 = vld [vmem:[%s1833 + $0xa0] sm:$0xf]
        %v1875 = vld [vmem:[%s1833 + $0xa4] sm:$0xf]
        %v1876 = vld [vmem:[%s1833 + $0xa8] sm:$0xf]
        %v1877 = vld [vmem:[%s1833 + $0xac] sm:$0xf]
        %v1878 = vld [vmem:[%s1833 + $0xb0] sm:$0xf]
        %v1879 = vld [vmem:[%s1833 + $0xb4] sm:$0xf]
        %v1880 = vld [vmem:[%s1833 + $0xb8] sm:$0xf]
        %v1881 = vld [vmem:[%s1833 + $0xbc] sm:$0xf]
        %v1882 = vld [vmem:[%s1833 + $0xc0] sm:$0xf]
        %v1883 = vld [vmem:[%s1833 + $0xc4] sm:$0xf]
        %v1884 = vld [vmem:[%s1833 + $0xc8] sm:$0xf]
        %v1885 = vld [vmem:[%s1833 + $0xcc] sm:$0xf]
        %v1886 = vld [vmem:[%s1833 + $0xd0] sm:$0xf]
        %v1887 = vld [vmem:[%s1833 + $0xd4] sm:$0xf]
        %v1888 = vld [vmem:[%s1833 + $0xd8] sm:$0xf]
        %v1889 = vld [vmem:[%s1833 + $0xdc] sm:$0xf]
        %v1890 = vld [vmem:[%s1833 + $0xe0] sm:$0xf]
        %v1891 = vld [vmem:[%s1833 + $0xe4] sm:$0xf]
        %v1892 = vld [vmem:[%s1833 + $0xe8] sm:$0xf]
        %v1893 = vld [vmem:[%s1833 + $0xec] sm:$0xf]
        %v1894 = vld [vmem:[%s1833 + $0xf0] sm:$0xf]
        %v1895 = vld [vmem:[%s1833 + $0xf4] sm:$0xf]
        %v1896 = vld [vmem:[%s1833 + $0xf8] sm:$0xf]
        %v1897 = vld [vmem:[%s1833 + $0xfc] sm:$0xf]
        %v1898 = vld [vmem:[%s1833 + $0x100] sm:$0xf]
        %v1899 = vld [vmem:[%s1833 + $0x104] sm:$0xf]
        %v1900 = vld [vmem:[%s1833 + $0x108] sm:$0xf]
        %v1901 = vld [vmem:[%s1833 + $0x10c] sm:$0xf]
        %v1902 = vld [vmem:[%s1833 + $0x110] sm:$0xf]
        %v1903 = vld [vmem:[%s1833 + $0x114] sm:$0xf]
        %v1904 = vld [vmem:[%s1833 + $0x118] sm:$0xf]
        %v1905 = vld [vmem:[%s1833 + $0x11c] sm:$0xf]
        %v1906 = vld [vmem:[%s1833 + $0x120] sm:$0xf]
        %v1907 = vld [vmem:[%s1833 + $0x124] sm:$0xf]
        %v1908 = vld [vmem:[%s1833 + $0x128] sm:$0xf]
        %v1909 = vld [vmem:[%s1833 + $0x12c] sm:$0xf]
        %v1910 = vld [vmem:[%s1833 + $0x130] sm:$0xf]
        %v1911 = vld [vmem:[%s1833 + $0x134] sm:$0xf]
        %v1912 = vld [vmem:[%s1833 + $0x138] sm:$0xf]
        %v1913 = vld [vmem:[%s1833 + $0x13c] sm:$0xf]
        %v1914 = vld [vmem:[%s1833 + $0x140] sm:$0xf]
        %v1915 = vld [vmem:[%s1833 + $0x144] sm:$0xf]
        %v1916 = vld [vmem:[%s1833 + $0x148] sm:$0xf]
        %v1917 = vld [vmem:[%s1833 + $0x14c] sm:$0xf]
        %v1918 = vld [vmem:[%s1833 + $0x150] sm:$0xf]
        %v1919 = vld [vmem:[%s1833 + $0x154] sm:$0xf]
        %v1920 = vld [vmem:[%s1833 + $0x158] sm:$0xf]
        %v1921 = vld [vmem:[%s1833 + $0x15c] sm:$0xf]
        %v1922 = vld [vmem:[%s1833 + $0x160] sm:$0xf]
        %v1923 = vld [vmem:[%s1833 + $0x164] sm:$0xf]
        %v1924 = vld [vmem:[%s1833 + $0x168] sm:$0xf]
        %v1925 = vld [vmem:[%s1833 + $0x16c] sm:$0xf]
        %v1926 = vld [vmem:[%s1833 + $0x170] sm:$0xf]
        %v1927 = vld [vmem:[%s1833 + $0x174] sm:$0xf]
        %v1928 = vld [vmem:[%s1833 + $0x178] sm:$0xf]
        %v1929 = vld [vmem:[%s1833 + $0x17c] sm:$0xf]
        %v1930 = vld [vmem:[%s1833 + $0x180] sm:$0xf]
        %v1931 = vld [vmem:[%s1833 + $0x184] sm:$0xf]
        %v1932 = vld [vmem:[%s1833 + $0x188] sm:$0xf]
        %v1933 = vld [vmem:[%s1833 + $0x18c] sm:$0xf]
        %v1934 = vld [vmem:[%s1833 + $0x190] sm:$0xf]
        %v1935 = vld [vmem:[%s1833 + $0x194] sm:$0xf]
        %v1936 = vld [vmem:[%s1833 + $0x198] sm:$0xf]
        %v1937 = vld [vmem:[%s1833 + $0x19c] sm:$0xf]
        %v1938 = vld [vmem:[%s1833 + $0x1a0] sm:$0xf]
        %v1939 = vld [vmem:[%s1833 + $0x1a4] sm:$0xf]
        %v1940 = vld [vmem:[%s1833 + $0x1a8] sm:$0xf]
        %v1941 = vld [vmem:[%s1833 + $0x1ac] sm:$0xf]
        %v1942 = vld [vmem:[%s1833 + $0x1b0] sm:$0xf]
        %v1943 = vld [vmem:[%s1833 + $0x1b4] sm:$0xf]
        %v1944 = vld [vmem:[%s1833 + $0x1b8] sm:$0xf]
        %v1945 = vld [vmem:[%s1833 + $0x1bc] sm:$0xf]
        %v1946 = vld [vmem:[%s1833 + $0x1c0] sm:$0xf]
        %v1947 = vld [vmem:[%s1833 + $0x1c4] sm:$0xf]
        %v1948 = vld [vmem:[%s1833 + $0x1c8] sm:$0xf]
        %v1949 = vld [vmem:[%s1833 + $0x1cc] sm:$0xf]
        %v1950 = vld [vmem:[%s1833 + $0x1d0] sm:$0xf]
        %v1951 = vld [vmem:[%s1833 + $0x1d4] sm:$0xf]
        %v1952 = vld [vmem:[%s1833 + $0x1d8] sm:$0xf]
        %v1953 = vld [vmem:[%s1833 + $0x1dc] sm:$0xf]
        %v1954 = vld [vmem:[%s1833 + $0x1e0] sm:$0xf]
        %v1955 = vld [vmem:[%s1833 + $0x1e4] sm:$0xf]
        %v1956 = vld [vmem:[%s1833 + $0x1e8] sm:$0xf]
        %v1957 = vld [vmem:[%s1833 + $0x1ec] sm:$0xf]
        %v1958 = vld [vmem:[%s1833 + $0x1f0] sm:$0xf]
        %v1959 = vld [vmem:[%s1833 + $0x1f4] sm:$0xf]
        %v1960 = vld [vmem:[%s1833 + $0x1f8] sm:$0xf]
        %v1961 = vld [vmem:[%s1833 + $0x1fc] sm:$0xf]
        %v1962 = vld [vmem:[%s1833 + $0x200] sm:$0xf]
        %v1963 = vld [vmem:[%s1833 + $0x204] sm:$0xf]
        %v1964 = vld [vmem:[%s1833 + $0x208] sm:$0xf]
        %v1965 = vld [vmem:[%s1833 + $0x20c] sm:$0xf]
        %v1966 = vld [vmem:[%s1833 + $0x210] sm:$0xf]
        %v1967 = vld [vmem:[%s1833 + $0x214] sm:$0xf]
        %v1968 = vld [vmem:[%s1833 + $0x218] sm:$0xf]
        %v1969 = vld [vmem:[%s1833 + $0x21c] sm:$0xf]
        %v1970 = vld [vmem:[%s1833 + $0x220] sm:$0xf]
        %v1971 = vld [vmem:[%s1833 + $0x224] sm:$0xf]
        %v1972 = vld [vmem:[%s1833 + $0x228] sm:$0xf]
        %v1973 = vld [vmem:[%s1833 + $0x22c] sm:$0xf]
        %v1974 = vld [vmem:[%s1833 + $0x230] sm:$0xf]
        %v1975 = vld [vmem:[%s1833 + $0x234] sm:$0xf]
        %v1976 = vld [vmem:[%s1833 + $0x238] sm:$0xf]
        %v1977 = vld [vmem:[%s1833 + $0x23c] sm:$0xf]
        %v1978 = vpack.c.b16 %v1701, %v1699
        %v1979 = vpack.c.b16 %v1815, %v1813
        %v1980 = vpack.c.b16 %v1816, %v1814
        %v1981 = vpack.c.b16 %v1703, %v1701
        %v1982 = vpack.c.b16 %v1817, %v1815
        %v1983 = vpack.c.b16 %v1818, %v1816
        %v1984 = vpack.c.b16 %v1705, %v1703
        %v1985 = vpack.c.b16 %v1819, %v1817
        %v1986 = vpack.c.b16 %v1820, %v1818
        %v1987 = vpack.c.b16 %v1707, %v1705
        %v1988 = vpack.c.b16 %v1821, %v1819
        %v1989 = vpack.c.b16 %v1822, %v1820
        %v1990 = vpack.c.b16 %v1709, %v1707
        %v1991 = vpack.c.b16 %v1823, %v1821
        %v1992 = vpack.c.b16 %v1824, %v1822
        %v1993 = vpack.c.b16 %v1711, %v1709
        %v1994 = vpack.c.b16 %v1825, %v1823
        %v1995 = vpack.c.b16 %v1826, %v1824
        %v1996 = vpack.c.b16 %v1713, %v1711
        %v1997 = vpack.c.b16 %v1827, %v1825
        %v1998 = vpack.c.b16 %v1828, %v1826
        %v1999 = vpack.c.b16 %v1789, %v1713
        %v2000 = vpack.c.b16 %v1829, %v1827
        %v2001 = vpack.c.b16 %v1830, %v1828
        %v2002 = vpack.c.b16 %v1802, %v1789
        %v2003 = vpack.c.b16 %v1831, %v1829
        %v2004 = vpack.c.b16 %v1832, %v1830
        %v2176 = vunpack.c.l.b16 %v1834
        %v2177 = vunpack.c.l.b16 %v1835
        %v2178 = vunpack.c.l.b16 %v1836
        %v2179 = vunpack.c.l.b16 %v1837
        %v2180 = vunpack.c.l.b16 %v1838
        %v2181 = vunpack.c.l.b16 %v1839
        %v2182 = vunpack.c.l.b16 %v1840
        %v2183 = vunpack.c.l.b16 %v1841
        %v2184 = vunpack.c.l.b16 %v1842
        %v2185 = vunpack.c.l.b16 %v1843
        %v2186 = vunpack.c.l.b16 %v1844
        %v2187 = vunpack.c.l.b16 %v1845
        %v2188 = vunpack.c.l.b16 %v1846
        %v2189 = vunpack.c.l.b16 %v1847
        %v2190 = vunpack.c.l.b16 %v1848
        %v2191 = vunpack.c.l.b16 %v1849
        %v2192 = vunpack.c.l.b16 %v1850
        %v2193 = vunpack.c.l.b16 %v1851
        %v2194 = vunpack.c.l.b16 %v1852
        %v2195 = vunpack.c.l.b16 %v1853
        %v2196 = vunpack.c.l.b16 %v1854
        %v2197 = vunpack.c.l.b16 %v1855
        %v2198 = vunpack.c.l.b16 %v1856
        %v2199 = vunpack.c.l.b16 %v1857
        %v2200 = vunpack.c.l.b16 %v1858
        %v2201 = vunpack.c.l.b16 %v1859
        %v2202 = vunpack.c.l.b16 %v1860
        %v2203 = vunpack.c.l.b16 %v1861
        %v2204 = vunpack.c.l.b16 %v1862
        %v2205 = vunpack.c.l.b16 %v1863
        %v2206 = vunpack.c.l.b16 %v1864
        %v2207 = vunpack.c.l.b16 %v1865
        %v2208 = vunpack.c.l.b16 %v1866
        %v2209 = vunpack.c.l.b16 %v1867
        %v2210 = vunpack.c.l.b16 %v1868
        %v2211 = vunpack.c.l.b16 %v1869
        %v2212 = vunpack.c.l.b16 %v1870
        %v2213 = vunpack.c.l.b16 %v1871
        %v2214 = vunpack.c.l.b16 %v1872
        %v2215 = vunpack.c.l.b16 %v1873
        %v2216 = vunpack.c.l.b16 %v1874
        %v2217 = vunpack.c.l.b16 %v1875
        %v2218 = vunpack.c.l.b16 %v1876
        %v2219 = vunpack.c.l.b16 %v1877
        %v2220 = vunpack.c.l.b16 %v1878
        %v2221 = vunpack.c.l.b16 %v1879
        %v2222 = vunpack.c.l.b16 %v1880
        %v2223 = vunpack.c.l.b16 %v1881
        %v2224 = vunpack.c.l.b16 %v1882
        %v2225 = vunpack.c.l.b16 %v1883
        %v2226 = vunpack.c.l.b16 %v1884
        %v2227 = vunpack.c.l.b16 %v1885
        %v2228 = vunpack.c.l.b16 %v1886
        %v2229 = vunpack.c.l.b16 %v1887
        %v2230 = vunpack.c.l.b16 %v1888
        %v2231 = vunpack.c.l.b16 %v1889
        %v2232 = vunpack.c.l.b16 %v1890
        %v2233 = vunpack.c.l.b16 %v1891
        %v2234 = vunpack.c.l.b16 %v1892
        %v2235 = vunpack.c.l.b16 %v1893
        %v2236 = vunpack.c.l.b16 %v1894
        %v2237 = vunpack.c.l.b16 %v1895
        %v2238 = vunpack.c.l.b16 %v1896
        %v2239 = vunpack.c.l.b16 %v1897
        %v2240 = vunpack.c.l.b16 %v1898
        %v2241 = vunpack.c.l.b16 %v1899
        %v2242 = vunpack.c.l.b16 %v1900
        %v2243 = vunpack.c.l.b16 %v1901
        %v2244 = vunpack.c.l.b16 %v1902
        %v2245 = vunpack.c.l.b16 %v1903
        %v2246 = vunpack.c.l.b16 %v1904
        %v2247 = vunpack.c.l.b16 %v1905
        %v2248 = vunpack.c.l.b16 %v1906
        %v2249 = vunpack.c.l.b16 %v1907
        %v2250 = vunpack.c.l.b16 %v1908
        %v2251 = vunpack.c.l.b16 %v1909
        %v2252 = vunpack.c.l.b16 %v1910
        %v2253 = vunpack.c.l.b16 %v1911
        %v2254 = vunpack.c.l.b16 %v1912
        %v2255 = vunpack.c.l.b16 %v1913
        %v2256 = vunpack.c.l.b16 %v1914
        %v2257 = vunpack.c.l.b16 %v1915
        %v2258 = vunpack.c.l.b16 %v1916
        %v2259 = vunpack.c.l.b16 %v1917
        %v2260 = vunpack.c.l.b16 %v1918
        %v2261 = vunpack.c.l.b16 %v1919
        %v2262 = vunpack.c.l.b16 %v1920
        %v2263 = vunpack.c.l.b16 %v1921
        %v2264 = vunpack.c.l.b16 %v1922
        %v2265 = vunpack.c.l.b16 %v1923
        %v2266 = vunpack.c.l.b16 %v1924
        %v2267 = vunpack.c.l.b16 %v1925
        %v2268 = vunpack.c.l.b16 %v1926
        %v2269 = vunpack.c.l.b16 %v1927
        %v2270 = vunpack.c.l.b16 %v1928
        %v2271 = vunpack.c.l.b16 %v1929
        %v2272 = vunpack.c.l.b16 %v1930
        %v2273 = vunpack.c.l.b16 %v1931
        %v2274 = vunpack.c.l.b16 %v1932
        %v2275 = vunpack.c.l.b16 %v1933
        %v2276 = vunpack.c.l.b16 %v1934
        %v2277 = vunpack.c.l.b16 %v1935
        %v2278 = vunpack.c.l.b16 %v1936
        %v2279 = vunpack.c.l.b16 %v1937
        %v2280 = vunpack.c.l.b16 %v1938
        %v2281 = vunpack.c.l.b16 %v1939
        %v2282 = vunpack.c.l.b16 %v1940
        %v2283 = vunpack.c.l.b16 %v1941
        %v2284 = vunpack.c.l.b16 %v1942
        %v2285 = vunpack.c.l.b16 %v1943
        %v2286 = vunpack.c.l.b16 %v1944
        %v2287 = vunpack.c.l.b16 %v1945
        %v2288 = vunpack.c.l.b16 %v1946
        %v2289 = vunpack.c.l.b16 %v1947
        %v2290 = vunpack.c.l.b16 %v1948
        %v2291 = vunpack.c.l.b16 %v1949
        %v2292 = vunpack.c.l.b16 %v1950
        %v2293 = vunpack.c.l.b16 %v1951
        %v2294 = vunpack.c.l.b16 %v1952
        %v2295 = vunpack.c.l.b16 %v1953
        %v2296 = vunpack.c.l.b16 %v1954
        %v2297 = vunpack.c.l.b16 %v1955
        %v2298 = vunpack.c.l.b16 %v1956
        %v2299 = vunpack.c.l.b16 %v1957
        %v2300 = vunpack.c.l.b16 %v1958
        %v2301 = vunpack.c.l.b16 %v1959
        %v2302 = vunpack.c.l.b16 %v1960
        %v2303 = vunpack.c.l.b16 %v1961
        %v2304 = vunpack.c.l.b16 %v1962
        %v2305 = vunpack.c.l.b16 %v1963
        %v2306 = vunpack.c.l.b16 %v1964
        %v2307 = vunpack.c.l.b16 %v1965
        %v2308 = vunpack.c.l.b16 %v1966
        %v2309 = vunpack.c.l.b16 %v1967
        %v2310 = vunpack.c.l.b16 %v1968
        %v2311 = vunpack.c.l.b16 %v1969
        %v2312 = vunpack.c.l.b16 %v1970
        %v2313 = vunpack.c.l.b16 %v1971
        %v2314 = vunpack.c.l.b16 %v1972
        %v2315 = vunpack.c.l.b16 %v1973
        %v2316 = vunpack.c.l.b16 %v1974
        %v2317 = vunpack.c.l.b16 %v1975
        %v2318 = vunpack.c.l.b16 %v1976
        %v2319 = vunpack.c.l.b16 %v1977
        %v2320 = vpack.c.b16 %v2177, %v2176
        %v2321 = vpack.c.b16 %v2179, %v2178
        %v2322 = vpack.c.b16 %v2181, %v2180
        %v2323 = vpack.c.b16 %v2183, %v2182
        %v2324 = vpack.c.b16 %v2185, %v2184
        %v2325 = vpack.c.b16 %v2187, %v2186
        %v2326 = vpack.c.b16 %v2189, %v2188
        %v2327 = vpack.c.b16 %v2191, %v2190
        %v2328 = vpack.c.b16 %v2193, %v2192
        %v2329 = vpack.c.b16 %v2195, %v2194
        %v2330 = vpack.c.b16 %v2197, %v2196
        %v2331 = vpack.c.b16 %v2199, %v2198
        %v2332 = vpack.c.b16 %v2201, %v2200
        %v2333 = vpack.c.b16 %v2203, %v2202
        %v2334 = vpack.c.b16 %v2205, %v2204
        %v2335 = vpack.c.b16 %v2207, %v2206
        %v2336 = vpack.c.b16 %v2209, %v2208
        %v2337 = vpack.c.b16 %v2211, %v2210
        %v2338 = vpack.c.b16 %v2213, %v2212
        %v2339 = vpack.c.b16 %v2215, %v2214
        %v2340 = vpack.c.b16 %v2217, %v2216
        %v2341 = vpack.c.b16 %v2219, %v2218
        %v2342 = vpack.c.b16 %v2221, %v2220
        %v2343 = vpack.c.b16 %v2223, %v2222
        %v2344 = vpack.c.b16 %v2225, %v2224
        %v2345 = vpack.c.b16 %v2227, %v2226
        %v2346 = vpack.c.b16 %v2229, %v2228
        %v2347 = vpack.c.b16 %v2231, %v2230
        %v2348 = vpack.c.b16 %v2233, %v2232
        %v2349 = vpack.c.b16 %v2235, %v2234
        %v2350 = vpack.c.b16 %v2237, %v2236
        %v2351 = vpack.c.b16 %v2239, %v2238
        %v2352 = vpack.c.b16 %v2241, %v2240
        %v2353 = vpack.c.b16 %v2243, %v2242
        %v2354 = vpack.c.b16 %v2245, %v2244
        %v2355 = vpack.c.b16 %v2247, %v2246
        %v2356 = vpack.c.b16 %v2249, %v2248
        %v2357 = vpack.c.b16 %v2251, %v2250
        %v2358 = vpack.c.b16 %v2253, %v2252
        %v2359 = vpack.c.b16 %v2255, %v2254
        %v2360 = vpack.c.b16 %v2257, %v2256
        %v2361 = vpack.c.b16 %v2259, %v2258
        %v2362 = vpack.c.b16 %v2261, %v2260
        %v2363 = vpack.c.b16 %v2263, %v2262
        %v2364 = vpack.c.b16 %v2265, %v2264
        %v2365 = vpack.c.b16 %v2267, %v2266
        %v2366 = vpack.c.b16 %v2269, %v2268
        %v2367 = vpack.c.b16 %v2271, %v2270
        %v2368 = vpack.c.b16 %v2273, %v2272
        %v2369 = vpack.c.b16 %v2275, %v2274
        %v2370 = vpack.c.b16 %v2277, %v2276
        %v2371 = vpack.c.b16 %v2279, %v2278
        %v2372 = vpack.c.b16 %v2281, %v2280
        %v2373 = vpack.c.b16 %v2283, %v2282
        %v2374 = vpack.c.b16 %v2285, %v2284
        %v2375 = vpack.c.b16 %v2287, %v2286
        %v2376 = vpack.c.b16 %v2289, %v2288
        %v2377 = vpack.c.b16 %v2291, %v2290
        %v2378 = vpack.c.b16 %v2293, %v2292
        %v2379 = vpack.c.b16 %v2295, %v2294
        %v2380 = vpack.c.b16 %v2297, %v2296
        %v2381 = vpack.c.b16 %v2299, %v2298
        %v2382 = vpack.c.b16 %v2301, %v2300
        %v2383 = vpack.c.b16 %v2303, %v2302
        %v2384 = vpack.c.b16 %v2305, %v2304
        %v2385 = vpack.c.b16 %v2307, %v2306
        %v2386 = vpack.c.b16 %v2309, %v2308
        %v2387 = vpack.c.b16 %v2311, %v2310
        %v2388 = vpack.c.b16 %v2313, %v2312
        %v2389 = vpack.c.b16 %v2315, %v2314
        %v2390 = vpack.c.b16 %v2317, %v2316
        %v2391 = vpack.c.b16 %v2319, %v2318
        %2464 = vmatpush.bf16.msra.mxu0 %v2327
        %2465 = vmatpush.bf16.msra.mxu0 %v2326
        %2466 = vmatpush.bf16.msra.mxu0 %v2325
        %2467 = vmatpush.bf16.msra.mxu0 %v2324
        %2468 = vmatpush.bf16.msra.mxu0 %v2323
        %2469 = vmatpush.bf16.msra.mxu0 %v2322
        %2470 = vmatpush.bf16.msra.mxu0 %v2321
        %2471 = vmatpush.bf16.msra.mxu0 %v2320
        %2472 = vmatmul.bf16.gmra.mxu0 %v1978
        %v2473 = vpop.f32.mrf.mxu0
        %v2474 = vadd.f32 0.0, %v2473
        %v2475 = vpop.f32.mrf.mxu0
        %v2476 = vadd.f32 0.0, %v2475
        %2477 = vmatmul.bf16.gmra.mxu0 %v1984
        %v2478 = vpop.f32.mrf.mxu0
        %v2479 = vadd.f32 0.0, %v2478
        %v2480 = vpop.f32.mrf.mxu0
        %v2481 = vadd.f32 0.0, %v2480
        %2482 = vmatmul.bf16.gmra.mxu0 %v1990
        %v2483 = vpop.f32.mrf.mxu0
        %v2484 = vadd.f32 0.0, %v2483
        %v2485 = vpop.f32.mrf.mxu0
        %v2486 = vadd.f32 0.0, %v2485
        %2487 = vmatmul.bf16.gmra.mxu0 %v1996
        %v2488 = vpop.f32.mrf.mxu0
        %v2489 = vadd.f32 0.0, %v2488
        %v2490 = vpop.f32.mrf.mxu0
        %v2491 = vadd.f32 0.0, %v2490
        %2492 = vdwg.mxu0
        %2493 = vmatpush.bf16.msra.mxu0 %v2335
        %2494 = vmatpush.bf16.msra.mxu0 %v2334
        %2495 = vmatpush.bf16.msra.mxu0 %v2333
        %2496 = vmatpush.bf16.msra.mxu0 %v2332
        %2497 = vmatpush.bf16.msra.mxu0 %v2331
        %2498 = vmatpush.bf16.msra.mxu0 %v2330
        %2499 = vmatpush.bf16.msra.mxu0 %v2329
        %2500 = vmatpush.bf16.msra.mxu0 %v2328
        %2501 = vmatmul.bf16.gmra.mxu0 %v1979
        %v2502 = vpop.f32.mrf.mxu0
        %v2503 = vadd.f32 %v2474, %v2502
        %v2504 = vpop.f32.mrf.mxu0
        %v2505 = vadd.f32 %v2476, %v2504
        %2506 = vmatmul.bf16.gmra.mxu0 %v1985
        %v2507 = vpop.f32.mrf.mxu0
        %v2508 = vadd.f32 %v2479, %v2507
        %v2509 = vpop.f32.mrf.mxu0
        %v2510 = vadd.f32 %v2481, %v2509
        %2511 = vmatmul.bf16.gmra.mxu0 %v1991
        %v2512 = vpop.f32.mrf.mxu0
        %v2513 = vadd.f32 %v2484, %v2512
        %v2514 = vpop.f32.mrf.mxu0
        %v2515 = vadd.f32 %v2486, %v2514
        %2516 = vmatmul.bf16.gmra.mxu0 %v1997
        %v2517 = vpop.f32.mrf.mxu0
        %v2518 = vadd.f32 %v2489, %v2517
        %v2519 = vpop.f32.mrf.mxu0
        %v2520 = vadd.f32 %v2491, %v2519
        %2521 = vdwg.mxu0
        %2522 = vmatpush.bf16.msra.mxu0 %v2343
        %2523 = vmatpush.bf16.msra.mxu0 %v2342
        %2524 = vmatpush.bf16.msra.mxu0 %v2341
        %2525 = vmatpush.bf16.msra.mxu0 %v2340
        %2526 = vmatpush.bf16.msra.mxu0 %v2339
        %2527 = vmatpush.bf16.msra.mxu0 %v2338
        %2528 = vmatpush.bf16.msra.mxu0 %v2337
        %2529 = vmatpush.bf16.msra.mxu0 %v2336
        %2530 = vmatmul.bf16.gmra.mxu0 %v1980
        %v2531 = vpop.f32.mrf.mxu0
        %v2532 = vadd.f32 %v2503, %v2531
        %v2533 = vpop.f32.mrf.mxu0
        %v2534 = vadd.f32 %v2505, %v2533
        %2535 = vmatmul.bf16.gmra.mxu0 %v1986
        %v2536 = vpop.f32.mrf.mxu0
        %v2537 = vadd.f32 %v2508, %v2536
        %v2538 = vpop.f32.mrf.mxu0
        %v2539 = vadd.f32 %v2510, %v2538
        %2540 = vmatmul.bf16.gmra.mxu0 %v1992
        %v2541 = vpop.f32.mrf.mxu0
        %v2542 = vadd.f32 %v2513, %v2541
        %v2543 = vpop.f32.mrf.mxu0
        %v2544 = vadd.f32 %v2515, %v2543
        %2545 = vmatmul.bf16.gmra.mxu0 %v1998
        %v2546 = vpop.f32.mrf.mxu0
        %v2547 = vadd.f32 %v2518, %v2546
        %v2548 = vpop.f32.mrf.mxu0
        %v2549 = vadd.f32 %v2520, %v2548
        %2550 = vdwg.mxu0
        %2551 = vmatpush.bf16.msra.mxu0 %v2351
        %2552 = vmatpush.bf16.msra.mxu0 %v2350
        %2553 = vmatpush.bf16.msra.mxu0 %v2349
        %2554 = vmatpush.bf16.msra.mxu0 %v2348
        %2555 = vmatpush.bf16.msra.mxu0 %v2347
        %2556 = vmatpush.bf16.msra.mxu0 %v2346
        %2557 = vmatpush.bf16.msra.mxu0 %v2345
        %2558 = vmatpush.bf16.msra.mxu0 %v2344
        %2559 = vmatmul.bf16.gmra.mxu0 %v1981
        %v2560 = vpop.f32.mrf.mxu0
        %v2561 = vadd.f32 %v2532, %v2560
        %v2562 = vpop.f32.mrf.mxu0
        %v2563 = vadd.f32 %v2534, %v2562
        %2564 = vmatmul.bf16.gmra.mxu0 %v1987
        %v2565 = vpop.f32.mrf.mxu0
        %v2566 = vadd.f32 %v2537, %v2565
        %v2567 = vpop.f32.mrf.mxu0
        %v2568 = vadd.f32 %v2539, %v2567
        %2569 = vmatmul.bf16.gmra.mxu0 %v1993
        %v2570 = vpop.f32.mrf.mxu0
        %v2571 = vadd.f32 %v2542, %v2570
        %v2572 = vpop.f32.mrf.mxu0
        %v2573 = vadd.f32 %v2544, %v2572
        %2574 = vmatmul.bf16.gmra.mxu0 %v1999
        %v2575 = vpop.f32.mrf.mxu0
        %v2576 = vadd.f32 %v2547, %v2575
        %v2577 = vpop.f32.mrf.mxu0
        %v2578 = vadd.f32 %v2549, %v2577
        %2579 = vdwg.mxu0
        %2580 = vmatpush.bf16.msra.mxu0 %v2359
        %2581 = vmatpush.bf16.msra.mxu0 %v2358
        %2582 = vmatpush.bf16.msra.mxu0 %v2357
        %2583 = vmatpush.bf16.msra.mxu0 %v2356
        %2584 = vmatpush.bf16.msra.mxu0 %v2355
        %2585 = vmatpush.bf16.msra.mxu0 %v2354
        %2586 = vmatpush.bf16.msra.mxu0 %v2353
        %2587 = vmatpush.bf16.msra.mxu0 %v2352
        %2588 = vmatmul.bf16.gmra.mxu0 %v1982
        %v2589 = vpop.f32.mrf.mxu0
        %v2590 = vadd.f32 %v2561, %v2589
        %v2591 = vpop.f32.mrf.mxu0
        %v2592 = vadd.f32 %v2563, %v2591
        %2593 = vmatmul.bf16.gmra.mxu0 %v1988
        %v2594 = vpop.f32.mrf.mxu0
        %v2595 = vadd.f32 %v2566, %v2594
        %v2596 = vpop.f32.mrf.mxu0
        %v2597 = vadd.f32 %v2568, %v2596
        %2598 = vmatmul.bf16.gmra.mxu0 %v1994
        %v2599 = vpop.f32.mrf.mxu0
        %v2600 = vadd.f32 %v2571, %v2599
        %v2601 = vpop.f32.mrf.mxu0
        %v2602 = vadd.f32 %v2573, %v2601
        %2603 = vmatmul.bf16.gmra.mxu0 %v2000
        %v2604 = vpop.f32.mrf.mxu0
        %v2605 = vadd.f32 %v2576, %v2604
        %v2606 = vpop.f32.mrf.mxu0
        %v2607 = vadd.f32 %v2578, %v2606
        %2608 = vdwg.mxu0
        %2609 = vmatpush.bf16.msra.mxu0 %v2367
        %2610 = vmatpush.bf16.msra.mxu0 %v2366
        %2611 = vmatpush.bf16.msra.mxu0 %v2365
        %2612 = vmatpush.bf16.msra.mxu0 %v2364
        %2613 = vmatpush.bf16.msra.mxu0 %v2363
        %2614 = vmatpush.bf16.msra.mxu0 %v2362
        %2615 = vmatpush.bf16.msra.mxu0 %v2361
        %2616 = vmatpush.bf16.msra.mxu0 %v2360
        %2617 = vmatmul.bf16.gmra.mxu0 %v1983
        %v2618 = vpop.f32.mrf.mxu0
        %v2619 = vadd.f32 %v2590, %v2618
        %v2620 = vpop.f32.mrf.mxu0
        %v2621 = vadd.f32 %v2592, %v2620
        %2622 = vmatmul.bf16.gmra.mxu0 %v1989
        %v2623 = vpop.f32.mrf.mxu0
        %v2624 = vadd.f32 %v2595, %v2623
        %v2625 = vpop.f32.mrf.mxu0
        %v2626 = vadd.f32 %v2597, %v2625
        %2627 = vmatmul.bf16.gmra.mxu0 %v1995
        %v2628 = vpop.f32.mrf.mxu0
        %v2629 = vadd.f32 %v2600, %v2628
        %v2630 = vpop.f32.mrf.mxu0
        %v2631 = vadd.f32 %v2602, %v2630
        %2632 = vmatmul.bf16.gmra.mxu0 %v2001
        %v2633 = vpop.f32.mrf.mxu0
        %v2634 = vadd.f32 %v2605, %v2633
        %v2635 = vpop.f32.mrf.mxu0
        %v2636 = vadd.f32 %v2607, %v2635
        %2637 = vdwg.mxu0
        %2638 = vmatpush.bf16.msra.mxu0 %v2375
        %2639 = vmatpush.bf16.msra.mxu0 %v2374
        %2640 = vmatpush.bf16.msra.mxu0 %v2373
        %2641 = vmatpush.bf16.msra.mxu0 %v2372
        %2642 = vmatpush.bf16.msra.mxu0 %v2371
        %2643 = vmatpush.bf16.msra.mxu0 %v2370
        %2644 = vmatpush.bf16.msra.mxu0 %v2369
        %2645 = vmatpush.bf16.msra.mxu0 %v2368
        %2646 = vmatmul.bf16.gmra.mxu0 %v1984
        %v2647 = vpop.f32.mrf.mxu0
        %v2648 = vadd.f32 %v2619, %v2647
        %v2649 = vpop.f32.mrf.mxu0
        %v2650 = vadd.f32 %v2621, %v2649
        %2651 = vmatmul.bf16.gmra.mxu0 %v1990
        %v2652 = vpop.f32.mrf.mxu0
        %v2653 = vadd.f32 %v2624, %v2652
        %v2654 = vpop.f32.mrf.mxu0
        %v2655 = vadd.f32 %v2626, %v2654
        %2656 = vmatmul.bf16.gmra.mxu0 %v1996
        %v2657 = vpop.f32.mrf.mxu0
        %v2658 = vadd.f32 %v2629, %v2657
        %v2659 = vpop.f32.mrf.mxu0
        %v2660 = vadd.f32 %v2631, %v2659
        %2661 = vmatmul.bf16.gmra.mxu0 %v2002
        %v2662 = vpop.f32.mrf.mxu0
        %v2663 = vadd.f32 %v2634, %v2662
        %v2664 = vpop.f32.mrf.mxu0
        %v2665 = vadd.f32 %v2636, %v2664
        %2666 = vdwg.mxu0
        %2667 = vmatpush.bf16.msra.mxu0 %v2383
        %2668 = vmatpush.bf16.msra.mxu0 %v2382
        %2669 = vmatpush.bf16.msra.mxu0 %v2381
        %2670 = vmatpush.bf16.msra.mxu0 %v2380
        %2671 = vmatpush.bf16.msra.mxu0 %v2379
        %2672 = vmatpush.bf16.msra.mxu0 %v2378
        %2673 = vmatpush.bf16.msra.mxu0 %v2377
        %2674 = vmatpush.bf16.msra.mxu0 %v2376
        %2675 = vmatmul.bf16.gmra.mxu0 %v1985
        %v2676 = vpop.f32.mrf.mxu0
        %v2677 = vadd.f32 %v2648, %v2676
        %v2678 = vpop.f32.mrf.mxu0
        %v2679 = vadd.f32 %v2650, %v2678
        %2680 = vmatmul.bf16.gmra.mxu0 %v1991
        %v2681 = vpop.f32.mrf.mxu0
        %v2682 = vadd.f32 %v2653, %v2681
        %v2683 = vpop.f32.mrf.mxu0
        %v2684 = vadd.f32 %v2655, %v2683
        %2685 = vmatmul.bf16.gmra.mxu0 %v1997
        %v2686 = vpop.f32.mrf.mxu0
        %v2687 = vadd.f32 %v2658, %v2686
        %v2688 = vpop.f32.mrf.mxu0
        %v2689 = vadd.f32 %v2660, %v2688
        %2690 = vmatmul.bf16.gmra.mxu0 %v2003
        %v2691 = vpop.f32.mrf.mxu0
        %v2692 = vadd.f32 %v2663, %v2691
        %v2693 = vpop.f32.mrf.mxu0
        %v2694 = vadd.f32 %v2665, %v2693
        %2695 = vdwg.mxu0
        %2696 = vmatpush.bf16.msra.mxu0 %v2391
        %2697 = vmatpush.bf16.msra.mxu0 %v2390
        %2698 = vmatpush.bf16.msra.mxu0 %v2389
        %2699 = vmatpush.bf16.msra.mxu0 %v2388
        %2700 = vmatpush.bf16.msra.mxu0 %v2387
        %2701 = vmatpush.bf16.msra.mxu0 %v2386
        %2702 = vmatpush.bf16.msra.mxu0 %v2385
        %2703 = vmatpush.bf16.msra.mxu0 %v2384
        %2704 = vmatmul.bf16.gmra.mxu0 %v1986
        %v2705 = vpop.f32.mrf.mxu0
        %v2706 = vadd.f32 %v2677, %v2705
        %v2707 = vpop.f32.mrf.mxu0
        %v2708 = vadd.f32 %v2679, %v2707
        %2709 = vmatmul.bf16.gmra.mxu0 %v1992
        %v2710 = vpop.f32.mrf.mxu0
        %v2711 = vadd.f32 %v2682, %v2710
        %v2712 = vpop.f32.mrf.mxu0
        %v2713 = vadd.f32 %v2684, %v2712
        %2714 = vmatmul.bf16.gmra.mxu0 %v1998
        %v2715 = vpop.f32.mrf.mxu0
        %v2716 = vadd.f32 %v2687, %v2715
        %v2717 = vpop.f32.mrf.mxu0
        %v2718 = vadd.f32 %v2689, %v2717
        %2719 = vmatmul.bf16.gmra.mxu0 %v2004
        %v2720 = vpop.f32.mrf.mxu0
        %v2721 = vadd.f32 %v2692, %v2720
        %v2722 = vpop.f32.mrf.mxu0
        %v2723 = vadd.f32 %v2694, %v2722
        %2724 = vdwg.mxu0
        %s2725 = sld [smem:[#allocation4 + $0x1]]
        %vm2726 = vcmp.ge.f32.partialorder %v2706, 0.0
        %vm2727 = vcmp.ge.f32.partialorder %v2708, 0.0
        %vm2728 = vcmp.ge.f32.partialorder %v2711, 0.0
        %vm2729 = vcmp.ge.f32.partialorder %v2713, 0.0
        %vm2730 = vcmp.ge.f32.partialorder %v2716, 0.0
        %vm2731 = vcmp.ge.f32.partialorder %v2718, 0.0
        %vm2732 = vcmp.ge.f32.partialorder %v2721, 0.0
        %vm2733 = vcmp.ge.f32.partialorder %v2723, 0.0
        %v2734 = vstv %s2725
        %v2735 = vmul.f32 %v2734, %v2706
        %v2736 = vmul.f32 %v2734, %v2708
        %v2737 = vmul.f32 %v2734, %v2711
        %v2738 = vmul.f32 %v2734, %v2713
        %v2739 = vmul.f32 %v2734, %v2716
        %v2740 = vmul.f32 %v2734, %v2718
        %v2741 = vmul.f32 %v2734, %v2721
        %v2742 = vmul.f32 %v2734, %v2723
        %v2743 = vsel %vm2726, %v2706, %v2735
        %v2744 = vsel %vm2727, %v2708, %v2736
        %v2745 = vsel %vm2728, %v2711, %v2737
        %v2746 = vsel %vm2729, %v2713, %v2738
        %v2747 = vsel %vm2730, %v2716, %v2739
        %v2748 = vsel %vm2731, %v2718, %v2740
        %v2749 = vsel %vm2732, %v2721, %v2741
        %v2750 = vsel %vm2733, %v2723, %v2742
        %v2751 = vld [vmem:[%s192] sm:$0xff]
        %v2752 = vld [vmem:[%s192 + $0x8] sm:$0xff]
        %v2753 = vld [vmem:[%s192 + $0x10] sm:$0xff]
        %v2754 = vld [vmem:[%s192 + $0x18] sm:$0xff]
        %v2755 = vld [vmem:[%s192 + $0x20] sm:$0xff]
        %v2756 = vld [vmem:[%s192 + $0x28] sm:$0xff]
        %v2757 = vld [vmem:[%s192 + $0x30] sm:$0xff]
        %v2758 = vld [vmem:[%s192 + $0x38] sm:$0xff]
        %v2759 = vadd.f32 %v2743, %v2751
        %v2760 = vadd.f32 %v2744, %v2752
        %v2761 = vadd.f32 %v2745, %v2753
        %v2762 = vadd.f32 %v2746, %v2754
        %v2763 = vadd.f32 %v2747, %v2755
        %v2764 = vadd.f32 %v2748, %v2756
        %v2765 = vadd.f32 %v2749, %v2757
        %v2766 = vadd.f32 %v2750, %v2758
        %2767 = vst [vmem:[#allocation3] sm:$0xff] %v2759
        %2768 = vst [vmem:[#allocation3 + $0x8] sm:$0xff] %v2760
        %2769 = vst [vmem:[#allocation3 + $0x10] sm:$0xff] %v2761
        %2770 = vst [vmem:[#allocation3 + $0x18] sm:$0xff] %v2762
        %2771 = vst [vmem:[#allocation3 + $0x20] sm:$0xff] %v2763
        %2772 = vst [vmem:[#allocation3 + $0x28] sm:$0xff] %v2764
        %2773 = vst [vmem:[#allocation3 + $0x30] sm:$0xff] %v2765
        %2774 = vst [vmem:[#allocation3 + $0x38] sm:$0xff] %v2766
        %v2775 = vpack.c.bf16 %v2759, %v2759
        %v2776 = vpack.c.bf16 %v2760, %v2760
        %v2777 = vpack.c.bf16 %v2761, %v2761
        %v2778 = vpack.c.bf16 %v2762, %v2762
        %v2779 = vpack.c.bf16 %v2763, %v2763
        %v2780 = vpack.c.bf16 %v2764, %v2764
        %v2781 = vpack.c.bf16 %v2765, %v2765
        %v2782 = vpack.c.bf16 %v2766, %v2766
        %v2784 = vshrl.u32 %v2775, 16
        %v2786 = vrot.slane %v2784, 7
        %v2787 = vshll.u32 %v2775, 16
        %v2789 = vor.u32 %v2786, %v2787
        %v2790 = vrot.slane %v2786, 4
        %v2792 = vshrl.u32 %v2776, 16
        %v2794 = vrot.slane %v2792, 7
        %v2795 = vshll.u32 %v2776, 16
        %v2797 = vor.u32 %v2794, %v2795
        %v2798 = vrot.slane %v2794, 4
        %v2800 = vshrl.u32 %v2777, 16
        %v2802 = vrot.slane %v2800, 7
        %v2803 = vshll.u32 %v2777, 16
        %v2805 = vor.u32 %v2802, %v2803
        %v2806 = vrot.slane %v2802, 4
        %v2808 = vshrl.u32 %v2778, 16
        %v2810 = vrot.slane %v2808, 7
        %v2811 = vshll.u32 %v2778, 16
        %v2813 = vor.u32 %v2810, %v2811
        %v2814 = vrot.slane %v2810, 4
        %v2816 = vshrl.u32 %v2779, 16
        %v2818 = vrot.slane %v2816, 7
        %v2819 = vshll.u32 %v2779, 16
        %v2821 = vor.u32 %v2818, %v2819
        %v2822 = vrot.slane %v2818, 4
        %v2824 = vshrl.u32 %v2780, 16
        %v2826 = vrot.slane %v2824, 7
        %v2827 = vshll.u32 %v2780, 16
        %v2829 = vor.u32 %v2826, %v2827
        %v2830 = vrot.slane %v2826, 4
        %v2832 = vshrl.u32 %v2781, 16
        %v2834 = vrot.slane %v2832, 7
        %v2835 = vshll.u32 %v2781, 16
        %v2837 = vor.u32 %v2834, %v2835
        %v2838 = vrot.slane %v2834, 4
        %v2840 = vshrl.u32 %v2782, 16
        %v2842 = vrot.slane %v2840, 7
        %v2843 = vshll.u32 %v2782, 16
        %v2845 = vor.u32 %v2842, %v2843
        %v2846 = vrot.slane %v2842, 4
        %v2863 = vld [vmem:[%s389] sm:$0xf]
        %v2864 = vsel %vm391, %v2789, %v2863
        %2865 = vst [vmem:[%s389] sm:$0xf] %v2864
        %v2866 = vld [vmem:[%s389 + $0x4] sm:$0x1]
        %v2867 = vsel %vm230, %v2790, %v2866
        %2868 = vst [vmem:[%s389 + $0x4] sm:$0x1] %v2867
        %v2869 = vld [vmem:[%s389 + $0x8] sm:$0xf]
        %v2870 = vsel %vm391, %v2797, %v2869
        %2871 = vst [vmem:[%s389 + $0x8] sm:$0xf] %v2870
        %v2872 = vld [vmem:[%s389 + $0xc] sm:$0x1]
        %v2873 = vsel %vm230, %v2798, %v2872
        %2874 = vst [vmem:[%s389 + $0xc] sm:$0x1] %v2873
        %v2875 = vld [vmem:[%s389 + $0x10] sm:$0xf]
        %v2876 = vsel %vm391, %v2805, %v2875
        %2877 = vst [vmem:[%s389 + $0x10] sm:$0xf] %v2876
        %v2878 = vld [vmem:[%s389 + $0x14] sm:$0x1]
        %v2879 = vsel %vm230, %v2806, %v2878
        %2880 = vst [vmem:[%s389 + $0x14] sm:$0x1] %v2879
        %v2881 = vld [vmem:[%s389 + $0x18] sm:$0xf]
        %v2882 = vsel %vm391, %v2813, %v2881
        %2883 = vst [vmem:[%s389 + $0x18] sm:$0xf] %v2882
        %v2884 = vld [vmem:[%s389 + $0x1c] sm:$0x1]
        %v2885 = vsel %vm230, %v2814, %v2884
        %2886 = vst [vmem:[%s389 + $0x1c] sm:$0x1] %v2885
        %v2887 = vld [vmem:[%s389 + $0x20] sm:$0xf]
        %v2888 = vsel %vm391, %v2821, %v2887
        %2889 = vst [vmem:[%s389 + $0x20] sm:$0xf] %v2888
        %v2890 = vld [vmem:[%s389 + $0x24] sm:$0x1]
        %v2891 = vsel %vm230, %v2822, %v2890
        %2892 = vst [vmem:[%s389 + $0x24] sm:$0x1] %v2891
        %v2893 = vld [vmem:[%s389 + $0x28] sm:$0xf]
        %v2894 = vsel %vm391, %v2829, %v2893
        %2895 = vst [vmem:[%s389 + $0x28] sm:$0xf] %v2894
        %v2896 = vld [vmem:[%s389 + $0x2c] sm:$0x1]
        %v2897 = vsel %vm230, %v2830, %v2896
        %2898 = vst [vmem:[%s389 + $0x2c] sm:$0x1] %v2897
        %v2899 = vld [vmem:[%s389 + $0x30] sm:$0xf]
        %v2900 = vsel %vm391, %v2837, %v2899
        %2901 = vst [vmem:[%s389 + $0x30] sm:$0xf] %v2900
        %v2902 = vld [vmem:[%s389 + $0x34] sm:$0x1]
        %v2903 = vsel %vm230, %v2838, %v2902
        %2904 = vst [vmem:[%s389 + $0x34] sm:$0x1] %v2903
        %v2905 = vld [vmem:[%s389 + $0x38] sm:$0xf]
        %v2906 = vsel %vm391, %v2845, %v2905
        %2907 = vst [vmem:[%s389 + $0x38] sm:$0xf] %v2906
        %v2908 = vld [vmem:[%s389 + $0x3c] sm:$0x1]
        %v2909 = vsel %vm230, %v2846, %v2908
        %2910 = vst [vmem:[%s389 + $0x3c] sm:$0x1] %v2909
        %v2911 = vld [vmem:[#allocation2] sm:$0xf]
        %v2912 = vld [vmem:[#allocation2 + $0x4] sm:$0x1]
        %v2913 = vld [vmem:[#allocation2 + $0x8] sm:$0xf]
        %v2914 = vld [vmem:[#allocation2 + $0xc] sm:$0x1]
        %v2915 = vld [vmem:[#allocation2 + $0x10] sm:$0xf]
        %v2916 = vld [vmem:[#allocation2 + $0x14] sm:$0x1]
        %v2917 = vld [vmem:[#allocation2 + $0x18] sm:$0xf]
        %v2918 = vld [vmem:[#allocation2 + $0x1c] sm:$0x1]
        %v2919 = vld [vmem:[#allocation2 + $0x20] sm:$0xf]
        %v2920 = vld [vmem:[#allocation2 + $0x24] sm:$0x1]
        %v2921 = vld [vmem:[#allocation2 + $0x28] sm:$0xf]
        %v2922 = vld [vmem:[#allocation2 + $0x2c] sm:$0x1]
        %v2923 = vld [vmem:[#allocation2 + $0x30] sm:$0xf]
        %v2924 = vld [vmem:[#allocation2 + $0x34] sm:$0x1]
        %v2925 = vld [vmem:[#allocation2 + $0x38] sm:$0xf]
        %v2926 = vld [vmem:[#allocation2 + $0x3c] sm:$0x1]
        %v2927 = vld [vmem:[#allocation2 + $0x40] sm:$0xf]
        %v2928 = vld [vmem:[#allocation2 + $0x44] sm:$0x1]
        %v2929 = vld [vmem:[#allocation2 + $0x48] sm:$0xf]
        %v2930 = vld [vmem:[#allocation2 + $0x4c] sm:$0x1]
        %v2947 = vunpack.c.l.b16 %v2911
        %v2948 = vunpack.c.l.b16 %v2912
        %v2949 = vunpack.c.l.b16 %v2913
        %v2950 = vunpack.c.l.b16 %v2914
        %v2951 = vunpack.c.l.b16 %v2915
        %v2952 = vunpack.c.l.b16 %v2916
        %v2953 = vunpack.c.l.b16 %v2917
        %v2954 = vunpack.c.l.b16 %v2918
        %v2955 = vunpack.c.l.b16 %v2919
        %v2956 = vunpack.c.l.b16 %v2920
        %v2957 = vunpack.c.l.b16 %v2921
        %v2958 = vunpack.c.l.b16 %v2922
        %v2959 = vunpack.c.l.b16 %v2923
        %v2960 = vunpack.c.l.b16 %v2924
        %v2961 = vunpack.c.l.b16 %v2925
        %v2962 = vunpack.c.l.b16 %v2926
        %v2963 = vpack.c.b16 %v2948, %v2947
        %v2964 = vpack.c.b16 %v2950, %v2949
        %v2965 = vpack.c.b16 %v2952, %v2951
        %v2966 = vpack.c.b16 %v2954, %v2953
        %v2967 = vpack.c.b16 %v2956, %v2955
        %v2968 = vpack.c.b16 %v2958, %v2957
        %v2969 = vpack.c.b16 %v2960, %v2959
        %v2970 = vpack.c.b16 %v2962, %v2961
        %v2972 = vshrl.u32 %v2963, 16
        %v2974 = vshll.u32 %v2963, 16
        %v2976 = vrot.slane %v2974, 1
        %v2977 = vor.u32 %v2972, %v2976
        %v2979 = vshrl.u32 %v2964, 16
        %v2981 = vshll.u32 %v2964, 16
        %v2983 = vrot.slane %v2981, 1
        %v2984 = vor.u32 %v2979, %v2983
        %v2986 = vshrl.u32 %v2965, 16
        %v2988 = vshll.u32 %v2965, 16
        %v2990 = vrot.slane %v2988, 1
        %v2991 = vor.u32 %v2986, %v2990
        %v2993 = vshrl.u32 %v2966, 16
        %v2995 = vshll.u32 %v2966, 16
        %v2997 = vrot.slane %v2995, 1
        %v2998 = vor.u32 %v2993, %v2997
        %v3000 = vshrl.u32 %v2967, 16
        %v3002 = vshll.u32 %v2967, 16
        %v3004 = vrot.slane %v3002, 1
        %v3005 = vor.u32 %v3000, %v3004
        %v3007 = vshrl.u32 %v2968, 16
        %v3009 = vshll.u32 %v2968, 16
        %v3011 = vrot.slane %v3009, 1
        %v3012 = vor.u32 %v3007, %v3011
        %v3014 = vshrl.u32 %v2969, 16
        %v3016 = vshll.u32 %v2969, 16
        %v3018 = vrot.slane %v3016, 1
        %v3019 = vor.u32 %v3014, %v3018
        %v3021 = vshrl.u32 %v2970, 16
        %v3023 = vshll.u32 %v2970, 16
        %v3025 = vrot.slane %v3023, 1
        %v3026 = vor.u32 %v3021, %v3025
        %v3027 = vrot.slane %v2963, 1
        %v3028 = vrot.slane %v2964, 1
        %v3029 = vrot.slane %v2965, 1
        %v3030 = vrot.slane %v2966, 1
        %v3031 = vrot.slane %v2967, 1
        %v3032 = vrot.slane %v2968, 1
        %v3033 = vrot.slane %v2969, 1
        %v3034 = vrot.slane %v2970, 1
        %v3037 = vunpack.c.l.b16 %v2927
        %v3038 = vunpack.c.l.b16 %v2928
        %v3039 = vpack.c.b16 %v3038, %v3037
        %v3041 = vshrl.u32 %v3039, 16
        %v3043 = vshll.u32 %v3039, 16
        %v3045 = vrot.slane %v3043, 1
        %v3046 = vor.u32 %v3041, %v3045
        %v3047 = vrot.slane %v3039, 1
        %v3050 = vunpack.c.l.b16 %v2929
        %v3051 = vunpack.c.l.b16 %v2930
        %v3052 = vpack.c.b16 %v3051, %v3050
        %v3054 = vshrl.u32 %v3052, 16
        %v3056 = vshll.u32 %v3052, 16
        %v3058 = vrot.slane %v3056, 1
        %v3059 = vor.u32 %v3054, %v3058
        %v3060 = vrot.slane %v3052, 1
        %v3061 = vunpack.c.l.b16 %v2977
        %v3062 = vunpack.c.l.b16 %v3027
        %v3063 = vunpack.c.l.b16 %v2984
        %v3064 = vunpack.c.l.b16 %v3028
        %v3065 = vunpack.c.l.b16 %v2991
        %v3066 = vunpack.c.l.b16 %v3029
        %v3067 = vunpack.c.l.b16 %v2998
        %v3068 = vunpack.c.l.b16 %v3030
        %v3069 = vunpack.c.l.b16 %v3005
        %v3070 = vunpack.c.l.b16 %v3031
        %v3071 = vunpack.c.l.b16 %v3012
        %v3072 = vunpack.c.l.b16 %v3032
        %v3073 = vunpack.c.l.b16 %v3019
        %v3074 = vunpack.c.l.b16 %v3033
        %v3075 = vunpack.c.l.b16 %v3026
        %v3076 = vunpack.c.l.b16 %v3034
        %v3077 = vunpack.c.l.b16 %v3046
        %v3078 = vunpack.c.l.b16 %v3047
        %v3079 = vunpack.c.l.b16 %v3059
        %v3080 = vunpack.c.l.b16 %v3060
        %s3081 = scalar_lea.vmem [#allocation9], 1152
        %v3082 = vld [vmem:[%s3081] sm:$0xf]
        %v3083 = vld [vmem:[%s3081 + $0x4] sm:$0xf]
        %v3084 = vld [vmem:[%s3081 + $0x8] sm:$0xf]
        %v3085 = vld [vmem:[%s3081 + $0xc] sm:$0xf]
        %v3086 = vld [vmem:[%s3081 + $0x10] sm:$0xf]
        %v3087 = vld [vmem:[%s3081 + $0x14] sm:$0xf]
        %v3088 = vld [vmem:[%s3081 + $0x18] sm:$0xf]
        %v3089 = vld [vmem:[%s3081 + $0x1c] sm:$0xf]
        %v3090 = vld [vmem:[%s3081 + $0x20] sm:$0xf]
        %v3091 = vld [vmem:[%s3081 + $0x24] sm:$0xf]
        %v3092 = vld [vmem:[%s3081 + $0x28] sm:$0xf]
        %v3093 = vld [vmem:[%s3081 + $0x2c] sm:$0xf]
        %v3094 = vld [vmem:[%s3081 + $0x30] sm:$0xf]
        %v3095 = vld [vmem:[%s3081 + $0x34] sm:$0xf]
        %v3096 = vld [vmem:[%s3081 + $0x38] sm:$0xf]
        %v3097 = vld [vmem:[%s3081 + $0x3c] sm:$0xf]
        %v3098 = vld [vmem:[%s3081 + $0x40] sm:$0xf]
        %v3099 = vld [vmem:[%s3081 + $0x44] sm:$0xf]
        %v3100 = vld [vmem:[%s3081 + $0x48] sm:$0xf]
        %v3101 = vld [vmem:[%s3081 + $0x4c] sm:$0xf]
        %v3102 = vld [vmem:[%s3081 + $0x50] sm:$0xf]
        %v3103 = vld [vmem:[%s3081 + $0x54] sm:$0xf]
        %v3104 = vld [vmem:[%s3081 + $0x58] sm:$0xf]
        %v3105 = vld [vmem:[%s3081 + $0x5c] sm:$0xf]
        %v3106 = vld [vmem:[%s3081 + $0x60] sm:$0xf]
        %v3107 = vld [vmem:[%s3081 + $0x64] sm:$0xf]
        %v3108 = vld [vmem:[%s3081 + $0x68] sm:$0xf]
        %v3109 = vld [vmem:[%s3081 + $0x6c] sm:$0xf]
        %v3110 = vld [vmem:[%s3081 + $0x70] sm:$0xf]
        %v3111 = vld [vmem:[%s3081 + $0x74] sm:$0xf]
        %v3112 = vld [vmem:[%s3081 + $0x78] sm:$0xf]
        %v3113 = vld [vmem:[%s3081 + $0x7c] sm:$0xf]
        %v3114 = vld [vmem:[%s3081 + $0x80] sm:$0xf]
        %v3115 = vld [vmem:[%s3081 + $0x84] sm:$0xf]
        %v3116 = vld [vmem:[%s3081 + $0x88] sm:$0xf]
        %v3117 = vld [vmem:[%s3081 + $0x8c] sm:$0xf]
        %v3118 = vld [vmem:[%s3081 + $0x90] sm:$0xf]
        %v3119 = vld [vmem:[%s3081 + $0x94] sm:$0xf]
        %v3120 = vld [vmem:[%s3081 + $0x98] sm:$0xf]
        %v3121 = vld [vmem:[%s3081 + $0x9c] sm:$0xf]
        %v3122 = vld [vmem:[%s3081 + $0xa0] sm:$0xf]
        %v3123 = vld [vmem:[%s3081 + $0xa4] sm:$0xf]
        %v3124 = vld [vmem:[%s3081 + $0xa8] sm:$0xf]
        %v3125 = vld [vmem:[%s3081 + $0xac] sm:$0xf]
        %v3126 = vld [vmem:[%s3081 + $0xb0] sm:$0xf]
        %v3127 = vld [vmem:[%s3081 + $0xb4] sm:$0xf]
        %v3128 = vld [vmem:[%s3081 + $0xb8] sm:$0xf]
        %v3129 = vld [vmem:[%s3081 + $0xbc] sm:$0xf]
        %v3130 = vld [vmem:[%s3081 + $0xc0] sm:$0xf]
        %v3131 = vld [vmem:[%s3081 + $0xc4] sm:$0xf]
        %v3132 = vld [vmem:[%s3081 + $0xc8] sm:$0xf]
        %v3133 = vld [vmem:[%s3081 + $0xcc] sm:$0xf]
        %v3134 = vld [vmem:[%s3081 + $0xd0] sm:$0xf]
        %v3135 = vld [vmem:[%s3081 + $0xd4] sm:$0xf]
        %v3136 = vld [vmem:[%s3081 + $0xd8] sm:$0xf]
        %v3137 = vld [vmem:[%s3081 + $0xdc] sm:$0xf]
        %v3138 = vld [vmem:[%s3081 + $0xe0] sm:$0xf]
        %v3139 = vld [vmem:[%s3081 + $0xe4] sm:$0xf]
        %v3140 = vld [vmem:[%s3081 + $0xe8] sm:$0xf]
        %v3141 = vld [vmem:[%s3081 + $0xec] sm:$0xf]
        %v3142 = vld [vmem:[%s3081 + $0xf0] sm:$0xf]
        %v3143 = vld [vmem:[%s3081 + $0xf4] sm:$0xf]
        %v3144 = vld [vmem:[%s3081 + $0xf8] sm:$0xf]
        %v3145 = vld [vmem:[%s3081 + $0xfc] sm:$0xf]
        %v3146 = vld [vmem:[%s3081 + $0x100] sm:$0xf]
        %v3147 = vld [vmem:[%s3081 + $0x104] sm:$0xf]
        %v3148 = vld [vmem:[%s3081 + $0x108] sm:$0xf]
        %v3149 = vld [vmem:[%s3081 + $0x10c] sm:$0xf]
        %v3150 = vld [vmem:[%s3081 + $0x110] sm:$0xf]
        %v3151 = vld [vmem:[%s3081 + $0x114] sm:$0xf]
        %v3152 = vld [vmem:[%s3081 + $0x118] sm:$0xf]
        %v3153 = vld [vmem:[%s3081 + $0x11c] sm:$0xf]
        %v3154 = vld [vmem:[%s3081 + $0x120] sm:$0xf]
        %v3155 = vld [vmem:[%s3081 + $0x124] sm:$0xf]
        %v3156 = vld [vmem:[%s3081 + $0x128] sm:$0xf]
        %v3157 = vld [vmem:[%s3081 + $0x12c] sm:$0xf]
        %v3158 = vld [vmem:[%s3081 + $0x130] sm:$0xf]
        %v3159 = vld [vmem:[%s3081 + $0x134] sm:$0xf]
        %v3160 = vld [vmem:[%s3081 + $0x138] sm:$0xf]
        %v3161 = vld [vmem:[%s3081 + $0x13c] sm:$0xf]
        %v3162 = vld [vmem:[%s3081 + $0x140] sm:$0xf]
        %v3163 = vld [vmem:[%s3081 + $0x144] sm:$0xf]
        %v3164 = vld [vmem:[%s3081 + $0x148] sm:$0xf]
        %v3165 = vld [vmem:[%s3081 + $0x14c] sm:$0xf]
        %v3166 = vld [vmem:[%s3081 + $0x150] sm:$0xf]
        %v3167 = vld [vmem:[%s3081 + $0x154] sm:$0xf]
        %v3168 = vld [vmem:[%s3081 + $0x158] sm:$0xf]
        %v3169 = vld [vmem:[%s3081 + $0x15c] sm:$0xf]
        %v3170 = vld [vmem:[%s3081 + $0x160] sm:$0xf]
        %v3171 = vld [vmem:[%s3081 + $0x164] sm:$0xf]
        %v3172 = vld [vmem:[%s3081 + $0x168] sm:$0xf]
        %v3173 = vld [vmem:[%s3081 + $0x16c] sm:$0xf]
        %v3174 = vld [vmem:[%s3081 + $0x170] sm:$0xf]
        %v3175 = vld [vmem:[%s3081 + $0x174] sm:$0xf]
        %v3176 = vld [vmem:[%s3081 + $0x178] sm:$0xf]
        %v3177 = vld [vmem:[%s3081 + $0x17c] sm:$0xf]
        %v3178 = vld [vmem:[%s3081 + $0x180] sm:$0xf]
        %v3179 = vld [vmem:[%s3081 + $0x184] sm:$0xf]
        %v3180 = vld [vmem:[%s3081 + $0x188] sm:$0xf]
        %v3181 = vld [vmem:[%s3081 + $0x18c] sm:$0xf]
        %v3182 = vld [vmem:[%s3081 + $0x190] sm:$0xf]
        %v3183 = vld [vmem:[%s3081 + $0x194] sm:$0xf]
        %v3184 = vld [vmem:[%s3081 + $0x198] sm:$0xf]
        %v3185 = vld [vmem:[%s3081 + $0x19c] sm:$0xf]
        %v3186 = vld [vmem:[%s3081 + $0x1a0] sm:$0xf]
        %v3187 = vld [vmem:[%s3081 + $0x1a4] sm:$0xf]
        %v3188 = vld [vmem:[%s3081 + $0x1a8] sm:$0xf]
        %v3189 = vld [vmem:[%s3081 + $0x1ac] sm:$0xf]
        %v3190 = vld [vmem:[%s3081 + $0x1b0] sm:$0xf]
        %v3191 = vld [vmem:[%s3081 + $0x1b4] sm:$0xf]
        %v3192 = vld [vmem:[%s3081 + $0x1b8] sm:$0xf]
        %v3193 = vld [vmem:[%s3081 + $0x1bc] sm:$0xf]
        %v3194 = vld [vmem:[%s3081 + $0x1c0] sm:$0xf]
        %v3195 = vld [vmem:[%s3081 + $0x1c4] sm:$0xf]
        %v3196 = vld [vmem:[%s3081 + $0x1c8] sm:$0xf]
        %v3197 = vld [vmem:[%s3081 + $0x1cc] sm:$0xf]
        %v3198 = vld [vmem:[%s3081 + $0x1d0] sm:$0xf]
        %v3199 = vld [vmem:[%s3081 + $0x1d4] sm:$0xf]
        %v3200 = vld [vmem:[%s3081 + $0x1d8] sm:$0xf]
        %v3201 = vld [vmem:[%s3081 + $0x1dc] sm:$0xf]
        %v3202 = vld [vmem:[%s3081 + $0x1e0] sm:$0xf]
        %v3203 = vld [vmem:[%s3081 + $0x1e4] sm:$0xf]
        %v3204 = vld [vmem:[%s3081 + $0x1e8] sm:$0xf]
        %v3205 = vld [vmem:[%s3081 + $0x1ec] sm:$0xf]
        %v3206 = vld [vmem:[%s3081 + $0x1f0] sm:$0xf]
        %v3207 = vld [vmem:[%s3081 + $0x1f4] sm:$0xf]
        %v3208 = vld [vmem:[%s3081 + $0x1f8] sm:$0xf]
        %v3209 = vld [vmem:[%s3081 + $0x1fc] sm:$0xf]
        %v3210 = vld [vmem:[%s3081 + $0x200] sm:$0xf]
        %v3211 = vld [vmem:[%s3081 + $0x204] sm:$0xf]
        %v3212 = vld [vmem:[%s3081 + $0x208] sm:$0xf]
        %v3213 = vld [vmem:[%s3081 + $0x20c] sm:$0xf]
        %v3214 = vld [vmem:[%s3081 + $0x210] sm:$0xf]
        %v3215 = vld [vmem:[%s3081 + $0x214] sm:$0xf]
        %v3216 = vld [vmem:[%s3081 + $0x218] sm:$0xf]
        %v3217 = vld [vmem:[%s3081 + $0x21c] sm:$0xf]
        %v3218 = vld [vmem:[%s3081 + $0x220] sm:$0xf]
        %v3219 = vld [vmem:[%s3081 + $0x224] sm:$0xf]
        %v3220 = vld [vmem:[%s3081 + $0x228] sm:$0xf]
        %v3221 = vld [vmem:[%s3081 + $0x22c] sm:$0xf]
        %v3222 = vld [vmem:[%s3081 + $0x230] sm:$0xf]
        %v3223 = vld [vmem:[%s3081 + $0x234] sm:$0xf]
        %v3224 = vld [vmem:[%s3081 + $0x238] sm:$0xf]
        %v3225 = vld [vmem:[%s3081 + $0x23c] sm:$0xf]
        %v3226 = vpack.c.b16 %v2949, %v2947
        %v3227 = vpack.c.b16 %v3063, %v3061
        %v3228 = vpack.c.b16 %v3064, %v3062
        %v3229 = vpack.c.b16 %v2951, %v2949
        %v3230 = vpack.c.b16 %v3065, %v3063
        %v3231 = vpack.c.b16 %v3066, %v3064
        %v3232 = vpack.c.b16 %v2953, %v2951
        %v3233 = vpack.c.b16 %v3067, %v3065
        %v3234 = vpack.c.b16 %v3068, %v3066
        %v3235 = vpack.c.b16 %v2955, %v2953
        %v3236 = vpack.c.b16 %v3069, %v3067
        %v3237 = vpack.c.b16 %v3070, %v3068
        %v3238 = vpack.c.b16 %v2957, %v2955
        %v3239 = vpack.c.b16 %v3071, %v3069
        %v3240 = vpack.c.b16 %v3072, %v3070
        %v3241 = vpack.c.b16 %v2959, %v2957
        %v3242 = vpack.c.b16 %v3073, %v3071
        %v3243 = vpack.c.b16 %v3074, %v3072
        %v3244 = vpack.c.b16 %v2961, %v2959
        %v3245 = vpack.c.b16 %v3075, %v3073
        %v3246 = vpack.c.b16 %v3076, %v3074
        %v3247 = vpack.c.b16 %v3037, %v2961
        %v3248 = vpack.c.b16 %v3077, %v3075
        %v3249 = vpack.c.b16 %v3078, %v3076
        %v3250 = vpack.c.b16 %v3050, %v3037
        %v3251 = vpack.c.b16 %v3079, %v3077
        %v3252 = vpack.c.b16 %v3080, %v3078
        %v3424 = vunpack.c.l.b16 %v3082
        %v3425 = vunpack.c.l.b16 %v3083
        %v3426 = vunpack.c.l.b16 %v3084
        %v3427 = vunpack.c.l.b16 %v3085
        %v3428 = vunpack.c.l.b16 %v3086
        %v3429 = vunpack.c.l.b16 %v3087
        %v3430 = vunpack.c.l.b16 %v3088
        %v3431 = vunpack.c.l.b16 %v3089
        %v3432 = vunpack.c.l.b16 %v3090
        %v3433 = vunpack.c.l.b16 %v3091
        %v3434 = vunpack.c.l.b16 %v3092
        %v3435 = vunpack.c.l.b16 %v3093
        %v3436 = vunpack.c.l.b16 %v3094
        %v3437 = vunpack.c.l.b16 %v3095
        %v3438 = vunpack.c.l.b16 %v3096
        %v3439 = vunpack.c.l.b16 %v3097
        %v3440 = vunpack.c.l.b16 %v3098
        %v3441 = vunpack.c.l.b16 %v3099
        %v3442 = vunpack.c.l.b16 %v3100
        %v3443 = vunpack.c.l.b16 %v3101
        %v3444 = vunpack.c.l.b16 %v3102
        %v3445 = vunpack.c.l.b16 %v3103
        %v3446 = vunpack.c.l.b16 %v3104
        %v3447 = vunpack.c.l.b16 %v3105
        %v3448 = vunpack.c.l.b16 %v3106
        %v3449 = vunpack.c.l.b16 %v3107
        %v3450 = vunpack.c.l.b16 %v3108
        %v3451 = vunpack.c.l.b16 %v3109
        %v3452 = vunpack.c.l.b16 %v3110
        %v3453 = vunpack.c.l.b16 %v3111
        %v3454 = vunpack.c.l.b16 %v3112
        %v3455 = vunpack.c.l.b16 %v3113
        %v3456 = vunpack.c.l.b16 %v3114
        %v3457 = vunpack.c.l.b16 %v3115
        %v3458 = vunpack.c.l.b16 %v3116
        %v3459 = vunpack.c.l.b16 %v3117
        %v3460 = vunpack.c.l.b16 %v3118
        %v3461 = vunpack.c.l.b16 %v3119
        %v3462 = vunpack.c.l.b16 %v3120
        %v3463 = vunpack.c.l.b16 %v3121
        %v3464 = vunpack.c.l.b16 %v3122
        %v3465 = vunpack.c.l.b16 %v3123
        %v3466 = vunpack.c.l.b16 %v3124
        %v3467 = vunpack.c.l.b16 %v3125
        %v3468 = vunpack.c.l.b16 %v3126
        %v3469 = vunpack.c.l.b16 %v3127
        %v3470 = vunpack.c.l.b16 %v3128
        %v3471 = vunpack.c.l.b16 %v3129
        %v3472 = vunpack.c.l.b16 %v3130
        %v3473 = vunpack.c.l.b16 %v3131
        %v3474 = vunpack.c.l.b16 %v3132
        %v3475 = vunpack.c.l.b16 %v3133
        %v3476 = vunpack.c.l.b16 %v3134
        %v3477 = vunpack.c.l.b16 %v3135
        %v3478 = vunpack.c.l.b16 %v3136
        %v3479 = vunpack.c.l.b16 %v3137
        %v3480 = vunpack.c.l.b16 %v3138
        %v3481 = vunpack.c.l.b16 %v3139
        %v3482 = vunpack.c.l.b16 %v3140
        %v3483 = vunpack.c.l.b16 %v3141
        %v3484 = vunpack.c.l.b16 %v3142
        %v3485 = vunpack.c.l.b16 %v3143
        %v3486 = vunpack.c.l.b16 %v3144
        %v3487 = vunpack.c.l.b16 %v3145
        %v3488 = vunpack.c.l.b16 %v3146
        %v3489 = vunpack.c.l.b16 %v3147
        %v3490 = vunpack.c.l.b16 %v3148
        %v3491 = vunpack.c.l.b16 %v3149
        %v3492 = vunpack.c.l.b16 %v3150
        %v3493 = vunpack.c.l.b16 %v3151
        %v3494 = vunpack.c.l.b16 %v3152
        %v3495 = vunpack.c.l.b16 %v3153
        %v3496 = vunpack.c.l.b16 %v3154
        %v3497 = vunpack.c.l.b16 %v3155
        %v3498 = vunpack.c.l.b16 %v3156
        %v3499 = vunpack.c.l.b16 %v3157
        %v3500 = vunpack.c.l.b16 %v3158
        %v3501 = vunpack.c.l.b16 %v3159
        %v3502 = vunpack.c.l.b16 %v3160
        %v3503 = vunpack.c.l.b16 %v3161
        %v3504 = vunpack.c.l.b16 %v3162
        %v3505 = vunpack.c.l.b16 %v3163
        %v3506 = vunpack.c.l.b16 %v3164
        %v3507 = vunpack.c.l.b16 %v3165
        %v3508 = vunpack.c.l.b16 %v3166
        %v3509 = vunpack.c.l.b16 %v3167
        %v3510 = vunpack.c.l.b16 %v3168
        %v3511 = vunpack.c.l.b16 %v3169
        %v3512 = vunpack.c.l.b16 %v3170
        %v3513 = vunpack.c.l.b16 %v3171
        %v3514 = vunpack.c.l.b16 %v3172
        %v3515 = vunpack.c.l.b16 %v3173
        %v3516 = vunpack.c.l.b16 %v3174
        %v3517 = vunpack.c.l.b16 %v3175
        %v3518 = vunpack.c.l.b16 %v3176
        %v3519 = vunpack.c.l.b16 %v3177
        %v3520 = vunpack.c.l.b16 %v3178
        %v3521 = vunpack.c.l.b16 %v3179
        %v3522 = vunpack.c.l.b16 %v3180
        %v3523 = vunpack.c.l.b16 %v3181
        %v3524 = vunpack.c.l.b16 %v3182
        %v3525 = vunpack.c.l.b16 %v3183
        %v3526 = vunpack.c.l.b16 %v3184
        %v3527 = vunpack.c.l.b16 %v3185
        %v3528 = vunpack.c.l.b16 %v3186
        %v3529 = vunpack.c.l.b16 %v3187
        %v3530 = vunpack.c.l.b16 %v3188
        %v3531 = vunpack.c.l.b16 %v3189
        %v3532 = vunpack.c.l.b16 %v3190
        %v3533 = vunpack.c.l.b16 %v3191
        %v3534 = vunpack.c.l.b16 %v3192
        %v3535 = vunpack.c.l.b16 %v3193
        %v3536 = vunpack.c.l.b16 %v3194
        %v3537 = vunpack.c.l.b16 %v3195
        %v3538 = vunpack.c.l.b16 %v3196
        %v3539 = vunpack.c.l.b16 %v3197
        %v3540 = vunpack.c.l.b16 %v3198
        %v3541 = vunpack.c.l.b16 %v3199
        %v3542 = vunpack.c.l.b16 %v3200
        %v3543 = vunpack.c.l.b16 %v3201
        %v3544 = vunpack.c.l.b16 %v3202
        %v3545 = vunpack.c.l.b16 %v3203
        %v3546 = vunpack.c.l.b16 %v3204
        %v3547 = vunpack.c.l.b16 %v3205
        %v3548 = vunpack.c.l.b16 %v3206
        %v3549 = vunpack.c.l.b16 %v3207
        %v3550 = vunpack.c.l.b16 %v3208
        %v3551 = vunpack.c.l.b16 %v3209
        %v3552 = vunpack.c.l.b16 %v3210
        %v3553 = vunpack.c.l.b16 %v3211
        %v3554 = vunpack.c.l.b16 %v3212
        %v3555 = vunpack.c.l.b16 %v3213
        %v3556 = vunpack.c.l.b16 %v3214
        %v3557 = vunpack.c.l.b16 %v3215
        %v3558 = vunpack.c.l.b16 %v3216
        %v3559 = vunpack.c.l.b16 %v3217
        %v3560 = vunpack.c.l.b16 %v3218
        %v3561 = vunpack.c.l.b16 %v3219
        %v3562 = vunpack.c.l.b16 %v3220
        %v3563 = vunpack.c.l.b16 %v3221
        %v3564 = vunpack.c.l.b16 %v3222
        %v3565 = vunpack.c.l.b16 %v3223
        %v3566 = vunpack.c.l.b16 %v3224
        %v3567 = vunpack.c.l.b16 %v3225
        %v3568 = vpack.c.b16 %v3425, %v3424
        %v3569 = vpack.c.b16 %v3427, %v3426
        %v3570 = vpack.c.b16 %v3429, %v3428
        %v3571 = vpack.c.b16 %v3431, %v3430
        %v3572 = vpack.c.b16 %v3433, %v3432
        %v3573 = vpack.c.b16 %v3435, %v3434
        %v3574 = vpack.c.b16 %v3437, %v3436
        %v3575 = vpack.c.b16 %v3439, %v3438
        %v3576 = vpack.c.b16 %v3441, %v3440
        %v3577 = vpack.c.b16 %v3443, %v3442
        %v3578 = vpack.c.b16 %v3445, %v3444
        %v3579 = vpack.c.b16 %v3447, %v3446
        %v3580 = vpack.c.b16 %v3449, %v3448
        %v3581 = vpack.c.b16 %v3451, %v3450
        %v3582 = vpack.c.b16 %v3453, %v3452
        %v3583 = vpack.c.b16 %v3455, %v3454
        %v3584 = vpack.c.b16 %v3457, %v3456
        %v3585 = vpack.c.b16 %v3459, %v3458
        %v3586 = vpack.c.b16 %v3461, %v3460
        %v3587 = vpack.c.b16 %v3463, %v3462
        %v3588 = vpack.c.b16 %v3465, %v3464
        %v3589 = vpack.c.b16 %v3467, %v3466
        %v3590 = vpack.c.b16 %v3469, %v3468
        %v3591 = vpack.c.b16 %v3471, %v3470
        %v3592 = vpack.c.b16 %v3473, %v3472
        %v3593 = vpack.c.b16 %v3475, %v3474
        %v3594 = vpack.c.b16 %v3477, %v3476
        %v3595 = vpack.c.b16 %v3479, %v3478
        %v3596 = vpack.c.b16 %v3481, %v3480
        %v3597 = vpack.c.b16 %v3483, %v3482
        %v3598 = vpack.c.b16 %v3485, %v3484
        %v3599 = vpack.c.b16 %v3487, %v3486
        %v3600 = vpack.c.b16 %v3489, %v3488
        %v3601 = vpack.c.b16 %v3491, %v3490
        %v3602 = vpack.c.b16 %v3493, %v3492
        %v3603 = vpack.c.b16 %v3495, %v3494
        %v3604 = vpack.c.b16 %v3497, %v3496
        %v3605 = vpack.c.b16 %v3499, %v3498
        %v3606 = vpack.c.b16 %v3501, %v3500
        %v3607 = vpack.c.b16 %v3503, %v3502
        %v3608 = vpack.c.b16 %v3505, %v3504
        %v3609 = vpack.c.b16 %v3507, %v3506
        %v3610 = vpack.c.b16 %v3509, %v3508
        %v3611 = vpack.c.b16 %v3511, %v3510
        %v3612 = vpack.c.b16 %v3513, %v3512
        %v3613 = vpack.c.b16 %v3515, %v3514
        %v3614 = vpack.c.b16 %v3517, %v3516
        %v3615 = vpack.c.b16 %v3519, %v3518
        %v3616 = vpack.c.b16 %v3521, %v3520
        %v3617 = vpack.c.b16 %v3523, %v3522
        %v3618 = vpack.c.b16 %v3525, %v3524
        %v3619 = vpack.c.b16 %v3527, %v3526
        %v3620 = vpack.c.b16 %v3529, %v3528
        %v3621 = vpack.c.b16 %v3531, %v3530
        %v3622 = vpack.c.b16 %v3533, %v3532
        %v3623 = vpack.c.b16 %v3535, %v3534
        %v3624 = vpack.c.b16 %v3537, %v3536
        %v3625 = vpack.c.b16 %v3539, %v3538
        %v3626 = vpack.c.b16 %v3541, %v3540
        %v3627 = vpack.c.b16 %v3543, %v3542
        %v3628 = vpack.c.b16 %v3545, %v3544
        %v3629 = vpack.c.b16 %v3547, %v3546
        %v3630 = vpack.c.b16 %v3549, %v3548
        %v3631 = vpack.c.b16 %v3551, %v3550
        %v3632 = vpack.c.b16 %v3553, %v3552
        %v3633 = vpack.c.b16 %v3555, %v3554
        %v3634 = vpack.c.b16 %v3557, %v3556
        %v3635 = vpack.c.b16 %v3559, %v3558
        %v3636 = vpack.c.b16 %v3561, %v3560
        %v3637 = vpack.c.b16 %v3563, %v3562
        %v3638 = vpack.c.b16 %v3565, %v3564
        %v3639 = vpack.c.b16 %v3567, %v3566
        %3712 = vmatpush.bf16.msra.mxu0 %v3575
        %3713 = vmatpush.bf16.msra.mxu0 %v3574
        %3714 = vmatpush.bf16.msra.mxu0 %v3573
        %3715 = vmatpush.bf16.msra.mxu0 %v3572
        %3716 = vmatpush.bf16.msra.mxu0 %v3571
        %3717 = vmatpush.bf16.msra.mxu0 %v3570
        %3718 = vmatpush.bf16.msra.mxu0 %v3569
        %3719 = vmatpush.bf16.msra.mxu0 %v3568
        %3720 = vmatmul.bf16.gmra.mxu0 %v3226
        %v3721 = vpop.f32.mrf.mxu0
        %v3722 = vadd.f32 0.0, %v3721
        %v3723 = vpop.f32.mrf.mxu0
        %v3724 = vadd.f32 0.0, %v3723
        %3725 = vmatmul.bf16.gmra.mxu0 %v3232
        %v3726 = vpop.f32.mrf.mxu0
        %v3727 = vadd.f32 0.0, %v3726
        %v3728 = vpop.f32.mrf.mxu0
        %v3729 = vadd.f32 0.0, %v3728
        %3730 = vmatmul.bf16.gmra.mxu0 %v3238
        %v3731 = vpop.f32.mrf.mxu0
        %v3732 = vadd.f32 0.0, %v3731
        %v3733 = vpop.f32.mrf.mxu0
        %v3734 = vadd.f32 0.0, %v3733
        %3735 = vmatmul.bf16.gmra.mxu0 %v3244
        %v3736 = vpop.f32.mrf.mxu0
        %v3737 = vadd.f32 0.0, %v3736
        %v3738 = vpop.f32.mrf.mxu0
        %v3739 = vadd.f32 0.0, %v3738
        %3740 = vdwg.mxu0
        %3741 = vmatpush.bf16.msra.mxu0 %v3583
        %3742 = vmatpush.bf16.msra.mxu0 %v3582
        %3743 = vmatpush.bf16.msra.mxu0 %v3581
        %3744 = vmatpush.bf16.msra.mxu0 %v3580
        %3745 = vmatpush.bf16.msra.mxu0 %v3579
        %3746 = vmatpush.bf16.msra.mxu0 %v3578
        %3747 = vmatpush.bf16.msra.mxu0 %v3577
        %3748 = vmatpush.bf16.msra.mxu0 %v3576
        %3749 = vmatmul.bf16.gmra.mxu0 %v3227
        %v3750 = vpop.f32.mrf.mxu0
        %v3751 = vadd.f32 %v3722, %v3750
        %v3752 = vpop.f32.mrf.mxu0
        %v3753 = vadd.f32 %v3724, %v3752
        %3754 = vmatmul.bf16.gmra.mxu0 %v3233
        %v3755 = vpop.f32.mrf.mxu0
        %v3756 = vadd.f32 %v3727, %v3755
        %v3757 = vpop.f32.mrf.mxu0
        %v3758 = vadd.f32 %v3729, %v3757
        %3759 = vmatmul.bf16.gmra.mxu0 %v3239
        %v3760 = vpop.f32.mrf.mxu0
        %v3761 = vadd.f32 %v3732, %v3760
        %v3762 = vpop.f32.mrf.mxu0
        %v3763 = vadd.f32 %v3734, %v3762
        %3764 = vmatmul.bf16.gmra.mxu0 %v3245
        %v3765 = vpop.f32.mrf.mxu0
        %v3766 = vadd.f32 %v3737, %v3765
        %v3767 = vpop.f32.mrf.mxu0
        %v3768 = vadd.f32 %v3739, %v3767
        %3769 = vdwg.mxu0
        %3770 = vmatpush.bf16.msra.mxu0 %v3591
        %3771 = vmatpush.bf16.msra.mxu0 %v3590
        %3772 = vmatpush.bf16.msra.mxu0 %v3589
        %3773 = vmatpush.bf16.msra.mxu0 %v3588
        %3774 = vmatpush.bf16.msra.mxu0 %v3587
        %3775 = vmatpush.bf16.msra.mxu0 %v3586
        %3776 = vmatpush.bf16.msra.mxu0 %v3585
        %3777 = vmatpush.bf16.msra.mxu0 %v3584
        %3778 = vmatmul.bf16.gmra.mxu0 %v3228
        %v3779 = vpop.f32.mrf.mxu0
        %v3780 = vadd.f32 %v3751, %v3779
        %v3781 = vpop.f32.mrf.mxu0
        %v3782 = vadd.f32 %v3753, %v3781
        %3783 = vmatmul.bf16.gmra.mxu0 %v3234
        %v3784 = vpop.f32.mrf.mxu0
        %v3785 = vadd.f32 %v3756, %v3784
        %v3786 = vpop.f32.mrf.mxu0
        %v3787 = vadd.f32 %v3758, %v3786
        %3788 = vmatmul.bf16.gmra.mxu0 %v3240
        %v3789 = vpop.f32.mrf.mxu0
        %v3790 = vadd.f32 %v3761, %v3789
        %v3791 = vpop.f32.mrf.mxu0
        %v3792 = vadd.f32 %v3763, %v3791
        %3793 = vmatmul.bf16.gmra.mxu0 %v3246
        %v3794 = vpop.f32.mrf.mxu0
        %v3795 = vadd.f32 %v3766, %v3794
        %v3796 = vpop.f32.mrf.mxu0
        %v3797 = vadd.f32 %v3768, %v3796
        %3798 = vdwg.mxu0
        %3799 = vmatpush.bf16.msra.mxu0 %v3599
        %3800 = vmatpush.bf16.msra.mxu0 %v3598
        %3801 = vmatpush.bf16.msra.mxu0 %v3597
        %3802 = vmatpush.bf16.msra.mxu0 %v3596
        %3803 = vmatpush.bf16.msra.mxu0 %v3595
        %3804 = vmatpush.bf16.msra.mxu0 %v3594
        %3805 = vmatpush.bf16.msra.mxu0 %v3593
        %3806 = vmatpush.bf16.msra.mxu0 %v3592
        %3807 = vmatmul.bf16.gmra.mxu0 %v3229
        %v3808 = vpop.f32.mrf.mxu0
        %v3809 = vadd.f32 %v3780, %v3808
        %v3810 = vpop.f32.mrf.mxu0
        %v3811 = vadd.f32 %v3782, %v3810
        %3812 = vmatmul.bf16.gmra.mxu0 %v3235
        %v3813 = vpop.f32.mrf.mxu0
        %v3814 = vadd.f32 %v3785, %v3813
        %v3815 = vpop.f32.mrf.mxu0
        %v3816 = vadd.f32 %v3787, %v3815
        %3817 = vmatmul.bf16.gmra.mxu0 %v3241
        %v3818 = vpop.f32.mrf.mxu0
        %v3819 = vadd.f32 %v3790, %v3818
        %v3820 = vpop.f32.mrf.mxu0
        %v3821 = vadd.f32 %v3792, %v3820
        %3822 = vmatmul.bf16.gmra.mxu0 %v3247
        %v3823 = vpop.f32.mrf.mxu0
        %v3824 = vadd.f32 %v3795, %v3823
        %v3825 = vpop.f32.mrf.mxu0
        %v3826 = vadd.f32 %v3797, %v3825
        %3827 = vdwg.mxu0
        %3828 = vmatpush.bf16.msra.mxu0 %v3607
        %3829 = vmatpush.bf16.msra.mxu0 %v3606
        %3830 = vmatpush.bf16.msra.mxu0 %v3605
        %3831 = vmatpush.bf16.msra.mxu0 %v3604
        %3832 = vmatpush.bf16.msra.mxu0 %v3603
        %3833 = vmatpush.bf16.msra.mxu0 %v3602
        %3834 = vmatpush.bf16.msra.mxu0 %v3601
        %3835 = vmatpush.bf16.msra.mxu0 %v3600
        %3836 = vmatmul.bf16.gmra.mxu0 %v3230
        %v3837 = vpop.f32.mrf.mxu0
        %v3838 = vadd.f32 %v3809, %v3837
        %v3839 = vpop.f32.mrf.mxu0
        %v3840 = vadd.f32 %v3811, %v3839
        %3841 = vmatmul.bf16.gmra.mxu0 %v3236
        %v3842 = vpop.f32.mrf.mxu0
        %v3843 = vadd.f32 %v3814, %v3842
        %v3844 = vpop.f32.mrf.mxu0
        %v3845 = vadd.f32 %v3816, %v3844
        %3846 = vmatmul.bf16.gmra.mxu0 %v3242
        %v3847 = vpop.f32.mrf.mxu0
        %v3848 = vadd.f32 %v3819, %v3847
        %v3849 = vpop.f32.mrf.mxu0
        %v3850 = vadd.f32 %v3821, %v3849
        %3851 = vmatmul.bf16.gmra.mxu0 %v3248
        %v3852 = vpop.f32.mrf.mxu0
        %v3853 = vadd.f32 %v3824, %v3852
        %v3854 = vpop.f32.mrf.mxu0
        %v3855 = vadd.f32 %v3826, %v3854
        %3856 = vdwg.mxu0
        %3857 = vmatpush.bf16.msra.mxu0 %v3615
        %3858 = vmatpush.bf16.msra.mxu0 %v3614
        %3859 = vmatpush.bf16.msra.mxu0 %v3613
        %3860 = vmatpush.bf16.msra.mxu0 %v3612
        %3861 = vmatpush.bf16.msra.mxu0 %v3611
        %3862 = vmatpush.bf16.msra.mxu0 %v3610
        %3863 = vmatpush.bf16.msra.mxu0 %v3609
        %3864 = vmatpush.bf16.msra.mxu0 %v3608
        %3865 = vmatmul.bf16.gmra.mxu0 %v3231
        %v3866 = vpop.f32.mrf.mxu0
        %v3867 = vadd.f32 %v3838, %v3866
        %v3868 = vpop.f32.mrf.mxu0
        %v3869 = vadd.f32 %v3840, %v3868
        %3870 = vmatmul.bf16.gmra.mxu0 %v3237
        %v3871 = vpop.f32.mrf.mxu0
        %v3872 = vadd.f32 %v3843, %v3871
        %v3873 = vpop.f32.mrf.mxu0
        %v3874 = vadd.f32 %v3845, %v3873
        %3875 = vmatmul.bf16.gmra.mxu0 %v3243
        %v3876 = vpop.f32.mrf.mxu0
        %v3877 = vadd.f32 %v3848, %v3876
        %v3878 = vpop.f32.mrf.mxu0
        %v3879 = vadd.f32 %v3850, %v3878
        %3880 = vmatmul.bf16.gmra.mxu0 %v3249
        %v3881 = vpop.f32.mrf.mxu0
        %v3882 = vadd.f32 %v3853, %v3881
        %v3883 = vpop.f32.mrf.mxu0
        %v3884 = vadd.f32 %v3855, %v3883
        %3885 = vdwg.mxu0
        %3886 = vmatpush.bf16.msra.mxu0 %v3623
        %3887 = vmatpush.bf16.msra.mxu0 %v3622
        %3888 = vmatpush.bf16.msra.mxu0 %v3621
        %3889 = vmatpush.bf16.msra.mxu0 %v3620
        %3890 = vmatpush.bf16.msra.mxu0 %v3619
        %3891 = vmatpush.bf16.msra.mxu0 %v3618
        %3892 = vmatpush.bf16.msra.mxu0 %v3617
        %3893 = vmatpush.bf16.msra.mxu0 %v3616
        %3894 = vmatmul.bf16.gmra.mxu0 %v3232
        %v3895 = vpop.f32.mrf.mxu0
        %v3896 = vadd.f32 %v3867, %v3895
        %v3897 = vpop.f32.mrf.mxu0
        %v3898 = vadd.f32 %v3869, %v3897
        %3899 = vmatmul.bf16.gmra.mxu0 %v3238
        %v3900 = vpop.f32.mrf.mxu0
        %v3901 = vadd.f32 %v3872, %v3900
        %v3902 = vpop.f32.mrf.mxu0
        %v3903 = vadd.f32 %v3874, %v3902
        %3904 = vmatmul.bf16.gmra.mxu0 %v3244
        %v3905 = vpop.f32.mrf.mxu0
        %v3906 = vadd.f32 %v3877, %v3905
        %v3907 = vpop.f32.mrf.mxu0
        %v3908 = vadd.f32 %v3879, %v3907
        %3909 = vmatmul.bf16.gmra.mxu0 %v3250
        %v3910 = vpop.f32.mrf.mxu0
        %v3911 = vadd.f32 %v3882, %v3910
        %v3912 = vpop.f32.mrf.mxu0
        %v3913 = vadd.f32 %v3884, %v3912
        %3914 = vdwg.mxu0
        %3915 = vmatpush.bf16.msra.mxu0 %v3631
        %3916 = vmatpush.bf16.msra.mxu0 %v3630
        %3917 = vmatpush.bf16.msra.mxu0 %v3629
        %3918 = vmatpush.bf16.msra.mxu0 %v3628
        %3919 = vmatpush.bf16.msra.mxu0 %v3627
        %3920 = vmatpush.bf16.msra.mxu0 %v3626
        %3921 = vmatpush.bf16.msra.mxu0 %v3625
        %3922 = vmatpush.bf16.msra.mxu0 %v3624
        %3923 = vmatmul.bf16.gmra.mxu0 %v3233
        %v3924 = vpop.f32.mrf.mxu0
        %v3925 = vadd.f32 %v3896, %v3924
        %v3926 = vpop.f32.mrf.mxu0
        %v3927 = vadd.f32 %v3898, %v3926
        %3928 = vmatmul.bf16.gmra.mxu0 %v3239
        %v3929 = vpop.f32.mrf.mxu0
        %v3930 = vadd.f32 %v3901, %v3929
        %v3931 = vpop.f32.mrf.mxu0
        %v3932 = vadd.f32 %v3903, %v3931
        %3933 = vmatmul.bf16.gmra.mxu0 %v3245
        %v3934 = vpop.f32.mrf.mxu0
        %v3935 = vadd.f32 %v3906, %v3934
        %v3936 = vpop.f32.mrf.mxu0
        %v3937 = vadd.f32 %v3908, %v3936
        %3938 = vmatmul.bf16.gmra.mxu0 %v3251
        %v3939 = vpop.f32.mrf.mxu0
        %v3940 = vadd.f32 %v3911, %v3939
        %v3941 = vpop.f32.mrf.mxu0
        %v3942 = vadd.f32 %v3913, %v3941
        %3943 = vdwg.mxu0
        %3944 = vmatpush.bf16.msra.mxu0 %v3639
        %3945 = vmatpush.bf16.msra.mxu0 %v3638
        %3946 = vmatpush.bf16.msra.mxu0 %v3637
        %3947 = vmatpush.bf16.msra.mxu0 %v3636
        %3948 = vmatpush.bf16.msra.mxu0 %v3635
        %3949 = vmatpush.bf16.msra.mxu0 %v3634
        %3950 = vmatpush.bf16.msra.mxu0 %v3633
        %3951 = vmatpush.bf16.msra.mxu0 %v3632
        %3952 = vmatmul.bf16.gmra.mxu0 %v3234
        %v3953 = vpop.f32.mrf.mxu0
        %v3954 = vadd.f32 %v3925, %v3953
        %v3955 = vpop.f32.mrf.mxu0
        %v3956 = vadd.f32 %v3927, %v3955
        %3957 = vmatmul.bf16.gmra.mxu0 %v3240
        %v3958 = vpop.f32.mrf.mxu0
        %v3959 = vadd.f32 %v3930, %v3958
        %v3960 = vpop.f32.mrf.mxu0
        %v3961 = vadd.f32 %v3932, %v3960
        %3962 = vmatmul.bf16.gmra.mxu0 %v3246
        %v3963 = vpop.f32.mrf.mxu0
        %v3964 = vadd.f32 %v3935, %v3963
        %v3965 = vpop.f32.mrf.mxu0
        %v3966 = vadd.f32 %v3937, %v3965
        %3967 = vmatmul.bf16.gmra.mxu0 %v3252
        %v3968 = vpop.f32.mrf.mxu0
        %v3969 = vadd.f32 %v3940, %v3968
        %v3970 = vpop.f32.mrf.mxu0
        %v3971 = vadd.f32 %v3942, %v3970
        %3972 = vdwg.mxu0
        %s3973 = sld [smem:[#allocation4 + $0x2]]
        %vm3974 = vcmp.ge.f32.partialorder %v3954, 0.0
        %vm3975 = vcmp.ge.f32.partialorder %v3956, 0.0
        %vm3976 = vcmp.ge.f32.partialorder %v3959, 0.0
        %vm3977 = vcmp.ge.f32.partialorder %v3961, 0.0
        %vm3978 = vcmp.ge.f32.partialorder %v3964, 0.0
        %vm3979 = vcmp.ge.f32.partialorder %v3966, 0.0
        %vm3980 = vcmp.ge.f32.partialorder %v3969, 0.0
        %vm3981 = vcmp.ge.f32.partialorder %v3971, 0.0
        %v3982 = vstv %s3973
        %v3983 = vmul.f32 %v3982, %v3954
        %v3984 = vmul.f32 %v3982, %v3956
        %v3985 = vmul.f32 %v3982, %v3959
        %v3986 = vmul.f32 %v3982, %v3961
        %v3987 = vmul.f32 %v3982, %v3964
        %v3988 = vmul.f32 %v3982, %v3966
        %v3989 = vmul.f32 %v3982, %v3969
        %v3990 = vmul.f32 %v3982, %v3971
        %v3991 = vsel %vm3974, %v3954, %v3983
        %v3992 = vsel %vm3975, %v3956, %v3984
        %v3993 = vsel %vm3976, %v3959, %v3985
        %v3994 = vsel %vm3977, %v3961, %v3986
        %v3995 = vsel %vm3978, %v3964, %v3987
        %v3996 = vsel %vm3979, %v3966, %v3988
        %v3997 = vsel %vm3980, %v3969, %v3989
        %v3998 = vsel %vm3981, %v3971, %v3990
        %v3999 = vpack.c.bf16 %v3991, %v3991
        %v4000 = vpack.c.bf16 %v3992, %v3992
        %v4001 = vpack.c.bf16 %v3993, %v3993
        %v4002 = vpack.c.bf16 %v3994, %v3994
        %v4003 = vpack.c.bf16 %v3995, %v3995
        %v4004 = vpack.c.bf16 %v3996, %v3996
        %v4005 = vpack.c.bf16 %v3997, %v3997
        %v4006 = vpack.c.bf16 %v3998, %v3998
        %v4008 = vshrl.u32 %v3999, 16
        %v4010 = vrot.slane %v4008, 7
        %v4011 = vshll.u32 %v3999, 16
        %v4013 = vor.u32 %v4010, %v4011
        %v4014 = vrot.slane %v4010, 4
        %v4016 = vshrl.u32 %v4000, 16
        %v4018 = vrot.slane %v4016, 7
        %v4019 = vshll.u32 %v4000, 16
        %v4021 = vor.u32 %v4018, %v4019
        %v4022 = vrot.slane %v4018, 4
        %v4024 = vshrl.u32 %v4001, 16
        %v4026 = vrot.slane %v4024, 7
        %v4027 = vshll.u32 %v4001, 16
        %v4029 = vor.u32 %v4026, %v4027
        %v4030 = vrot.slane %v4026, 4
        %v4032 = vshrl.u32 %v4002, 16
        %v4034 = vrot.slane %v4032, 7
        %v4035 = vshll.u32 %v4002, 16
        %v4037 = vor.u32 %v4034, %v4035
        %v4038 = vrot.slane %v4034, 4
        %v4040 = vshrl.u32 %v4003, 16
        %v4042 = vrot.slane %v4040, 7
        %v4043 = vshll.u32 %v4003, 16
        %v4045 = vor.u32 %v4042, %v4043
        %v4046 = vrot.slane %v4042, 4
        %v4048 = vshrl.u32 %v4004, 16
        %v4050 = vrot.slane %v4048, 7
        %v4051 = vshll.u32 %v4004, 16
        %v4053 = vor.u32 %v4050, %v4051
        %v4054 = vrot.slane %v4050, 4
        %v4056 = vshrl.u32 %v4005, 16
        %v4058 = vrot.slane %v4056, 7
        %v4059 = vshll.u32 %v4005, 16
        %v4061 = vor.u32 %v4058, %v4059
        %v4062 = vrot.slane %v4058, 4
        %v4064 = vshrl.u32 %v4006, 16
        %v4066 = vrot.slane %v4064, 7
        %v4067 = vshll.u32 %v4006, 16
        %v4069 = vor.u32 %v4066, %v4067
        %v4070 = vrot.slane %v4066, 4
        %v4087 = vld [vmem:[%s389] sm:$0xf]
        %v4088 = vsel %vm391, %v4013, %v4087
        %4089 = vst [vmem:[%s389] sm:$0xf] %v4088
        %v4090 = vld [vmem:[%s389 + $0x4] sm:$0x1]
        %v4091 = vsel %vm230, %v4014, %v4090
        %4092 = vst [vmem:[%s389 + $0x4] sm:$0x1] %v4091
        %v4093 = vld [vmem:[%s389 + $0x8] sm:$0xf]
        %v4094 = vsel %vm391, %v4021, %v4093
        %4095 = vst [vmem:[%s389 + $0x8] sm:$0xf] %v4094
        %v4096 = vld [vmem:[%s389 + $0xc] sm:$0x1]
        %v4097 = vsel %vm230, %v4022, %v4096
        %4098 = vst [vmem:[%s389 + $0xc] sm:$0x1] %v4097
        %v4099 = vld [vmem:[%s389 + $0x10] sm:$0xf]
        %v4100 = vsel %vm391, %v4029, %v4099
        %4101 = vst [vmem:[%s389 + $0x10] sm:$0xf] %v4100
        %v4102 = vld [vmem:[%s389 + $0x14] sm:$0x1]
        %v4103 = vsel %vm230, %v4030, %v4102
        %4104 = vst [vmem:[%s389 + $0x14] sm:$0x1] %v4103
        %v4105 = vld [vmem:[%s389 + $0x18] sm:$0xf]
        %v4106 = vsel %vm391, %v4037, %v4105
        %4107 = vst [vmem:[%s389 + $0x18] sm:$0xf] %v4106
        %v4108 = vld [vmem:[%s389 + $0x1c] sm:$0x1]
        %v4109 = vsel %vm230, %v4038, %v4108
        %4110 = vst [vmem:[%s389 + $0x1c] sm:$0x1] %v4109
        %v4111 = vld [vmem:[%s389 + $0x20] sm:$0xf]
        %v4112 = vsel %vm391, %v4045, %v4111
        %4113 = vst [vmem:[%s389 + $0x20] sm:$0xf] %v4112
        %v4114 = vld [vmem:[%s389 + $0x24] sm:$0x1]
        %v4115 = vsel %vm230, %v4046, %v4114
        %4116 = vst [vmem:[%s389 + $0x24] sm:$0x1] %v4115
        %v4117 = vld [vmem:[%s389 + $0x28] sm:$0xf]
        %v4118 = vsel %vm391, %v4053, %v4117
        %4119 = vst [vmem:[%s389 + $0x28] sm:$0xf] %v4118
        %v4120 = vld [vmem:[%s389 + $0x2c] sm:$0x1]
        %v4121 = vsel %vm230, %v4054, %v4120
        %4122 = vst [vmem:[%s389 + $0x2c] sm:$0x1] %v4121
        %v4123 = vld [vmem:[%s389 + $0x30] sm:$0xf]
        %v4124 = vsel %vm391, %v4061, %v4123
        %4125 = vst [vmem:[%s389 + $0x30] sm:$0xf] %v4124
        %v4126 = vld [vmem:[%s389 + $0x34] sm:$0x1]
        %v4127 = vsel %vm230, %v4062, %v4126
        %4128 = vst [vmem:[%s389 + $0x34] sm:$0x1] %v4127
        %v4129 = vld [vmem:[%s389 + $0x38] sm:$0xf]
        %v4130 = vsel %vm391, %v4069, %v4129
        %4131 = vst [vmem:[%s389 + $0x38] sm:$0xf] %v4130
        %v4132 = vld [vmem:[%s389 + $0x3c] sm:$0x1]
        %v4133 = vsel %vm230, %v4070, %v4132
        %4134 = vst [vmem:[%s389 + $0x3c] sm:$0x1] %v4133
        %v4135 = vld [vmem:[#allocation2] sm:$0xf]
        %v4136 = vld [vmem:[#allocation2 + $0x4] sm:$0x1]
        %v4137 = vld [vmem:[#allocation2 + $0x8] sm:$0xf]
        %v4138 = vld [vmem:[#allocation2 + $0xc] sm:$0x1]
        %v4139 = vld [vmem:[#allocation2 + $0x10] sm:$0xf]
        %v4140 = vld [vmem:[#allocation2 + $0x14] sm:$0x1]
        %v4141 = vld [vmem:[#allocation2 + $0x18] sm:$0xf]
        %v4142 = vld [vmem:[#allocation2 + $0x1c] sm:$0x1]
        %v4143 = vld [vmem:[#allocation2 + $0x20] sm:$0xf]
        %v4144 = vld [vmem:[#allocation2 + $0x24] sm:$0x1]
        %v4145 = vld [vmem:[#allocation2 + $0x28] sm:$0xf]
        %v4146 = vld [vmem:[#allocation2 + $0x2c] sm:$0x1]
        %v4147 = vld [vmem:[#allocation2 + $0x30] sm:$0xf]
        %v4148 = vld [vmem:[#allocation2 + $0x34] sm:$0x1]
        %v4149 = vld [vmem:[#allocation2 + $0x38] sm:$0xf]
        %v4150 = vld [vmem:[#allocation2 + $0x3c] sm:$0x1]
        %v4151 = vld [vmem:[#allocation2 + $0x40] sm:$0xf]
        %v4152 = vld [vmem:[#allocation2 + $0x44] sm:$0x1]
        %v4153 = vld [vmem:[#allocation2 + $0x48] sm:$0xf]
        %v4154 = vld [vmem:[#allocation2 + $0x4c] sm:$0x1]
        %v4171 = vunpack.c.l.b16 %v4135
        %v4172 = vunpack.c.l.b16 %v4136
        %v4173 = vunpack.c.l.b16 %v4137
        %v4174 = vunpack.c.l.b16 %v4138
        %v4175 = vunpack.c.l.b16 %v4139
        %v4176 = vunpack.c.l.b16 %v4140
        %v4177 = vunpack.c.l.b16 %v4141
        %v4178 = vunpack.c.l.b16 %v4142
        %v4179 = vunpack.c.l.b16 %v4143
        %v4180 = vunpack.c.l.b16 %v4144
        %v4181 = vunpack.c.l.b16 %v4145
        %v4182 = vunpack.c.l.b16 %v4146
        %v4183 = vunpack.c.l.b16 %v4147
        %v4184 = vunpack.c.l.b16 %v4148
        %v4185 = vunpack.c.l.b16 %v4149
        %v4186 = vunpack.c.l.b16 %v4150
        %v4187 = vpack.c.b16 %v4172, %v4171
        %v4188 = vpack.c.b16 %v4174, %v4173
        %v4189 = vpack.c.b16 %v4176, %v4175
        %v4190 = vpack.c.b16 %v4178, %v4177
        %v4191 = vpack.c.b16 %v4180, %v4179
        %v4192 = vpack.c.b16 %v4182, %v4181
        %v4193 = vpack.c.b16 %v4184, %v4183
        %v4194 = vpack.c.b16 %v4186, %v4185
        %v4196 = vshrl.u32 %v4187, 16
        %v4198 = vshll.u32 %v4187, 16
        %v4200 = vrot.slane %v4198, 1
        %v4201 = vor.u32 %v4196, %v4200
        %v4203 = vshrl.u32 %v4188, 16
        %v4205 = vshll.u32 %v4188, 16
        %v4207 = vrot.slane %v4205, 1
        %v4208 = vor.u32 %v4203, %v4207
        %v4210 = vshrl.u32 %v4189, 16
        %v4212 = vshll.u32 %v4189, 16
        %v4214 = vrot.slane %v4212, 1
        %v4215 = vor.u32 %v4210, %v4214
        %v4217 = vshrl.u32 %v4190, 16
        %v4219 = vshll.u32 %v4190, 16
        %v4221 = vrot.slane %v4219, 1
        %v4222 = vor.u32 %v4217, %v4221
        %v4224 = vshrl.u32 %v4191, 16
        %v4226 = vshll.u32 %v4191, 16
        %v4228 = vrot.slane %v4226, 1
        %v4229 = vor.u32 %v4224, %v4228
        %v4231 = vshrl.u32 %v4192, 16
        %v4233 = vshll.u32 %v4192, 16
        %v4235 = vrot.slane %v4233, 1
        %v4236 = vor.u32 %v4231, %v4235
        %v4238 = vshrl.u32 %v4193, 16
        %v4240 = vshll.u32 %v4193, 16
        %v4242 = vrot.slane %v4240, 1
        %v4243 = vor.u32 %v4238, %v4242
        %v4245 = vshrl.u32 %v4194, 16
        %v4247 = vshll.u32 %v4194, 16
        %v4249 = vrot.slane %v4247, 1
        %v4250 = vor.u32 %v4245, %v4249
        %v4251 = vrot.slane %v4187, 1
        %v4252 = vrot.slane %v4188, 1
        %v4253 = vrot.slane %v4189, 1
        %v4254 = vrot.slane %v4190, 1
        %v4255 = vrot.slane %v4191, 1
        %v4256 = vrot.slane %v4192, 1
        %v4257 = vrot.slane %v4193, 1
        %v4258 = vrot.slane %v4194, 1
        %v4261 = vunpack.c.l.b16 %v4151
        %v4262 = vunpack.c.l.b16 %v4152
        %v4263 = vpack.c.b16 %v4262, %v4261
        %v4265 = vshrl.u32 %v4263, 16
        %v4267 = vshll.u32 %v4263, 16
        %v4269 = vrot.slane %v4267, 1
        %v4270 = vor.u32 %v4265, %v4269
        %v4271 = vrot.slane %v4263, 1
        %v4274 = vunpack.c.l.b16 %v4153
        %v4275 = vunpack.c.l.b16 %v4154
        %v4276 = vpack.c.b16 %v4275, %v4274
        %v4278 = vshrl.u32 %v4276, 16
        %v4280 = vshll.u32 %v4276, 16
        %v4282 = vrot.slane %v4280, 1
        %v4283 = vor.u32 %v4278, %v4282
        %v4284 = vrot.slane %v4276, 1
        %v4285 = vunpack.c.l.b16 %v4201
        %v4286 = vunpack.c.l.b16 %v4251
        %v4287 = vunpack.c.l.b16 %v4208
        %v4288 = vunpack.c.l.b16 %v4252
        %v4289 = vunpack.c.l.b16 %v4215
        %v4290 = vunpack.c.l.b16 %v4253
        %v4291 = vunpack.c.l.b16 %v4222
        %v4292 = vunpack.c.l.b16 %v4254
        %v4293 = vunpack.c.l.b16 %v4229
        %v4294 = vunpack.c.l.b16 %v4255
        %v4295 = vunpack.c.l.b16 %v4236
        %v4296 = vunpack.c.l.b16 %v4256
        %v4297 = vunpack.c.l.b16 %v4243
        %v4298 = vunpack.c.l.b16 %v4257
        %v4299 = vunpack.c.l.b16 %v4250
        %v4300 = vunpack.c.l.b16 %v4258
        %v4301 = vunpack.c.l.b16 %v4270
        %v4302 = vunpack.c.l.b16 %v4271
        %v4303 = vunpack.c.l.b16 %v4283
        %v4304 = vunpack.c.l.b16 %v4284
        %s4305 = scalar_lea.vmem [#allocation9], 1728
        %v4306 = vld [vmem:[%s4305] sm:$0xf]
        %v4307 = vld [vmem:[%s4305 + $0x4] sm:$0xf]
        %v4308 = vld [vmem:[%s4305 + $0x8] sm:$0xf]
        %v4309 = vld [vmem:[%s4305 + $0xc] sm:$0xf]
        %v4310 = vld [vmem:[%s4305 + $0x10] sm:$0xf]
        %v4311 = vld [vmem:[%s4305 + $0x14] sm:$0xf]
        %v4312 = vld [vmem:[%s4305 + $0x18] sm:$0xf]
        %v4313 = vld [vmem:[%s4305 + $0x1c] sm:$0xf]
        %v4314 = vld [vmem:[%s4305 + $0x20] sm:$0xf]
        %v4315 = vld [vmem:[%s4305 + $0x24] sm:$0xf]
        %v4316 = vld [vmem:[%s4305 + $0x28] sm:$0xf]
        %v4317 = vld [vmem:[%s4305 + $0x2c] sm:$0xf]
        %v4318 = vld [vmem:[%s4305 + $0x30] sm:$0xf]
        %v4319 = vld [vmem:[%s4305 + $0x34] sm:$0xf]
        %v4320 = vld [vmem:[%s4305 + $0x38] sm:$0xf]
        %v4321 = vld [vmem:[%s4305 + $0x3c] sm:$0xf]
        %v4322 = vld [vmem:[%s4305 + $0x40] sm:$0xf]
        %v4323 = vld [vmem:[%s4305 + $0x44] sm:$0xf]
        %v4324 = vld [vmem:[%s4305 + $0x48] sm:$0xf]
        %v4325 = vld [vmem:[%s4305 + $0x4c] sm:$0xf]
        %v4326 = vld [vmem:[%s4305 + $0x50] sm:$0xf]
        %v4327 = vld [vmem:[%s4305 + $0x54] sm:$0xf]
        %v4328 = vld [vmem:[%s4305 + $0x58] sm:$0xf]
        %v4329 = vld [vmem:[%s4305 + $0x5c] sm:$0xf]
        %v4330 = vld [vmem:[%s4305 + $0x60] sm:$0xf]
        %v4331 = vld [vmem:[%s4305 + $0x64] sm:$0xf]
        %v4332 = vld [vmem:[%s4305 + $0x68] sm:$0xf]
        %v4333 = vld [vmem:[%s4305 + $0x6c] sm:$0xf]
        %v4334 = vld [vmem:[%s4305 + $0x70] sm:$0xf]
        %v4335 = vld [vmem:[%s4305 + $0x74] sm:$0xf]
        %v4336 = vld [vmem:[%s4305 + $0x78] sm:$0xf]
        %v4337 = vld [vmem:[%s4305 + $0x7c] sm:$0xf]
        %v4338 = vld [vmem:[%s4305 + $0x80] sm:$0xf]
        %v4339 = vld [vmem:[%s4305 + $0x84] sm:$0xf]
        %v4340 = vld [vmem:[%s4305 + $0x88] sm:$0xf]
        %v4341 = vld [vmem:[%s4305 + $0x8c] sm:$0xf]
        %v4342 = vld [vmem:[%s4305 + $0x90] sm:$0xf]
        %v4343 = vld [vmem:[%s4305 + $0x94] sm:$0xf]
        %v4344 = vld [vmem:[%s4305 + $0x98] sm:$0xf]
        %v4345 = vld [vmem:[%s4305 + $0x9c] sm:$0xf]
        %v4346 = vld [vmem:[%s4305 + $0xa0] sm:$0xf]
        %v4347 = vld [vmem:[%s4305 + $0xa4] sm:$0xf]
        %v4348 = vld [vmem:[%s4305 + $0xa8] sm:$0xf]
        %v4349 = vld [vmem:[%s4305 + $0xac] sm:$0xf]
        %v4350 = vld [vmem:[%s4305 + $0xb0] sm:$0xf]
        %v4351 = vld [vmem:[%s4305 + $0xb4] sm:$0xf]
        %v4352 = vld [vmem:[%s4305 + $0xb8] sm:$0xf]
        %v4353 = vld [vmem:[%s4305 + $0xbc] sm:$0xf]
        %v4354 = vld [vmem:[%s4305 + $0xc0] sm:$0xf]
        %v4355 = vld [vmem:[%s4305 + $0xc4] sm:$0xf]
        %v4356 = vld [vmem:[%s4305 + $0xc8] sm:$0xf]
        %v4357 = vld [vmem:[%s4305 + $0xcc] sm:$0xf]
        %v4358 = vld [vmem:[%s4305 + $0xd0] sm:$0xf]
        %v4359 = vld [vmem:[%s4305 + $0xd4] sm:$0xf]
        %v4360 = vld [vmem:[%s4305 + $0xd8] sm:$0xf]
        %v4361 = vld [vmem:[%s4305 + $0xdc] sm:$0xf]
        %v4362 = vld [vmem:[%s4305 + $0xe0] sm:$0xf]
        %v4363 = vld [vmem:[%s4305 + $0xe4] sm:$0xf]
        %v4364 = vld [vmem:[%s4305 + $0xe8] sm:$0xf]
        %v4365 = vld [vmem:[%s4305 + $0xec] sm:$0xf]
        %v4366 = vld [vmem:[%s4305 + $0xf0] sm:$0xf]
        %v4367 = vld [vmem:[%s4305 + $0xf4] sm:$0xf]
        %v4368 = vld [vmem:[%s4305 + $0xf8] sm:$0xf]
        %v4369 = vld [vmem:[%s4305 + $0xfc] sm:$0xf]
        %v4370 = vld [vmem:[%s4305 + $0x100] sm:$0xf]
        %v4371 = vld [vmem:[%s4305 + $0x104] sm:$0xf]
        %v4372 = vld [vmem:[%s4305 + $0x108] sm:$0xf]
        %v4373 = vld [vmem:[%s4305 + $0x10c] sm:$0xf]
        %v4374 = vld [vmem:[%s4305 + $0x110] sm:$0xf]
        %v4375 = vld [vmem:[%s4305 + $0x114] sm:$0xf]
        %v4376 = vld [vmem:[%s4305 + $0x118] sm:$0xf]
        %v4377 = vld [vmem:[%s4305 + $0x11c] sm:$0xf]
        %v4378 = vld [vmem:[%s4305 + $0x120] sm:$0xf]
        %v4379 = vld [vmem:[%s4305 + $0x124] sm:$0xf]
        %v4380 = vld [vmem:[%s4305 + $0x128] sm:$0xf]
        %v4381 = vld [vmem:[%s4305 + $0x12c] sm:$0xf]
        %v4382 = vld [vmem:[%s4305 + $0x130] sm:$0xf]
        %v4383 = vld [vmem:[%s4305 + $0x134] sm:$0xf]
        %v4384 = vld [vmem:[%s4305 + $0x138] sm:$0xf]
        %v4385 = vld [vmem:[%s4305 + $0x13c] sm:$0xf]
        %v4386 = vld [vmem:[%s4305 + $0x140] sm:$0xf]
        %v4387 = vld [vmem:[%s4305 + $0x144] sm:$0xf]
        %v4388 = vld [vmem:[%s4305 + $0x148] sm:$0xf]
        %v4389 = vld [vmem:[%s4305 + $0x14c] sm:$0xf]
        %v4390 = vld [vmem:[%s4305 + $0x150] sm:$0xf]
        %v4391 = vld [vmem:[%s4305 + $0x154] sm:$0xf]
        %v4392 = vld [vmem:[%s4305 + $0x158] sm:$0xf]
        %v4393 = vld [vmem:[%s4305 + $0x15c] sm:$0xf]
        %v4394 = vld [vmem:[%s4305 + $0x160] sm:$0xf]
        %v4395 = vld [vmem:[%s4305 + $0x164] sm:$0xf]
        %v4396 = vld [vmem:[%s4305 + $0x168] sm:$0xf]
        %v4397 = vld [vmem:[%s4305 + $0x16c] sm:$0xf]
        %v4398 = vld [vmem:[%s4305 + $0x170] sm:$0xf]
        %v4399 = vld [vmem:[%s4305 + $0x174] sm:$0xf]
        %v4400 = vld [vmem:[%s4305 + $0x178] sm:$0xf]
        %v4401 = vld [vmem:[%s4305 + $0x17c] sm:$0xf]
        %v4402 = vld [vmem:[%s4305 + $0x180] sm:$0xf]
        %v4403 = vld [vmem:[%s4305 + $0x184] sm:$0xf]
        %v4404 = vld [vmem:[%s4305 + $0x188] sm:$0xf]
        %v4405 = vld [vmem:[%s4305 + $0x18c] sm:$0xf]
        %v4406 = vld [vmem:[%s4305 + $0x190] sm:$0xf]
        %v4407 = vld [vmem:[%s4305 + $0x194] sm:$0xf]
        %v4408 = vld [vmem:[%s4305 + $0x198] sm:$0xf]
        %v4409 = vld [vmem:[%s4305 + $0x19c] sm:$0xf]
        %v4410 = vld [vmem:[%s4305 + $0x1a0] sm:$0xf]
        %v4411 = vld [vmem:[%s4305 + $0x1a4] sm:$0xf]
        %v4412 = vld [vmem:[%s4305 + $0x1a8] sm:$0xf]
        %v4413 = vld [vmem:[%s4305 + $0x1ac] sm:$0xf]
        %v4414 = vld [vmem:[%s4305 + $0x1b0] sm:$0xf]
        %v4415 = vld [vmem:[%s4305 + $0x1b4] sm:$0xf]
        %v4416 = vld [vmem:[%s4305 + $0x1b8] sm:$0xf]
        %v4417 = vld [vmem:[%s4305 + $0x1bc] sm:$0xf]
        %v4418 = vld [vmem:[%s4305 + $0x1c0] sm:$0xf]
        %v4419 = vld [vmem:[%s4305 + $0x1c4] sm:$0xf]
        %v4420 = vld [vmem:[%s4305 + $0x1c8] sm:$0xf]
        %v4421 = vld [vmem:[%s4305 + $0x1cc] sm:$0xf]
        %v4422 = vld [vmem:[%s4305 + $0x1d0] sm:$0xf]
        %v4423 = vld [vmem:[%s4305 + $0x1d4] sm:$0xf]
        %v4424 = vld [vmem:[%s4305 + $0x1d8] sm:$0xf]
        %v4425 = vld [vmem:[%s4305 + $0x1dc] sm:$0xf]
        %v4426 = vld [vmem:[%s4305 + $0x1e0] sm:$0xf]
        %v4427 = vld [vmem:[%s4305 + $0x1e4] sm:$0xf]
        %v4428 = vld [vmem:[%s4305 + $0x1e8] sm:$0xf]
        %v4429 = vld [vmem:[%s4305 + $0x1ec] sm:$0xf]
        %v4430 = vld [vmem:[%s4305 + $0x1f0] sm:$0xf]
        %v4431 = vld [vmem:[%s4305 + $0x1f4] sm:$0xf]
        %v4432 = vld [vmem:[%s4305 + $0x1f8] sm:$0xf]
        %v4433 = vld [vmem:[%s4305 + $0x1fc] sm:$0xf]
        %v4434 = vld [vmem:[%s4305 + $0x200] sm:$0xf]
        %v4435 = vld [vmem:[%s4305 + $0x204] sm:$0xf]
        %v4436 = vld [vmem:[%s4305 + $0x208] sm:$0xf]
        %v4437 = vld [vmem:[%s4305 + $0x20c] sm:$0xf]
        %v4438 = vld [vmem:[%s4305 + $0x210] sm:$0xf]
        %v4439 = vld [vmem:[%s4305 + $0x214] sm:$0xf]
        %v4440 = vld [vmem:[%s4305 + $0x218] sm:$0xf]
        %v4441 = vld [vmem:[%s4305 + $0x21c] sm:$0xf]
        %v4442 = vld [vmem:[%s4305 + $0x220] sm:$0xf]
        %v4443 = vld [vmem:[%s4305 + $0x224] sm:$0xf]
        %v4444 = vld [vmem:[%s4305 + $0x228] sm:$0xf]
        %v4445 = vld [vmem:[%s4305 + $0x22c] sm:$0xf]
        %v4446 = vld [vmem:[%s4305 + $0x230] sm:$0xf]
        %v4447 = vld [vmem:[%s4305 + $0x234] sm:$0xf]
        %v4448 = vld [vmem:[%s4305 + $0x238] sm:$0xf]
        %v4449 = vld [vmem:[%s4305 + $0x23c] sm:$0xf]
        %v4450 = vpack.c.b16 %v4173, %v4171
        %v4451 = vpack.c.b16 %v4287, %v4285
        %v4452 = vpack.c.b16 %v4288, %v4286
        %v4453 = vpack.c.b16 %v4175, %v4173
        %v4454 = vpack.c.b16 %v4289, %v4287
        %v4455 = vpack.c.b16 %v4290, %v4288
        %v4456 = vpack.c.b16 %v4177, %v4175
        %v4457 = vpack.c.b16 %v4291, %v4289
        %v4458 = vpack.c.b16 %v4292, %v4290
        %v4459 = vpack.c.b16 %v4179, %v4177
        %v4460 = vpack.c.b16 %v4293, %v4291
        %v4461 = vpack.c.b16 %v4294, %v4292
        %v4462 = vpack.c.b16 %v4181, %v4179
        %v4463 = vpack.c.b16 %v4295, %v4293
        %v4464 = vpack.c.b16 %v4296, %v4294
        %v4465 = vpack.c.b16 %v4183, %v4181
        %v4466 = vpack.c.b16 %v4297, %v4295
        %v4467 = vpack.c.b16 %v4298, %v4296
        %v4468 = vpack.c.b16 %v4185, %v4183
        %v4469 = vpack.c.b16 %v4299, %v4297
        %v4470 = vpack.c.b16 %v4300, %v4298
        %v4471 = vpack.c.b16 %v4261, %v4185
        %v4472 = vpack.c.b16 %v4301, %v4299
        %v4473 = vpack.c.b16 %v4302, %v4300
        %v4474 = vpack.c.b16 %v4274, %v4261
        %v4475 = vpack.c.b16 %v4303, %v4301
        %v4476 = vpack.c.b16 %v4304, %v4302
        %v4648 = vunpack.c.l.b16 %v4306
        %v4649 = vunpack.c.l.b16 %v4307
        %v4650 = vunpack.c.l.b16 %v4308
        %v4651 = vunpack.c.l.b16 %v4309
        %v4652 = vunpack.c.l.b16 %v4310
        %v4653 = vunpack.c.l.b16 %v4311
        %v4654 = vunpack.c.l.b16 %v4312
        %v4655 = vunpack.c.l.b16 %v4313
        %v4656 = vunpack.c.l.b16 %v4314
        %v4657 = vunpack.c.l.b16 %v4315
        %v4658 = vunpack.c.l.b16 %v4316
        %v4659 = vunpack.c.l.b16 %v4317
        %v4660 = vunpack.c.l.b16 %v4318
        %v4661 = vunpack.c.l.b16 %v4319
        %v4662 = vunpack.c.l.b16 %v4320
        %v4663 = vunpack.c.l.b16 %v4321
        %v4664 = vunpack.c.l.b16 %v4322
        %v4665 = vunpack.c.l.b16 %v4323
        %v4666 = vunpack.c.l.b16 %v4324
        %v4667 = vunpack.c.l.b16 %v4325
        %v4668 = vunpack.c.l.b16 %v4326
        %v4669 = vunpack.c.l.b16 %v4327
        %v4670 = vunpack.c.l.b16 %v4328
        %v4671 = vunpack.c.l.b16 %v4329
        %v4672 = vunpack.c.l.b16 %v4330
        %v4673 = vunpack.c.l.b16 %v4331
        %v4674 = vunpack.c.l.b16 %v4332
        %v4675 = vunpack.c.l.b16 %v4333
        %v4676 = vunpack.c.l.b16 %v4334
        %v4677 = vunpack.c.l.b16 %v4335
        %v4678 = vunpack.c.l.b16 %v4336
        %v4679 = vunpack.c.l.b16 %v4337
        %v4680 = vunpack.c.l.b16 %v4338
        %v4681 = vunpack.c.l.b16 %v4339
        %v4682 = vunpack.c.l.b16 %v4340
        %v4683 = vunpack.c.l.b16 %v4341
        %v4684 = vunpack.c.l.b16 %v4342
        %v4685 = vunpack.c.l.b16 %v4343
        %v4686 = vunpack.c.l.b16 %v4344
        %v4687 = vunpack.c.l.b16 %v4345
        %v4688 = vunpack.c.l.b16 %v4346
        %v4689 = vunpack.c.l.b16 %v4347
        %v4690 = vunpack.c.l.b16 %v4348
        %v4691 = vunpack.c.l.b16 %v4349
        %v4692 = vunpack.c.l.b16 %v4350
        %v4693 = vunpack.c.l.b16 %v4351
        %v4694 = vunpack.c.l.b16 %v4352
        %v4695 = vunpack.c.l.b16 %v4353
        %v4696 = vunpack.c.l.b16 %v4354
        %v4697 = vunpack.c.l.b16 %v4355
        %v4698 = vunpack.c.l.b16 %v4356
        %v4699 = vunpack.c.l.b16 %v4357
        %v4700 = vunpack.c.l.b16 %v4358
        %v4701 = vunpack.c.l.b16 %v4359
        %v4702 = vunpack.c.l.b16 %v4360
        %v4703 = vunpack.c.l.b16 %v4361
        %v4704 = vunpack.c.l.b16 %v4362
        %v4705 = vunpack.c.l.b16 %v4363
        %v4706 = vunpack.c.l.b16 %v4364
        %v4707 = vunpack.c.l.b16 %v4365
        %v4708 = vunpack.c.l.b16 %v4366
        %v4709 = vunpack.c.l.b16 %v4367
        %v4710 = vunpack.c.l.b16 %v4368
        %v4711 = vunpack.c.l.b16 %v4369
        %v4712 = vunpack.c.l.b16 %v4370
        %v4713 = vunpack.c.l.b16 %v4371
        %v4714 = vunpack.c.l.b16 %v4372
        %v4715 = vunpack.c.l.b16 %v4373
        %v4716 = vunpack.c.l.b16 %v4374
        %v4717 = vunpack.c.l.b16 %v4375
        %v4718 = vunpack.c.l.b16 %v4376
        %v4719 = vunpack.c.l.b16 %v4377
        %v4720 = vunpack.c.l.b16 %v4378
        %v4721 = vunpack.c.l.b16 %v4379
        %v4722 = vunpack.c.l.b16 %v4380
        %v4723 = vunpack.c.l.b16 %v4381
        %v4724 = vunpack.c.l.b16 %v4382
        %v4725 = vunpack.c.l.b16 %v4383
        %v4726 = vunpack.c.l.b16 %v4384
        %v4727 = vunpack.c.l.b16 %v4385
        %v4728 = vunpack.c.l.b16 %v4386
        %v4729 = vunpack.c.l.b16 %v4387
        %v4730 = vunpack.c.l.b16 %v4388
        %v4731 = vunpack.c.l.b16 %v4389
        %v4732 = vunpack.c.l.b16 %v4390
        %v4733 = vunpack.c.l.b16 %v4391
        %v4734 = vunpack.c.l.b16 %v4392
        %v4735 = vunpack.c.l.b16 %v4393
        %v4736 = vunpack.c.l.b16 %v4394
        %v4737 = vunpack.c.l.b16 %v4395
        %v4738 = vunpack.c.l.b16 %v4396
        %v4739 = vunpack.c.l.b16 %v4397
        %v4740 = vunpack.c.l.b16 %v4398
        %v4741 = vunpack.c.l.b16 %v4399
        %v4742 = vunpack.c.l.b16 %v4400
        %v4743 = vunpack.c.l.b16 %v4401
        %v4744 = vunpack.c.l.b16 %v4402
        %v4745 = vunpack.c.l.b16 %v4403
        %v4746 = vunpack.c.l.b16 %v4404
        %v4747 = vunpack.c.l.b16 %v4405
        %v4748 = vunpack.c.l.b16 %v4406
        %v4749 = vunpack.c.l.b16 %v4407
        %v4750 = vunpack.c.l.b16 %v4408
        %v4751 = vunpack.c.l.b16 %v4409
        %v4752 = vunpack.c.l.b16 %v4410
        %v4753 = vunpack.c.l.b16 %v4411
        %v4754 = vunpack.c.l.b16 %v4412
        %v4755 = vunpack.c.l.b16 %v4413
        %v4756 = vunpack.c.l.b16 %v4414
        %v4757 = vunpack.c.l.b16 %v4415
        %v4758 = vunpack.c.l.b16 %v4416
        %v4759 = vunpack.c.l.b16 %v4417
        %v4760 = vunpack.c.l.b16 %v4418
        %v4761 = vunpack.c.l.b16 %v4419
        %v4762 = vunpack.c.l.b16 %v4420
        %v4763 = vunpack.c.l.b16 %v4421
        %v4764 = vunpack.c.l.b16 %v4422
        %v4765 = vunpack.c.l.b16 %v4423
        %v4766 = vunpack.c.l.b16 %v4424
        %v4767 = vunpack.c.l.b16 %v4425
        %v4768 = vunpack.c.l.b16 %v4426
        %v4769 = vunpack.c.l.b16 %v4427
        %v4770 = vunpack.c.l.b16 %v4428
        %v4771 = vunpack.c.l.b16 %v4429
        %v4772 = vunpack.c.l.b16 %v4430
        %v4773 = vunpack.c.l.b16 %v4431
        %v4774 = vunpack.c.l.b16 %v4432
        %v4775 = vunpack.c.l.b16 %v4433
        %v4776 = vunpack.c.l.b16 %v4434
        %v4777 = vunpack.c.l.b16 %v4435
        %v4778 = vunpack.c.l.b16 %v4436
        %v4779 = vunpack.c.l.b16 %v4437
        %v4780 = vunpack.c.l.b16 %v4438
        %v4781 = vunpack.c.l.b16 %v4439
        %v4782 = vunpack.c.l.b16 %v4440
        %v4783 = vunpack.c.l.b16 %v4441
        %v4784 = vunpack.c.l.b16 %v4442
        %v4785 = vunpack.c.l.b16 %v4443
        %v4786 = vunpack.c.l.b16 %v4444
        %v4787 = vunpack.c.l.b16 %v4445
        %v4788 = vunpack.c.l.b16 %v4446
        %v4789 = vunpack.c.l.b16 %v4447
        %v4790 = vunpack.c.l.b16 %v4448
        %v4791 = vunpack.c.l.b16 %v4449
        %v4792 = vpack.c.b16 %v4649, %v4648
        %v4793 = vpack.c.b16 %v4651, %v4650
        %v4794 = vpack.c.b16 %v4653, %v4652
        %v4795 = vpack.c.b16 %v4655, %v4654
        %v4796 = vpack.c.b16 %v4657, %v4656
        %v4797 = vpack.c.b16 %v4659, %v4658
        %v4798 = vpack.c.b16 %v4661, %v4660
        %v4799 = vpack.c.b16 %v4663, %v4662
        %v4800 = vpack.c.b16 %v4665, %v4664
        %v4801 = vpack.c.b16 %v4667, %v4666
        %v4802 = vpack.c.b16 %v4669, %v4668
        %v4803 = vpack.c.b16 %v4671, %v4670
        %v4804 = vpack.c.b16 %v4673, %v4672
        %v4805 = vpack.c.b16 %v4675, %v4674
        %v4806 = vpack.c.b16 %v4677, %v4676
        %v4807 = vpack.c.b16 %v4679, %v4678
        %v4808 = vpack.c.b16 %v4681, %v4680
        %v4809 = vpack.c.b16 %v4683, %v4682
        %v4810 = vpack.c.b16 %v4685, %v4684
        %v4811 = vpack.c.b16 %v4687, %v4686
        %v4812 = vpack.c.b16 %v4689, %v4688
        %v4813 = vpack.c.b16 %v4691, %v4690
        %v4814 = vpack.c.b16 %v4693, %v4692
        %v4815 = vpack.c.b16 %v4695, %v4694
        %v4816 = vpack.c.b16 %v4697, %v4696
        %v4817 = vpack.c.b16 %v4699, %v4698
        %v4818 = vpack.c.b16 %v4701, %v4700
        %v4819 = vpack.c.b16 %v4703, %v4702
        %v4820 = vpack.c.b16 %v4705, %v4704
        %v4821 = vpack.c.b16 %v4707, %v4706
        %v4822 = vpack.c.b16 %v4709, %v4708
        %v4823 = vpack.c.b16 %v4711, %v4710
        %v4824 = vpack.c.b16 %v4713, %v4712
        %v4825 = vpack.c.b16 %v4715, %v4714
        %v4826 = vpack.c.b16 %v4717, %v4716
        %v4827 = vpack.c.b16 %v4719, %v4718
        %v4828 = vpack.c.b16 %v4721, %v4720
        %v4829 = vpack.c.b16 %v4723, %v4722
        %v4830 = vpack.c.b16 %v4725, %v4724
        %v4831 = vpack.c.b16 %v4727, %v4726
        %v4832 = vpack.c.b16 %v4729, %v4728
        %v4833 = vpack.c.b16 %v4731, %v4730
        %v4834 = vpack.c.b16 %v4733, %v4732
        %v4835 = vpack.c.b16 %v4735, %v4734
        %v4836 = vpack.c.b16 %v4737, %v4736
        %v4837 = vpack.c.b16 %v4739, %v4738
        %v4838 = vpack.c.b16 %v4741, %v4740
        %v4839 = vpack.c.b16 %v4743, %v4742
        %v4840 = vpack.c.b16 %v4745, %v4744
        %v4841 = vpack.c.b16 %v4747, %v4746
        %v4842 = vpack.c.b16 %v4749, %v4748
        %v4843 = vpack.c.b16 %v4751, %v4750
        %v4844 = vpack.c.b16 %v4753, %v4752
        %v4845 = vpack.c.b16 %v4755, %v4754
        %v4846 = vpack.c.b16 %v4757, %v4756
        %v4847 = vpack.c.b16 %v4759, %v4758
        %v4848 = vpack.c.b16 %v4761, %v4760
        %v4849 = vpack.c.b16 %v4763, %v4762
        %v4850 = vpack.c.b16 %v4765, %v4764
        %v4851 = vpack.c.b16 %v4767, %v4766
        %v4852 = vpack.c.b16 %v4769, %v4768
        %v4853 = vpack.c.b16 %v4771, %v4770
        %v4854 = vpack.c.b16 %v4773, %v4772
        %v4855 = vpack.c.b16 %v4775, %v4774
        %v4856 = vpack.c.b16 %v4777, %v4776
        %v4857 = vpack.c.b16 %v4779, %v4778
        %v4858 = vpack.c.b16 %v4781, %v4780
        %v4859 = vpack.c.b16 %v4783, %v4782
        %v4860 = vpack.c.b16 %v4785, %v4784
        %v4861 = vpack.c.b16 %v4787, %v4786
        %v4862 = vpack.c.b16 %v4789, %v4788
        %v4863 = vpack.c.b16 %v4791, %v4790
        %4936 = vmatpush.bf16.msra.mxu0 %v4799
        %4937 = vmatpush.bf16.msra.mxu0 %v4798
        %4938 = vmatpush.bf16.msra.mxu0 %v4797
        %4939 = vmatpush.bf16.msra.mxu0 %v4796
        %4940 = vmatpush.bf16.msra.mxu0 %v4795
        %4941 = vmatpush.bf16.msra.mxu0 %v4794
        %4942 = vmatpush.bf16.msra.mxu0 %v4793
        %4943 = vmatpush.bf16.msra.mxu0 %v4792
        %4944 = vmatmul.bf16.gmra.mxu0 %v4450
        %v4945 = vpop.f32.mrf.mxu0
        %v4946 = vadd.f32 0.0, %v4945
        %v4947 = vpop.f32.mrf.mxu0
        %v4948 = vadd.f32 0.0, %v4947
        %4949 = vmatmul.bf16.gmra.mxu0 %v4456
        %v4950 = vpop.f32.mrf.mxu0
        %v4951 = vadd.f32 0.0, %v4950
        %v4952 = vpop.f32.mrf.mxu0
        %v4953 = vadd.f32 0.0, %v4952
        %4954 = vmatmul.bf16.gmra.mxu0 %v4462
        %v4955 = vpop.f32.mrf.mxu0
        %v4956 = vadd.f32 0.0, %v4955
        %v4957 = vpop.f32.mrf.mxu0
        %v4958 = vadd.f32 0.0, %v4957
        %4959 = vmatmul.bf16.gmra.mxu0 %v4468
        %v4960 = vpop.f32.mrf.mxu0
        %v4961 = vadd.f32 0.0, %v4960
        %v4962 = vpop.f32.mrf.mxu0
        %v4963 = vadd.f32 0.0, %v4962
        %4964 = vdwg.mxu0
        %4965 = vmatpush.bf16.msra.mxu0 %v4807
        %4966 = vmatpush.bf16.msra.mxu0 %v4806
        %4967 = vmatpush.bf16.msra.mxu0 %v4805
        %4968 = vmatpush.bf16.msra.mxu0 %v4804
        %4969 = vmatpush.bf16.msra.mxu0 %v4803
        %4970 = vmatpush.bf16.msra.mxu0 %v4802
        %4971 = vmatpush.bf16.msra.mxu0 %v4801
        %4972 = vmatpush.bf16.msra.mxu0 %v4800
        %4973 = vmatmul.bf16.gmra.mxu0 %v4451
        %v4974 = vpop.f32.mrf.mxu0
        %v4975 = vadd.f32 %v4946, %v4974
        %v4976 = vpop.f32.mrf.mxu0
        %v4977 = vadd.f32 %v4948, %v4976
        %4978 = vmatmul.bf16.gmra.mxu0 %v4457
        %v4979 = vpop.f32.mrf.mxu0
        %v4980 = vadd.f32 %v4951, %v4979
        %v4981 = vpop.f32.mrf.mxu0
        %v4982 = vadd.f32 %v4953, %v4981
        %4983 = vmatmul.bf16.gmra.mxu0 %v4463
        %v4984 = vpop.f32.mrf.mxu0
        %v4985 = vadd.f32 %v4956, %v4984
        %v4986 = vpop.f32.mrf.mxu0
        %v4987 = vadd.f32 %v4958, %v4986
        %4988 = vmatmul.bf16.gmra.mxu0 %v4469
        %v4989 = vpop.f32.mrf.mxu0
        %v4990 = vadd.f32 %v4961, %v4989
        %v4991 = vpop.f32.mrf.mxu0
        %v4992 = vadd.f32 %v4963, %v4991
        %4993 = vdwg.mxu0
        %4994 = vmatpush.bf16.msra.mxu0 %v4815
        %4995 = vmatpush.bf16.msra.mxu0 %v4814
        %4996 = vmatpush.bf16.msra.mxu0 %v4813
        %4997 = vmatpush.bf16.msra.mxu0 %v4812
        %4998 = vmatpush.bf16.msra.mxu0 %v4811
        %4999 = vmatpush.bf16.msra.mxu0 %v4810
        %5000 = vmatpush.bf16.msra.mxu0 %v4809
        %5001 = vmatpush.bf16.msra.mxu0 %v4808
        %5002 = vmatmul.bf16.gmra.mxu0 %v4452
        %v5003 = vpop.f32.mrf.mxu0
        %v5004 = vadd.f32 %v4975, %v5003
        %v5005 = vpop.f32.mrf.mxu0
        %v5006 = vadd.f32 %v4977, %v5005
        %5007 = vmatmul.bf16.gmra.mxu0 %v4458
        %v5008 = vpop.f32.mrf.mxu0
        %v5009 = vadd.f32 %v4980, %v5008
        %v5010 = vpop.f32.mrf.mxu0
        %v5011 = vadd.f32 %v4982, %v5010
        %5012 = vmatmul.bf16.gmra.mxu0 %v4464
        %v5013 = vpop.f32.mrf.mxu0
        %v5014 = vadd.f32 %v4985, %v5013
        %v5015 = vpop.f32.mrf.mxu0
        %v5016 = vadd.f32 %v4987, %v5015
        %5017 = vmatmul.bf16.gmra.mxu0 %v4470
        %v5018 = vpop.f32.mrf.mxu0
        %v5019 = vadd.f32 %v4990, %v5018
        %v5020 = vpop.f32.mrf.mxu0
        %v5021 = vadd.f32 %v4992, %v5020
        %5022 = vdwg.mxu0
        %5023 = vmatpush.bf16.msra.mxu0 %v4823
        %5024 = vmatpush.bf16.msra.mxu0 %v4822
        %5025 = vmatpush.bf16.msra.mxu0 %v4821
        %5026 = vmatpush.bf16.msra.mxu0 %v4820
        %5027 = vmatpush.bf16.msra.mxu0 %v4819
        %5028 = vmatpush.bf16.msra.mxu0 %v4818
        %5029 = vmatpush.bf16.msra.mxu0 %v4817
        %5030 = vmatpush.bf16.msra.mxu0 %v4816
        %5031 = vmatmul.bf16.gmra.mxu0 %v4453
        %v5032 = vpop.f32.mrf.mxu0
        %v5033 = vadd.f32 %v5004, %v5032
        %v5034 = vpop.f32.mrf.mxu0
        %v5035 = vadd.f32 %v5006, %v5034
        %5036 = vmatmul.bf16.gmra.mxu0 %v4459
        %v5037 = vpop.f32.mrf.mxu0
        %v5038 = vadd.f32 %v5009, %v5037
        %v5039 = vpop.f32.mrf.mxu0
        %v5040 = vadd.f32 %v5011, %v5039
        %5041 = vmatmul.bf16.gmra.mxu0 %v4465
        %v5042 = vpop.f32.mrf.mxu0
        %v5043 = vadd.f32 %v5014, %v5042
        %v5044 = vpop.f32.mrf.mxu0
        %v5045 = vadd.f32 %v5016, %v5044
        %5046 = vmatmul.bf16.gmra.mxu0 %v4471
        %v5047 = vpop.f32.mrf.mxu0
        %v5048 = vadd.f32 %v5019, %v5047
        %v5049 = vpop.f32.mrf.mxu0
        %v5050 = vadd.f32 %v5021, %v5049
        %5051 = vdwg.mxu0
        %5052 = vmatpush.bf16.msra.mxu0 %v4831
        %5053 = vmatpush.bf16.msra.mxu0 %v4830
        %5054 = vmatpush.bf16.msra.mxu0 %v4829
        %5055 = vmatpush.bf16.msra.mxu0 %v4828
        %5056 = vmatpush.bf16.msra.mxu0 %v4827
        %5057 = vmatpush.bf16.msra.mxu0 %v4826
        %5058 = vmatpush.bf16.msra.mxu0 %v4825
        %5059 = vmatpush.bf16.msra.mxu0 %v4824
        %5060 = vmatmul.bf16.gmra.mxu0 %v4454
        %v5061 = vpop.f32.mrf.mxu0
        %v5062 = vadd.f32 %v5033, %v5061
        %v5063 = vpop.f32.mrf.mxu0
        %v5064 = vadd.f32 %v5035, %v5063
        %5065 = vmatmul.bf16.gmra.mxu0 %v4460
        %v5066 = vpop.f32.mrf.mxu0
        %v5067 = vadd.f32 %v5038, %v5066
        %v5068 = vpop.f32.mrf.mxu0
        %v5069 = vadd.f32 %v5040, %v5068
        %5070 = vmatmul.bf16.gmra.mxu0 %v4466
        %v5071 = vpop.f32.mrf.mxu0
        %v5072 = vadd.f32 %v5043, %v5071
        %v5073 = vpop.f32.mrf.mxu0
        %v5074 = vadd.f32 %v5045, %v5073
        %5075 = vmatmul.bf16.gmra.mxu0 %v4472
        %v5076 = vpop.f32.mrf.mxu0
        %v5077 = vadd.f32 %v5048, %v5076
        %v5078 = vpop.f32.mrf.mxu0
        %v5079 = vadd.f32 %v5050, %v5078
        %5080 = vdwg.mxu0
        %5081 = vmatpush.bf16.msra.mxu0 %v4839
        %5082 = vmatpush.bf16.msra.mxu0 %v4838
        %5083 = vmatpush.bf16.msra.mxu0 %v4837
        %5084 = vmatpush.bf16.msra.mxu0 %v4836
        %5085 = vmatpush.bf16.msra.mxu0 %v4835
        %5086 = vmatpush.bf16.msra.mxu0 %v4834
        %5087 = vmatpush.bf16.msra.mxu0 %v4833
        %5088 = vmatpush.bf16.msra.mxu0 %v4832
        %5089 = vmatmul.bf16.gmra.mxu0 %v4455
        %v5090 = vpop.f32.mrf.mxu0
        %v5091 = vadd.f32 %v5062, %v5090
        %v5092 = vpop.f32.mrf.mxu0
        %v5093 = vadd.f32 %v5064, %v5092
        %5094 = vmatmul.bf16.gmra.mxu0 %v4461
        %v5095 = vpop.f32.mrf.mxu0
        %v5096 = vadd.f32 %v5067, %v5095
        %v5097 = vpop.f32.mrf.mxu0
        %v5098 = vadd.f32 %v5069, %v5097
        %5099 = vmatmul.bf16.gmra.mxu0 %v4467
        %v5100 = vpop.f32.mrf.mxu0
        %v5101 = vadd.f32 %v5072, %v5100
        %v5102 = vpop.f32.mrf.mxu0
        %v5103 = vadd.f32 %v5074, %v5102
        %5104 = vmatmul.bf16.gmra.mxu0 %v4473
        %v5105 = vpop.f32.mrf.mxu0
        %v5106 = vadd.f32 %v5077, %v5105
        %v5107 = vpop.f32.mrf.mxu0
        %v5108 = vadd.f32 %v5079, %v5107
        %5109 = vdwg.mxu0
        %5110 = vmatpush.bf16.msra.mxu0 %v4847
        %5111 = vmatpush.bf16.msra.mxu0 %v4846
        %5112 = vmatpush.bf16.msra.mxu0 %v4845
        %5113 = vmatpush.bf16.msra.mxu0 %v4844
        %5114 = vmatpush.bf16.msra.mxu0 %v4843
        %5115 = vmatpush.bf16.msra.mxu0 %v4842
        %5116 = vmatpush.bf16.msra.mxu0 %v4841
        %5117 = vmatpush.bf16.msra.mxu0 %v4840
        %5118 = vmatmul.bf16.gmra.mxu0 %v4456
        %v5119 = vpop.f32.mrf.mxu0
        %v5120 = vadd.f32 %v5091, %v5119
        %v5121 = vpop.f32.mrf.mxu0
        %v5122 = vadd.f32 %v5093, %v5121
        %5123 = vmatmul.bf16.gmra.mxu0 %v4462
        %v5124 = vpop.f32.mrf.mxu0
        %v5125 = vadd.f32 %v5096, %v5124
        %v5126 = vpop.f32.mrf.mxu0
        %v5127 = vadd.f32 %v5098, %v5126
        %5128 = vmatmul.bf16.gmra.mxu0 %v4468
        %v5129 = vpop.f32.mrf.mxu0
        %v5130 = vadd.f32 %v5101, %v5129
        %v5131 = vpop.f32.mrf.mxu0
        %v5132 = vadd.f32 %v5103, %v5131
        %5133 = vmatmul.bf16.gmra.mxu0 %v4474
        %v5134 = vpop.f32.mrf.mxu0
        %v5135 = vadd.f32 %v5106, %v5134
        %v5136 = vpop.f32.mrf.mxu0
        %v5137 = vadd.f32 %v5108, %v5136
        %5138 = vdwg.mxu0
        %5139 = vmatpush.bf16.msra.mxu0 %v4855
        %5140 = vmatpush.bf16.msra.mxu0 %v4854
        %5141 = vmatpush.bf16.msra.mxu0 %v4853
        %5142 = vmatpush.bf16.msra.mxu0 %v4852
        %5143 = vmatpush.bf16.msra.mxu0 %v4851
        %5144 = vmatpush.bf16.msra.mxu0 %v4850
        %5145 = vmatpush.bf16.msra.mxu0 %v4849
        %5146 = vmatpush.bf16.msra.mxu0 %v4848
        %5147 = vmatmul.bf16.gmra.mxu0 %v4457
        %v5148 = vpop.f32.mrf.mxu0
        %v5149 = vadd.f32 %v5120, %v5148
        %v5150 = vpop.f32.mrf.mxu0
        %v5151 = vadd.f32 %v5122, %v5150
        %5152 = vmatmul.bf16.gmra.mxu0 %v4463
        %v5153 = vpop.f32.mrf.mxu0
        %v5154 = vadd.f32 %v5125, %v5153
        %v5155 = vpop.f32.mrf.mxu0
        %v5156 = vadd.f32 %v5127, %v5155
        %5157 = vmatmul.bf16.gmra.mxu0 %v4469
        %v5158 = vpop.f32.mrf.mxu0
        %v5159 = vadd.f32 %v5130, %v5158
        %v5160 = vpop.f32.mrf.mxu0
        %v5161 = vadd.f32 %v5132, %v5160
        %5162 = vmatmul.bf16.gmra.mxu0 %v4475
        %v5163 = vpop.f32.mrf.mxu0
        %v5164 = vadd.f32 %v5135, %v5163
        %v5165 = vpop.f32.mrf.mxu0
        %v5166 = vadd.f32 %v5137, %v5165
        %5167 = vdwg.mxu0
        %5168 = vmatpush.bf16.msra.mxu0 %v4863
        %5169 = vmatpush.bf16.msra.mxu0 %v4862
        %5170 = vmatpush.bf16.msra.mxu0 %v4861
        %5171 = vmatpush.bf16.msra.mxu0 %v4860
        %5172 = vmatpush.bf16.msra.mxu0 %v4859
        %5173 = vmatpush.bf16.msra.mxu0 %v4858
        %5174 = vmatpush.bf16.msra.mxu0 %v4857
        %5175 = vmatpush.bf16.msra.mxu0 %v4856
        %5176 = vmatmul.bf16.gmra.mxu0 %v4458
        %v5177 = vpop.f32.mrf.mxu0
        %v5178 = vadd.f32 %v5149, %v5177
        %v5179 = vpop.f32.mrf.mxu0
        %v5180 = vadd.f32 %v5151, %v5179
        %5181 = vmatmul.bf16.gmra.mxu0 %v4464
        %v5182 = vpop.f32.mrf.mxu0
        %v5183 = vadd.f32 %v5154, %v5182
        %v5184 = vpop.f32.mrf.mxu0
        %v5185 = vadd.f32 %v5156, %v5184
        %5186 = vmatmul.bf16.gmra.mxu0 %v4470
        %v5187 = vpop.f32.mrf.mxu0
        %v5188 = vadd.f32 %v5159, %v5187
        %v5189 = vpop.f32.mrf.mxu0
        %v5190 = vadd.f32 %v5161, %v5189
        %5191 = vmatmul.bf16.gmra.mxu0 %v4476
        %v5192 = vpop.f32.mrf.mxu0
        %v5193 = vadd.f32 %v5164, %v5192
        %v5194 = vpop.f32.mrf.mxu0
        %v5195 = vadd.f32 %v5166, %v5194
        %5196 = vdwg.mxu0
        %s5197 = sld [smem:[#allocation4 + $0x3]]
        %vm5198 = vcmp.ge.f32.partialorder %v5178, 0.0
        %vm5199 = vcmp.ge.f32.partialorder %v5180, 0.0
        %vm5200 = vcmp.ge.f32.partialorder %v5183, 0.0
        %vm5201 = vcmp.ge.f32.partialorder %v5185, 0.0
        %vm5202 = vcmp.ge.f32.partialorder %v5188, 0.0
        %vm5203 = vcmp.ge.f32.partialorder %v5190, 0.0
        %vm5204 = vcmp.ge.f32.partialorder %v5193, 0.0
        %vm5205 = vcmp.ge.f32.partialorder %v5195, 0.0
        %v5206 = vstv %s5197
        %v5207 = vmul.f32 %v5206, %v5178
        %v5208 = vmul.f32 %v5206, %v5180
        %v5209 = vmul.f32 %v5206, %v5183
        %v5210 = vmul.f32 %v5206, %v5185
        %v5211 = vmul.f32 %v5206, %v5188
        %v5212 = vmul.f32 %v5206, %v5190
        %v5213 = vmul.f32 %v5206, %v5193
        %v5214 = vmul.f32 %v5206, %v5195
        %v5215 = vsel %vm5198, %v5178, %v5207
        %v5216 = vsel %vm5199, %v5180, %v5208
        %v5217 = vsel %vm5200, %v5183, %v5209
        %v5218 = vsel %vm5201, %v5185, %v5210
        %v5219 = vsel %vm5202, %v5188, %v5211
        %v5220 = vsel %vm5203, %v5190, %v5212
        %v5221 = vsel %vm5204, %v5193, %v5213
        %v5222 = vsel %vm5205, %v5195, %v5214
        %v5223 = vld [vmem:[#allocation3] sm:$0xff]
        %v5224 = vld [vmem:[#allocation3 + $0x8] sm:$0xff]
        %v5225 = vld [vmem:[#allocation3 + $0x10] sm:$0xff]
        %v5226 = vld [vmem:[#allocation3 + $0x18] sm:$0xff]
        %v5227 = vld [vmem:[#allocation3 + $0x20] sm:$0xff]
        %v5228 = vld [vmem:[#allocation3 + $0x28] sm:$0xff]
        %v5229 = vld [vmem:[#allocation3 + $0x30] sm:$0xff]
        %v5230 = vld [vmem:[#allocation3 + $0x38] sm:$0xff]
        %v5231 = vadd.f32 %v5215, %v5223
        %v5232 = vadd.f32 %v5216, %v5224
        %v5233 = vadd.f32 %v5217, %v5225
        %v5234 = vadd.f32 %v5218, %v5226
        %v5235 = vadd.f32 %v5219, %v5227
        %v5236 = vadd.f32 %v5220, %v5228
        %v5237 = vadd.f32 %v5221, %v5229
        %v5238 = vadd.f32 %v5222, %v5230
        %5239 = vst [vmem:[#allocation3] sm:$0xff] %v5231
        %5240 = vst [vmem:[#allocation3 + $0x8] sm:$0xff] %v5232
        %5241 = vst [vmem:[#allocation3 + $0x10] sm:$0xff] %v5233
        %5242 = vst [vmem:[#allocation3 + $0x18] sm:$0xff] %v5234
        %5243 = vst [vmem:[#allocation3 + $0x20] sm:$0xff] %v5235
        %5244 = vst [vmem:[#allocation3 + $0x28] sm:$0xff] %v5236
        %5245 = vst [vmem:[#allocation3 + $0x30] sm:$0xff] %v5237
        %5246 = vst [vmem:[#allocation3 + $0x38] sm:$0xff] %v5238
        %v5247 = vpack.c.bf16 %v5231, %v5231
        %v5248 = vpack.c.bf16 %v5232, %v5232
        %v5249 = vpack.c.bf16 %v5233, %v5233
        %v5250 = vpack.c.bf16 %v5234, %v5234
        %v5251 = vpack.c.bf16 %v5235, %v5235
        %v5252 = vpack.c.bf16 %v5236, %v5236
        %v5253 = vpack.c.bf16 %v5237, %v5237
        %v5254 = vpack.c.bf16 %v5238, %v5238
        %v5256 = vshrl.u32 %v5247, 16
        %v5258 = vrot.slane %v5256, 7
        %v5259 = vshll.u32 %v5247, 16
        %v5261 = vor.u32 %v5258, %v5259
        %v5262 = vrot.slane %v5258, 4
        %v5264 = vshrl.u32 %v5248, 16
        %v5266 = vrot.slane %v5264, 7
        %v5267 = vshll.u32 %v5248, 16
        %v5269 = vor.u32 %v5266, %v5267
        %v5270 = vrot.slane %v5266, 4
        %v5272 = vshrl.u32 %v5249, 16
        %v5274 = vrot.slane %v5272, 7
        %v5275 = vshll.u32 %v5249, 16
        %v5277 = vor.u32 %v5274, %v5275
        %v5278 = vrot.slane %v5274, 4
        %v5280 = vshrl.u32 %v5250, 16
        %v5282 = vrot.slane %v5280, 7
        %v5283 = vshll.u32 %v5250, 16
        %v5285 = vor.u32 %v5282, %v5283
        %v5286 = vrot.slane %v5282, 4
        %v5288 = vshrl.u32 %v5251, 16
        %v5290 = vrot.slane %v5288, 7
        %v5291 = vshll.u32 %v5251, 16
        %v5293 = vor.u32 %v5290, %v5291
        %v5294 = vrot.slane %v5290, 4
        %v5296 = vshrl.u32 %v5252, 16
        %v5298 = vrot.slane %v5296, 7
        %v5299 = vshll.u32 %v5252, 16
        %v5301 = vor.u32 %v5298, %v5299
        %v5302 = vrot.slane %v5298, 4
        %v5304 = vshrl.u32 %v5253, 16
        %v5306 = vrot.slane %v5304, 7
        %v5307 = vshll.u32 %v5253, 16
        %v5309 = vor.u32 %v5306, %v5307
        %v5310 = vrot.slane %v5306, 4
        %v5312 = vshrl.u32 %v5254, 16
        %v5314 = vrot.slane %v5312, 7
        %v5315 = vshll.u32 %v5254, 16
        %v5317 = vor.u32 %v5314, %v5315
        %v5318 = vrot.slane %v5314, 4
        %v5335 = vld [vmem:[%s389] sm:$0xf]
        %v5336 = vsel %vm391, %v5261, %v5335
        %5337 = vst [vmem:[%s389] sm:$0xf] %v5336
        %v5338 = vld [vmem:[%s389 + $0x4] sm:$0x1]
        %v5339 = vsel %vm230, %v5262, %v5338
        %5340 = vst [vmem:[%s389 + $0x4] sm:$0x1] %v5339
        %v5341 = vld [vmem:[%s389 + $0x8] sm:$0xf]
        %v5342 = vsel %vm391, %v5269, %v5341
        %5343 = vst [vmem:[%s389 + $0x8] sm:$0xf] %v5342
        %v5344 = vld [vmem:[%s389 + $0xc] sm:$0x1]
        %v5345 = vsel %vm230, %v5270, %v5344
        %5346 = vst [vmem:[%s389 + $0xc] sm:$0x1] %v5345
        %v5347 = vld [vmem:[%s389 + $0x10] sm:$0xf]
        %v5348 = vsel %vm391, %v5277, %v5347
        %5349 = vst [vmem:[%s389 + $0x10] sm:$0xf] %v5348
        %v5350 = vld [vmem:[%s389 + $0x14] sm:$0x1]
        %v5351 = vsel %vm230, %v5278, %v5350
        %5352 = vst [vmem:[%s389 + $0x14] sm:$0x1] %v5351
        %v5353 = vld [vmem:[%s389 + $0x18] sm:$0xf]
        %v5354 = vsel %vm391, %v5285, %v5353
        %5355 = vst [vmem:[%s389 + $0x18] sm:$0xf] %v5354
        %v5356 = vld [vmem:[%s389 + $0x1c] sm:$0x1]
        %v5357 = vsel %vm230, %v5286, %v5356
        %5358 = vst [vmem:[%s389 + $0x1c] sm:$0x1] %v5357
        %v5359 = vld [vmem:[%s389 + $0x20] sm:$0xf]
        %v5360 = vsel %vm391, %v5293, %v5359
        %5361 = vst [vmem:[%s389 + $0x20] sm:$0xf] %v5360
        %v5362 = vld [vmem:[%s389 + $0x24] sm:$0x1]
        %v5363 = vsel %vm230, %v5294, %v5362
        %5364 = vst [vmem:[%s389 + $0x24] sm:$0x1] %v5363
        %v5365 = vld [vmem:[%s389 + $0x28] sm:$0xf]
        %v5366 = vsel %vm391, %v5301, %v5365
        %5367 = vst [vmem:[%s389 + $0x28] sm:$0xf] %v5366
        %v5368 = vld [vmem:[%s389 + $0x2c] sm:$0x1]
        %v5369 = vsel %vm230, %v5302, %v5368
        %5370 = vst [vmem:[%s389 + $0x2c] sm:$0x1] %v5369
        %v5371 = vld [vmem:[%s389 + $0x30] sm:$0xf]
        %v5372 = vsel %vm391, %v5309, %v5371
        %5373 = vst [vmem:[%s389 + $0x30] sm:$0xf] %v5372
        %v5374 = vld [vmem:[%s389 + $0x34] sm:$0x1]
        %v5375 = vsel %vm230, %v5310, %v5374
        %5376 = vst [vmem:[%s389 + $0x34] sm:$0x1] %v5375
        %v5377 = vld [vmem:[%s389 + $0x38] sm:$0xf]
        %v5378 = vsel %vm391, %v5317, %v5377
        %5379 = vst [vmem:[%s389 + $0x38] sm:$0xf] %v5378
        %v5380 = vld [vmem:[%s389 + $0x3c] sm:$0x1]
        %v5381 = vsel %vm230, %v5318, %v5380
        %5382 = vst [vmem:[%s389 + $0x3c] sm:$0x1] %v5381
        %v5383 = vld [vmem:[#allocation2] sm:$0xf]
        %v5384 = vld [vmem:[#allocation2 + $0x4] sm:$0x1]
        %v5385 = vld [vmem:[#allocation2 + $0x8] sm:$0xf]
        %v5386 = vld [vmem:[#allocation2 + $0xc] sm:$0x1]
        %v5387 = vld [vmem:[#allocation2 + $0x10] sm:$0xf]
        %v5388 = vld [vmem:[#allocation2 + $0x14] sm:$0x1]
        %v5389 = vld [vmem:[#allocation2 + $0x18] sm:$0xf]
        %v5390 = vld [vmem:[#allocation2 + $0x1c] sm:$0x1]
        %v5391 = vld [vmem:[#allocation2 + $0x20] sm:$0xf]
        %v5392 = vld [vmem:[#allocation2 + $0x24] sm:$0x1]
        %v5393 = vld [vmem:[#allocation2 + $0x28] sm:$0xf]
        %v5394 = vld [vmem:[#allocation2 + $0x2c] sm:$0x1]
        %v5395 = vld [vmem:[#allocation2 + $0x30] sm:$0xf]
        %v5396 = vld [vmem:[#allocation2 + $0x34] sm:$0x1]
        %v5397 = vld [vmem:[#allocation2 + $0x38] sm:$0xf]
        %v5398 = vld [vmem:[#allocation2 + $0x3c] sm:$0x1]
        %v5399 = vld [vmem:[#allocation2 + $0x40] sm:$0xf]
        %v5400 = vld [vmem:[#allocation2 + $0x44] sm:$0x1]
        %v5401 = vld [vmem:[#allocation2 + $0x48] sm:$0xf]
        %v5402 = vld [vmem:[#allocation2 + $0x4c] sm:$0x1]
        %v5419 = vunpack.c.l.b16 %v5383
        %v5420 = vunpack.c.l.b16 %v5384
        %v5421 = vunpack.c.l.b16 %v5385
        %v5422 = vunpack.c.l.b16 %v5386
        %v5423 = vunpack.c.l.b16 %v5387
        %v5424 = vunpack.c.l.b16 %v5388
        %v5425 = vunpack.c.l.b16 %v5389
        %v5426 = vunpack.c.l.b16 %v5390
        %v5427 = vunpack.c.l.b16 %v5391
        %v5428 = vunpack.c.l.b16 %v5392
        %v5429 = vunpack.c.l.b16 %v5393
        %v5430 = vunpack.c.l.b16 %v5394
        %v5431 = vunpack.c.l.b16 %v5395
        %v5432 = vunpack.c.l.b16 %v5396
        %v5433 = vunpack.c.l.b16 %v5397
        %v5434 = vunpack.c.l.b16 %v5398
        %v5435 = vpack.c.b16 %v5420, %v5419
        %v5436 = vpack.c.b16 %v5422, %v5421
        %v5437 = vpack.c.b16 %v5424, %v5423
        %v5438 = vpack.c.b16 %v5426, %v5425
        %v5439 = vpack.c.b16 %v5428, %v5427
        %v5440 = vpack.c.b16 %v5430, %v5429
        %v5441 = vpack.c.b16 %v5432, %v5431
        %v5442 = vpack.c.b16 %v5434, %v5433
        %v5444 = vshrl.u32 %v5435, 16
        %v5446 = vshll.u32 %v5435, 16
        %v5448 = vrot.slane %v5446, 1
        %v5449 = vor.u32 %v5444, %v5448
        %v5451 = vshrl.u32 %v5436, 16
        %v5453 = vshll.u32 %v5436, 16
        %v5455 = vrot.slane %v5453, 1
        %v5456 = vor.u32 %v5451, %v5455
        %v5458 = vshrl.u32 %v5437, 16
        %v5460 = vshll.u32 %v5437, 16
        %v5462 = vrot.slane %v5460, 1
        %v5463 = vor.u32 %v5458, %v5462
        %v5465 = vshrl.u32 %v5438, 16
        %v5467 = vshll.u32 %v5438, 16
        %v5469 = vrot.slane %v5467, 1
        %v5470 = vor.u32 %v5465, %v5469
        %v5472 = vshrl.u32 %v5439, 16
        %v5474 = vshll.u32 %v5439, 16
        %v5476 = vrot.slane %v5474, 1
        %v5477 = vor.u32 %v5472, %v5476
        %v5479 = vshrl.u32 %v5440, 16
        %v5481 = vshll.u32 %v5440, 16
        %v5483 = vrot.slane %v5481, 1
        %v5484 = vor.u32 %v5479, %v5483
        %v5486 = vshrl.u32 %v5441, 16
        %v5488 = vshll.u32 %v5441, 16
        %v5490 = vrot.slane %v5488, 1
        %v5491 = vor.u32 %v5486, %v5490
        %v5493 = vshrl.u32 %v5442, 16
        %v5495 = vshll.u32 %v5442, 16
        %v5497 = vrot.slane %v5495, 1
        %v5498 = vor.u32 %v5493, %v5497
        %v5499 = vrot.slane %v5435, 1
        %v5500 = vrot.slane %v5436, 1
        %v5501 = vrot.slane %v5437, 1
        %v5502 = vrot.slane %v5438, 1
        %v5503 = vrot.slane %v5439, 1
        %v5504 = vrot.slane %v5440, 1
        %v5505 = vrot.slane %v5441, 1
        %v5506 = vrot.slane %v5442, 1
        %v5509 = vunpack.c.l.b16 %v5399
        %v5510 = vunpack.c.l.b16 %v5400
        %v5511 = vpack.c.b16 %v5510, %v5509
        %v5513 = vshrl.u32 %v5511, 16
        %v5515 = vshll.u32 %v5511, 16
        %v5517 = vrot.slane %v5515, 1
        %v5518 = vor.u32 %v5513, %v5517
        %v5519 = vrot.slane %v5511, 1
        %v5522 = vunpack.c.l.b16 %v5401
        %v5523 = vunpack.c.l.b16 %v5402
        %v5524 = vpack.c.b16 %v5523, %v5522
        %v5526 = vshrl.u32 %v5524, 16
        %v5528 = vshll.u32 %v5524, 16
        %v5530 = vrot.slane %v5528, 1
        %v5531 = vor.u32 %v5526, %v5530
        %v5532 = vrot.slane %v5524, 1
        %v5533 = vunpack.c.l.b16 %v5449
        %v5534 = vunpack.c.l.b16 %v5499
        %v5535 = vunpack.c.l.b16 %v5456
        %v5536 = vunpack.c.l.b16 %v5500
        %v5537 = vunpack.c.l.b16 %v5463
        %v5538 = vunpack.c.l.b16 %v5501
        %v5539 = vunpack.c.l.b16 %v5470
        %v5540 = vunpack.c.l.b16 %v5502
        %v5541 = vunpack.c.l.b16 %v5477
        %v5542 = vunpack.c.l.b16 %v5503
        %v5543 = vunpack.c.l.b16 %v5484
        %v5544 = vunpack.c.l.b16 %v5504
        %v5545 = vunpack.c.l.b16 %v5491
        %v5546 = vunpack.c.l.b16 %v5505
        %v5547 = vunpack.c.l.b16 %v5498
        %v5548 = vunpack.c.l.b16 %v5506
        %v5549 = vunpack.c.l.b16 %v5518
        %v5550 = vunpack.c.l.b16 %v5519
        %v5551 = vunpack.c.l.b16 %v5531
        %v5552 = vunpack.c.l.b16 %v5532
        %s5553 = scalar_lea.vmem [#allocation9], 2304
        %v5554 = vld [vmem:[%s5553] sm:$0xf]
        %v5555 = vld [vmem:[%s5553 + $0x4] sm:$0xf]
        %v5556 = vld [vmem:[%s5553 + $0x8] sm:$0xf]
        %v5557 = vld [vmem:[%s5553 + $0xc] sm:$0xf]
        %v5558 = vld [vmem:[%s5553 + $0x10] sm:$0xf]
        %v5559 = vld [vmem:[%s5553 + $0x14] sm:$0xf]
        %v5560 = vld [vmem:[%s5553 + $0x18] sm:$0xf]
        %v5561 = vld [vmem:[%s5553 + $0x1c] sm:$0xf]
        %v5562 = vld [vmem:[%s5553 + $0x20] sm:$0xf]
        %v5563 = vld [vmem:[%s5553 + $0x24] sm:$0xf]
        %v5564 = vld [vmem:[%s5553 + $0x28] sm:$0xf]
        %v5565 = vld [vmem:[%s5553 + $0x2c] sm:$0xf]
        %v5566 = vld [vmem:[%s5553 + $0x30] sm:$0xf]
        %v5567 = vld [vmem:[%s5553 + $0x34] sm:$0xf]
        %v5568 = vld [vmem:[%s5553 + $0x38] sm:$0xf]
        %v5569 = vld [vmem:[%s5553 + $0x3c] sm:$0xf]
        %v5570 = vld [vmem:[%s5553 + $0x40] sm:$0xf]
        %v5571 = vld [vmem:[%s5553 + $0x44] sm:$0xf]
        %v5572 = vld [vmem:[%s5553 + $0x48] sm:$0xf]
        %v5573 = vld [vmem:[%s5553 + $0x4c] sm:$0xf]
        %v5574 = vld [vmem:[%s5553 + $0x50] sm:$0xf]
        %v5575 = vld [vmem:[%s5553 + $0x54] sm:$0xf]
        %v5576 = vld [vmem:[%s5553 + $0x58] sm:$0xf]
        %v5577 = vld [vmem:[%s5553 + $0x5c] sm:$0xf]
        %v5578 = vld [vmem:[%s5553 + $0x60] sm:$0xf]
        %v5579 = vld [vmem:[%s5553 + $0x64] sm:$0xf]
        %v5580 = vld [vmem:[%s5553 + $0x68] sm:$0xf]
        %v5581 = vld [vmem:[%s5553 + $0x6c] sm:$0xf]
        %v5582 = vld [vmem:[%s5553 + $0x70] sm:$0xf]
        %v5583 = vld [vmem:[%s5553 + $0x74] sm:$0xf]
        %v5584 = vld [vmem:[%s5553 + $0x78] sm:$0xf]
        %v5585 = vld [vmem:[%s5553 + $0x7c] sm:$0xf]
        %v5586 = vld [vmem:[%s5553 + $0x80] sm:$0xf]
        %v5587 = vld [vmem:[%s5553 + $0x84] sm:$0xf]
        %v5588 = vld [vmem:[%s5553 + $0x88] sm:$0xf]
        %v5589 = vld [vmem:[%s5553 + $0x8c] sm:$0xf]
        %v5590 = vld [vmem:[%s5553 + $0x90] sm:$0xf]
        %v5591 = vld [vmem:[%s5553 + $0x94] sm:$0xf]
        %v5592 = vld [vmem:[%s5553 + $0x98] sm:$0xf]
        %v5593 = vld [vmem:[%s5553 + $0x9c] sm:$0xf]
        %v5594 = vld [vmem:[%s5553 + $0xa0] sm:$0xf]
        %v5595 = vld [vmem:[%s5553 + $0xa4] sm:$0xf]
        %v5596 = vld [vmem:[%s5553 + $0xa8] sm:$0xf]
        %v5597 = vld [vmem:[%s5553 + $0xac] sm:$0xf]
        %v5598 = vld [vmem:[%s5553 + $0xb0] sm:$0xf]
        %v5599 = vld [vmem:[%s5553 + $0xb4] sm:$0xf]
        %v5600 = vld [vmem:[%s5553 + $0xb8] sm:$0xf]
        %v5601 = vld [vmem:[%s5553 + $0xbc] sm:$0xf]
        %v5602 = vld [vmem:[%s5553 + $0xc0] sm:$0xf]
        %v5603 = vld [vmem:[%s5553 + $0xc4] sm:$0xf]
        %v5604 = vld [vmem:[%s5553 + $0xc8] sm:$0xf]
        %v5605 = vld [vmem:[%s5553 + $0xcc] sm:$0xf]
        %v5606 = vld [vmem:[%s5553 + $0xd0] sm:$0xf]
        %v5607 = vld [vmem:[%s5553 + $0xd4] sm:$0xf]
        %v5608 = vld [vmem:[%s5553 + $0xd8] sm:$0xf]
        %v5609 = vld [vmem:[%s5553 + $0xdc] sm:$0xf]
        %v5610 = vld [vmem:[%s5553 + $0xe0] sm:$0xf]
        %v5611 = vld [vmem:[%s5553 + $0xe4] sm:$0xf]
        %v5612 = vld [vmem:[%s5553 + $0xe8] sm:$0xf]
        %v5613 = vld [vmem:[%s5553 + $0xec] sm:$0xf]
        %v5614 = vld [vmem:[%s5553 + $0xf0] sm:$0xf]
        %v5615 = vld [vmem:[%s5553 + $0xf4] sm:$0xf]
        %v5616 = vld [vmem:[%s5553 + $0xf8] sm:$0xf]
        %v5617 = vld [vmem:[%s5553 + $0xfc] sm:$0xf]
        %v5618 = vld [vmem:[%s5553 + $0x100] sm:$0xf]
        %v5619 = vld [vmem:[%s5553 + $0x104] sm:$0xf]
        %v5620 = vld [vmem:[%s5553 + $0x108] sm:$0xf]
        %v5621 = vld [vmem:[%s5553 + $0x10c] sm:$0xf]
        %v5622 = vld [vmem:[%s5553 + $0x110] sm:$0xf]
        %v5623 = vld [vmem:[%s5553 + $0x114] sm:$0xf]
        %v5624 = vld [vmem:[%s5553 + $0x118] sm:$0xf]
        %v5625 = vld [vmem:[%s5553 + $0x11c] sm:$0xf]
        %v5626 = vld [vmem:[%s5553 + $0x120] sm:$0xf]
        %v5627 = vld [vmem:[%s5553 + $0x124] sm:$0xf]
        %v5628 = vld [vmem:[%s5553 + $0x128] sm:$0xf]
        %v5629 = vld [vmem:[%s5553 + $0x12c] sm:$0xf]
        %v5630 = vld [vmem:[%s5553 + $0x130] sm:$0xf]
        %v5631 = vld [vmem:[%s5553 + $0x134] sm:$0xf]
        %v5632 = vld [vmem:[%s5553 + $0x138] sm:$0xf]
        %v5633 = vld [vmem:[%s5553 + $0x13c] sm:$0xf]
        %v5634 = vld [vmem:[%s5553 + $0x140] sm:$0xf]
        %v5635 = vld [vmem:[%s5553 + $0x144] sm:$0xf]
        %v5636 = vld [vmem:[%s5553 + $0x148] sm:$0xf]
        %v5637 = vld [vmem:[%s5553 + $0x14c] sm:$0xf]
        %v5638 = vld [vmem:[%s5553 + $0x150] sm:$0xf]
        %v5639 = vld [vmem:[%s5553 + $0x154] sm:$0xf]
        %v5640 = vld [vmem:[%s5553 + $0x158] sm:$0xf]
        %v5641 = vld [vmem:[%s5553 + $0x15c] sm:$0xf]
        %v5642 = vld [vmem:[%s5553 + $0x160] sm:$0xf]
        %v5643 = vld [vmem:[%s5553 + $0x164] sm:$0xf]
        %v5644 = vld [vmem:[%s5553 + $0x168] sm:$0xf]
        %v5645 = vld [vmem:[%s5553 + $0x16c] sm:$0xf]
        %v5646 = vld [vmem:[%s5553 + $0x170] sm:$0xf]
        %v5647 = vld [vmem:[%s5553 + $0x174] sm:$0xf]
        %v5648 = vld [vmem:[%s5553 + $0x178] sm:$0xf]
        %v5649 = vld [vmem:[%s5553 + $0x17c] sm:$0xf]
        %v5650 = vld [vmem:[%s5553 + $0x180] sm:$0xf]
        %v5651 = vld [vmem:[%s5553 + $0x184] sm:$0xf]
        %v5652 = vld [vmem:[%s5553 + $0x188] sm:$0xf]
        %v5653 = vld [vmem:[%s5553 + $0x18c] sm:$0xf]
        %v5654 = vld [vmem:[%s5553 + $0x190] sm:$0xf]
        %v5655 = vld [vmem:[%s5553 + $0x194] sm:$0xf]
        %v5656 = vld [vmem:[%s5553 + $0x198] sm:$0xf]
        %v5657 = vld [vmem:[%s5553 + $0x19c] sm:$0xf]
        %v5658 = vld [vmem:[%s5553 + $0x1a0] sm:$0xf]
        %v5659 = vld [vmem:[%s5553 + $0x1a4] sm:$0xf]
        %v5660 = vld [vmem:[%s5553 + $0x1a8] sm:$0xf]
        %v5661 = vld [vmem:[%s5553 + $0x1ac] sm:$0xf]
        %v5662 = vld [vmem:[%s5553 + $0x1b0] sm:$0xf]
        %v5663 = vld [vmem:[%s5553 + $0x1b4] sm:$0xf]
        %v5664 = vld [vmem:[%s5553 + $0x1b8] sm:$0xf]
        %v5665 = vld [vmem:[%s5553 + $0x1bc] sm:$0xf]
        %v5666 = vld [vmem:[%s5553 + $0x1c0] sm:$0xf]
        %v5667 = vld [vmem:[%s5553 + $0x1c4] sm:$0xf]
        %v5668 = vld [vmem:[%s5553 + $0x1c8] sm:$0xf]
        %v5669 = vld [vmem:[%s5553 + $0x1cc] sm:$0xf]
        %v5670 = vld [vmem:[%s5553 + $0x1d0] sm:$0xf]
        %v5671 = vld [vmem:[%s5553 + $0x1d4] sm:$0xf]
        %v5672 = vld [vmem:[%s5553 + $0x1d8] sm:$0xf]
        %v5673 = vld [vmem:[%s5553 + $0x1dc] sm:$0xf]
        %v5674 = vld [vmem:[%s5553 + $0x1e0] sm:$0xf]
        %v5675 = vld [vmem:[%s5553 + $0x1e4] sm:$0xf]
        %v5676 = vld [vmem:[%s5553 + $0x1e8] sm:$0xf]
        %v5677 = vld [vmem:[%s5553 + $0x1ec] sm:$0xf]
        %v5678 = vld [vmem:[%s5553 + $0x1f0] sm:$0xf]
        %v5679 = vld [vmem:[%s5553 + $0x1f4] sm:$0xf]
        %v5680 = vld [vmem:[%s5553 + $0x1f8] sm:$0xf]
        %v5681 = vld [vmem:[%s5553 + $0x1fc] sm:$0xf]
        %v5682 = vld [vmem:[%s5553 + $0x200] sm:$0xf]
        %v5683 = vld [vmem:[%s5553 + $0x204] sm:$0xf]
        %v5684 = vld [vmem:[%s5553 + $0x208] sm:$0xf]
        %v5685 = vld [vmem:[%s5553 + $0x20c] sm:$0xf]
        %v5686 = vld [vmem:[%s5553 + $0x210] sm:$0xf]
        %v5687 = vld [vmem:[%s5553 + $0x214] sm:$0xf]
        %v5688 = vld [vmem:[%s5553 + $0x218] sm:$0xf]
        %v5689 = vld [vmem:[%s5553 + $0x21c] sm:$0xf]
        %v5690 = vld [vmem:[%s5553 + $0x220] sm:$0xf]
        %v5691 = vld [vmem:[%s5553 + $0x224] sm:$0xf]
        %v5692 = vld [vmem:[%s5553 + $0x228] sm:$0xf]
        %v5693 = vld [vmem:[%s5553 + $0x22c] sm:$0xf]
        %v5694 = vld [vmem:[%s5553 + $0x230] sm:$0xf]
        %v5695 = vld [vmem:[%s5553 + $0x234] sm:$0xf]
        %v5696 = vld [vmem:[%s5553 + $0x238] sm:$0xf]
        %v5697 = vld [vmem:[%s5553 + $0x23c] sm:$0xf]
        %v5698 = vpack.c.b16 %v5421, %v5419
        %v5699 = vpack.c.b16 %v5535, %v5533
        %v5700 = vpack.c.b16 %v5536, %v5534
        %v5701 = vpack.c.b16 %v5423, %v5421
        %v5702 = vpack.c.b16 %v5537, %v5535
        %v5703 = vpack.c.b16 %v5538, %v5536
        %v5704 = vpack.c.b16 %v5425, %v5423
        %v5705 = vpack.c.b16 %v5539, %v5537
        %v5706 = vpack.c.b16 %v5540, %v5538
        %v5707 = vpack.c.b16 %v5427, %v5425
        %v5708 = vpack.c.b16 %v5541, %v5539
        %v5709 = vpack.c.b16 %v5542, %v5540
        %v5710 = vpack.c.b16 %v5429, %v5427
        %v5711 = vpack.c.b16 %v5543, %v5541
        %v5712 = vpack.c.b16 %v5544, %v5542
        %v5713 = vpack.c.b16 %v5431, %v5429
        %v5714 = vpack.c.b16 %v5545, %v5543
        %v5715 = vpack.c.b16 %v5546, %v5544
        %v5716 = vpack.c.b16 %v5433, %v5431
        %v5717 = vpack.c.b16 %v5547, %v5545
        %v5718 = vpack.c.b16 %v5548, %v5546
        %v5719 = vpack.c.b16 %v5509, %v5433
        %v5720 = vpack.c.b16 %v5549, %v5547
        %v5721 = vpack.c.b16 %v5550, %v5548
        %v5722 = vpack.c.b16 %v5522, %v5509
        %v5723 = vpack.c.b16 %v5551, %v5549
        %v5724 = vpack.c.b16 %v5552, %v5550
        %v5896 = vunpack.c.l.b16 %v5554
        %v5897 = vunpack.c.l.b16 %v5555
        %v5898 = vunpack.c.l.b16 %v5556
        %v5899 = vunpack.c.l.b16 %v5557
        %v5900 = vunpack.c.l.b16 %v5558
        %v5901 = vunpack.c.l.b16 %v5559
        %v5902 = vunpack.c.l.b16 %v5560
        %v5903 = vunpack.c.l.b16 %v5561
        %v5904 = vunpack.c.l.b16 %v5562
        %v5905 = vunpack.c.l.b16 %v5563
        %v5906 = vunpack.c.l.b16 %v5564
        %v5907 = vunpack.c.l.b16 %v5565
        %v5908 = vunpack.c.l.b16 %v5566
        %v5909 = vunpack.c.l.b16 %v5567
        %v5910 = vunpack.c.l.b16 %v5568
        %v5911 = vunpack.c.l.b16 %v5569
        %v5912 = vunpack.c.l.b16 %v5570
        %v5913 = vunpack.c.l.b16 %v5571
        %v5914 = vunpack.c.l.b16 %v5572
        %v5915 = vunpack.c.l.b16 %v5573
        %v5916 = vunpack.c.l.b16 %v5574
        %v5917 = vunpack.c.l.b16 %v5575
        %v5918 = vunpack.c.l.b16 %v5576
        %v5919 = vunpack.c.l.b16 %v5577
        %v5920 = vunpack.c.l.b16 %v5578
        %v5921 = vunpack.c.l.b16 %v5579
        %v5922 = vunpack.c.l.b16 %v5580
        %v5923 = vunpack.c.l.b16 %v5581
        %v5924 = vunpack.c.l.b16 %v5582
        %v5925 = vunpack.c.l.b16 %v5583
        %v5926 = vunpack.c.l.b16 %v5584
        %v5927 = vunpack.c.l.b16 %v5585
        %v5928 = vunpack.c.l.b16 %v5586
        %v5929 = vunpack.c.l.b16 %v5587
        %v5930 = vunpack.c.l.b16 %v5588
        %v5931 = vunpack.c.l.b16 %v5589
        %v5932 = vunpack.c.l.b16 %v5590
        %v5933 = vunpack.c.l.b16 %v5591
        %v5934 = vunpack.c.l.b16 %v5592
        %v5935 = vunpack.c.l.b16 %v5593
        %v5936 = vunpack.c.l.b16 %v5594
        %v5937 = vunpack.c.l.b16 %v5595
        %v5938 = vunpack.c.l.b16 %v5596
        %v5939 = vunpack.c.l.b16 %v5597
        %v5940 = vunpack.c.l.b16 %v5598
        %v5941 = vunpack.c.l.b16 %v5599
        %v5942 = vunpack.c.l.b16 %v5600
        %v5943 = vunpack.c.l.b16 %v5601
        %v5944 = vunpack.c.l.b16 %v5602
        %v5945 = vunpack.c.l.b16 %v5603
        %v5946 = vunpack.c.l.b16 %v5604
        %v5947 = vunpack.c.l.b16 %v5605
        %v5948 = vunpack.c.l.b16 %v5606
        %v5949 = vunpack.c.l.b16 %v5607
        %v5950 = vunpack.c.l.b16 %v5608
        %v5951 = vunpack.c.l.b16 %v5609
        %v5952 = vunpack.c.l.b16 %v5610
        %v5953 = vunpack.c.l.b16 %v5611
        %v5954 = vunpack.c.l.b16 %v5612
        %v5955 = vunpack.c.l.b16 %v5613
        %v5956 = vunpack.c.l.b16 %v5614
        %v5957 = vunpack.c.l.b16 %v5615
        %v5958 = vunpack.c.l.b16 %v5616
        %v5959 = vunpack.c.l.b16 %v5617
        %v5960 = vunpack.c.l.b16 %v5618
        %v5961 = vunpack.c.l.b16 %v5619
        %v5962 = vunpack.c.l.b16 %v5620
        %v5963 = vunpack.c.l.b16 %v5621
        %v5964 = vunpack.c.l.b16 %v5622
        %v5965 = vunpack.c.l.b16 %v5623
        %v5966 = vunpack.c.l.b16 %v5624
        %v5967 = vunpack.c.l.b16 %v5625
        %v5968 = vunpack.c.l.b16 %v5626
        %v5969 = vunpack.c.l.b16 %v5627
        %v5970 = vunpack.c.l.b16 %v5628
        %v5971 = vunpack.c.l.b16 %v5629
        %v5972 = vunpack.c.l.b16 %v5630
        %v5973 = vunpack.c.l.b16 %v5631
        %v5974 = vunpack.c.l.b16 %v5632
        %v5975 = vunpack.c.l.b16 %v5633
        %v5976 = vunpack.c.l.b16 %v5634
        %v5977 = vunpack.c.l.b16 %v5635
        %v5978 = vunpack.c.l.b16 %v5636
        %v5979 = vunpack.c.l.b16 %v5637
        %v5980 = vunpack.c.l.b16 %v5638
        %v5981 = vunpack.c.l.b16 %v5639
        %v5982 = vunpack.c.l.b16 %v5640
        %v5983 = vunpack.c.l.b16 %v5641
        %v5984 = vunpack.c.l.b16 %v5642
        %v5985 = vunpack.c.l.b16 %v5643
        %v5986 = vunpack.c.l.b16 %v5644
        %v5987 = vunpack.c.l.b16 %v5645
        %v5988 = vunpack.c.l.b16 %v5646
        %v5989 = vunpack.c.l.b16 %v5647
        %v5990 = vunpack.c.l.b16 %v5648
        %v5991 = vunpack.c.l.b16 %v5649
        %v5992 = vunpack.c.l.b16 %v5650
        %v5993 = vunpack.c.l.b16 %v5651
        %v5994 = vunpack.c.l.b16 %v5652
        %v5995 = vunpack.c.l.b16 %v5653
        %v5996 = vunpack.c.l.b16 %v5654
        %v5997 = vunpack.c.l.b16 %v5655
        %v5998 = vunpack.c.l.b16 %v5656
        %v5999 = vunpack.c.l.b16 %v5657
        %v6000 = vunpack.c.l.b16 %v5658
        %v6001 = vunpack.c.l.b16 %v5659
        %v6002 = vunpack.c.l.b16 %v5660
        %v6003 = vunpack.c.l.b16 %v5661
        %v6004 = vunpack.c.l.b16 %v5662
        %v6005 = vunpack.c.l.b16 %v5663
        %v6006 = vunpack.c.l.b16 %v5664
        %v6007 = vunpack.c.l.b16 %v5665
        %v6008 = vunpack.c.l.b16 %v5666
        %v6009 = vunpack.c.l.b16 %v5667
        %v6010 = vunpack.c.l.b16 %v5668
        %v6011 = vunpack.c.l.b16 %v5669
        %v6012 = vunpack.c.l.b16 %v5670
        %v6013 = vunpack.c.l.b16 %v5671
        %v6014 = vunpack.c.l.b16 %v5672
        %v6015 = vunpack.c.l.b16 %v5673
        %v6016 = vunpack.c.l.b16 %v5674
        %v6017 = vunpack.c.l.b16 %v5675
        %v6018 = vunpack.c.l.b16 %v5676
        %v6019 = vunpack.c.l.b16 %v5677
        %v6020 = vunpack.c.l.b16 %v5678
        %v6021 = vunpack.c.l.b16 %v5679
        %v6022 = vunpack.c.l.b16 %v5680
        %v6023 = vunpack.c.l.b16 %v5681
        %v6024 = vunpack.c.l.b16 %v5682
        %v6025 = vunpack.c.l.b16 %v5683
        %v6026 = vunpack.c.l.b16 %v5684
        %v6027 = vunpack.c.l.b16 %v5685
        %v6028 = vunpack.c.l.b16 %v5686
        %v6029 = vunpack.c.l.b16 %v5687
        %v6030 = vunpack.c.l.b16 %v5688
        %v6031 = vunpack.c.l.b16 %v5689
        %v6032 = vunpack.c.l.b16 %v5690
        %v6033 = vunpack.c.l.b16 %v5691
        %v6034 = vunpack.c.l.b16 %v5692
        %v6035 = vunpack.c.l.b16 %v5693
        %v6036 = vunpack.c.l.b16 %v5694
        %v6037 = vunpack.c.l.b16 %v5695
        %v6038 = vunpack.c.l.b16 %v5696
        %v6039 = vunpack.c.l.b16 %v5697
        %v6040 = vpack.c.b16 %v5897, %v5896
        %v6041 = vpack.c.b16 %v5899, %v5898
        %v6042 = vpack.c.b16 %v5901, %v5900
        %v6043 = vpack.c.b16 %v5903, %v5902
        %v6044 = vpack.c.b16 %v5905, %v5904
        %v6045 = vpack.c.b16 %v5907, %v5906
        %v6046 = vpack.c.b16 %v5909, %v5908
        %v6047 = vpack.c.b16 %v5911, %v5910
        %v6048 = vpack.c.b16 %v5913, %v5912
        %v6049 = vpack.c.b16 %v5915, %v5914
        %v6050 = vpack.c.b16 %v5917, %v5916
        %v6051 = vpack.c.b16 %v5919, %v5918
        %v6052 = vpack.c.b16 %v5921, %v5920
        %v6053 = vpack.c.b16 %v5923, %v5922
        %v6054 = vpack.c.b16 %v5925, %v5924
        %v6055 = vpack.c.b16 %v5927, %v5926
        %v6056 = vpack.c.b16 %v5929, %v5928
        %v6057 = vpack.c.b16 %v5931, %v5930
        %v6058 = vpack.c.b16 %v5933, %v5932
        %v6059 = vpack.c.b16 %v5935, %v5934
        %v6060 = vpack.c.b16 %v5937, %v5936
        %v6061 = vpack.c.b16 %v5939, %v5938
        %v6062 = vpack.c.b16 %v5941, %v5940
        %v6063 = vpack.c.b16 %v5943, %v5942
        %v6064 = vpack.c.b16 %v5945, %v5944
        %v6065 = vpack.c.b16 %v5947, %v5946
        %v6066 = vpack.c.b16 %v5949, %v5948
        %v6067 = vpack.c.b16 %v5951, %v5950
        %v6068 = vpack.c.b16 %v5953, %v5952
        %v6069 = vpack.c.b16 %v5955, %v5954
        %v6070 = vpack.c.b16 %v5957, %v5956
        %v6071 = vpack.c.b16 %v5959, %v5958
        %v6072 = vpack.c.b16 %v5961, %v5960
        %v6073 = vpack.c.b16 %v5963, %v5962
        %v6074 = vpack.c.b16 %v5965, %v5964
        %v6075 = vpack.c.b16 %v5967, %v5966
        %v6076 = vpack.c.b16 %v5969, %v5968
        %v6077 = vpack.c.b16 %v5971, %v5970
        %v6078 = vpack.c.b16 %v5973, %v5972
        %v6079 = vpack.c.b16 %v5975, %v5974
        %v6080 = vpack.c.b16 %v5977, %v5976
        %v6081 = vpack.c.b16 %v5979, %v5978
        %v6082 = vpack.c.b16 %v5981, %v5980
        %v6083 = vpack.c.b16 %v5983, %v5982
        %v6084 = vpack.c.b16 %v5985, %v5984
        %v6085 = vpack.c.b16 %v5987, %v5986
        %v6086 = vpack.c.b16 %v5989, %v5988
        %v6087 = vpack.c.b16 %v5991, %v5990
        %v6088 = vpack.c.b16 %v5993, %v5992
        %v6089 = vpack.c.b16 %v5995, %v5994
        %v6090 = vpack.c.b16 %v5997, %v5996
        %v6091 = vpack.c.b16 %v5999, %v5998
        %v6092 = vpack.c.b16 %v6001, %v6000
        %v6093 = vpack.c.b16 %v6003, %v6002
        %v6094 = vpack.c.b16 %v6005, %v6004
        %v6095 = vpack.c.b16 %v6007, %v6006
        %v6096 = vpack.c.b16 %v6009, %v6008
        %v6097 = vpack.c.b16 %v6011, %v6010
        %v6098 = vpack.c.b16 %v6013, %v6012
        %v6099 = vpack.c.b16 %v6015, %v6014
        %v6100 = vpack.c.b16 %v6017, %v6016
        %v6101 = vpack.c.b16 %v6019, %v6018
        %v6102 = vpack.c.b16 %v6021, %v6020
        %v6103 = vpack.c.b16 %v6023, %v6022
        %v6104 = vpack.c.b16 %v6025, %v6024
        %v6105 = vpack.c.b16 %v6027, %v6026
        %v6106 = vpack.c.b16 %v6029, %v6028
        %v6107 = vpack.c.b16 %v6031, %v6030
        %v6108 = vpack.c.b16 %v6033, %v6032
        %v6109 = vpack.c.b16 %v6035, %v6034
        %v6110 = vpack.c.b16 %v6037, %v6036
        %v6111 = vpack.c.b16 %v6039, %v6038
        %6184 = vmatpush.bf16.msra.mxu0 %v6047
        %6185 = vmatpush.bf16.msra.mxu0 %v6046
        %6186 = vmatpush.bf16.msra.mxu0 %v6045
        %6187 = vmatpush.bf16.msra.mxu0 %v6044
        %6188 = vmatpush.bf16.msra.mxu0 %v6043
        %6189 = vmatpush.bf16.msra.mxu0 %v6042
        %6190 = vmatpush.bf16.msra.mxu0 %v6041
        %6191 = vmatpush.bf16.msra.mxu0 %v6040
        %6192 = vmatmul.bf16.gmra.mxu0 %v5698
        %v6193 = vpop.f32.mrf.mxu0
        %v6194 = vadd.f32 0.0, %v6193
        %v6195 = vpop.f32.mrf.mxu0
        %v6196 = vadd.f32 0.0, %v6195
        %6197 = vmatmul.bf16.gmra.mxu0 %v5704
        %v6198 = vpop.f32.mrf.mxu0
        %v6199 = vadd.f32 0.0, %v6198
        %v6200 = vpop.f32.mrf.mxu0
        %v6201 = vadd.f32 0.0, %v6200
        %6202 = vmatmul.bf16.gmra.mxu0 %v5710
        %v6203 = vpop.f32.mrf.mxu0
        %v6204 = vadd.f32 0.0, %v6203
        %v6205 = vpop.f32.mrf.mxu0
        %v6206 = vadd.f32 0.0, %v6205
        %6207 = vmatmul.bf16.gmra.mxu0 %v5716
        %v6208 = vpop.f32.mrf.mxu0
        %v6209 = vadd.f32 0.0, %v6208
        %v6210 = vpop.f32.mrf.mxu0
        %v6211 = vadd.f32 0.0, %v6210
        %6212 = vdwg.mxu0
        %6213 = vmatpush.bf16.msra.mxu0 %v6055
        %6214 = vmatpush.bf16.msra.mxu0 %v6054
        %6215 = vmatpush.bf16.msra.mxu0 %v6053
        %6216 = vmatpush.bf16.msra.mxu0 %v6052
        %6217 = vmatpush.bf16.msra.mxu0 %v6051
        %6218 = vmatpush.bf16.msra.mxu0 %v6050
        %6219 = vmatpush.bf16.msra.mxu0 %v6049
        %6220 = vmatpush.bf16.msra.mxu0 %v6048
        %6221 = vmatmul.bf16.gmra.mxu0 %v5699
        %v6222 = vpop.f32.mrf.mxu0
        %v6223 = vadd.f32 %v6194, %v6222
        %v6224 = vpop.f32.mrf.mxu0
        %v6225 = vadd.f32 %v6196, %v6224
        %6226 = vmatmul.bf16.gmra.mxu0 %v5705
        %v6227 = vpop.f32.mrf.mxu0
        %v6228 = vadd.f32 %v6199, %v6227
        %v6229 = vpop.f32.mrf.mxu0
        %v6230 = vadd.f32 %v6201, %v6229
        %6231 = vmatmul.bf16.gmra.mxu0 %v5711
        %v6232 = vpop.f32.mrf.mxu0
        %v6233 = vadd.f32 %v6204, %v6232
        %v6234 = vpop.f32.mrf.mxu0
        %v6235 = vadd.f32 %v6206, %v6234
        %6236 = vmatmul.bf16.gmra.mxu0 %v5717
        %v6237 = vpop.f32.mrf.mxu0
        %v6238 = vadd.f32 %v6209, %v6237
        %v6239 = vpop.f32.mrf.mxu0
        %v6240 = vadd.f32 %v6211, %v6239
        %6241 = vdwg.mxu0
        %6242 = vmatpush.bf16.msra.mxu0 %v6063
        %6243 = vmatpush.bf16.msra.mxu0 %v6062
        %6244 = vmatpush.bf16.msra.mxu0 %v6061
        %6245 = vmatpush.bf16.msra.mxu0 %v6060
        %6246 = vmatpush.bf16.msra.mxu0 %v6059
        %6247 = vmatpush.bf16.msra.mxu0 %v6058
        %6248 = vmatpush.bf16.msra.mxu0 %v6057
        %6249 = vmatpush.bf16.msra.mxu0 %v6056
        %6250 = vmatmul.bf16.gmra.mxu0 %v5700
        %v6251 = vpop.f32.mrf.mxu0
        %v6252 = vadd.f32 %v6223, %v6251
        %v6253 = vpop.f32.mrf.mxu0
        %v6254 = vadd.f32 %v6225, %v6253
        %6255 = vmatmul.bf16.gmra.mxu0 %v5706
        %v6256 = vpop.f32.mrf.mxu0
        %v6257 = vadd.f32 %v6228, %v6256
        %v6258 = vpop.f32.mrf.mxu0
        %v6259 = vadd.f32 %v6230, %v6258
        %6260 = vmatmul.bf16.gmra.mxu0 %v5712
        %v6261 = vpop.f32.mrf.mxu0
        %v6262 = vadd.f32 %v6233, %v6261
        %v6263 = vpop.f32.mrf.mxu0
        %v6264 = vadd.f32 %v6235, %v6263
        %6265 = vmatmul.bf16.gmra.mxu0 %v5718
        %v6266 = vpop.f32.mrf.mxu0
        %v6267 = vadd.f32 %v6238, %v6266
        %v6268 = vpop.f32.mrf.mxu0
        %v6269 = vadd.f32 %v6240, %v6268
        %6270 = vdwg.mxu0
        %6271 = vmatpush.bf16.msra.mxu0 %v6071
        %6272 = vmatpush.bf16.msra.mxu0 %v6070
        %6273 = vmatpush.bf16.msra.mxu0 %v6069
        %6274 = vmatpush.bf16.msra.mxu0 %v6068
        %6275 = vmatpush.bf16.msra.mxu0 %v6067
        %6276 = vmatpush.bf16.msra.mxu0 %v6066
        %6277 = vmatpush.bf16.msra.mxu0 %v6065
        %6278 = vmatpush.bf16.msra.mxu0 %v6064
        %6279 = vmatmul.bf16.gmra.mxu0 %v5701
        %v6280 = vpop.f32.mrf.mxu0
        %v6281 = vadd.f32 %v6252, %v6280
        %v6282 = vpop.f32.mrf.mxu0
        %v6283 = vadd.f32 %v6254, %v6282
        %6284 = vmatmul.bf16.gmra.mxu0 %v5707
        %v6285 = vpop.f32.mrf.mxu0
        %v6286 = vadd.f32 %v6257, %v6285
        %v6287 = vpop.f32.mrf.mxu0
        %v6288 = vadd.f32 %v6259, %v6287
        %6289 = vmatmul.bf16.gmra.mxu0 %v5713
        %v6290 = vpop.f32.mrf.mxu0
        %v6291 = vadd.f32 %v6262, %v6290
        %v6292 = vpop.f32.mrf.mxu0
        %v6293 = vadd.f32 %v6264, %v6292
        %6294 = vmatmul.bf16.gmra.mxu0 %v5719
        %v6295 = vpop.f32.mrf.mxu0
        %v6296 = vadd.f32 %v6267, %v6295
        %v6297 = vpop.f32.mrf.mxu0
        %v6298 = vadd.f32 %v6269, %v6297
        %6299 = vdwg.mxu0
        %6300 = vmatpush.bf16.msra.mxu0 %v6079
        %6301 = vmatpush.bf16.msra.mxu0 %v6078
        %6302 = vmatpush.bf16.msra.mxu0 %v6077
        %6303 = vmatpush.bf16.msra.mxu0 %v6076
        %6304 = vmatpush.bf16.msra.mxu0 %v6075
        %6305 = vmatpush.bf16.msra.mxu0 %v6074
        %6306 = vmatpush.bf16.msra.mxu0 %v6073
        %6307 = vmatpush.bf16.msra.mxu0 %v6072
        %6308 = vmatmul.bf16.gmra.mxu0 %v5702
        %v6309 = vpop.f32.mrf.mxu0
        %v6310 = vadd.f32 %v6281, %v6309
        %v6311 = vpop.f32.mrf.mxu0
        %v6312 = vadd.f32 %v6283, %v6311
        %6313 = vmatmul.bf16.gmra.mxu0 %v5708
        %v6314 = vpop.f32.mrf.mxu0
        %v6315 = vadd.f32 %v6286, %v6314
        %v6316 = vpop.f32.mrf.mxu0
        %v6317 = vadd.f32 %v6288, %v6316
        %6318 = vmatmul.bf16.gmra.mxu0 %v5714
        %v6319 = vpop.f32.mrf.mxu0
        %v6320 = vadd.f32 %v6291, %v6319
        %v6321 = vpop.f32.mrf.mxu0
        %v6322 = vadd.f32 %v6293, %v6321
        %6323 = vmatmul.bf16.gmra.mxu0 %v5720
        %v6324 = vpop.f32.mrf.mxu0
        %v6325 = vadd.f32 %v6296, %v6324
        %v6326 = vpop.f32.mrf.mxu0
        %v6327 = vadd.f32 %v6298, %v6326
        %6328 = vdwg.mxu0
        %6329 = vmatpush.bf16.msra.mxu0 %v6087
        %6330 = vmatpush.bf16.msra.mxu0 %v6086
        %6331 = vmatpush.bf16.msra.mxu0 %v6085
        %6332 = vmatpush.bf16.msra.mxu0 %v6084
        %6333 = vmatpush.bf16.msra.mxu0 %v6083
        %6334 = vmatpush.bf16.msra.mxu0 %v6082
        %6335 = vmatpush.bf16.msra.mxu0 %v6081
        %6336 = vmatpush.bf16.msra.mxu0 %v6080
        %6337 = vmatmul.bf16.gmra.mxu0 %v5703
        %v6338 = vpop.f32.mrf.mxu0
        %v6339 = vadd.f32 %v6310, %v6338
        %v6340 = vpop.f32.mrf.mxu0
        %v6341 = vadd.f32 %v6312, %v6340
        %6342 = vmatmul.bf16.gmra.mxu0 %v5709
        %v6343 = vpop.f32.mrf.mxu0
        %v6344 = vadd.f32 %v6315, %v6343
        %v6345 = vpop.f32.mrf.mxu0
        %v6346 = vadd.f32 %v6317, %v6345
        %6347 = vmatmul.bf16.gmra.mxu0 %v5715
        %v6348 = vpop.f32.mrf.mxu0
        %v6349 = vadd.f32 %v6320, %v6348
        %v6350 = vpop.f32.mrf.mxu0
        %v6351 = vadd.f32 %v6322, %v6350
        %6352 = vmatmul.bf16.gmra.mxu0 %v5721
        %v6353 = vpop.f32.mrf.mxu0
        %v6354 = vadd.f32 %v6325, %v6353
        %v6355 = vpop.f32.mrf.mxu0
        %v6356 = vadd.f32 %v6327, %v6355
        %6357 = vdwg.mxu0
        %6358 = vmatpush.bf16.msra.mxu0 %v6095
        %6359 = vmatpush.bf16.msra.mxu0 %v6094
        %6360 = vmatpush.bf16.msra.mxu0 %v6093
        %6361 = vmatpush.bf16.msra.mxu0 %v6092
        %6362 = vmatpush.bf16.msra.mxu0 %v6091
        %6363 = vmatpush.bf16.msra.mxu0 %v6090
        %6364 = vmatpush.bf16.msra.mxu0 %v6089
        %6365 = vmatpush.bf16.msra.mxu0 %v6088
        %6366 = vmatmul.bf16.gmra.mxu0 %v5704
        %v6367 = vpop.f32.mrf.mxu0
        %v6368 = vadd.f32 %v6339, %v6367
        %v6369 = vpop.f32.mrf.mxu0
        %v6370 = vadd.f32 %v6341, %v6369
        %6371 = vmatmul.bf16.gmra.mxu0 %v5710
        %v6372 = vpop.f32.mrf.mxu0
        %v6373 = vadd.f32 %v6344, %v6372
        %v6374 = vpop.f32.mrf.mxu0
        %v6375 = vadd.f32 %v6346, %v6374
        %6376 = vmatmul.bf16.gmra.mxu0 %v5716
        %v6377 = vpop.f32.mrf.mxu0
        %v6378 = vadd.f32 %v6349, %v6377
        %v6379 = vpop.f32.mrf.mxu0
        %v6380 = vadd.f32 %v6351, %v6379
        %6381 = vmatmul.bf16.gmra.mxu0 %v5722
        %v6382 = vpop.f32.mrf.mxu0
        %v6383 = vadd.f32 %v6354, %v6382
        %v6384 = vpop.f32.mrf.mxu0
        %v6385 = vadd.f32 %v6356, %v6384
        %6386 = vdwg.mxu0
        %6387 = vmatpush.bf16.msra.mxu0 %v6103
        %6388 = vmatpush.bf16.msra.mxu0 %v6102
        %6389 = vmatpush.bf16.msra.mxu0 %v6101
        %6390 = vmatpush.bf16.msra.mxu0 %v6100
        %6391 = vmatpush.bf16.msra.mxu0 %v6099
        %6392 = vmatpush.bf16.msra.mxu0 %v6098
        %6393 = vmatpush.bf16.msra.mxu0 %v6097
        %6394 = vmatpush.bf16.msra.mxu0 %v6096
        %6395 = vmatmul.bf16.gmra.mxu0 %v5705
        %v6396 = vpop.f32.mrf.mxu0
        %v6397 = vadd.f32 %v6368, %v6396
        %v6398 = vpop.f32.mrf.mxu0
        %v6399 = vadd.f32 %v6370, %v6398
        %6400 = vmatmul.bf16.gmra.mxu0 %v5711
        %v6401 = vpop.f32.mrf.mxu0
        %v6402 = vadd.f32 %v6373, %v6401
        %v6403 = vpop.f32.mrf.mxu0
        %v6404 = vadd.f32 %v6375, %v6403
        %6405 = vmatmul.bf16.gmra.mxu0 %v5717
        %v6406 = vpop.f32.mrf.mxu0
        %v6407 = vadd.f32 %v6378, %v6406
        %v6408 = vpop.f32.mrf.mxu0
        %v6409 = vadd.f32 %v6380, %v6408
        %6410 = vmatmul.bf16.gmra.mxu0 %v5723
        %v6411 = vpop.f32.mrf.mxu0
        %v6412 = vadd.f32 %v6383, %v6411
        %v6413 = vpop.f32.mrf.mxu0
        %v6414 = vadd.f32 %v6385, %v6413
        %6415 = vdwg.mxu0
        %6416 = vmatpush.bf16.msra.mxu0 %v6111
        %6417 = vmatpush.bf16.msra.mxu0 %v6110
        %6418 = vmatpush.bf16.msra.mxu0 %v6109
        %6419 = vmatpush.bf16.msra.mxu0 %v6108
        %6420 = vmatpush.bf16.msra.mxu0 %v6107
        %6421 = vmatpush.bf16.msra.mxu0 %v6106
        %6422 = vmatpush.bf16.msra.mxu0 %v6105
        %6423 = vmatpush.bf16.msra.mxu0 %v6104
        %6424 = vmatmul.bf16.gmra.mxu0 %v5706
        %v6425 = vpop.f32.mrf.mxu0
        %v6426 = vadd.f32 %v6397, %v6425
        %v6427 = vpop.f32.mrf.mxu0
        %v6428 = vadd.f32 %v6399, %v6427
        %6429 = vmatmul.bf16.gmra.mxu0 %v5712
        %v6430 = vpop.f32.mrf.mxu0
        %v6431 = vadd.f32 %v6402, %v6430
        %v6432 = vpop.f32.mrf.mxu0
        %v6433 = vadd.f32 %v6404, %v6432
        %6434 = vmatmul.bf16.gmra.mxu0 %v5718
        %v6435 = vpop.f32.mrf.mxu0
        %v6436 = vadd.f32 %v6407, %v6435
        %v6437 = vpop.f32.mrf.mxu0
        %v6438 = vadd.f32 %v6409, %v6437
        %6439 = vmatmul.bf16.gmra.mxu0 %v5724
        %v6440 = vpop.f32.mrf.mxu0
        %v6441 = vadd.f32 %v6412, %v6440
        %v6442 = vpop.f32.mrf.mxu0
        %v6443 = vadd.f32 %v6414, %v6442
        %6444 = vdwg.mxu0
        %s6445 = sld [smem:[#allocation4 + $0x4]]
        %vm6446 = vcmp.ge.f32.partialorder %v6426, 0.0
        %vm6447 = vcmp.ge.f32.partialorder %v6428, 0.0
        %vm6448 = vcmp.ge.f32.partialorder %v6431, 0.0
        %vm6449 = vcmp.ge.f32.partialorder %v6433, 0.0
        %vm6450 = vcmp.ge.f32.partialorder %v6436, 0.0
        %vm6451 = vcmp.ge.f32.partialorder %v6438, 0.0
        %vm6452 = vcmp.ge.f32.partialorder %v6441, 0.0
        %vm6453 = vcmp.ge.f32.partialorder %v6443, 0.0
        %v6454 = vstv %s6445
        %v6455 = vmul.f32 %v6454, %v6426
        %v6456 = vmul.f32 %v6454, %v6428
        %v6457 = vmul.f32 %v6454, %v6431
        %v6458 = vmul.f32 %v6454, %v6433
        %v6459 = vmul.f32 %v6454, %v6436
        %v6460 = vmul.f32 %v6454, %v6438
        %v6461 = vmul.f32 %v6454, %v6441
        %v6462 = vmul.f32 %v6454, %v6443
        %v6463 = vsel %vm6446, %v6426, %v6455
        %v6464 = vsel %vm6447, %v6428, %v6456
        %v6465 = vsel %vm6448, %v6431, %v6457
        %v6466 = vsel %vm6449, %v6433, %v6458
        %v6467 = vsel %vm6450, %v6436, %v6459
        %v6468 = vsel %vm6451, %v6438, %v6460
        %v6469 = vsel %vm6452, %v6441, %v6461
        %v6470 = vsel %vm6453, %v6443, %v6462
        %v6471 = vpack.c.bf16 %v6463, %v6463
        %v6472 = vpack.c.bf16 %v6464, %v6464
        %v6473 = vpack.c.bf16 %v6465, %v6465
        %v6474 = vpack.c.bf16 %v6466, %v6466
        %v6475 = vpack.c.bf16 %v6467, %v6467
        %v6476 = vpack.c.bf16 %v6468, %v6468
        %v6477 = vpack.c.bf16 %v6469, %v6469
        %v6478 = vpack.c.bf16 %v6470, %v6470
        %v6480 = vshrl.u32 %v6471, 16
        %v6482 = vrot.slane %v6480, 7
        %v6483 = vshll.u32 %v6471, 16
        %v6485 = vor.u32 %v6482, %v6483
        %v6486 = vrot.slane %v6482, 4
        %v6488 = vshrl.u32 %v6472, 16
        %v6490 = vrot.slane %v6488, 7
        %v6491 = vshll.u32 %v6472, 16
        %v6493 = vor.u32 %v6490, %v6491
        %v6494 = vrot.slane %v6490, 4
        %v6496 = vshrl.u32 %v6473, 16
        %v6498 = vrot.slane %v6496, 7
        %v6499 = vshll.u32 %v6473, 16
        %v6501 = vor.u32 %v6498, %v6499
        %v6502 = vrot.slane %v6498, 4
        %v6504 = vshrl.u32 %v6474, 16
        %v6506 = vrot.slane %v6504, 7
        %v6507 = vshll.u32 %v6474, 16
        %v6509 = vor.u32 %v6506, %v6507
        %v6510 = vrot.slane %v6506, 4
        %v6512 = vshrl.u32 %v6475, 16
        %v6514 = vrot.slane %v6512, 7
        %v6515 = vshll.u32 %v6475, 16
        %v6517 = vor.u32 %v6514, %v6515
        %v6518 = vrot.slane %v6514, 4
        %v6520 = vshrl.u32 %v6476, 16
        %v6522 = vrot.slane %v6520, 7
        %v6523 = vshll.u32 %v6476, 16
        %v6525 = vor.u32 %v6522, %v6523
        %v6526 = vrot.slane %v6522, 4
        %v6528 = vshrl.u32 %v6477, 16
        %v6530 = vrot.slane %v6528, 7
        %v6531 = vshll.u32 %v6477, 16
        %v6533 = vor.u32 %v6530, %v6531
        %v6534 = vrot.slane %v6530, 4
        %v6536 = vshrl.u32 %v6478, 16
        %v6538 = vrot.slane %v6536, 7
        %v6539 = vshll.u32 %v6478, 16
        %v6541 = vor.u32 %v6538, %v6539
        %v6542 = vrot.slane %v6538, 4
        %v6559 = vld [vmem:[%s389] sm:$0xf]
        %v6560 = vsel %vm391, %v6485, %v6559
        %6561 = vst [vmem:[%s389] sm:$0xf] %v6560
        %v6562 = vld [vmem:[%s389 + $0x4] sm:$0x1]
        %v6563 = vsel %vm230, %v6486, %v6562
        %6564 = vst [vmem:[%s389 + $0x4] sm:$0x1] %v6563
        %v6565 = vld [vmem:[%s389 + $0x8] sm:$0xf]
        %v6566 = vsel %vm391, %v6493, %v6565
        %6567 = vst [vmem:[%s389 + $0x8] sm:$0xf] %v6566
        %v6568 = vld [vmem:[%s389 + $0xc] sm:$0x1]
        %v6569 = vsel %vm230, %v6494, %v6568
        %6570 = vst [vmem:[%s389 + $0xc] sm:$0x1] %v6569
        %v6571 = vld [vmem:[%s389 + $0x10] sm:$0xf]
        %v6572 = vsel %vm391, %v6501, %v6571
        %6573 = vst [vmem:[%s389 + $0x10] sm:$0xf] %v6572
        %v6574 = vld [vmem:[%s389 + $0x14] sm:$0x1]
        %v6575 = vsel %vm230, %v6502, %v6574
        %6576 = vst [vmem:[%s389 + $0x14] sm:$0x1] %v6575
        %v6577 = vld [vmem:[%s389 + $0x18] sm:$0xf]
        %v6578 = vsel %vm391, %v6509, %v6577
        %6579 = vst [vmem:[%s389 + $0x18] sm:$0xf] %v6578
        %v6580 = vld [vmem:[%s389 + $0x1c] sm:$0x1]
        %v6581 = vsel %vm230, %v6510, %v6580
        %6582 = vst [vmem:[%s389 + $0x1c] sm:$0x1] %v6581
        %v6583 = vld [vmem:[%s389 + $0x20] sm:$0xf]
        %v6584 = vsel %vm391, %v6517, %v6583
        %6585 = vst [vmem:[%s389 + $0x20] sm:$0xf] %v6584
        %v6586 = vld [vmem:[%s389 + $0x24] sm:$0x1]
        %v6587 = vsel %vm230, %v6518, %v6586
        %6588 = vst [vmem:[%s389 + $0x24] sm:$0x1] %v6587
        %v6589 = vld [vmem:[%s389 + $0x28] sm:$0xf]
        %v6590 = vsel %vm391, %v6525, %v6589
        %6591 = vst [vmem:[%s389 + $0x28] sm:$0xf] %v6590
        %v6592 = vld [vmem:[%s389 + $0x2c] sm:$0x1]
        %v6593 = vsel %vm230, %v6526, %v6592
        %6594 = vst [vmem:[%s389 + $0x2c] sm:$0x1] %v6593
        %v6595 = vld [vmem:[%s389 + $0x30] sm:$0xf]
        %v6596 = vsel %vm391, %v6533, %v6595
        %6597 = vst [vmem:[%s389 + $0x30] sm:$0xf] %v6596
        %v6598 = vld [vmem:[%s389 + $0x34] sm:$0x1]
        %v6599 = vsel %vm230, %v6534, %v6598
        %6600 = vst [vmem:[%s389 + $0x34] sm:$0x1] %v6599
        %v6601 = vld [vmem:[%s389 + $0x38] sm:$0xf]
        %v6602 = vsel %vm391, %v6541, %v6601
        %6603 = vst [vmem:[%s389 + $0x38] sm:$0xf] %v6602
        %v6604 = vld [vmem:[%s389 + $0x3c] sm:$0x1]
        %v6605 = vsel %vm230, %v6542, %v6604
        %6606 = vst [vmem:[%s389 + $0x3c] sm:$0x1] %v6605
        %v6607 = vld [vmem:[#allocation2] sm:$0xf]
        %v6608 = vld [vmem:[#allocation2 + $0x4] sm:$0x1]
        %v6609 = vld [vmem:[#allocation2 + $0x8] sm:$0xf]
        %v6610 = vld [vmem:[#allocation2 + $0xc] sm:$0x1]
        %v6611 = vld [vmem:[#allocation2 + $0x10] sm:$0xf]
        %v6612 = vld [vmem:[#allocation2 + $0x14] sm:$0x1]
        %v6613 = vld [vmem:[#allocation2 + $0x18] sm:$0xf]
        %v6614 = vld [vmem:[#allocation2 + $0x1c] sm:$0x1]
        %v6615 = vld [vmem:[#allocation2 + $0x20] sm:$0xf]
        %v6616 = vld [vmem:[#allocation2 + $0x24] sm:$0x1]
        %v6617 = vld [vmem:[#allocation2 + $0x28] sm:$0xf]
        %v6618 = vld [vmem:[#allocation2 + $0x2c] sm:$0x1]
        %v6619 = vld [vmem:[#allocation2 + $0x30] sm:$0xf]
        %v6620 = vld [vmem:[#allocation2 + $0x34] sm:$0x1]
        %v6621 = vld [vmem:[#allocation2 + $0x38] sm:$0xf]
        %v6622 = vld [vmem:[#allocation2 + $0x3c] sm:$0x1]
        %v6623 = vld [vmem:[#allocation2 + $0x40] sm:$0xf]
        %v6624 = vld [vmem:[#allocation2 + $0x44] sm:$0x1]
        %v6625 = vld [vmem:[#allocation2 + $0x48] sm:$0xf]
        %v6626 = vld [vmem:[#allocation2 + $0x4c] sm:$0x1]
        %v6643 = vunpack.c.l.b16 %v6607
        %v6644 = vunpack.c.l.b16 %v6608
        %v6645 = vunpack.c.l.b16 %v6609
        %v6646 = vunpack.c.l.b16 %v6610
        %v6647 = vunpack.c.l.b16 %v6611
        %v6648 = vunpack.c.l.b16 %v6612
        %v6649 = vunpack.c.l.b16 %v6613
        %v6650 = vunpack.c.l.b16 %v6614
        %v6651 = vunpack.c.l.b16 %v6615
        %v6652 = vunpack.c.l.b16 %v6616
        %v6653 = vunpack.c.l.b16 %v6617
        %v6654 = vunpack.c.l.b16 %v6618
        %v6655 = vunpack.c.l.b16 %v6619
        %v6656 = vunpack.c.l.b16 %v6620
        %v6657 = vunpack.c.l.b16 %v6621
        %v6658 = vunpack.c.l.b16 %v6622
        %v6659 = vpack.c.b16 %v6644, %v6643
        %v6660 = vpack.c.b16 %v6646, %v6645
        %v6661 = vpack.c.b16 %v6648, %v6647
        %v6662 = vpack.c.b16 %v6650, %v6649
        %v6663 = vpack.c.b16 %v6652, %v6651
        %v6664 = vpack.c.b16 %v6654, %v6653
        %v6665 = vpack.c.b16 %v6656, %v6655
        %v6666 = vpack.c.b16 %v6658, %v6657
        %v6668 = vshrl.u32 %v6659, 16
        %v6670 = vshll.u32 %v6659, 16
        %v6672 = vrot.slane %v6670, 1
        %v6673 = vor.u32 %v6668, %v6672
        %v6675 = vshrl.u32 %v6660, 16
        %v6677 = vshll.u32 %v6660, 16
        %v6679 = vrot.slane %v6677, 1
        %v6680 = vor.u32 %v6675, %v6679
        %v6682 = vshrl.u32 %v6661, 16
        %v6684 = vshll.u32 %v6661, 16
        %v6686 = vrot.slane %v6684, 1
        %v6687 = vor.u32 %v6682, %v6686
        %v6689 = vshrl.u32 %v6662, 16
        %v6691 = vshll.u32 %v6662, 16
        %v6693 = vrot.slane %v6691, 1
        %v6694 = vor.u32 %v6689, %v6693
        %v6696 = vshrl.u32 %v6663, 16
        %v6698 = vshll.u32 %v6663, 16
        %v6700 = vrot.slane %v6698, 1
        %v6701 = vor.u32 %v6696, %v6700
        %v6703 = vshrl.u32 %v6664, 16
        %v6705 = vshll.u32 %v6664, 16
        %v6707 = vrot.slane %v6705, 1
        %v6708 = vor.u32 %v6703, %v6707
        %v6710 = vshrl.u32 %v6665, 16
        %v6712 = vshll.u32 %v6665, 16
        %v6714 = vrot.slane %v6712, 1
        %v6715 = vor.u32 %v6710, %v6714
        %v6717 = vshrl.u32 %v6666, 16
        %v6719 = vshll.u32 %v6666, 16
        %v6721 = vrot.slane %v6719, 1
        %v6722 = vor.u32 %v6717, %v6721
        %v6723 = vrot.slane %v6659, 1
        %v6724 = vrot.slane %v6660, 1
        %v6725 = vrot.slane %v6661, 1
        %v6726 = vrot.slane %v6662, 1
        %v6727 = vrot.slane %v6663, 1
        %v6728 = vrot.slane %v6664, 1
        %v6729 = vrot.slane %v6665, 1
        %v6730 = vrot.slane %v6666, 1
        %v6733 = vunpack.c.l.b16 %v6623
        %v6734 = vunpack.c.l.b16 %v6624
        %v6735 = vpack.c.b16 %v6734, %v6733
        %v6737 = vshrl.u32 %v6735, 16
        %v6739 = vshll.u32 %v6735, 16
        %v6741 = vrot.slane %v6739, 1
        %v6742 = vor.u32 %v6737, %v6741
        %v6743 = vrot.slane %v6735, 1
        %v6746 = vunpack.c.l.b16 %v6625
        %v6747 = vunpack.c.l.b16 %v6626
        %v6748 = vpack.c.b16 %v6747, %v6746
        %v6750 = vshrl.u32 %v6748, 16
        %v6752 = vshll.u32 %v6748, 16
        %v6754 = vrot.slane %v6752, 1
        %v6755 = vor.u32 %v6750, %v6754
        %v6756 = vrot.slane %v6748, 1
        %v6757 = vunpack.c.l.b16 %v6673
        %v6758 = vunpack.c.l.b16 %v6723
        %v6759 = vunpack.c.l.b16 %v6680
        %v6760 = vunpack.c.l.b16 %v6724
        %v6761 = vunpack.c.l.b16 %v6687
        %v6762 = vunpack.c.l.b16 %v6725
        %v6763 = vunpack.c.l.b16 %v6694
        %v6764 = vunpack.c.l.b16 %v6726
        %v6765 = vunpack.c.l.b16 %v6701
        %v6766 = vunpack.c.l.b16 %v6727
        %v6767 = vunpack.c.l.b16 %v6708
        %v6768 = vunpack.c.l.b16 %v6728
        %v6769 = vunpack.c.l.b16 %v6715
        %v6770 = vunpack.c.l.b16 %v6729
        %v6771 = vunpack.c.l.b16 %v6722
        %v6772 = vunpack.c.l.b16 %v6730
        %v6773 = vunpack.c.l.b16 %v6742
        %v6774 = vunpack.c.l.b16 %v6743
        %v6775 = vunpack.c.l.b16 %v6755
        %v6776 = vunpack.c.l.b16 %v6756
        %s6777 = scalar_lea.vmem [#allocation9], 2880
        %v6778 = vld [vmem:[%s6777] sm:$0xf]
        %v6779 = vld [vmem:[%s6777 + $0x4] sm:$0xf]
        %v6780 = vld [vmem:[%s6777 + $0x8] sm:$0xf]
        %v6781 = vld [vmem:[%s6777 + $0xc] sm:$0xf]
        %v6782 = vld [vmem:[%s6777 + $0x10] sm:$0xf]
        %v6783 = vld [vmem:[%s6777 + $0x14] sm:$0xf]
        %v6784 = vld [vmem:[%s6777 + $0x18] sm:$0xf]
        %v6785 = vld [vmem:[%s6777 + $0x1c] sm:$0xf]
        %v6786 = vld [vmem:[%s6777 + $0x20] sm:$0xf]
        %v6787 = vld [vmem:[%s6777 + $0x24] sm:$0xf]
        %v6788 = vld [vmem:[%s6777 + $0x28] sm:$0xf]
        %v6789 = vld [vmem:[%s6777 + $0x2c] sm:$0xf]
        %v6790 = vld [vmem:[%s6777 + $0x30] sm:$0xf]
        %v6791 = vld [vmem:[%s6777 + $0x34] sm:$0xf]
        %v6792 = vld [vmem:[%s6777 + $0x38] sm:$0xf]
        %v6793 = vld [vmem:[%s6777 + $0x3c] sm:$0xf]
        %v6794 = vld [vmem:[%s6777 + $0x40] sm:$0xf]
        %v6795 = vld [vmem:[%s6777 + $0x44] sm:$0xf]
        %v6796 = vld [vmem:[%s6777 + $0x48] sm:$0xf]
        %v6797 = vld [vmem:[%s6777 + $0x4c] sm:$0xf]
        %v6798 = vld [vmem:[%s6777 + $0x50] sm:$0xf]
        %v6799 = vld [vmem:[%s6777 + $0x54] sm:$0xf]
        %v6800 = vld [vmem:[%s6777 + $0x58] sm:$0xf]
        %v6801 = vld [vmem:[%s6777 + $0x5c] sm:$0xf]
        %v6802 = vld [vmem:[%s6777 + $0x60] sm:$0xf]
        %v6803 = vld [vmem:[%s6777 + $0x64] sm:$0xf]
        %v6804 = vld [vmem:[%s6777 + $0x68] sm:$0xf]
        %v6805 = vld [vmem:[%s6777 + $0x6c] sm:$0xf]
        %v6806 = vld [vmem:[%s6777 + $0x70] sm:$0xf]
        %v6807 = vld [vmem:[%s6777 + $0x74] sm:$0xf]
        %v6808 = vld [vmem:[%s6777 + $0x78] sm:$0xf]
        %v6809 = vld [vmem:[%s6777 + $0x7c] sm:$0xf]
        %v6810 = vld [vmem:[%s6777 + $0x80] sm:$0xf]
        %v6811 = vld [vmem:[%s6777 + $0x84] sm:$0xf]
        %v6812 = vld [vmem:[%s6777 + $0x88] sm:$0xf]
        %v6813 = vld [vmem:[%s6777 + $0x8c] sm:$0xf]
        %v6814 = vld [vmem:[%s6777 + $0x90] sm:$0xf]
        %v6815 = vld [vmem:[%s6777 + $0x94] sm:$0xf]
        %v6816 = vld [vmem:[%s6777 + $0x98] sm:$0xf]
        %v6817 = vld [vmem:[%s6777 + $0x9c] sm:$0xf]
        %v6818 = vld [vmem:[%s6777 + $0xa0] sm:$0xf]
        %v6819 = vld [vmem:[%s6777 + $0xa4] sm:$0xf]
        %v6820 = vld [vmem:[%s6777 + $0xa8] sm:$0xf]
        %v6821 = vld [vmem:[%s6777 + $0xac] sm:$0xf]
        %v6822 = vld [vmem:[%s6777 + $0xb0] sm:$0xf]
        %v6823 = vld [vmem:[%s6777 + $0xb4] sm:$0xf]
        %v6824 = vld [vmem:[%s6777 + $0xb8] sm:$0xf]
        %v6825 = vld [vmem:[%s6777 + $0xbc] sm:$0xf]
        %v6826 = vld [vmem:[%s6777 + $0xc0] sm:$0xf]
        %v6827 = vld [vmem:[%s6777 + $0xc4] sm:$0xf]
        %v6828 = vld [vmem:[%s6777 + $0xc8] sm:$0xf]
        %v6829 = vld [vmem:[%s6777 + $0xcc] sm:$0xf]
        %v6830 = vld [vmem:[%s6777 + $0xd0] sm:$0xf]
        %v6831 = vld [vmem:[%s6777 + $0xd4] sm:$0xf]
        %v6832 = vld [vmem:[%s6777 + $0xd8] sm:$0xf]
        %v6833 = vld [vmem:[%s6777 + $0xdc] sm:$0xf]
        %v6834 = vld [vmem:[%s6777 + $0xe0] sm:$0xf]
        %v6835 = vld [vmem:[%s6777 + $0xe4] sm:$0xf]
        %v6836 = vld [vmem:[%s6777 + $0xe8] sm:$0xf]
        %v6837 = vld [vmem:[%s6777 + $0xec] sm:$0xf]
        %v6838 = vld [vmem:[%s6777 + $0xf0] sm:$0xf]
        %v6839 = vld [vmem:[%s6777 + $0xf4] sm:$0xf]
        %v6840 = vld [vmem:[%s6777 + $0xf8] sm:$0xf]
        %v6841 = vld [vmem:[%s6777 + $0xfc] sm:$0xf]
        %v6842 = vld [vmem:[%s6777 + $0x100] sm:$0xf]
        %v6843 = vld [vmem:[%s6777 + $0x104] sm:$0xf]
        %v6844 = vld [vmem:[%s6777 + $0x108] sm:$0xf]
        %v6845 = vld [vmem:[%s6777 + $0x10c] sm:$0xf]
        %v6846 = vld [vmem:[%s6777 + $0x110] sm:$0xf]
        %v6847 = vld [vmem:[%s6777 + $0x114] sm:$0xf]
        %v6848 = vld [vmem:[%s6777 + $0x118] sm:$0xf]
        %v6849 = vld [vmem:[%s6777 + $0x11c] sm:$0xf]
        %v6850 = vld [vmem:[%s6777 + $0x120] sm:$0xf]
        %v6851 = vld [vmem:[%s6777 + $0x124] sm:$0xf]
        %v6852 = vld [vmem:[%s6777 + $0x128] sm:$0xf]
        %v6853 = vld [vmem:[%s6777 + $0x12c] sm:$0xf]
        %v6854 = vld [vmem:[%s6777 + $0x130] sm:$0xf]
        %v6855 = vld [vmem:[%s6777 + $0x134] sm:$0xf]
        %v6856 = vld [vmem:[%s6777 + $0x138] sm:$0xf]
        %v6857 = vld [vmem:[%s6777 + $0x13c] sm:$0xf]
        %v6858 = vld [vmem:[%s6777 + $0x140] sm:$0xf]
        %v6859 = vld [vmem:[%s6777 + $0x144] sm:$0xf]
        %v6860 = vld [vmem:[%s6777 + $0x148] sm:$0xf]
        %v6861 = vld [vmem:[%s6777 + $0x14c] sm:$0xf]
        %v6862 = vld [vmem:[%s6777 + $0x150] sm:$0xf]
        %v6863 = vld [vmem:[%s6777 + $0x154] sm:$0xf]
        %v6864 = vld [vmem:[%s6777 + $0x158] sm:$0xf]
        %v6865 = vld [vmem:[%s6777 + $0x15c] sm:$0xf]
        %v6866 = vld [vmem:[%s6777 + $0x160] sm:$0xf]
        %v6867 = vld [vmem:[%s6777 + $0x164] sm:$0xf]
        %v6868 = vld [vmem:[%s6777 + $0x168] sm:$0xf]
        %v6869 = vld [vmem:[%s6777 + $0x16c] sm:$0xf]
        %v6870 = vld [vmem:[%s6777 + $0x170] sm:$0xf]
        %v6871 = vld [vmem:[%s6777 + $0x174] sm:$0xf]
        %v6872 = vld [vmem:[%s6777 + $0x178] sm:$0xf]
        %v6873 = vld [vmem:[%s6777 + $0x17c] sm:$0xf]
        %v6874 = vld [vmem:[%s6777 + $0x180] sm:$0xf]
        %v6875 = vld [vmem:[%s6777 + $0x184] sm:$0xf]
        %v6876 = vld [vmem:[%s6777 + $0x188] sm:$0xf]
        %v6877 = vld [vmem:[%s6777 + $0x18c] sm:$0xf]
        %v6878 = vld [vmem:[%s6777 + $0x190] sm:$0xf]
        %v6879 = vld [vmem:[%s6777 + $0x194] sm:$0xf]
        %v6880 = vld [vmem:[%s6777 + $0x198] sm:$0xf]
        %v6881 = vld [vmem:[%s6777 + $0x19c] sm:$0xf]
        %v6882 = vld [vmem:[%s6777 + $0x1a0] sm:$0xf]
        %v6883 = vld [vmem:[%s6777 + $0x1a4] sm:$0xf]
        %v6884 = vld [vmem:[%s6777 + $0x1a8] sm:$0xf]
        %v6885 = vld [vmem:[%s6777 + $0x1ac] sm:$0xf]
        %v6886 = vld [vmem:[%s6777 + $0x1b0] sm:$0xf]
        %v6887 = vld [vmem:[%s6777 + $0x1b4] sm:$0xf]
        %v6888 = vld [vmem:[%s6777 + $0x1b8] sm:$0xf]
        %v6889 = vld [vmem:[%s6777 + $0x1bc] sm:$0xf]
        %v6890 = vld [vmem:[%s6777 + $0x1c0] sm:$0xf]
        %v6891 = vld [vmem:[%s6777 + $0x1c4] sm:$0xf]
        %v6892 = vld [vmem:[%s6777 + $0x1c8] sm:$0xf]
        %v6893 = vld [vmem:[%s6777 + $0x1cc] sm:$0xf]
        %v6894 = vld [vmem:[%s6777 + $0x1d0] sm:$0xf]
        %v6895 = vld [vmem:[%s6777 + $0x1d4] sm:$0xf]
        %v6896 = vld [vmem:[%s6777 + $0x1d8] sm:$0xf]
        %v6897 = vld [vmem:[%s6777 + $0x1dc] sm:$0xf]
        %v6898 = vld [vmem:[%s6777 + $0x1e0] sm:$0xf]
        %v6899 = vld [vmem:[%s6777 + $0x1e4] sm:$0xf]
        %v6900 = vld [vmem:[%s6777 + $0x1e8] sm:$0xf]
        %v6901 = vld [vmem:[%s6777 + $0x1ec] sm:$0xf]
        %v6902 = vld [vmem:[%s6777 + $0x1f0] sm:$0xf]
        %v6903 = vld [vmem:[%s6777 + $0x1f4] sm:$0xf]
        %v6904 = vld [vmem:[%s6777 + $0x1f8] sm:$0xf]
        %v6905 = vld [vmem:[%s6777 + $0x1fc] sm:$0xf]
        %v6906 = vld [vmem:[%s6777 + $0x200] sm:$0xf]
        %v6907 = vld [vmem:[%s6777 + $0x204] sm:$0xf]
        %v6908 = vld [vmem:[%s6777 + $0x208] sm:$0xf]
        %v6909 = vld [vmem:[%s6777 + $0x20c] sm:$0xf]
        %v6910 = vld [vmem:[%s6777 + $0x210] sm:$0xf]
        %v6911 = vld [vmem:[%s6777 + $0x214] sm:$0xf]
        %v6912 = vld [vmem:[%s6777 + $0x218] sm:$0xf]
        %v6913 = vld [vmem:[%s6777 + $0x21c] sm:$0xf]
        %v6914 = vld [vmem:[%s6777 + $0x220] sm:$0xf]
        %v6915 = vld [vmem:[%s6777 + $0x224] sm:$0xf]
        %v6916 = vld [vmem:[%s6777 + $0x228] sm:$0xf]
        %v6917 = vld [vmem:[%s6777 + $0x22c] sm:$0xf]
        %v6918 = vld [vmem:[%s6777 + $0x230] sm:$0xf]
        %v6919 = vld [vmem:[%s6777 + $0x234] sm:$0xf]
        %v6920 = vld [vmem:[%s6777 + $0x238] sm:$0xf]
        %v6921 = vld [vmem:[%s6777 + $0x23c] sm:$0xf]
        %v6922 = vpack.c.b16 %v6645, %v6643
        %v6923 = vpack.c.b16 %v6759, %v6757
        %v6924 = vpack.c.b16 %v6760, %v6758
        %v6925 = vpack.c.b16 %v6647, %v6645
        %v6926 = vpack.c.b16 %v6761, %v6759
        %v6927 = vpack.c.b16 %v6762, %v6760
        %v6928 = vpack.c.b16 %v6649, %v6647
        %v6929 = vpack.c.b16 %v6763, %v6761
        %v6930 = vpack.c.b16 %v6764, %v6762
        %v6931 = vpack.c.b16 %v6651, %v6649
        %v6932 = vpack.c.b16 %v6765, %v6763
        %v6933 = vpack.c.b16 %v6766, %v6764
        %v6934 = vpack.c.b16 %v6653, %v6651
        %v6935 = vpack.c.b16 %v6767, %v6765
        %v6936 = vpack.c.b16 %v6768, %v6766
        %v6937 = vpack.c.b16 %v6655, %v6653
        %v6938 = vpack.c.b16 %v6769, %v6767
        %v6939 = vpack.c.b16 %v6770, %v6768
        %v6940 = vpack.c.b16 %v6657, %v6655
        %v6941 = vpack.c.b16 %v6771, %v6769
        %v6942 = vpack.c.b16 %v6772, %v6770
        %v6943 = vpack.c.b16 %v6733, %v6657
        %v6944 = vpack.c.b16 %v6773, %v6771
        %v6945 = vpack.c.b16 %v6774, %v6772
        %v6946 = vpack.c.b16 %v6746, %v6733
        %v6947 = vpack.c.b16 %v6775, %v6773
        %v6948 = vpack.c.b16 %v6776, %v6774
        %v7120 = vunpack.c.l.b16 %v6778
        %v7121 = vunpack.c.l.b16 %v6779
        %v7122 = vunpack.c.l.b16 %v6780
        %v7123 = vunpack.c.l.b16 %v6781
        %v7124 = vunpack.c.l.b16 %v6782
        %v7125 = vunpack.c.l.b16 %v6783
        %v7126 = vunpack.c.l.b16 %v6784
        %v7127 = vunpack.c.l.b16 %v6785
        %v7128 = vunpack.c.l.b16 %v6786
        %v7129 = vunpack.c.l.b16 %v6787
        %v7130 = vunpack.c.l.b16 %v6788
        %v7131 = vunpack.c.l.b16 %v6789
        %v7132 = vunpack.c.l.b16 %v6790
        %v7133 = vunpack.c.l.b16 %v6791
        %v7134 = vunpack.c.l.b16 %v6792
        %v7135 = vunpack.c.l.b16 %v6793
        %v7136 = vunpack.c.l.b16 %v6794
        %v7137 = vunpack.c.l.b16 %v6795
        %v7138 = vunpack.c.l.b16 %v6796
        %v7139 = vunpack.c.l.b16 %v6797
        %v7140 = vunpack.c.l.b16 %v6798
        %v7141 = vunpack.c.l.b16 %v6799
        %v7142 = vunpack.c.l.b16 %v6800
        %v7143 = vunpack.c.l.b16 %v6801
        %v7144 = vunpack.c.l.b16 %v6802
        %v7145 = vunpack.c.l.b16 %v6803
        %v7146 = vunpack.c.l.b16 %v6804
        %v7147 = vunpack.c.l.b16 %v6805
        %v7148 = vunpack.c.l.b16 %v6806
        %v7149 = vunpack.c.l.b16 %v6807
        %v7150 = vunpack.c.l.b16 %v6808
        %v7151 = vunpack.c.l.b16 %v6809
        %v7152 = vunpack.c.l.b16 %v6810
        %v7153 = vunpack.c.l.b16 %v6811
        %v7154 = vunpack.c.l.b16 %v6812
        %v7155 = vunpack.c.l.b16 %v6813
        %v7156 = vunpack.c.l.b16 %v6814
        %v7157 = vunpack.c.l.b16 %v6815
        %v7158 = vunpack.c.l.b16 %v6816
        %v7159 = vunpack.c.l.b16 %v6817
        %v7160 = vunpack.c.l.b16 %v6818
        %v7161 = vunpack.c.l.b16 %v6819
        %v7162 = vunpack.c.l.b16 %v6820
        %v7163 = vunpack.c.l.b16 %v6821
        %v7164 = vunpack.c.l.b16 %v6822
        %v7165 = vunpack.c.l.b16 %v6823
        %v7166 = vunpack.c.l.b16 %v6824
        %v7167 = vunpack.c.l.b16 %v6825
        %v7168 = vunpack.c.l.b16 %v6826
        %v7169 = vunpack.c.l.b16 %v6827
        %v7170 = vunpack.c.l.b16 %v6828
        %v7171 = vunpack.c.l.b16 %v6829
        %v7172 = vunpack.c.l.b16 %v6830
        %v7173 = vunpack.c.l.b16 %v6831
        %v7174 = vunpack.c.l.b16 %v6832
        %v7175 = vunpack.c.l.b16 %v6833
        %v7176 = vunpack.c.l.b16 %v6834
        %v7177 = vunpack.c.l.b16 %v6835
        %v7178 = vunpack.c.l.b16 %v6836
        %v7179 = vunpack.c.l.b16 %v6837
        %v7180 = vunpack.c.l.b16 %v6838
        %v7181 = vunpack.c.l.b16 %v6839
        %v7182 = vunpack.c.l.b16 %v6840
        %v7183 = vunpack.c.l.b16 %v6841
        %v7184 = vunpack.c.l.b16 %v6842
        %v7185 = vunpack.c.l.b16 %v6843
        %v7186 = vunpack.c.l.b16 %v6844
        %v7187 = vunpack.c.l.b16 %v6845
        %v7188 = vunpack.c.l.b16 %v6846
        %v7189 = vunpack.c.l.b16 %v6847
        %v7190 = vunpack.c.l.b16 %v6848
        %v7191 = vunpack.c.l.b16 %v6849
        %v7192 = vunpack.c.l.b16 %v6850
        %v7193 = vunpack.c.l.b16 %v6851
        %v7194 = vunpack.c.l.b16 %v6852
        %v7195 = vunpack.c.l.b16 %v6853
        %v7196 = vunpack.c.l.b16 %v6854
        %v7197 = vunpack.c.l.b16 %v6855
        %v7198 = vunpack.c.l.b16 %v6856
        %v7199 = vunpack.c.l.b16 %v6857
        %v7200 = vunpack.c.l.b16 %v6858
        %v7201 = vunpack.c.l.b16 %v6859
        %v7202 = vunpack.c.l.b16 %v6860
        %v7203 = vunpack.c.l.b16 %v6861
        %v7204 = vunpack.c.l.b16 %v6862
        %v7205 = vunpack.c.l.b16 %v6863
        %v7206 = vunpack.c.l.b16 %v6864
        %v7207 = vunpack.c.l.b16 %v6865
        %v7208 = vunpack.c.l.b16 %v6866
        %v7209 = vunpack.c.l.b16 %v6867
        %v7210 = vunpack.c.l.b16 %v6868
        %v7211 = vunpack.c.l.b16 %v6869
        %v7212 = vunpack.c.l.b16 %v6870
        %v7213 = vunpack.c.l.b16 %v6871
        %v7214 = vunpack.c.l.b16 %v6872
        %v7215 = vunpack.c.l.b16 %v6873
        %v7216 = vunpack.c.l.b16 %v6874
        %v7217 = vunpack.c.l.b16 %v6875
        %v7218 = vunpack.c.l.b16 %v6876
        %v7219 = vunpack.c.l.b16 %v6877
        %v7220 = vunpack.c.l.b16 %v6878
        %v7221 = vunpack.c.l.b16 %v6879
        %v7222 = vunpack.c.l.b16 %v6880
        %v7223 = vunpack.c.l.b16 %v6881
        %v7224 = vunpack.c.l.b16 %v6882
        %v7225 = vunpack.c.l.b16 %v6883
        %v7226 = vunpack.c.l.b16 %v6884
        %v7227 = vunpack.c.l.b16 %v6885
        %v7228 = vunpack.c.l.b16 %v6886
        %v7229 = vunpack.c.l.b16 %v6887
        %v7230 = vunpack.c.l.b16 %v6888
        %v7231 = vunpack.c.l.b16 %v6889
        %v7232 = vunpack.c.l.b16 %v6890
        %v7233 = vunpack.c.l.b16 %v6891
        %v7234 = vunpack.c.l.b16 %v6892
        %v7235 = vunpack.c.l.b16 %v6893
        %v7236 = vunpack.c.l.b16 %v6894
        %v7237 = vunpack.c.l.b16 %v6895
        %v7238 = vunpack.c.l.b16 %v6896
        %v7239 = vunpack.c.l.b16 %v6897
        %v7240 = vunpack.c.l.b16 %v6898
        %v7241 = vunpack.c.l.b16 %v6899
        %v7242 = vunpack.c.l.b16 %v6900
        %v7243 = vunpack.c.l.b16 %v6901
        %v7244 = vunpack.c.l.b16 %v6902
        %v7245 = vunpack.c.l.b16 %v6903
        %v7246 = vunpack.c.l.b16 %v6904
        %v7247 = vunpack.c.l.b16 %v6905
        %v7248 = vunpack.c.l.b16 %v6906
        %v7249 = vunpack.c.l.b16 %v6907
        %v7250 = vunpack.c.l.b16 %v6908
        %v7251 = vunpack.c.l.b16 %v6909
        %v7252 = vunpack.c.l.b16 %v6910
        %v7253 = vunpack.c.l.b16 %v6911
        %v7254 = vunpack.c.l.b16 %v6912
        %v7255 = vunpack.c.l.b16 %v6913
        %v7256 = vunpack.c.l.b16 %v6914
        %v7257 = vunpack.c.l.b16 %v6915
        %v7258 = vunpack.c.l.b16 %v6916
        %v7259 = vunpack.c.l.b16 %v6917
        %v7260 = vunpack.c.l.b16 %v6918
        %v7261 = vunpack.c.l.b16 %v6919
        %v7262 = vunpack.c.l.b16 %v6920
        %v7263 = vunpack.c.l.b16 %v6921
        %v7264 = vpack.c.b16 %v7121, %v7120
        %v7265 = vpack.c.b16 %v7123, %v7122
        %v7266 = vpack.c.b16 %v7125, %v7124
        %v7267 = vpack.c.b16 %v7127, %v7126
        %v7268 = vpack.c.b16 %v7129, %v7128
        %v7269 = vpack.c.b16 %v7131, %v7130
        %v7270 = vpack.c.b16 %v7133, %v7132
        %v7271 = vpack.c.b16 %v7135, %v7134
        %v7272 = vpack.c.b16 %v7137, %v7136
        %v7273 = vpack.c.b16 %v7139, %v7138
        %v7274 = vpack.c.b16 %v7141, %v7140
        %v7275 = vpack.c.b16 %v7143, %v7142
        %v7276 = vpack.c.b16 %v7145, %v7144
        %v7277 = vpack.c.b16 %v7147, %v7146
        %v7278 = vpack.c.b16 %v7149, %v7148
        %v7279 = vpack.c.b16 %v7151, %v7150
        %v7280 = vpack.c.b16 %v7153, %v7152
        %v7281 = vpack.c.b16 %v7155, %v7154
        %v7282 = vpack.c.b16 %v7157, %v7156
        %v7283 = vpack.c.b16 %v7159, %v7158
        %v7284 = vpack.c.b16 %v7161, %v7160
        %v7285 = vpack.c.b16 %v7163, %v7162
        %v7286 = vpack.c.b16 %v7165, %v7164
        %v7287 = vpack.c.b16 %v7167, %v7166
        %v7288 = vpack.c.b16 %v7169, %v7168
        %v7289 = vpack.c.b16 %v7171, %v7170
        %v7290 = vpack.c.b16 %v7173, %v7172
        %v7291 = vpack.c.b16 %v7175, %v7174
        %v7292 = vpack.c.b16 %v7177, %v7176
        %v7293 = vpack.c.b16 %v7179, %v7178
        %v7294 = vpack.c.b16 %v7181, %v7180
        %v7295 = vpack.c.b16 %v7183, %v7182
        %v7296 = vpack.c.b16 %v7185, %v7184
        %v7297 = vpack.c.b16 %v7187, %v7186
        %v7298 = vpack.c.b16 %v7189, %v7188
        %v7299 = vpack.c.b16 %v7191, %v7190
        %v7300 = vpack.c.b16 %v7193, %v7192
        %v7301 = vpack.c.b16 %v7195, %v7194
        %v7302 = vpack.c.b16 %v7197, %v7196
        %v7303 = vpack.c.b16 %v7199, %v7198
        %v7304 = vpack.c.b16 %v7201, %v7200
        %v7305 = vpack.c.b16 %v7203, %v7202
        %v7306 = vpack.c.b16 %v7205, %v7204
        %v7307 = vpack.c.b16 %v7207, %v7206
        %v7308 = vpack.c.b16 %v7209, %v7208
        %v7309 = vpack.c.b16 %v7211, %v7210
        %v7310 = vpack.c.b16 %v7213, %v7212
        %v7311 = vpack.c.b16 %v7215, %v7214
        %v7312 = vpack.c.b16 %v7217, %v7216
        %v7313 = vpack.c.b16 %v7219, %v7218
        %v7314 = vpack.c.b16 %v7221, %v7220
        %v7315 = vpack.c.b16 %v7223, %v7222
        %v7316 = vpack.c.b16 %v7225, %v7224
        %v7317 = vpack.c.b16 %v7227, %v7226
        %v7318 = vpack.c.b16 %v7229, %v7228
        %v7319 = vpack.c.b16 %v7231, %v7230
        %v7320 = vpack.c.b16 %v7233, %v7232
        %v7321 = vpack.c.b16 %v7235, %v7234
        %v7322 = vpack.c.b16 %v7237, %v7236
        %v7323 = vpack.c.b16 %v7239, %v7238
        %v7324 = vpack.c.b16 %v7241, %v7240
        %v7325 = vpack.c.b16 %v7243, %v7242
        %v7326 = vpack.c.b16 %v7245, %v7244
        %v7327 = vpack.c.b16 %v7247, %v7246
        %v7328 = vpack.c.b16 %v7249, %v7248
        %v7329 = vpack.c.b16 %v7251, %v7250
        %v7330 = vpack.c.b16 %v7253, %v7252
        %v7331 = vpack.c.b16 %v7255, %v7254
        %v7332 = vpack.c.b16 %v7257, %v7256
        %v7333 = vpack.c.b16 %v7259, %v7258
        %v7334 = vpack.c.b16 %v7261, %v7260
        %v7335 = vpack.c.b16 %v7263, %v7262
        %7408 = vmatpush.bf16.msra.mxu0 %v7271
        %7409 = vmatpush.bf16.msra.mxu0 %v7270
        %7410 = vmatpush.bf16.msra.mxu0 %v7269
        %7411 = vmatpush.bf16.msra.mxu0 %v7268
        %7412 = vmatpush.bf16.msra.mxu0 %v7267
        %7413 = vmatpush.bf16.msra.mxu0 %v7266
        %7414 = vmatpush.bf16.msra.mxu0 %v7265
        %7415 = vmatpush.bf16.msra.mxu0 %v7264
        %7416 = vmatmul.bf16.gmra.mxu0 %v6922
        %v7417 = vpop.f32.mrf.mxu0
        %v7418 = vadd.f32 0.0, %v7417
        %v7419 = vpop.f32.mrf.mxu0
        %v7420 = vadd.f32 0.0, %v7419
        %7421 = vmatmul.bf16.gmra.mxu0 %v6928
        %v7422 = vpop.f32.mrf.mxu0
        %v7423 = vadd.f32 0.0, %v7422
        %v7424 = vpop.f32.mrf.mxu0
        %v7425 = vadd.f32 0.0, %v7424
        %7426 = vmatmul.bf16.gmra.mxu0 %v6934
        %v7427 = vpop.f32.mrf.mxu0
        %v7428 = vadd.f32 0.0, %v7427
        %v7429 = vpop.f32.mrf.mxu0
        %v7430 = vadd.f32 0.0, %v7429
        %7431 = vmatmul.bf16.gmra.mxu0 %v6940
        %v7432 = vpop.f32.mrf.mxu0
        %v7433 = vadd.f32 0.0, %v7432
        %v7434 = vpop.f32.mrf.mxu0
        %v7435 = vadd.f32 0.0, %v7434
        %7436 = vdwg.mxu0
        %7437 = vmatpush.bf16.msra.mxu0 %v7279
        %7438 = vmatpush.bf16.msra.mxu0 %v7278
        %7439 = vmatpush.bf16.msra.mxu0 %v7277
        %7440 = vmatpush.bf16.msra.mxu0 %v7276
        %7441 = vmatpush.bf16.msra.mxu0 %v7275
        %7442 = vmatpush.bf16.msra.mxu0 %v7274
        %7443 = vmatpush.bf16.msra.mxu0 %v7273
        %7444 = vmatpush.bf16.msra.mxu0 %v7272
        %7445 = vmatmul.bf16.gmra.mxu0 %v6923
        %v7446 = vpop.f32.mrf.mxu0
        %v7447 = vadd.f32 %v7418, %v7446
        %v7448 = vpop.f32.mrf.mxu0
        %v7449 = vadd.f32 %v7420, %v7448
        %7450 = vmatmul.bf16.gmra.mxu0 %v6929
        %v7451 = vpop.f32.mrf.mxu0
        %v7452 = vadd.f32 %v7423, %v7451
        %v7453 = vpop.f32.mrf.mxu0
        %v7454 = vadd.f32 %v7425, %v7453
        %7455 = vmatmul.bf16.gmra.mxu0 %v6935
        %v7456 = vpop.f32.mrf.mxu0
        %v7457 = vadd.f32 %v7428, %v7456
        %v7458 = vpop.f32.mrf.mxu0
        %v7459 = vadd.f32 %v7430, %v7458
        %7460 = vmatmul.bf16.gmra.mxu0 %v6941
        %v7461 = vpop.f32.mrf.mxu0
        %v7462 = vadd.f32 %v7433, %v7461
        %v7463 = vpop.f32.mrf.mxu0
        %v7464 = vadd.f32 %v7435, %v7463
        %7465 = vdwg.mxu0
        %7466 = vmatpush.bf16.msra.mxu0 %v7287
        %7467 = vmatpush.bf16.msra.mxu0 %v7286
        %7468 = vmatpush.bf16.msra.mxu0 %v7285
        %7469 = vmatpush.bf16.msra.mxu0 %v7284
        %7470 = vmatpush.bf16.msra.mxu0 %v7283
        %7471 = vmatpush.bf16.msra.mxu0 %v7282
        %7472 = vmatpush.bf16.msra.mxu0 %v7281
        %7473 = vmatpush.bf16.msra.mxu0 %v7280
        %7474 = vmatmul.bf16.gmra.mxu0 %v6924
        %v7475 = vpop.f32.mrf.mxu0
        %v7476 = vadd.f32 %v7447, %v7475
        %v7477 = vpop.f32.mrf.mxu0
        %v7478 = vadd.f32 %v7449, %v7477
        %7479 = vmatmul.bf16.gmra.mxu0 %v6930
        %v7480 = vpop.f32.mrf.mxu0
        %v7481 = vadd.f32 %v7452, %v7480
        %v7482 = vpop.f32.mrf.mxu0
        %v7483 = vadd.f32 %v7454, %v7482
        %7484 = vmatmul.bf16.gmra.mxu0 %v6936
        %v7485 = vpop.f32.mrf.mxu0
        %v7486 = vadd.f32 %v7457, %v7485
        %v7487 = vpop.f32.mrf.mxu0
        %v7488 = vadd.f32 %v7459, %v7487
        %7489 = vmatmul.bf16.gmra.mxu0 %v6942
        %v7490 = vpop.f32.mrf.mxu0
        %v7491 = vadd.f32 %v7462, %v7490
        %v7492 = vpop.f32.mrf.mxu0
        %v7493 = vadd.f32 %v7464, %v7492
        %7494 = vdwg.mxu0
        %7495 = vmatpush.bf16.msra.mxu0 %v7295
        %7496 = vmatpush.bf16.msra.mxu0 %v7294
        %7497 = vmatpush.bf16.msra.mxu0 %v7293
        %7498 = vmatpush.bf16.msra.mxu0 %v7292
        %7499 = vmatpush.bf16.msra.mxu0 %v7291
        %7500 = vmatpush.bf16.msra.mxu0 %v7290
        %7501 = vmatpush.bf16.msra.mxu0 %v7289
        %7502 = vmatpush.bf16.msra.mxu0 %v7288
        %7503 = vmatmul.bf16.gmra.mxu0 %v6925
        %v7504 = vpop.f32.mrf.mxu0
        %v7505 = vadd.f32 %v7476, %v7504
        %v7506 = vpop.f32.mrf.mxu0
        %v7507 = vadd.f32 %v7478, %v7506
        %7508 = vmatmul.bf16.gmra.mxu0 %v6931
        %v7509 = vpop.f32.mrf.mxu0
        %v7510 = vadd.f32 %v7481, %v7509
        %v7511 = vpop.f32.mrf.mxu0
        %v7512 = vadd.f32 %v7483, %v7511
        %7513 = vmatmul.bf16.gmra.mxu0 %v6937
        %v7514 = vpop.f32.mrf.mxu0
        %v7515 = vadd.f32 %v7486, %v7514
        %v7516 = vpop.f32.mrf.mxu0
        %v7517 = vadd.f32 %v7488, %v7516
        %7518 = vmatmul.bf16.gmra.mxu0 %v6943
        %v7519 = vpop.f32.mrf.mxu0
        %v7520 = vadd.f32 %v7491, %v7519
        %v7521 = vpop.f32.mrf.mxu0
        %v7522 = vadd.f32 %v7493, %v7521
        %7523 = vdwg.mxu0
        %7524 = vmatpush.bf16.msra.mxu0 %v7303
        %7525 = vmatpush.bf16.msra.mxu0 %v7302
        %7526 = vmatpush.bf16.msra.mxu0 %v7301
        %7527 = vmatpush.bf16.msra.mxu0 %v7300
        %7528 = vmatpush.bf16.msra.mxu0 %v7299
        %7529 = vmatpush.bf16.msra.mxu0 %v7298
        %7530 = vmatpush.bf16.msra.mxu0 %v7297
        %7531 = vmatpush.bf16.msra.mxu0 %v7296
        %7532 = vmatmul.bf16.gmra.mxu0 %v6926
        %v7533 = vpop.f32.mrf.mxu0
        %v7534 = vadd.f32 %v7505, %v7533
        %v7535 = vpop.f32.mrf.mxu0
        %v7536 = vadd.f32 %v7507, %v7535
        %7537 = vmatmul.bf16.gmra.mxu0 %v6932
        %v7538 = vpop.f32.mrf.mxu0
        %v7539 = vadd.f32 %v7510, %v7538
        %v7540 = vpop.f32.mrf.mxu0
        %v7541 = vadd.f32 %v7512, %v7540
        %7542 = vmatmul.bf16.gmra.mxu0 %v6938
        %v7543 = vpop.f32.mrf.mxu0
        %v7544 = vadd.f32 %v7515, %v7543
        %v7545 = vpop.f32.mrf.mxu0
        %v7546 = vadd.f32 %v7517, %v7545
        %7547 = vmatmul.bf16.gmra.mxu0 %v6944
        %v7548 = vpop.f32.mrf.mxu0
        %v7549 = vadd.f32 %v7520, %v7548
        %v7550 = vpop.f32.mrf.mxu0
        %v7551 = vadd.f32 %v7522, %v7550
        %7552 = vdwg.mxu0
        %7553 = vmatpush.bf16.msra.mxu0 %v7311
        %7554 = vmatpush.bf16.msra.mxu0 %v7310
        %7555 = vmatpush.bf16.msra.mxu0 %v7309
        %7556 = vmatpush.bf16.msra.mxu0 %v7308
        %7557 = vmatpush.bf16.msra.mxu0 %v7307
        %7558 = vmatpush.bf16.msra.mxu0 %v7306
        %7559 = vmatpush.bf16.msra.mxu0 %v7305
        %7560 = vmatpush.bf16.msra.mxu0 %v7304
        %7561 = vmatmul.bf16.gmra.mxu0 %v6927
        %v7562 = vpop.f32.mrf.mxu0
        %v7563 = vadd.f32 %v7534, %v7562
        %v7564 = vpop.f32.mrf.mxu0
        %v7565 = vadd.f32 %v7536, %v7564
        %7566 = vmatmul.bf16.gmra.mxu0 %v6933
        %v7567 = vpop.f32.mrf.mxu0
        %v7568 = vadd.f32 %v7539, %v7567
        %v7569 = vpop.f32.mrf.mxu0
        %v7570 = vadd.f32 %v7541, %v7569
        %7571 = vmatmul.bf16.gmra.mxu0 %v6939
        %v7572 = vpop.f32.mrf.mxu0
        %v7573 = vadd.f32 %v7544, %v7572
        %v7574 = vpop.f32.mrf.mxu0
        %v7575 = vadd.f32 %v7546, %v7574
        %7576 = vmatmul.bf16.gmra.mxu0 %v6945
        %v7577 = vpop.f32.mrf.mxu0
        %v7578 = vadd.f32 %v7549, %v7577
        %v7579 = vpop.f32.mrf.mxu0
        %v7580 = vadd.f32 %v7551, %v7579
        %7581 = vdwg.mxu0
        %7582 = vmatpush.bf16.msra.mxu0 %v7319
        %7583 = vmatpush.bf16.msra.mxu0 %v7318
        %7584 = vmatpush.bf16.msra.mxu0 %v7317
        %7585 = vmatpush.bf16.msra.mxu0 %v7316
        %7586 = vmatpush.bf16.msra.mxu0 %v7315
        %7587 = vmatpush.bf16.msra.mxu0 %v7314
        %7588 = vmatpush.bf16.msra.mxu0 %v7313
        %7589 = vmatpush.bf16.msra.mxu0 %v7312
        %7590 = vmatmul.bf16.gmra.mxu0 %v6928
        %v7591 = vpop.f32.mrf.mxu0
        %v7592 = vadd.f32 %v7563, %v7591
        %v7593 = vpop.f32.mrf.mxu0
        %v7594 = vadd.f32 %v7565, %v7593
        %7595 = vmatmul.bf16.gmra.mxu0 %v6934
        %v7596 = vpop.f32.mrf.mxu0
        %v7597 = vadd.f32 %v7568, %v7596
        %v7598 = vpop.f32.mrf.mxu0
        %v7599 = vadd.f32 %v7570, %v7598
        %7600 = vmatmul.bf16.gmra.mxu0 %v6940
        %v7601 = vpop.f32.mrf.mxu0
        %v7602 = vadd.f32 %v7573, %v7601
        %v7603 = vpop.f32.mrf.mxu0
        %v7604 = vadd.f32 %v7575, %v7603
        %7605 = vmatmul.bf16.gmra.mxu0 %v6946
        %v7606 = vpop.f32.mrf.mxu0
        %v7607 = vadd.f32 %v7578, %v7606
        %v7608 = vpop.f32.mrf.mxu0
        %v7609 = vadd.f32 %v7580, %v7608
        %7610 = vdwg.mxu0
        %7611 = vmatpush.bf16.msra.mxu0 %v7327
        %7612 = vmatpush.bf16.msra.mxu0 %v7326
        %7613 = vmatpush.bf16.msra.mxu0 %v7325
        %7614 = vmatpush.bf16.msra.mxu0 %v7324
        %7615 = vmatpush.bf16.msra.mxu0 %v7323
        %7616 = vmatpush.bf16.msra.mxu0 %v7322
        %7617 = vmatpush.bf16.msra.mxu0 %v7321
        %7618 = vmatpush.bf16.msra.mxu0 %v7320
        %7619 = vmatmul.bf16.gmra.mxu0 %v6929
        %v7620 = vpop.f32.mrf.mxu0
        %v7621 = vadd.f32 %v7592, %v7620
        %v7622 = vpop.f32.mrf.mxu0
        %v7623 = vadd.f32 %v7594, %v7622
        %7624 = vmatmul.bf16.gmra.mxu0 %v6935
        %v7625 = vpop.f32.mrf.mxu0
        %v7626 = vadd.f32 %v7597, %v7625
        %v7627 = vpop.f32.mrf.mxu0
        %v7628 = vadd.f32 %v7599, %v7627
        %7629 = vmatmul.bf16.gmra.mxu0 %v6941
        %v7630 = vpop.f32.mrf.mxu0
        %v7631 = vadd.f32 %v7602, %v7630
        %v7632 = vpop.f32.mrf.mxu0
        %v7633 = vadd.f32 %v7604, %v7632
        %7634 = vmatmul.bf16.gmra.mxu0 %v6947
        %v7635 = vpop.f32.mrf.mxu0
        %v7636 = vadd.f32 %v7607, %v7635
        %v7637 = vpop.f32.mrf.mxu0
        %v7638 = vadd.f32 %v7609, %v7637
        %7639 = vdwg.mxu0
        %7640 = vmatpush.bf16.msra.mxu0 %v7335
        %7641 = vmatpush.bf16.msra.mxu0 %v7334
        %7642 = vmatpush.bf16.msra.mxu0 %v7333
        %7643 = vmatpush.bf16.msra.mxu0 %v7332
        %7644 = vmatpush.bf16.msra.mxu0 %v7331
        %7645 = vmatpush.bf16.msra.mxu0 %v7330
        %7646 = vmatpush.bf16.msra.mxu0 %v7329
        %7647 = vmatpush.bf16.msra.mxu0 %v7328
        %7648 = vmatmul.bf16.gmra.mxu0 %v6930
        %v7649 = vpop.f32.mrf.mxu0
        %v7650 = vadd.f32 %v7621, %v7649
        %v7651 = vpop.f32.mrf.mxu0
        %v7652 = vadd.f32 %v7623, %v7651
        %7653 = vmatmul.bf16.gmra.mxu0 %v6936
        %v7654 = vpop.f32.mrf.mxu0
        %v7655 = vadd.f32 %v7626, %v7654
        %v7656 = vpop.f32.mrf.mxu0
        %v7657 = vadd.f32 %v7628, %v7656
        %7658 = vmatmul.bf16.gmra.mxu0 %v6942
        %v7659 = vpop.f32.mrf.mxu0
        %v7660 = vadd.f32 %v7631, %v7659
        %v7661 = vpop.f32.mrf.mxu0
        %v7662 = vadd.f32 %v7633, %v7661
        %7663 = vmatmul.bf16.gmra.mxu0 %v6948
        %v7664 = vpop.f32.mrf.mxu0
        %v7665 = vadd.f32 %v7636, %v7664
        %v7666 = vpop.f32.mrf.mxu0
        %v7667 = vadd.f32 %v7638, %v7666
        %7668 = vdwg.mxu0
        %s7669 = sld [smem:[#allocation4 + $0x5]]
        %vm7670 = vcmp.ge.f32.partialorder %v7650, 0.0
        %vm7671 = vcmp.ge.f32.partialorder %v7652, 0.0
        %vm7672 = vcmp.ge.f32.partialorder %v7655, 0.0
        %vm7673 = vcmp.ge.f32.partialorder %v7657, 0.0
        %vm7674 = vcmp.ge.f32.partialorder %v7660, 0.0
        %vm7675 = vcmp.ge.f32.partialorder %v7662, 0.0
        %vm7676 = vcmp.ge.f32.partialorder %v7665, 0.0
        %vm7677 = vcmp.ge.f32.partialorder %v7667, 0.0
        %v7678 = vstv %s7669
        %v7679 = vmul.f32 %v7678, %v7650
        %v7680 = vmul.f32 %v7678, %v7652
        %v7681 = vmul.f32 %v7678, %v7655
        %v7682 = vmul.f32 %v7678, %v7657
        %v7683 = vmul.f32 %v7678, %v7660
        %v7684 = vmul.f32 %v7678, %v7662
        %v7685 = vmul.f32 %v7678, %v7665
        %v7686 = vmul.f32 %v7678, %v7667
        %v7687 = vsel %vm7670, %v7650, %v7679
        %v7688 = vsel %vm7671, %v7652, %v7680
        %v7689 = vsel %vm7672, %v7655, %v7681
        %v7690 = vsel %vm7673, %v7657, %v7682
        %v7691 = vsel %vm7674, %v7660, %v7683
        %v7692 = vsel %vm7675, %v7662, %v7684
        %v7693 = vsel %vm7676, %v7665, %v7685
        %v7694 = vsel %vm7677, %v7667, %v7686
        %v7695 = vld [vmem:[#allocation3] sm:$0xff]
        %v7696 = vld [vmem:[#allocation3 + $0x8] sm:$0xff]
        %v7697 = vld [vmem:[#allocation3 + $0x10] sm:$0xff]
        %v7698 = vld [vmem:[#allocation3 + $0x18] sm:$0xff]
        %v7699 = vld [vmem:[#allocation3 + $0x20] sm:$0xff]
        %v7700 = vld [vmem:[#allocation3 + $0x28] sm:$0xff]
        %v7701 = vld [vmem:[#allocation3 + $0x30] sm:$0xff]
        %v7702 = vld [vmem:[#allocation3 + $0x38] sm:$0xff]
        %v7703 = vadd.f32 %v7687, %v7695
        %v7704 = vadd.f32 %v7688, %v7696
        %v7705 = vadd.f32 %v7689, %v7697
        %v7706 = vadd.f32 %v7690, %v7698
        %v7707 = vadd.f32 %v7691, %v7699
        %v7708 = vadd.f32 %v7692, %v7700
        %v7709 = vadd.f32 %v7693, %v7701
        %v7710 = vadd.f32 %v7694, %v7702
        %7711 = vst [vmem:[#allocation3] sm:$0xff] %v7703
        %7712 = vst [vmem:[#allocation3 + $0x8] sm:$0xff] %v7704
        %7713 = vst [vmem:[#allocation3 + $0x10] sm:$0xff] %v7705
        %7714 = vst [vmem:[#allocation3 + $0x18] sm:$0xff] %v7706
        %7715 = vst [vmem:[#allocation3 + $0x20] sm:$0xff] %v7707
        %7716 = vst [vmem:[#allocation3 + $0x28] sm:$0xff] %v7708
        %7717 = vst [vmem:[#allocation3 + $0x30] sm:$0xff] %v7709
        %7718 = vst [vmem:[#allocation3 + $0x38] sm:$0xff] %v7710
        %v7719 = vpack.c.bf16 %v7703, %v7703
        %v7720 = vpack.c.bf16 %v7704, %v7704
        %v7721 = vpack.c.bf16 %v7705, %v7705
        %v7722 = vpack.c.bf16 %v7706, %v7706
        %v7723 = vpack.c.bf16 %v7707, %v7707
        %v7724 = vpack.c.bf16 %v7708, %v7708
        %v7725 = vpack.c.bf16 %v7709, %v7709
        %v7726 = vpack.c.bf16 %v7710, %v7710
        %v7728 = vshrl.u32 %v7719, 16
        %v7730 = vrot.slane %v7728, 7
        %v7731 = vshll.u32 %v7719, 16
        %v7733 = vor.u32 %v7730, %v7731
        %v7734 = vrot.slane %v7730, 4
        %v7736 = vshrl.u32 %v7720, 16
        %v7738 = vrot.slane %v7736, 7
        %v7739 = vshll.u32 %v7720, 16
        %v7741 = vor.u32 %v7738, %v7739
        %v7742 = vrot.slane %v7738, 4
        %v7744 = vshrl.u32 %v7721, 16
        %v7746 = vrot.slane %v7744, 7
        %v7747 = vshll.u32 %v7721, 16
        %v7749 = vor.u32 %v7746, %v7747
        %v7750 = vrot.slane %v7746, 4
        %v7752 = vshrl.u32 %v7722, 16
        %v7754 = vrot.slane %v7752, 7
        %v7755 = vshll.u32 %v7722, 16
        %v7757 = vor.u32 %v7754, %v7755
        %v7758 = vrot.slane %v7754, 4
        %v7760 = vshrl.u32 %v7723, 16
        %v7762 = vrot.slane %v7760, 7
        %v7763 = vshll.u32 %v7723, 16
        %v7765 = vor.u32 %v7762, %v7763
        %v7766 = vrot.slane %v7762, 4
        %v7768 = vshrl.u32 %v7724, 16
        %v7770 = vrot.slane %v7768, 7
        %v7771 = vshll.u32 %v7724, 16
        %v7773 = vor.u32 %v7770, %v7771
        %v7774 = vrot.slane %v7770, 4
        %v7776 = vshrl.u32 %v7725, 16
        %v7778 = vrot.slane %v7776, 7
        %v7779 = vshll.u32 %v7725, 16
        %v7781 = vor.u32 %v7778, %v7779
        %v7782 = vrot.slane %v7778, 4
        %v7784 = vshrl.u32 %v7726, 16
        %v7786 = vrot.slane %v7784, 7
        %v7787 = vshll.u32 %v7726, 16
        %v7789 = vor.u32 %v7786, %v7787
        %v7790 = vrot.slane %v7786, 4
        %v7807 = vld [vmem:[%s389] sm:$0xf]
        %v7808 = vsel %vm391, %v7733, %v7807
        %7809 = vst [vmem:[%s389] sm:$0xf] %v7808
        %v7810 = vld [vmem:[%s389 + $0x4] sm:$0x1]
        %v7811 = vsel %vm230, %v7734, %v7810
        %7812 = vst [vmem:[%s389 + $0x4] sm:$0x1] %v7811
        %v7813 = vld [vmem:[%s389 + $0x8] sm:$0xf]
        %v7814 = vsel %vm391, %v7741, %v7813
        %7815 = vst [vmem:[%s389 + $0x8] sm:$0xf] %v7814
        %v7816 = vld [vmem:[%s389 + $0xc] sm:$0x1]
        %v7817 = vsel %vm230, %v7742, %v7816
        %7818 = vst [vmem:[%s389 + $0xc] sm:$0x1] %v7817
        %v7819 = vld [vmem:[%s389 + $0x10] sm:$0xf]
        %v7820 = vsel %vm391, %v7749, %v7819
        %7821 = vst [vmem:[%s389 + $0x10] sm:$0xf] %v7820
        %v7822 = vld [vmem:[%s389 + $0x14] sm:$0x1]
        %v7823 = vsel %vm230, %v7750, %v7822
        %7824 = vst [vmem:[%s389 + $0x14] sm:$0x1] %v7823
        %v7825 = vld [vmem:[%s389 + $0x18] sm:$0xf]
        %v7826 = vsel %vm391, %v7757, %v7825
        %7827 = vst [vmem:[%s389 + $0x18] sm:$0xf] %v7826
        %v7828 = vld [vmem:[%s389 + $0x1c] sm:$0x1]
        %v7829 = vsel %vm230, %v7758, %v7828
        %7830 = vst [vmem:[%s389 + $0x1c] sm:$0x1] %v7829
        %v7831 = vld [vmem:[%s389 + $0x20] sm:$0xf]
        %v7832 = vsel %vm391, %v7765, %v7831
        %7833 = vst [vmem:[%s389 + $0x20] sm:$0xf] %v7832
        %v7834 = vld [vmem:[%s389 + $0x24] sm:$0x1]
        %v7835 = vsel %vm230, %v7766, %v7834
        %7836 = vst [vmem:[%s389 + $0x24] sm:$0x1] %v7835
        %v7837 = vld [vmem:[%s389 + $0x28] sm:$0xf]
        %v7838 = vsel %vm391, %v7773, %v7837
        %7839 = vst [vmem:[%s389 + $0x28] sm:$0xf] %v7838
        %v7840 = vld [vmem:[%s389 + $0x2c] sm:$0x1]
        %v7841 = vsel %vm230, %v7774, %v7840
        %7842 = vst [vmem:[%s389 + $0x2c] sm:$0x1] %v7841
        %v7843 = vld [vmem:[%s389 + $0x30] sm:$0xf]
        %v7844 = vsel %vm391, %v7781, %v7843
        %7845 = vst [vmem:[%s389 + $0x30] sm:$0xf] %v7844
        %v7846 = vld [vmem:[%s389 + $0x34] sm:$0x1]
        %v7847 = vsel %vm230, %v7782, %v7846
        %7848 = vst [vmem:[%s389 + $0x34] sm:$0x1] %v7847
        %v7849 = vld [vmem:[%s389 + $0x38] sm:$0xf]
        %v7850 = vsel %vm391, %v7789, %v7849
        %7851 = vst [vmem:[%s389 + $0x38] sm:$0xf] %v7850
        %v7852 = vld [vmem:[%s389 + $0x3c] sm:$0x1]
        %v7853 = vsel %vm230, %v7790, %v7852
        %7854 = vst [vmem:[%s389 + $0x3c] sm:$0x1] %v7853
        %v7855 = vld [vmem:[#allocation2] sm:$0xf]
        %v7856 = vld [vmem:[#allocation2 + $0x4] sm:$0x1]
        %v7857 = vld [vmem:[#allocation2 + $0x8] sm:$0xf]
        %v7858 = vld [vmem:[#allocation2 + $0xc] sm:$0x1]
        %v7859 = vld [vmem:[#allocation2 + $0x10] sm:$0xf]
        %v7860 = vld [vmem:[#allocation2 + $0x14] sm:$0x1]
        %v7861 = vld [vmem:[#allocation2 + $0x18] sm:$0xf]
        %v7862 = vld [vmem:[#allocation2 + $0x1c] sm:$0x1]
        %v7863 = vld [vmem:[#allocation2 + $0x20] sm:$0xf]
        %v7864 = vld [vmem:[#allocation2 + $0x24] sm:$0x1]
        %v7865 = vld [vmem:[#allocation2 + $0x28] sm:$0xf]
        %v7866 = vld [vmem:[#allocation2 + $0x2c] sm:$0x1]
        %v7867 = vld [vmem:[#allocation2 + $0x30] sm:$0xf]
        %v7868 = vld [vmem:[#allocation2 + $0x34] sm:$0x1]
        %v7869 = vld [vmem:[#allocation2 + $0x38] sm:$0xf]
        %v7870 = vld [vmem:[#allocation2 + $0x3c] sm:$0x1]
        %v7871 = vld [vmem:[#allocation2 + $0x40] sm:$0xf]
        %v7872 = vld [vmem:[#allocation2 + $0x44] sm:$0x1]
        %v7873 = vld [vmem:[#allocation2 + $0x48] sm:$0xf]
        %v7874 = vld [vmem:[#allocation2 + $0x4c] sm:$0x1]
        %v7891 = vunpack.c.l.b16 %v7855
        %v7892 = vunpack.c.l.b16 %v7856
        %v7893 = vunpack.c.l.b16 %v7857
        %v7894 = vunpack.c.l.b16 %v7858
        %v7895 = vunpack.c.l.b16 %v7859
        %v7896 = vunpack.c.l.b16 %v7860
        %v7897 = vunpack.c.l.b16 %v7861
        %v7898 = vunpack.c.l.b16 %v7862
        %v7899 = vunpack.c.l.b16 %v7863
        %v7900 = vunpack.c.l.b16 %v7864
        %v7901 = vunpack.c.l.b16 %v7865
        %v7902 = vunpack.c.l.b16 %v7866
        %v7903 = vunpack.c.l.b16 %v7867
        %v7904 = vunpack.c.l.b16 %v7868
        %v7905 = vunpack.c.l.b16 %v7869
        %v7906 = vunpack.c.l.b16 %v7870
        %v7907 = vpack.c.b16 %v7892, %v7891
        %v7908 = vpack.c.b16 %v7894, %v7893
        %v7909 = vpack.c.b16 %v7896, %v7895
        %v7910 = vpack.c.b16 %v7898, %v7897
        %v7911 = vpack.c.b16 %v7900, %v7899
        %v7912 = vpack.c.b16 %v7902, %v7901
        %v7913 = vpack.c.b16 %v7904, %v7903
        %v7914 = vpack.c.b16 %v7906, %v7905
        %v7916 = vshrl.u32 %v7907, 16
        %v7918 = vshll.u32 %v7907, 16
        %v7920 = vrot.slane %v7918, 1
        %v7921 = vor.u32 %v7916, %v7920
        %v7923 = vshrl.u32 %v7908, 16
        %v7925 = vshll.u32 %v7908, 16
        %v7927 = vrot.slane %v7925, 1
        %v7928 = vor.u32 %v7923, %v7927
        %v7930 = vshrl.u32 %v7909, 16
        %v7932 = vshll.u32 %v7909, 16
        %v7934 = vrot.slane %v7932, 1
        %v7935 = vor.u32 %v7930, %v7934
        %v7937 = vshrl.u32 %v7910, 16
        %v7939 = vshll.u32 %v7910, 16
        %v7941 = vrot.slane %v7939, 1
        %v7942 = vor.u32 %v7937, %v7941
        %v7944 = vshrl.u32 %v7911, 16
        %v7946 = vshll.u32 %v7911, 16
        %v7948 = vrot.slane %v7946, 1
        %v7949 = vor.u32 %v7944, %v7948
        %v7951 = vshrl.u32 %v7912, 16
        %v7953 = vshll.u32 %v7912, 16
        %v7955 = vrot.slane %v7953, 1
        %v7956 = vor.u32 %v7951, %v7955
        %v7958 = vshrl.u32 %v7913, 16
        %v7960 = vshll.u32 %v7913, 16
        %v7962 = vrot.slane %v7960, 1
        %v7963 = vor.u32 %v7958, %v7962
        %v7965 = vshrl.u32 %v7914, 16
        %v7967 = vshll.u32 %v7914, 16
        %v7969 = vrot.slane %v7967, 1
        %v7970 = vor.u32 %v7965, %v7969
        %v7971 = vrot.slane %v7907, 1
        %v7972 = vrot.slane %v7908, 1
        %v7973 = vrot.slane %v7909, 1
        %v7974 = vrot.slane %v7910, 1
        %v7975 = vrot.slane %v7911, 1
        %v7976 = vrot.slane %v7912, 1
        %v7977 = vrot.slane %v7913, 1
        %v7978 = vrot.slane %v7914, 1
        %v7981 = vunpack.c.l.b16 %v7871
        %v7982 = vunpack.c.l.b16 %v7872
        %v7983 = vpack.c.b16 %v7982, %v7981
        %v7985 = vshrl.u32 %v7983, 16
        %v7987 = vshll.u32 %v7983, 16
        %v7989 = vrot.slane %v7987, 1
        %v7990 = vor.u32 %v7985, %v7989
        %v7991 = vrot.slane %v7983, 1
        %v7994 = vunpack.c.l.b16 %v7873
        %v7995 = vunpack.c.l.b16 %v7874
        %v7996 = vpack.c.b16 %v7995, %v7994
        %v7998 = vshrl.u32 %v7996, 16
        %v8000 = vshll.u32 %v7996, 16
        %v8002 = vrot.slane %v8000, 1
        %v8003 = vor.u32 %v7998, %v8002
        %v8004 = vrot.slane %v7996, 1
        %v8005 = vunpack.c.l.b16 %v7921
        %v8006 = vunpack.c.l.b16 %v7971
        %v8007 = vunpack.c.l.b16 %v7928
        %v8008 = vunpack.c.l.b16 %v7972
        %v8009 = vunpack.c.l.b16 %v7935
        %v8010 = vunpack.c.l.b16 %v7973
        %v8011 = vunpack.c.l.b16 %v7942
        %v8012 = vunpack.c.l.b16 %v7974
        %v8013 = vunpack.c.l.b16 %v7949
        %v8014 = vunpack.c.l.b16 %v7975
        %v8015 = vunpack.c.l.b16 %v7956
        %v8016 = vunpack.c.l.b16 %v7976
        %v8017 = vunpack.c.l.b16 %v7963
        %v8018 = vunpack.c.l.b16 %v7977
        %v8019 = vunpack.c.l.b16 %v7970
        %v8020 = vunpack.c.l.b16 %v7978
        %v8021 = vunpack.c.l.b16 %v7990
        %v8022 = vunpack.c.l.b16 %v7991
        %v8023 = vunpack.c.l.b16 %v8003
        %v8024 = vunpack.c.l.b16 %v8004
        %s8025 = scalar_lea.vmem [#allocation9], 3456
        %v8026 = vld [vmem:[%s8025] sm:$0xf]
        %v8027 = vld [vmem:[%s8025 + $0x4] sm:$0xf]
        %v8028 = vld [vmem:[%s8025 + $0x8] sm:$0xf]
        %v8029 = vld [vmem:[%s8025 + $0xc] sm:$0xf]
        %v8030 = vld [vmem:[%s8025 + $0x10] sm:$0xf]
        %v8031 = vld [vmem:[%s8025 + $0x14] sm:$0xf]
        %v8032 = vld [vmem:[%s8025 + $0x18] sm:$0xf]
        %v8033 = vld [vmem:[%s8025 + $0x1c] sm:$0xf]
        %v8034 = vld [vmem:[%s8025 + $0x20] sm:$0xf]
        %v8035 = vld [vmem:[%s8025 + $0x24] sm:$0xf]
        %v8036 = vld [vmem:[%s8025 + $0x28] sm:$0xf]
        %v8037 = vld [vmem:[%s8025 + $0x2c] sm:$0xf]
        %v8038 = vld [vmem:[%s8025 + $0x30] sm:$0xf]
        %v8039 = vld [vmem:[%s8025 + $0x34] sm:$0xf]
        %v8040 = vld [vmem:[%s8025 + $0x38] sm:$0xf]
        %v8041 = vld [vmem:[%s8025 + $0x3c] sm:$0xf]
        %v8042 = vld [vmem:[%s8025 + $0x40] sm:$0xf]
        %v8043 = vld [vmem:[%s8025 + $0x44] sm:$0xf]
        %v8044 = vld [vmem:[%s8025 + $0x48] sm:$0xf]
        %v8045 = vld [vmem:[%s8025 + $0x4c] sm:$0xf]
        %v8046 = vld [vmem:[%s8025 + $0x50] sm:$0xf]
        %v8047 = vld [vmem:[%s8025 + $0x54] sm:$0xf]
        %v8048 = vld [vmem:[%s8025 + $0x58] sm:$0xf]
        %v8049 = vld [vmem:[%s8025 + $0x5c] sm:$0xf]
        %v8050 = vld [vmem:[%s8025 + $0x60] sm:$0xf]
        %v8051 = vld [vmem:[%s8025 + $0x64] sm:$0xf]
        %v8052 = vld [vmem:[%s8025 + $0x68] sm:$0xf]
        %v8053 = vld [vmem:[%s8025 + $0x6c] sm:$0xf]
        %v8054 = vld [vmem:[%s8025 + $0x70] sm:$0xf]
        %v8055 = vld [vmem:[%s8025 + $0x74] sm:$0xf]
        %v8056 = vld [vmem:[%s8025 + $0x78] sm:$0xf]
        %v8057 = vld [vmem:[%s8025 + $0x7c] sm:$0xf]
        %v8058 = vld [vmem:[%s8025 + $0x80] sm:$0xf]
        %v8059 = vld [vmem:[%s8025 + $0x84] sm:$0xf]
        %v8060 = vld [vmem:[%s8025 + $0x88] sm:$0xf]
        %v8061 = vld [vmem:[%s8025 + $0x8c] sm:$0xf]
        %v8062 = vld [vmem:[%s8025 + $0x90] sm:$0xf]
        %v8063 = vld [vmem:[%s8025 + $0x94] sm:$0xf]
        %v8064 = vld [vmem:[%s8025 + $0x98] sm:$0xf]
        %v8065 = vld [vmem:[%s8025 + $0x9c] sm:$0xf]
        %v8066 = vld [vmem:[%s8025 + $0xa0] sm:$0xf]
        %v8067 = vld [vmem:[%s8025 + $0xa4] sm:$0xf]
        %v8068 = vld [vmem:[%s8025 + $0xa8] sm:$0xf]
        %v8069 = vld [vmem:[%s8025 + $0xac] sm:$0xf]
        %v8070 = vld [vmem:[%s8025 + $0xb0] sm:$0xf]
        %v8071 = vld [vmem:[%s8025 + $0xb4] sm:$0xf]
        %v8072 = vld [vmem:[%s8025 + $0xb8] sm:$0xf]
        %v8073 = vld [vmem:[%s8025 + $0xbc] sm:$0xf]
        %v8074 = vld [vmem:[%s8025 + $0xc0] sm:$0xf]
        %v8075 = vld [vmem:[%s8025 + $0xc4] sm:$0xf]
        %v8076 = vld [vmem:[%s8025 + $0xc8] sm:$0xf]
        %v8077 = vld [vmem:[%s8025 + $0xcc] sm:$0xf]
        %v8078 = vld [vmem:[%s8025 + $0xd0] sm:$0xf]
        %v8079 = vld [vmem:[%s8025 + $0xd4] sm:$0xf]
        %v8080 = vld [vmem:[%s8025 + $0xd8] sm:$0xf]
        %v8081 = vld [vmem:[%s8025 + $0xdc] sm:$0xf]
        %v8082 = vld [vmem:[%s8025 + $0xe0] sm:$0xf]
        %v8083 = vld [vmem:[%s8025 + $0xe4] sm:$0xf]
        %v8084 = vld [vmem:[%s8025 + $0xe8] sm:$0xf]
        %v8085 = vld [vmem:[%s8025 + $0xec] sm:$0xf]
        %v8086 = vld [vmem:[%s8025 + $0xf0] sm:$0xf]
        %v8087 = vld [vmem:[%s8025 + $0xf4] sm:$0xf]
        %v8088 = vld [vmem:[%s8025 + $0xf8] sm:$0xf]
        %v8089 = vld [vmem:[%s8025 + $0xfc] sm:$0xf]
        %v8090 = vld [vmem:[%s8025 + $0x100] sm:$0xf]
        %v8091 = vld [vmem:[%s8025 + $0x104] sm:$0xf]
        %v8092 = vld [vmem:[%s8025 + $0x108] sm:$0xf]
        %v8093 = vld [vmem:[%s8025 + $0x10c] sm:$0xf]
        %v8094 = vld [vmem:[%s8025 + $0x110] sm:$0xf]
        %v8095 = vld [vmem:[%s8025 + $0x114] sm:$0xf]
        %v8096 = vld [vmem:[%s8025 + $0x118] sm:$0xf]
        %v8097 = vld [vmem:[%s8025 + $0x11c] sm:$0xf]
        %v8098 = vld [vmem:[%s8025 + $0x120] sm:$0xf]
        %v8099 = vld [vmem:[%s8025 + $0x124] sm:$0xf]
        %v8100 = vld [vmem:[%s8025 + $0x128] sm:$0xf]
        %v8101 = vld [vmem:[%s8025 + $0x12c] sm:$0xf]
        %v8102 = vld [vmem:[%s8025 + $0x130] sm:$0xf]
        %v8103 = vld [vmem:[%s8025 + $0x134] sm:$0xf]
        %v8104 = vld [vmem:[%s8025 + $0x138] sm:$0xf]
        %v8105 = vld [vmem:[%s8025 + $0x13c] sm:$0xf]
        %v8106 = vld [vmem:[%s8025 + $0x140] sm:$0xf]
        %v8107 = vld [vmem:[%s8025 + $0x144] sm:$0xf]
        %v8108 = vld [vmem:[%s8025 + $0x148] sm:$0xf]
        %v8109 = vld [vmem:[%s8025 + $0x14c] sm:$0xf]
        %v8110 = vld [vmem:[%s8025 + $0x150] sm:$0xf]
        %v8111 = vld [vmem:[%s8025 + $0x154] sm:$0xf]
        %v8112 = vld [vmem:[%s8025 + $0x158] sm:$0xf]
        %v8113 = vld [vmem:[%s8025 + $0x15c] sm:$0xf]
        %v8114 = vld [vmem:[%s8025 + $0x160] sm:$0xf]
        %v8115 = vld [vmem:[%s8025 + $0x164] sm:$0xf]
        %v8116 = vld [vmem:[%s8025 + $0x168] sm:$0xf]
        %v8117 = vld [vmem:[%s8025 + $0x16c] sm:$0xf]
        %v8118 = vld [vmem:[%s8025 + $0x170] sm:$0xf]
        %v8119 = vld [vmem:[%s8025 + $0x174] sm:$0xf]
        %v8120 = vld [vmem:[%s8025 + $0x178] sm:$0xf]
        %v8121 = vld [vmem:[%s8025 + $0x17c] sm:$0xf]
        %v8122 = vld [vmem:[%s8025 + $0x180] sm:$0xf]
        %v8123 = vld [vmem:[%s8025 + $0x184] sm:$0xf]
        %v8124 = vld [vmem:[%s8025 + $0x188] sm:$0xf]
        %v8125 = vld [vmem:[%s8025 + $0x18c] sm:$0xf]
        %v8126 = vld [vmem:[%s8025 + $0x190] sm:$0xf]
        %v8127 = vld [vmem:[%s8025 + $0x194] sm:$0xf]
        %v8128 = vld [vmem:[%s8025 + $0x198] sm:$0xf]
        %v8129 = vld [vmem:[%s8025 + $0x19c] sm:$0xf]
        %v8130 = vld [vmem:[%s8025 + $0x1a0] sm:$0xf]
        %v8131 = vld [vmem:[%s8025 + $0x1a4] sm:$0xf]
        %v8132 = vld [vmem:[%s8025 + $0x1a8] sm:$0xf]
        %v8133 = vld [vmem:[%s8025 + $0x1ac] sm:$0xf]
        %v8134 = vld [vmem:[%s8025 + $0x1b0] sm:$0xf]
        %v8135 = vld [vmem:[%s8025 + $0x1b4] sm:$0xf]
        %v8136 = vld [vmem:[%s8025 + $0x1b8] sm:$0xf]
        %v8137 = vld [vmem:[%s8025 + $0x1bc] sm:$0xf]
        %v8138 = vld [vmem:[%s8025 + $0x1c0] sm:$0xf]
        %v8139 = vld [vmem:[%s8025 + $0x1c4] sm:$0xf]
        %v8140 = vld [vmem:[%s8025 + $0x1c8] sm:$0xf]
        %v8141 = vld [vmem:[%s8025 + $0x1cc] sm:$0xf]
        %v8142 = vld [vmem:[%s8025 + $0x1d0] sm:$0xf]
        %v8143 = vld [vmem:[%s8025 + $0x1d4] sm:$0xf]
        %v8144 = vld [vmem:[%s8025 + $0x1d8] sm:$0xf]
        %v8145 = vld [vmem:[%s8025 + $0x1dc] sm:$0xf]
        %v8146 = vld [vmem:[%s8025 + $0x1e0] sm:$0xf]
        %v8147 = vld [vmem:[%s8025 + $0x1e4] sm:$0xf]
        %v8148 = vld [vmem:[%s8025 + $0x1e8] sm:$0xf]
        %v8149 = vld [vmem:[%s8025 + $0x1ec] sm:$0xf]
        %v8150 = vld [vmem:[%s8025 + $0x1f0] sm:$0xf]
        %v8151 = vld [vmem:[%s8025 + $0x1f4] sm:$0xf]
        %v8152 = vld [vmem:[%s8025 + $0x1f8] sm:$0xf]
        %v8153 = vld [vmem:[%s8025 + $0x1fc] sm:$0xf]
        %v8154 = vld [vmem:[%s8025 + $0x200] sm:$0xf]
        %v8155 = vld [vmem:[%s8025 + $0x204] sm:$0xf]
        %v8156 = vld [vmem:[%s8025 + $0x208] sm:$0xf]
        %v8157 = vld [vmem:[%s8025 + $0x20c] sm:$0xf]
        %v8158 = vld [vmem:[%s8025 + $0x210] sm:$0xf]
        %v8159 = vld [vmem:[%s8025 + $0x214] sm:$0xf]
        %v8160 = vld [vmem:[%s8025 + $0x218] sm:$0xf]
        %v8161 = vld [vmem:[%s8025 + $0x21c] sm:$0xf]
        %v8162 = vld [vmem:[%s8025 + $0x220] sm:$0xf]
        %v8163 = vld [vmem:[%s8025 + $0x224] sm:$0xf]
        %v8164 = vld [vmem:[%s8025 + $0x228] sm:$0xf]
        %v8165 = vld [vmem:[%s8025 + $0x22c] sm:$0xf]
        %v8166 = vld [vmem:[%s8025 + $0x230] sm:$0xf]
        %v8167 = vld [vmem:[%s8025 + $0x234] sm:$0xf]
        %v8168 = vld [vmem:[%s8025 + $0x238] sm:$0xf]
        %v8169 = vld [vmem:[%s8025 + $0x23c] sm:$0xf]
        %v8170 = vpack.c.b16 %v7893, %v7891
        %v8171 = vpack.c.b16 %v8007, %v8005
        %v8172 = vpack.c.b16 %v8008, %v8006
        %v8173 = vpack.c.b16 %v7895, %v7893
        %v8174 = vpack.c.b16 %v8009, %v8007
        %v8175 = vpack.c.b16 %v8010, %v8008
        %v8176 = vpack.c.b16 %v7897, %v7895
        %v8177 = vpack.c.b16 %v8011, %v8009
        %v8178 = vpack.c.b16 %v8012, %v8010
        %v8179 = vpack.c.b16 %v7899, %v7897
        %v8180 = vpack.c.b16 %v8013, %v8011
        %v8181 = vpack.c.b16 %v8014, %v8012
        %v8182 = vpack.c.b16 %v7901, %v7899
        %v8183 = vpack.c.b16 %v8015, %v8013
        %v8184 = vpack.c.b16 %v8016, %v8014
        %v8185 = vpack.c.b16 %v7903, %v7901
        %v8186 = vpack.c.b16 %v8017, %v8015
        %v8187 = vpack.c.b16 %v8018, %v8016
        %v8188 = vpack.c.b16 %v7905, %v7903
        %v8189 = vpack.c.b16 %v8019, %v8017
        %v8190 = vpack.c.b16 %v8020, %v8018
        %v8191 = vpack.c.b16 %v7981, %v7905
        %v8192 = vpack.c.b16 %v8021, %v8019
        %v8193 = vpack.c.b16 %v8022, %v8020
        %v8194 = vpack.c.b16 %v7994, %v7981
        %v8195 = vpack.c.b16 %v8023, %v8021
        %v8196 = vpack.c.b16 %v8024, %v8022
        %v8368 = vunpack.c.l.b16 %v8026
        %v8369 = vunpack.c.l.b16 %v8027
        %v8370 = vunpack.c.l.b16 %v8028
        %v8371 = vunpack.c.l.b16 %v8029
        %v8372 = vunpack.c.l.b16 %v8030
        %v8373 = vunpack.c.l.b16 %v8031
        %v8374 = vunpack.c.l.b16 %v8032
        %v8375 = vunpack.c.l.b16 %v8033
        %v8376 = vunpack.c.l.b16 %v8034
        %v8377 = vunpack.c.l.b16 %v8035
        %v8378 = vunpack.c.l.b16 %v8036
        %v8379 = vunpack.c.l.b16 %v8037
        %v8380 = vunpack.c.l.b16 %v8038
        %v8381 = vunpack.c.l.b16 %v8039
        %v8382 = vunpack.c.l.b16 %v8040
        %v8383 = vunpack.c.l.b16 %v8041
        %v8384 = vunpack.c.l.b16 %v8042
        %v8385 = vunpack.c.l.b16 %v8043
        %v8386 = vunpack.c.l.b16 %v8044
        %v8387 = vunpack.c.l.b16 %v8045
        %v8388 = vunpack.c.l.b16 %v8046
        %v8389 = vunpack.c.l.b16 %v8047
        %v8390 = vunpack.c.l.b16 %v8048
        %v8391 = vunpack.c.l.b16 %v8049
        %v8392 = vunpack.c.l.b16 %v8050
        %v8393 = vunpack.c.l.b16 %v8051
        %v8394 = vunpack.c.l.b16 %v8052
        %v8395 = vunpack.c.l.b16 %v8053
        %v8396 = vunpack.c.l.b16 %v8054
        %v8397 = vunpack.c.l.b16 %v8055
        %v8398 = vunpack.c.l.b16 %v8056
        %v8399 = vunpack.c.l.b16 %v8057
        %v8400 = vunpack.c.l.b16 %v8058
        %v8401 = vunpack.c.l.b16 %v8059
        %v8402 = vunpack.c.l.b16 %v8060
        %v8403 = vunpack.c.l.b16 %v8061
        %v8404 = vunpack.c.l.b16 %v8062
        %v8405 = vunpack.c.l.b16 %v8063
        %v8406 = vunpack.c.l.b16 %v8064
        %v8407 = vunpack.c.l.b16 %v8065
        %v8408 = vunpack.c.l.b16 %v8066
        %v8409 = vunpack.c.l.b16 %v8067
        %v8410 = vunpack.c.l.b16 %v8068
        %v8411 = vunpack.c.l.b16 %v8069
        %v8412 = vunpack.c.l.b16 %v8070
        %v8413 = vunpack.c.l.b16 %v8071
        %v8414 = vunpack.c.l.b16 %v8072
        %v8415 = vunpack.c.l.b16 %v8073
        %v8416 = vunpack.c.l.b16 %v8074
        %v8417 = vunpack.c.l.b16 %v8075
        %v8418 = vunpack.c.l.b16 %v8076
        %v8419 = vunpack.c.l.b16 %v8077
        %v8420 = vunpack.c.l.b16 %v8078
        %v8421 = vunpack.c.l.b16 %v8079
        %v8422 = vunpack.c.l.b16 %v8080
        %v8423 = vunpack.c.l.b16 %v8081
        %v8424 = vunpack.c.l.b16 %v8082
        %v8425 = vunpack.c.l.b16 %v8083
        %v8426 = vunpack.c.l.b16 %v8084
        %v8427 = vunpack.c.l.b16 %v8085
        %v8428 = vunpack.c.l.b16 %v8086
        %v8429 = vunpack.c.l.b16 %v8087
        %v8430 = vunpack.c.l.b16 %v8088
        %v8431 = vunpack.c.l.b16 %v8089
        %v8432 = vunpack.c.l.b16 %v8090
        %v8433 = vunpack.c.l.b16 %v8091
        %v8434 = vunpack.c.l.b16 %v8092
        %v8435 = vunpack.c.l.b16 %v8093
        %v8436 = vunpack.c.l.b16 %v8094
        %v8437 = vunpack.c.l.b16 %v8095
        %v8438 = vunpack.c.l.b16 %v8096
        %v8439 = vunpack.c.l.b16 %v8097
        %v8440 = vunpack.c.l.b16 %v8098
        %v8441 = vunpack.c.l.b16 %v8099
        %v8442 = vunpack.c.l.b16 %v8100
        %v8443 = vunpack.c.l.b16 %v8101
        %v8444 = vunpack.c.l.b16 %v8102
        %v8445 = vunpack.c.l.b16 %v8103
        %v8446 = vunpack.c.l.b16 %v8104
        %v8447 = vunpack.c.l.b16 %v8105
        %v8448 = vunpack.c.l.b16 %v8106
        %v8449 = vunpack.c.l.b16 %v8107
        %v8450 = vunpack.c.l.b16 %v8108
        %v8451 = vunpack.c.l.b16 %v8109
        %v8452 = vunpack.c.l.b16 %v8110
        %v8453 = vunpack.c.l.b16 %v8111
        %v8454 = vunpack.c.l.b16 %v8112
        %v8455 = vunpack.c.l.b16 %v8113
        %v8456 = vunpack.c.l.b16 %v8114
        %v8457 = vunpack.c.l.b16 %v8115
        %v8458 = vunpack.c.l.b16 %v8116
        %v8459 = vunpack.c.l.b16 %v8117
        %v8460 = vunpack.c.l.b16 %v8118
        %v8461 = vunpack.c.l.b16 %v8119
        %v8462 = vunpack.c.l.b16 %v8120
        %v8463 = vunpack.c.l.b16 %v8121
        %v8464 = vunpack.c.l.b16 %v8122
        %v8465 = vunpack.c.l.b16 %v8123
        %v8466 = vunpack.c.l.b16 %v8124
        %v8467 = vunpack.c.l.b16 %v8125
        %v8468 = vunpack.c.l.b16 %v8126
        %v8469 = vunpack.c.l.b16 %v8127
        %v8470 = vunpack.c.l.b16 %v8128
        %v8471 = vunpack.c.l.b16 %v8129
        %v8472 = vunpack.c.l.b16 %v8130
        %v8473 = vunpack.c.l.b16 %v8131
        %v8474 = vunpack.c.l.b16 %v8132
        %v8475 = vunpack.c.l.b16 %v8133
        %v8476 = vunpack.c.l.b16 %v8134
        %v8477 = vunpack.c.l.b16 %v8135
        %v8478 = vunpack.c.l.b16 %v8136
        %v8479 = vunpack.c.l.b16 %v8137
        %v8480 = vunpack.c.l.b16 %v8138
        %v8481 = vunpack.c.l.b16 %v8139
        %v8482 = vunpack.c.l.b16 %v8140
        %v8483 = vunpack.c.l.b16 %v8141
        %v8484 = vunpack.c.l.b16 %v8142
        %v8485 = vunpack.c.l.b16 %v8143
        %v8486 = vunpack.c.l.b16 %v8144
        %v8487 = vunpack.c.l.b16 %v8145
        %v8488 = vunpack.c.l.b16 %v8146
        %v8489 = vunpack.c.l.b16 %v8147
        %v8490 = vunpack.c.l.b16 %v8148
        %v8491 = vunpack.c.l.b16 %v8149
        %v8492 = vunpack.c.l.b16 %v8150
        %v8493 = vunpack.c.l.b16 %v8151
        %v8494 = vunpack.c.l.b16 %v8152
        %v8495 = vunpack.c.l.b16 %v8153
        %v8496 = vunpack.c.l.b16 %v8154
        %v8497 = vunpack.c.l.b16 %v8155
        %v8498 = vunpack.c.l.b16 %v8156
        %v8499 = vunpack.c.l.b16 %v8157
        %v8500 = vunpack.c.l.b16 %v8158
        %v8501 = vunpack.c.l.b16 %v8159
        %v8502 = vunpack.c.l.b16 %v8160
        %v8503 = vunpack.c.l.b16 %v8161
        %v8504 = vunpack.c.l.b16 %v8162
        %v8505 = vunpack.c.l.b16 %v8163
        %v8506 = vunpack.c.l.b16 %v8164
        %v8507 = vunpack.c.l.b16 %v8165
        %v8508 = vunpack.c.l.b16 %v8166
        %v8509 = vunpack.c.l.b16 %v8167
        %v8510 = vunpack.c.l.b16 %v8168
        %v8511 = vunpack.c.l.b16 %v8169
        %v8512 = vpack.c.b16 %v8369, %v8368
        %v8513 = vpack.c.b16 %v8371, %v8370
        %v8514 = vpack.c.b16 %v8373, %v8372
        %v8515 = vpack.c.b16 %v8375, %v8374
        %v8516 = vpack.c.b16 %v8377, %v8376
        %v8517 = vpack.c.b16 %v8379, %v8378
        %v8518 = vpack.c.b16 %v8381, %v8380
        %v8519 = vpack.c.b16 %v8383, %v8382
        %v8520 = vpack.c.b16 %v8385, %v8384
        %v8521 = vpack.c.b16 %v8387, %v8386
        %v8522 = vpack.c.b16 %v8389, %v8388
        %v8523 = vpack.c.b16 %v8391, %v8390
        %v8524 = vpack.c.b16 %v8393, %v8392
        %v8525 = vpack.c.b16 %v8395, %v8394
        %v8526 = vpack.c.b16 %v8397, %v8396
        %v8527 = vpack.c.b16 %v8399, %v8398
        %v8528 = vpack.c.b16 %v8401, %v8400
        %v8529 = vpack.c.b16 %v8403, %v8402
        %v8530 = vpack.c.b16 %v8405, %v8404
        %v8531 = vpack.c.b16 %v8407, %v8406
        %v8532 = vpack.c.b16 %v8409, %v8408
        %v8533 = vpack.c.b16 %v8411, %v8410
        %v8534 = vpack.c.b16 %v8413, %v8412
        %v8535 = vpack.c.b16 %v8415, %v8414
        %v8536 = vpack.c.b16 %v8417, %v8416
        %v8537 = vpack.c.b16 %v8419, %v8418
        %v8538 = vpack.c.b16 %v8421, %v8420
        %v8539 = vpack.c.b16 %v8423, %v8422
        %v8540 = vpack.c.b16 %v8425, %v8424
        %v8541 = vpack.c.b16 %v8427, %v8426
        %v8542 = vpack.c.b16 %v8429, %v8428
        %v8543 = vpack.c.b16 %v8431, %v8430
        %v8544 = vpack.c.b16 %v8433, %v8432
        %v8545 = vpack.c.b16 %v8435, %v8434
        %v8546 = vpack.c.b16 %v8437, %v8436
        %v8547 = vpack.c.b16 %v8439, %v8438
        %v8548 = vpack.c.b16 %v8441, %v8440
        %v8549 = vpack.c.b16 %v8443, %v8442
        %v8550 = vpack.c.b16 %v8445, %v8444
        %v8551 = vpack.c.b16 %v8447, %v8446
        %v8552 = vpack.c.b16 %v8449, %v8448
        %v8553 = vpack.c.b16 %v8451, %v8450
        %v8554 = vpack.c.b16 %v8453, %v8452
        %v8555 = vpack.c.b16 %v8455, %v8454
        %v8556 = vpack.c.b16 %v8457, %v8456
        %v8557 = vpack.c.b16 %v8459, %v8458
        %v8558 = vpack.c.b16 %v8461, %v8460
        %v8559 = vpack.c.b16 %v8463, %v8462
        %v8560 = vpack.c.b16 %v8465, %v8464
        %v8561 = vpack.c.b16 %v8467, %v8466
        %v8562 = vpack.c.b16 %v8469, %v8468
        %v8563 = vpack.c.b16 %v8471, %v8470
        %v8564 = vpack.c.b16 %v8473, %v8472
        %v8565 = vpack.c.b16 %v8475, %v8474
        %v8566 = vpack.c.b16 %v8477, %v8476
        %v8567 = vpack.c.b16 %v8479, %v8478
        %v8568 = vpack.c.b16 %v8481, %v8480
        %v8569 = vpack.c.b16 %v8483, %v8482
        %v8570 = vpack.c.b16 %v8485, %v8484
        %v8571 = vpack.c.b16 %v8487, %v8486
        %v8572 = vpack.c.b16 %v8489, %v8488
        %v8573 = vpack.c.b16 %v8491, %v8490
        %v8574 = vpack.c.b16 %v8493, %v8492
        %v8575 = vpack.c.b16 %v8495, %v8494
        %v8576 = vpack.c.b16 %v8497, %v8496
        %v8577 = vpack.c.b16 %v8499, %v8498
        %v8578 = vpack.c.b16 %v8501, %v8500
        %v8579 = vpack.c.b16 %v8503, %v8502
        %v8580 = vpack.c.b16 %v8505, %v8504
        %v8581 = vpack.c.b16 %v8507, %v8506
        %v8582 = vpack.c.b16 %v8509, %v8508
        %v8583 = vpack.c.b16 %v8511, %v8510
        %8656 = vmatpush.bf16.msra.mxu0 %v8519
        %8657 = vmatpush.bf16.msra.mxu0 %v8518
        %8658 = vmatpush.bf16.msra.mxu0 %v8517
        %8659 = vmatpush.bf16.msra.mxu0 %v8516
        %8660 = vmatpush.bf16.msra.mxu0 %v8515
        %8661 = vmatpush.bf16.msra.mxu0 %v8514
        %8662 = vmatpush.bf16.msra.mxu0 %v8513
        %8663 = vmatpush.bf16.msra.mxu0 %v8512
        %8664 = vmatmul.bf16.gmra.mxu0 %v8170
        %v8665 = vpop.f32.mrf.mxu0
        %v8666 = vadd.f32 0.0, %v8665
        %v8667 = vpop.f32.mrf.mxu0
        %v8668 = vadd.f32 0.0, %v8667
        %8669 = vmatmul.bf16.gmra.mxu0 %v8176
        %v8670 = vpop.f32.mrf.mxu0
        %v8671 = vadd.f32 0.0, %v8670
        %v8672 = vpop.f32.mrf.mxu0
        %v8673 = vadd.f32 0.0, %v8672
        %8674 = vmatmul.bf16.gmra.mxu0 %v8182
        %v8675 = vpop.f32.mrf.mxu0
        %v8676 = vadd.f32 0.0, %v8675
        %v8677 = vpop.f32.mrf.mxu0
        %v8678 = vadd.f32 0.0, %v8677
        %8679 = vmatmul.bf16.gmra.mxu0 %v8188
        %v8680 = vpop.f32.mrf.mxu0
        %v8681 = vadd.f32 0.0, %v8680
        %v8682 = vpop.f32.mrf.mxu0
        %v8683 = vadd.f32 0.0, %v8682
        %8684 = vdwg.mxu0
        %8685 = vmatpush.bf16.msra.mxu0 %v8527
        %8686 = vmatpush.bf16.msra.mxu0 %v8526
        %8687 = vmatpush.bf16.msra.mxu0 %v8525
        %8688 = vmatpush.bf16.msra.mxu0 %v8524
        %8689 = vmatpush.bf16.msra.mxu0 %v8523
        %8690 = vmatpush.bf16.msra.mxu0 %v8522
        %8691 = vmatpush.bf16.msra.mxu0 %v8521
        %8692 = vmatpush.bf16.msra.mxu0 %v8520
        %8693 = vmatmul.bf16.gmra.mxu0 %v8171
        %v8694 = vpop.f32.mrf.mxu0
        %v8695 = vadd.f32 %v8666, %v8694
        %v8696 = vpop.f32.mrf.mxu0
        %v8697 = vadd.f32 %v8668, %v8696
        %8698 = vmatmul.bf16.gmra.mxu0 %v8177
        %v8699 = vpop.f32.mrf.mxu0
        %v8700 = vadd.f32 %v8671, %v8699
        %v8701 = vpop.f32.mrf.mxu0
        %v8702 = vadd.f32 %v8673, %v8701
        %8703 = vmatmul.bf16.gmra.mxu0 %v8183
        %v8704 = vpop.f32.mrf.mxu0
        %v8705 = vadd.f32 %v8676, %v8704
        %v8706 = vpop.f32.mrf.mxu0
        %v8707 = vadd.f32 %v8678, %v8706
        %8708 = vmatmul.bf16.gmra.mxu0 %v8189
        %v8709 = vpop.f32.mrf.mxu0
        %v8710 = vadd.f32 %v8681, %v8709
        %v8711 = vpop.f32.mrf.mxu0
        %v8712 = vadd.f32 %v8683, %v8711
        %8713 = vdwg.mxu0
        %8714 = vmatpush.bf16.msra.mxu0 %v8535
        %8715 = vmatpush.bf16.msra.mxu0 %v8534
        %8716 = vmatpush.bf16.msra.mxu0 %v8533
        %8717 = vmatpush.bf16.msra.mxu0 %v8532
        %8718 = vmatpush.bf16.msra.mxu0 %v8531
        %8719 = vmatpush.bf16.msra.mxu0 %v8530
        %8720 = vmatpush.bf16.msra.mxu0 %v8529
        %8721 = vmatpush.bf16.msra.mxu0 %v8528
        %8722 = vmatmul.bf16.gmra.mxu0 %v8172
        %v8723 = vpop.f32.mrf.mxu0
        %v8724 = vadd.f32 %v8695, %v8723
        %v8725 = vpop.f32.mrf.mxu0
        %v8726 = vadd.f32 %v8697, %v8725
        %8727 = vmatmul.bf16.gmra.mxu0 %v8178
        %v8728 = vpop.f32.mrf.mxu0
        %v8729 = vadd.f32 %v8700, %v8728
        %v8730 = vpop.f32.mrf.mxu0
        %v8731 = vadd.f32 %v8702, %v8730
        %8732 = vmatmul.bf16.gmra.mxu0 %v8184
        %v8733 = vpop.f32.mrf.mxu0
        %v8734 = vadd.f32 %v8705, %v8733
        %v8735 = vpop.f32.mrf.mxu0
        %v8736 = vadd.f32 %v8707, %v8735
        %8737 = vmatmul.bf16.gmra.mxu0 %v8190
        %v8738 = vpop.f32.mrf.mxu0
        %v8739 = vadd.f32 %v8710, %v8738
        %v8740 = vpop.f32.mrf.mxu0
        %v8741 = vadd.f32 %v8712, %v8740
        %8742 = vdwg.mxu0
        %8743 = vmatpush.bf16.msra.mxu0 %v8543
        %8744 = vmatpush.bf16.msra.mxu0 %v8542
        %8745 = vmatpush.bf16.msra.mxu0 %v8541
        %8746 = vmatpush.bf16.msra.mxu0 %v8540
        %8747 = vmatpush.bf16.msra.mxu0 %v8539
        %8748 = vmatpush.bf16.msra.mxu0 %v8538
        %8749 = vmatpush.bf16.msra.mxu0 %v8537
        %8750 = vmatpush.bf16.msra.mxu0 %v8536
        %8751 = vmatmul.bf16.gmra.mxu0 %v8173
        %v8752 = vpop.f32.mrf.mxu0
        %v8753 = vadd.f32 %v8724, %v8752
        %v8754 = vpop.f32.mrf.mxu0
        %v8755 = vadd.f32 %v8726, %v8754
        %8756 = vmatmul.bf16.gmra.mxu0 %v8179
        %v8757 = vpop.f32.mrf.mxu0
        %v8758 = vadd.f32 %v8729, %v8757
        %v8759 = vpop.f32.mrf.mxu0
        %v8760 = vadd.f32 %v8731, %v8759
        %8761 = vmatmul.bf16.gmra.mxu0 %v8185
        %v8762 = vpop.f32.mrf.mxu0
        %v8763 = vadd.f32 %v8734, %v8762
        %v8764 = vpop.f32.mrf.mxu0
        %v8765 = vadd.f32 %v8736, %v8764
        %8766 = vmatmul.bf16.gmra.mxu0 %v8191
        %v8767 = vpop.f32.mrf.mxu0
        %v8768 = vadd.f32 %v8739, %v8767
        %v8769 = vpop.f32.mrf.mxu0
        %v8770 = vadd.f32 %v8741, %v8769
        %8771 = vdwg.mxu0
        %8772 = vmatpush.bf16.msra.mxu0 %v8551
        %8773 = vmatpush.bf16.msra.mxu0 %v8550
        %8774 = vmatpush.bf16.msra.mxu0 %v8549
        %8775 = vmatpush.bf16.msra.mxu0 %v8548
        %8776 = vmatpush.bf16.msra.mxu0 %v8547
        %8777 = vmatpush.bf16.msra.mxu0 %v8546
        %8778 = vmatpush.bf16.msra.mxu0 %v8545
        %8779 = vmatpush.bf16.msra.mxu0 %v8544
        %8780 = vmatmul.bf16.gmra.mxu0 %v8174
        %v8781 = vpop.f32.mrf.mxu0
        %v8782 = vadd.f32 %v8753, %v8781
        %v8783 = vpop.f32.mrf.mxu0
        %v8784 = vadd.f32 %v8755, %v8783
        %8785 = vmatmul.bf16.gmra.mxu0 %v8180
        %v8786 = vpop.f32.mrf.mxu0
        %v8787 = vadd.f32 %v8758, %v8786
        %v8788 = vpop.f32.mrf.mxu0
        %v8789 = vadd.f32 %v8760, %v8788
        %8790 = vmatmul.bf16.gmra.mxu0 %v8186
        %v8791 = vpop.f32.mrf.mxu0
        %v8792 = vadd.f32 %v8763, %v8791
        %v8793 = vpop.f32.mrf.mxu0
        %v8794 = vadd.f32 %v8765, %v8793
        %8795 = vmatmul.bf16.gmra.mxu0 %v8192
        %v8796 = vpop.f32.mrf.mxu0
        %v8797 = vadd.f32 %v8768, %v8796
        %v8798 = vpop.f32.mrf.mxu0
        %v8799 = vadd.f32 %v8770, %v8798
        %8800 = vdwg.mxu0
        %8801 = vmatpush.bf16.msra.mxu0 %v8559
        %8802 = vmatpush.bf16.msra.mxu0 %v8558
        %8803 = vmatpush.bf16.msra.mxu0 %v8557
        %8804 = vmatpush.bf16.msra.mxu0 %v8556
        %8805 = vmatpush.bf16.msra.mxu0 %v8555
        %8806 = vmatpush.bf16.msra.mxu0 %v8554
        %8807 = vmatpush.bf16.msra.mxu0 %v8553
        %8808 = vmatpush.bf16.msra.mxu0 %v8552
        %8809 = vmatmul.bf16.gmra.mxu0 %v8175
        %v8810 = vpop.f32.mrf.mxu0
        %v8811 = vadd.f32 %v8782, %v8810
        %v8812 = vpop.f32.mrf.mxu0
        %v8813 = vadd.f32 %v8784, %v8812
        %8814 = vmatmul.bf16.gmra.mxu0 %v8181
        %v8815 = vpop.f32.mrf.mxu0
        %v8816 = vadd.f32 %v8787, %v8815
        %v8817 = vpop.f32.mrf.mxu0
        %v8818 = vadd.f32 %v8789, %v8817
        %8819 = vmatmul.bf16.gmra.mxu0 %v8187
        %v8820 = vpop.f32.mrf.mxu0
        %v8821 = vadd.f32 %v8792, %v8820
        %v8822 = vpop.f32.mrf.mxu0
        %v8823 = vadd.f32 %v8794, %v8822
        %8824 = vmatmul.bf16.gmra.mxu0 %v8193
        %v8825 = vpop.f32.mrf.mxu0
        %v8826 = vadd.f32 %v8797, %v8825
        %v8827 = vpop.f32.mrf.mxu0
        %v8828 = vadd.f32 %v8799, %v8827
        %8829 = vdwg.mxu0
        %8830 = vmatpush.bf16.msra.mxu0 %v8567
        %8831 = vmatpush.bf16.msra.mxu0 %v8566
        %8832 = vmatpush.bf16.msra.mxu0 %v8565
        %8833 = vmatpush.bf16.msra.mxu0 %v8564
        %8834 = vmatpush.bf16.msra.mxu0 %v8563
        %8835 = vmatpush.bf16.msra.mxu0 %v8562
        %8836 = vmatpush.bf16.msra.mxu0 %v8561
        %8837 = vmatpush.bf16.msra.mxu0 %v8560
        %8838 = vmatmul.bf16.gmra.mxu0 %v8176
        %v8839 = vpop.f32.mrf.mxu0
        %v8840 = vadd.f32 %v8811, %v8839
        %v8841 = vpop.f32.mrf.mxu0
        %v8842 = vadd.f32 %v8813, %v8841
        %8843 = vmatmul.bf16.gmra.mxu0 %v8182
        %v8844 = vpop.f32.mrf.mxu0
        %v8845 = vadd.f32 %v8816, %v8844
        %v8846 = vpop.f32.mrf.mxu0
        %v8847 = vadd.f32 %v8818, %v8846
        %8848 = vmatmul.bf16.gmra.mxu0 %v8188
        %v8849 = vpop.f32.mrf.mxu0
        %v8850 = vadd.f32 %v8821, %v8849
        %v8851 = vpop.f32.mrf.mxu0
        %v8852 = vadd.f32 %v8823, %v8851
        %8853 = vmatmul.bf16.gmra.mxu0 %v8194
        %v8854 = vpop.f32.mrf.mxu0
        %v8855 = vadd.f32 %v8826, %v8854
        %v8856 = vpop.f32.mrf.mxu0
        %v8857 = vadd.f32 %v8828, %v8856
        %8858 = vdwg.mxu0
        %8859 = vmatpush.bf16.msra.mxu0 %v8575
        %8860 = vmatpush.bf16.msra.mxu0 %v8574
        %8861 = vmatpush.bf16.msra.mxu0 %v8573
        %8862 = vmatpush.bf16.msra.mxu0 %v8572
        %8863 = vmatpush.bf16.msra.mxu0 %v8571
        %8864 = vmatpush.bf16.msra.mxu0 %v8570
        %8865 = vmatpush.bf16.msra.mxu0 %v8569
        %8866 = vmatpush.bf16.msra.mxu0 %v8568
        %8867 = vmatmul.bf16.gmra.mxu0 %v8177
        %v8868 = vpop.f32.mrf.mxu0
        %v8869 = vadd.f32 %v8840, %v8868
        %v8870 = vpop.f32.mrf.mxu0
        %v8871 = vadd.f32 %v8842, %v8870
        %8872 = vmatmul.bf16.gmra.mxu0 %v8183
        %v8873 = vpop.f32.mrf.mxu0
        %v8874 = vadd.f32 %v8845, %v8873
        %v8875 = vpop.f32.mrf.mxu0
        %v8876 = vadd.f32 %v8847, %v8875
        %8877 = vmatmul.bf16.gmra.mxu0 %v8189
        %v8878 = vpop.f32.mrf.mxu0
        %v8879 = vadd.f32 %v8850, %v8878
        %v8880 = vpop.f32.mrf.mxu0
        %v8881 = vadd.f32 %v8852, %v8880
        %8882 = vmatmul.bf16.gmra.mxu0 %v8195
        %v8883 = vpop.f32.mrf.mxu0
        %v8884 = vadd.f32 %v8855, %v8883
        %v8885 = vpop.f32.mrf.mxu0
        %v8886 = vadd.f32 %v8857, %v8885
        %8887 = vdwg.mxu0
        %8888 = vmatpush.bf16.msra.mxu0 %v8583
        %8889 = vmatpush.bf16.msra.mxu0 %v8582
        %8890 = vmatpush.bf16.msra.mxu0 %v8581
        %8891 = vmatpush.bf16.msra.mxu0 %v8580
        %8892 = vmatpush.bf16.msra.mxu0 %v8579
        %8893 = vmatpush.bf16.msra.mxu0 %v8578
        %8894 = vmatpush.bf16.msra.mxu0 %v8577
        %8895 = vmatpush.bf16.msra.mxu0 %v8576
        %8896 = vmatmul.bf16.gmra.mxu0 %v8178
        %v8897 = vpop.f32.mrf.mxu0
        %v8898 = vadd.f32 %v8869, %v8897
        %v8899 = vpop.f32.mrf.mxu0
        %v8900 = vadd.f32 %v8871, %v8899
        %8901 = vmatmul.bf16.gmra.mxu0 %v8184
        %v8902 = vpop.f32.mrf.mxu0
        %v8903 = vadd.f32 %v8874, %v8902
        %v8904 = vpop.f32.mrf.mxu0
        %v8905 = vadd.f32 %v8876, %v8904
        %8906 = vmatmul.bf16.gmra.mxu0 %v8190
        %v8907 = vpop.f32.mrf.mxu0
        %v8908 = vadd.f32 %v8879, %v8907
        %v8909 = vpop.f32.mrf.mxu0
        %v8910 = vadd.f32 %v8881, %v8909
        %8911 = vmatmul.bf16.gmra.mxu0 %v8196
        %v8912 = vpop.f32.mrf.mxu0
        %v8913 = vadd.f32 %v8884, %v8912
        %v8914 = vpop.f32.mrf.mxu0
        %v8915 = vadd.f32 %v8886, %v8914
        %8916 = vdwg.mxu0
        %s8917 = sld [smem:[#allocation4 + $0x6]]
        %vm8918 = vcmp.ge.f32.partialorder %v8898, 0.0
        %vm8919 = vcmp.ge.f32.partialorder %v8900, 0.0
        %vm8920 = vcmp.ge.f32.partialorder %v8903, 0.0
        %vm8921 = vcmp.ge.f32.partialorder %v8905, 0.0
        %vm8922 = vcmp.ge.f32.partialorder %v8908, 0.0
        %vm8923 = vcmp.ge.f32.partialorder %v8910, 0.0
        %vm8924 = vcmp.ge.f32.partialorder %v8913, 0.0
        %vm8925 = vcmp.ge.f32.partialorder %v8915, 0.0
        %v8926 = vstv %s8917
        %v8927 = vmul.f32 %v8926, %v8898
        %v8928 = vmul.f32 %v8926, %v8900
        %v8929 = vmul.f32 %v8926, %v8903
        %v8930 = vmul.f32 %v8926, %v8905
        %v8931 = vmul.f32 %v8926, %v8908
        %v8932 = vmul.f32 %v8926, %v8910
        %v8933 = vmul.f32 %v8926, %v8913
        %v8934 = vmul.f32 %v8926, %v8915
        %v8935 = vsel %vm8918, %v8898, %v8927
        %v8936 = vsel %vm8919, %v8900, %v8928
        %v8937 = vsel %vm8920, %v8903, %v8929
        %v8938 = vsel %vm8921, %v8905, %v8930
        %v8939 = vsel %vm8922, %v8908, %v8931
        %v8940 = vsel %vm8923, %v8910, %v8932
        %v8941 = vsel %vm8924, %v8913, %v8933
        %v8942 = vsel %vm8925, %v8915, %v8934
        %v8943 = vpack.c.bf16 %v8935, %v8935
        %v8944 = vpack.c.bf16 %v8936, %v8936
        %v8945 = vpack.c.bf16 %v8937, %v8937
        %v8946 = vpack.c.bf16 %v8938, %v8938
        %v8947 = vpack.c.bf16 %v8939, %v8939
        %v8948 = vpack.c.bf16 %v8940, %v8940
        %v8949 = vpack.c.bf16 %v8941, %v8941
        %v8950 = vpack.c.bf16 %v8942, %v8942
        %v8952 = vshrl.u32 %v8943, 16
        %v8954 = vrot.slane %v8952, 7
        %v8955 = vshll.u32 %v8943, 16
        %v8957 = vor.u32 %v8954, %v8955
        %v8958 = vrot.slane %v8954, 4
        %v8960 = vshrl.u32 %v8944, 16
        %v8962 = vrot.slane %v8960, 7
        %v8963 = vshll.u32 %v8944, 16
        %v8965 = vor.u32 %v8962, %v8963
        %v8966 = vrot.slane %v8962, 4
        %v8968 = vshrl.u32 %v8945, 16
        %v8970 = vrot.slane %v8968, 7
        %v8971 = vshll.u32 %v8945, 16
        %v8973 = vor.u32 %v8970, %v8971
        %v8974 = vrot.slane %v8970, 4
        %v8976 = vshrl.u32 %v8946, 16
        %v8978 = vrot.slane %v8976, 7
        %v8979 = vshll.u32 %v8946, 16
        %v8981 = vor.u32 %v8978, %v8979
        %v8982 = vrot.slane %v8978, 4
        %v8984 = vshrl.u32 %v8947, 16
        %v8986 = vrot.slane %v8984, 7
        %v8987 = vshll.u32 %v8947, 16
        %v8989 = vor.u32 %v8986, %v8987
        %v8990 = vrot.slane %v8986, 4
        %v8992 = vshrl.u32 %v8948, 16
        %v8994 = vrot.slane %v8992, 7
        %v8995 = vshll.u32 %v8948, 16
        %v8997 = vor.u32 %v8994, %v8995
        %v8998 = vrot.slane %v8994, 4
        %v9000 = vshrl.u32 %v8949, 16
        %v9002 = vrot.slane %v9000, 7
        %v9003 = vshll.u32 %v8949, 16
        %v9005 = vor.u32 %v9002, %v9003
        %v9006 = vrot.slane %v9002, 4
        %v9008 = vshrl.u32 %v8950, 16
        %v9010 = vrot.slane %v9008, 7
        %v9011 = vshll.u32 %v8950, 16
        %v9013 = vor.u32 %v9010, %v9011
        %v9014 = vrot.slane %v9010, 4
        %v9031 = vld [vmem:[%s389] sm:$0xf]
        %v9032 = vsel %vm391, %v8957, %v9031
        %9033 = vst [vmem:[%s389] sm:$0xf] %v9032
        %v9034 = vld [vmem:[%s389 + $0x4] sm:$0x1]
        %v9035 = vsel %vm230, %v8958, %v9034
        %9036 = vst [vmem:[%s389 + $0x4] sm:$0x1] %v9035
        %v9037 = vld [vmem:[%s389 + $0x8] sm:$0xf]
        %v9038 = vsel %vm391, %v8965, %v9037
        %9039 = vst [vmem:[%s389 + $0x8] sm:$0xf] %v9038
        %v9040 = vld [vmem:[%s389 + $0xc] sm:$0x1]
        %v9041 = vsel %vm230, %v8966, %v9040
        %9042 = vst [vmem:[%s389 + $0xc] sm:$0x1] %v9041
        %v9043 = vld [vmem:[%s389 + $0x10] sm:$0xf]
        %v9044 = vsel %vm391, %v8973, %v9043
        %9045 = vst [vmem:[%s389 + $0x10] sm:$0xf] %v9044
        %v9046 = vld [vmem:[%s389 + $0x14] sm:$0x1]
        %v9047 = vsel %vm230, %v8974, %v9046
        %9048 = vst [vmem:[%s389 + $0x14] sm:$0x1] %v9047
        %v9049 = vld [vmem:[%s389 + $0x18] sm:$0xf]
        %v9050 = vsel %vm391, %v8981, %v9049
        %9051 = vst [vmem:[%s389 + $0x18] sm:$0xf] %v9050
        %v9052 = vld [vmem:[%s389 + $0x1c] sm:$0x1]
        %v9053 = vsel %vm230, %v8982, %v9052
        %9054 = vst [vmem:[%s389 + $0x1c] sm:$0x1] %v9053
        %v9055 = vld [vmem:[%s389 + $0x20] sm:$0xf]
        %v9056 = vsel %vm391, %v8989, %v9055
        %9057 = vst [vmem:[%s389 + $0x20] sm:$0xf] %v9056
        %v9058 = vld [vmem:[%s389 + $0x24] sm:$0x1]
        %v9059 = vsel %vm230, %v8990, %v9058
        %9060 = vst [vmem:[%s389 + $0x24] sm:$0x1] %v9059
        %v9061 = vld [vmem:[%s389 + $0x28] sm:$0xf]
        %v9062 = vsel %vm391, %v8997, %v9061
        %9063 = vst [vmem:[%s389 + $0x28] sm:$0xf] %v9062
        %v9064 = vld [vmem:[%s389 + $0x2c] sm:$0x1]
        %v9065 = vsel %vm230, %v8998, %v9064
        %9066 = vst [vmem:[%s389 + $0x2c] sm:$0x1] %v9065
        %v9067 = vld [vmem:[%s389 + $0x30] sm:$0xf]
        %v9068 = vsel %vm391, %v9005, %v9067
        %9069 = vst [vmem:[%s389 + $0x30] sm:$0xf] %v9068
        %v9070 = vld [vmem:[%s389 + $0x34] sm:$0x1]
        %v9071 = vsel %vm230, %v9006, %v9070
        %9072 = vst [vmem:[%s389 + $0x34] sm:$0x1] %v9071
        %v9073 = vld [vmem:[%s389 + $0x38] sm:$0xf]
        %v9074 = vsel %vm391, %v9013, %v9073
        %9075 = vst [vmem:[%s389 + $0x38] sm:$0xf] %v9074
        %v9076 = vld [vmem:[%s389 + $0x3c] sm:$0x1]
        %v9077 = vsel %vm230, %v9014, %v9076
        %9078 = vst [vmem:[%s389 + $0x3c] sm:$0x1] %v9077
        %v9079 = vld [vmem:[#allocation2] sm:$0xf]
        %v9080 = vld [vmem:[#allocation2 + $0x4] sm:$0x1]
        %v9081 = vld [vmem:[#allocation2 + $0x8] sm:$0xf]
        %v9082 = vld [vmem:[#allocation2 + $0xc] sm:$0x1]
        %v9083 = vld [vmem:[#allocation2 + $0x10] sm:$0xf]
        %v9084 = vld [vmem:[#allocation2 + $0x14] sm:$0x1]
        %v9085 = vld [vmem:[#allocation2 + $0x18] sm:$0xf]
        %v9086 = vld [vmem:[#allocation2 + $0x1c] sm:$0x1]
        %v9087 = vld [vmem:[#allocation2 + $0x20] sm:$0xf]
        %v9088 = vld [vmem:[#allocation2 + $0x24] sm:$0x1]
        %v9089 = vld [vmem:[#allocation2 + $0x28] sm:$0xf]
        %v9090 = vld [vmem:[#allocation2 + $0x2c] sm:$0x1]
        %v9091 = vld [vmem:[#allocation2 + $0x30] sm:$0xf]
        %v9092 = vld [vmem:[#allocation2 + $0x34] sm:$0x1]
        %v9093 = vld [vmem:[#allocation2 + $0x38] sm:$0xf]
        %v9094 = vld [vmem:[#allocation2 + $0x3c] sm:$0x1]
        %v9095 = vld [vmem:[#allocation2 + $0x40] sm:$0xf]
        %v9096 = vld [vmem:[#allocation2 + $0x44] sm:$0x1]
        %v9097 = vld [vmem:[#allocation2 + $0x48] sm:$0xf]
        %v9098 = vld [vmem:[#allocation2 + $0x4c] sm:$0x1]
        %v9115 = vunpack.c.l.b16 %v9079
        %v9116 = vunpack.c.l.b16 %v9080
        %v9117 = vunpack.c.l.b16 %v9081
        %v9118 = vunpack.c.l.b16 %v9082
        %v9119 = vunpack.c.l.b16 %v9083
        %v9120 = vunpack.c.l.b16 %v9084
        %v9121 = vunpack.c.l.b16 %v9085
        %v9122 = vunpack.c.l.b16 %v9086
        %v9123 = vunpack.c.l.b16 %v9087
        %v9124 = vunpack.c.l.b16 %v9088
        %v9125 = vunpack.c.l.b16 %v9089
        %v9126 = vunpack.c.l.b16 %v9090
        %v9127 = vunpack.c.l.b16 %v9091
        %v9128 = vunpack.c.l.b16 %v9092
        %v9129 = vunpack.c.l.b16 %v9093
        %v9130 = vunpack.c.l.b16 %v9094
        %v9131 = vpack.c.b16 %v9116, %v9115
        %v9132 = vpack.c.b16 %v9118, %v9117
        %v9133 = vpack.c.b16 %v9120, %v9119
        %v9134 = vpack.c.b16 %v9122, %v9121
        %v9135 = vpack.c.b16 %v9124, %v9123
        %v9136 = vpack.c.b16 %v9126, %v9125
        %v9137 = vpack.c.b16 %v9128, %v9127
        %v9138 = vpack.c.b16 %v9130, %v9129
        %v9140 = vshrl.u32 %v9131, 16
        %v9142 = vshll.u32 %v9131, 16
        %v9144 = vrot.slane %v9142, 1
        %v9145 = vor.u32 %v9140, %v9144
        %v9147 = vshrl.u32 %v9132, 16
        %v9149 = vshll.u32 %v9132, 16
        %v9151 = vrot.slane %v9149, 1
        %v9152 = vor.u32 %v9147, %v9151
        %v9154 = vshrl.u32 %v9133, 16
        %v9156 = vshll.u32 %v9133, 16
        %v9158 = vrot.slane %v9156, 1
        %v9159 = vor.u32 %v9154, %v9158
        %v9161 = vshrl.u32 %v9134, 16
        %v9163 = vshll.u32 %v9134, 16
        %v9165 = vrot.slane %v9163, 1
        %v9166 = vor.u32 %v9161, %v9165
        %v9168 = vshrl.u32 %v9135, 16
        %v9170 = vshll.u32 %v9135, 16
        %v9172 = vrot.slane %v9170, 1
        %v9173 = vor.u32 %v9168, %v9172
        %v9175 = vshrl.u32 %v9136, 16
        %v9177 = vshll.u32 %v9136, 16
        %v9179 = vrot.slane %v9177, 1
        %v9180 = vor.u32 %v9175, %v9179
        %v9182 = vshrl.u32 %v9137, 16
        %v9184 = vshll.u32 %v9137, 16
        %v9186 = vrot.slane %v9184, 1
        %v9187 = vor.u32 %v9182, %v9186
        %v9189 = vshrl.u32 %v9138, 16
        %v9191 = vshll.u32 %v9138, 16
        %v9193 = vrot.slane %v9191, 1
        %v9194 = vor.u32 %v9189, %v9193
        %v9195 = vrot.slane %v9131, 1
        %v9196 = vrot.slane %v9132, 1
        %v9197 = vrot.slane %v9133, 1
        %v9198 = vrot.slane %v9134, 1
        %v9199 = vrot.slane %v9135, 1
        %v9200 = vrot.slane %v9136, 1
        %v9201 = vrot.slane %v9137, 1
        %v9202 = vrot.slane %v9138, 1
        %v9205 = vunpack.c.l.b16 %v9095
        %v9206 = vunpack.c.l.b16 %v9096
        %v9207 = vpack.c.b16 %v9206, %v9205
        %v9209 = vshrl.u32 %v9207, 16
        %v9211 = vshll.u32 %v9207, 16
        %v9213 = vrot.slane %v9211, 1
        %v9214 = vor.u32 %v9209, %v9213
        %v9215 = vrot.slane %v9207, 1
        %v9218 = vunpack.c.l.b16 %v9097
        %v9219 = vunpack.c.l.b16 %v9098
        %v9220 = vpack.c.b16 %v9219, %v9218
        %v9222 = vshrl.u32 %v9220, 16
        %v9224 = vshll.u32 %v9220, 16
        %v9226 = vrot.slane %v9224, 1
        %v9227 = vor.u32 %v9222, %v9226
        %v9228 = vrot.slane %v9220, 1
        %v9229 = vunpack.c.l.b16 %v9145
        %v9230 = vunpack.c.l.b16 %v9195
        %v9231 = vunpack.c.l.b16 %v9152
        %v9232 = vunpack.c.l.b16 %v9196
        %v9233 = vunpack.c.l.b16 %v9159
        %v9234 = vunpack.c.l.b16 %v9197
        %v9235 = vunpack.c.l.b16 %v9166
        %v9236 = vunpack.c.l.b16 %v9198
        %v9237 = vunpack.c.l.b16 %v9173
        %v9238 = vunpack.c.l.b16 %v9199
        %v9239 = vunpack.c.l.b16 %v9180
        %v9240 = vunpack.c.l.b16 %v9200
        %v9241 = vunpack.c.l.b16 %v9187
        %v9242 = vunpack.c.l.b16 %v9201
        %v9243 = vunpack.c.l.b16 %v9194
        %v9244 = vunpack.c.l.b16 %v9202
        %v9245 = vunpack.c.l.b16 %v9214
        %v9246 = vunpack.c.l.b16 %v9215
        %v9247 = vunpack.c.l.b16 %v9227
        %v9248 = vunpack.c.l.b16 %v9228
        %s9249 = scalar_lea.vmem [#allocation9], 4032
        %v9250 = vld [vmem:[%s9249] sm:$0xf]
        %v9251 = vld [vmem:[%s9249 + $0x4] sm:$0xf]
        %v9252 = vld [vmem:[%s9249 + $0x8] sm:$0xf]
        %v9253 = vld [vmem:[%s9249 + $0xc] sm:$0xf]
        %v9254 = vld [vmem:[%s9249 + $0x10] sm:$0xf]
        %v9255 = vld [vmem:[%s9249 + $0x14] sm:$0xf]
        %v9256 = vld [vmem:[%s9249 + $0x18] sm:$0xf]
        %v9257 = vld [vmem:[%s9249 + $0x1c] sm:$0xf]
        %v9258 = vld [vmem:[%s9249 + $0x20] sm:$0xf]
        %v9259 = vld [vmem:[%s9249 + $0x24] sm:$0xf]
        %v9260 = vld [vmem:[%s9249 + $0x28] sm:$0xf]
        %v9261 = vld [vmem:[%s9249 + $0x2c] sm:$0xf]
        %v9262 = vld [vmem:[%s9249 + $0x30] sm:$0xf]
        %v9263 = vld [vmem:[%s9249 + $0x34] sm:$0xf]
        %v9264 = vld [vmem:[%s9249 + $0x38] sm:$0xf]
        %v9265 = vld [vmem:[%s9249 + $0x3c] sm:$0xf]
        %v9266 = vld [vmem:[%s9249 + $0x40] sm:$0xf]
        %v9267 = vld [vmem:[%s9249 + $0x44] sm:$0xf]
        %v9268 = vld [vmem:[%s9249 + $0x48] sm:$0xf]
        %v9269 = vld [vmem:[%s9249 + $0x4c] sm:$0xf]
        %v9270 = vld [vmem:[%s9249 + $0x50] sm:$0xf]
        %v9271 = vld [vmem:[%s9249 + $0x54] sm:$0xf]
        %v9272 = vld [vmem:[%s9249 + $0x58] sm:$0xf]
        %v9273 = vld [vmem:[%s9249 + $0x5c] sm:$0xf]
        %v9274 = vld [vmem:[%s9249 + $0x60] sm:$0xf]
        %v9275 = vld [vmem:[%s9249 + $0x64] sm:$0xf]
        %v9276 = vld [vmem:[%s9249 + $0x68] sm:$0xf]
        %v9277 = vld [vmem:[%s9249 + $0x6c] sm:$0xf]
        %v9278 = vld [vmem:[%s9249 + $0x70] sm:$0xf]
        %v9279 = vld [vmem:[%s9249 + $0x74] sm:$0xf]
        %v9280 = vld [vmem:[%s9249 + $0x78] sm:$0xf]
        %v9281 = vld [vmem:[%s9249 + $0x7c] sm:$0xf]
        %v9282 = vld [vmem:[%s9249 + $0x80] sm:$0xf]
        %v9283 = vld [vmem:[%s9249 + $0x84] sm:$0xf]
        %v9284 = vld [vmem:[%s9249 + $0x88] sm:$0xf]
        %v9285 = vld [vmem:[%s9249 + $0x8c] sm:$0xf]
        %v9286 = vld [vmem:[%s9249 + $0x90] sm:$0xf]
        %v9287 = vld [vmem:[%s9249 + $0x94] sm:$0xf]
        %v9288 = vld [vmem:[%s9249 + $0x98] sm:$0xf]
        %v9289 = vld [vmem:[%s9249 + $0x9c] sm:$0xf]
        %v9290 = vld [vmem:[%s9249 + $0xa0] sm:$0xf]
        %v9291 = vld [vmem:[%s9249 + $0xa4] sm:$0xf]
        %v9292 = vld [vmem:[%s9249 + $0xa8] sm:$0xf]
        %v9293 = vld [vmem:[%s9249 + $0xac] sm:$0xf]
        %v9294 = vld [vmem:[%s9249 + $0xb0] sm:$0xf]
        %v9295 = vld [vmem:[%s9249 + $0xb4] sm:$0xf]
        %v9296 = vld [vmem:[%s9249 + $0xb8] sm:$0xf]
        %v9297 = vld [vmem:[%s9249 + $0xbc] sm:$0xf]
        %v9298 = vld [vmem:[%s9249 + $0xc0] sm:$0xf]
        %v9299 = vld [vmem:[%s9249 + $0xc4] sm:$0xf]
        %v9300 = vld [vmem:[%s9249 + $0xc8] sm:$0xf]
        %v9301 = vld [vmem:[%s9249 + $0xcc] sm:$0xf]
        %v9302 = vld [vmem:[%s9249 + $0xd0] sm:$0xf]
        %v9303 = vld [vmem:[%s9249 + $0xd4] sm:$0xf]
        %v9304 = vld [vmem:[%s9249 + $0xd8] sm:$0xf]
        %v9305 = vld [vmem:[%s9249 + $0xdc] sm:$0xf]
        %v9306 = vld [vmem:[%s9249 + $0xe0] sm:$0xf]
        %v9307 = vld [vmem:[%s9249 + $0xe4] sm:$0xf]
        %v9308 = vld [vmem:[%s9249 + $0xe8] sm:$0xf]
        %v9309 = vld [vmem:[%s9249 + $0xec] sm:$0xf]
        %v9310 = vld [vmem:[%s9249 + $0xf0] sm:$0xf]
        %v9311 = vld [vmem:[%s9249 + $0xf4] sm:$0xf]
        %v9312 = vld [vmem:[%s9249 + $0xf8] sm:$0xf]
        %v9313 = vld [vmem:[%s9249 + $0xfc] sm:$0xf]
        %v9314 = vld [vmem:[%s9249 + $0x100] sm:$0xf]
        %v9315 = vld [vmem:[%s9249 + $0x104] sm:$0xf]
        %v9316 = vld [vmem:[%s9249 + $0x108] sm:$0xf]
        %v9317 = vld [vmem:[%s9249 + $0x10c] sm:$0xf]
        %v9318 = vld [vmem:[%s9249 + $0x110] sm:$0xf]
        %v9319 = vld [vmem:[%s9249 + $0x114] sm:$0xf]
        %v9320 = vld [vmem:[%s9249 + $0x118] sm:$0xf]
        %v9321 = vld [vmem:[%s9249 + $0x11c] sm:$0xf]
        %v9322 = vld [vmem:[%s9249 + $0x120] sm:$0xf]
        %v9323 = vld [vmem:[%s9249 + $0x124] sm:$0xf]
        %v9324 = vld [vmem:[%s9249 + $0x128] sm:$0xf]
        %v9325 = vld [vmem:[%s9249 + $0x12c] sm:$0xf]
        %v9326 = vld [vmem:[%s9249 + $0x130] sm:$0xf]
        %v9327 = vld [vmem:[%s9249 + $0x134] sm:$0xf]
        %v9328 = vld [vmem:[%s9249 + $0x138] sm:$0xf]
        %v9329 = vld [vmem:[%s9249 + $0x13c] sm:$0xf]
        %v9330 = vld [vmem:[%s9249 + $0x140] sm:$0xf]
        %v9331 = vld [vmem:[%s9249 + $0x144] sm:$0xf]
        %v9332 = vld [vmem:[%s9249 + $0x148] sm:$0xf]
        %v9333 = vld [vmem:[%s9249 + $0x14c] sm:$0xf]
        %v9334 = vld [vmem:[%s9249 + $0x150] sm:$0xf]
        %v9335 = vld [vmem:[%s9249 + $0x154] sm:$0xf]
        %v9336 = vld [vmem:[%s9249 + $0x158] sm:$0xf]
        %v9337 = vld [vmem:[%s9249 + $0x15c] sm:$0xf]
        %v9338 = vld [vmem:[%s9249 + $0x160] sm:$0xf]
        %v9339 = vld [vmem:[%s9249 + $0x164] sm:$0xf]
        %v9340 = vld [vmem:[%s9249 + $0x168] sm:$0xf]
        %v9341 = vld [vmem:[%s9249 + $0x16c] sm:$0xf]
        %v9342 = vld [vmem:[%s9249 + $0x170] sm:$0xf]
        %v9343 = vld [vmem:[%s9249 + $0x174] sm:$0xf]
        %v9344 = vld [vmem:[%s9249 + $0x178] sm:$0xf]
        %v9345 = vld [vmem:[%s9249 + $0x17c] sm:$0xf]
        %v9346 = vld [vmem:[%s9249 + $0x180] sm:$0xf]
        %v9347 = vld [vmem:[%s9249 + $0x184] sm:$0xf]
        %v9348 = vld [vmem:[%s9249 + $0x188] sm:$0xf]
        %v9349 = vld [vmem:[%s9249 + $0x18c] sm:$0xf]
        %v9350 = vld [vmem:[%s9249 + $0x190] sm:$0xf]
        %v9351 = vld [vmem:[%s9249 + $0x194] sm:$0xf]
        %v9352 = vld [vmem:[%s9249 + $0x198] sm:$0xf]
        %v9353 = vld [vmem:[%s9249 + $0x19c] sm:$0xf]
        %v9354 = vld [vmem:[%s9249 + $0x1a0] sm:$0xf]
        %v9355 = vld [vmem:[%s9249 + $0x1a4] sm:$0xf]
        %v9356 = vld [vmem:[%s9249 + $0x1a8] sm:$0xf]
        %v9357 = vld [vmem:[%s9249 + $0x1ac] sm:$0xf]
        %v9358 = vld [vmem:[%s9249 + $0x1b0] sm:$0xf]
        %v9359 = vld [vmem:[%s9249 + $0x1b4] sm:$0xf]
        %v9360 = vld [vmem:[%s9249 + $0x1b8] sm:$0xf]
        %v9361 = vld [vmem:[%s9249 + $0x1bc] sm:$0xf]
        %v9362 = vld [vmem:[%s9249 + $0x1c0] sm:$0xf]
        %v9363 = vld [vmem:[%s9249 + $0x1c4] sm:$0xf]
        %v9364 = vld [vmem:[%s9249 + $0x1c8] sm:$0xf]
        %v9365 = vld [vmem:[%s9249 + $0x1cc] sm:$0xf]
        %v9366 = vld [vmem:[%s9249 + $0x1d0] sm:$0xf]
        %v9367 = vld [vmem:[%s9249 + $0x1d4] sm:$0xf]
        %v9368 = vld [vmem:[%s9249 + $0x1d8] sm:$0xf]
        %v9369 = vld [vmem:[%s9249 + $0x1dc] sm:$0xf]
        %v9370 = vld [vmem:[%s9249 + $0x1e0] sm:$0xf]
        %v9371 = vld [vmem:[%s9249 + $0x1e4] sm:$0xf]
        %v9372 = vld [vmem:[%s9249 + $0x1e8] sm:$0xf]
        %v9373 = vld [vmem:[%s9249 + $0x1ec] sm:$0xf]
        %v9374 = vld [vmem:[%s9249 + $0x1f0] sm:$0xf]
        %v9375 = vld [vmem:[%s9249 + $0x1f4] sm:$0xf]
        %v9376 = vld [vmem:[%s9249 + $0x1f8] sm:$0xf]
        %v9377 = vld [vmem:[%s9249 + $0x1fc] sm:$0xf]
        %v9378 = vld [vmem:[%s9249 + $0x200] sm:$0xf]
        %v9379 = vld [vmem:[%s9249 + $0x204] sm:$0xf]
        %v9380 = vld [vmem:[%s9249 + $0x208] sm:$0xf]
        %v9381 = vld [vmem:[%s9249 + $0x20c] sm:$0xf]
        %v9382 = vld [vmem:[%s9249 + $0x210] sm:$0xf]
        %v9383 = vld [vmem:[%s9249 + $0x214] sm:$0xf]
        %v9384 = vld [vmem:[%s9249 + $0x218] sm:$0xf]
        %v9385 = vld [vmem:[%s9249 + $0x21c] sm:$0xf]
        %v9386 = vld [vmem:[%s9249 + $0x220] sm:$0xf]
        %v9387 = vld [vmem:[%s9249 + $0x224] sm:$0xf]
        %v9388 = vld [vmem:[%s9249 + $0x228] sm:$0xf]
        %v9389 = vld [vmem:[%s9249 + $0x22c] sm:$0xf]
        %v9390 = vld [vmem:[%s9249 + $0x230] sm:$0xf]
        %v9391 = vld [vmem:[%s9249 + $0x234] sm:$0xf]
        %v9392 = vld [vmem:[%s9249 + $0x238] sm:$0xf]
        %v9393 = vld [vmem:[%s9249 + $0x23c] sm:$0xf]
        %v9394 = vpack.c.b16 %v9117, %v9115
        %v9395 = vpack.c.b16 %v9231, %v9229
        %v9396 = vpack.c.b16 %v9232, %v9230
        %v9397 = vpack.c.b16 %v9119, %v9117
        %v9398 = vpack.c.b16 %v9233, %v9231
        %v9399 = vpack.c.b16 %v9234, %v9232
        %v9400 = vpack.c.b16 %v9121, %v9119
        %v9401 = vpack.c.b16 %v9235, %v9233
        %v9402 = vpack.c.b16 %v9236, %v9234
        %v9403 = vpack.c.b16 %v9123, %v9121
        %v9404 = vpack.c.b16 %v9237, %v9235
        %v9405 = vpack.c.b16 %v9238, %v9236
        %v9406 = vpack.c.b16 %v9125, %v9123
        %v9407 = vpack.c.b16 %v9239, %v9237
        %v9408 = vpack.c.b16 %v9240, %v9238
        %v9409 = vpack.c.b16 %v9127, %v9125
        %v9410 = vpack.c.b16 %v9241, %v9239
        %v9411 = vpack.c.b16 %v9242, %v9240
        %v9412 = vpack.c.b16 %v9129, %v9127
        %v9413 = vpack.c.b16 %v9243, %v9241
        %v9414 = vpack.c.b16 %v9244, %v9242
        %v9415 = vpack.c.b16 %v9205, %v9129
        %v9416 = vpack.c.b16 %v9245, %v9243
        %v9417 = vpack.c.b16 %v9246, %v9244
        %v9418 = vpack.c.b16 %v9218, %v9205
        %v9419 = vpack.c.b16 %v9247, %v9245
        %v9420 = vpack.c.b16 %v9248, %v9246
        %v9592 = vunpack.c.l.b16 %v9250
        %v9593 = vunpack.c.l.b16 %v9251
        %v9594 = vunpack.c.l.b16 %v9252
        %v9595 = vunpack.c.l.b16 %v9253
        %v9596 = vunpack.c.l.b16 %v9254
        %v9597 = vunpack.c.l.b16 %v9255
        %v9598 = vunpack.c.l.b16 %v9256
        %v9599 = vunpack.c.l.b16 %v9257
        %v9600 = vunpack.c.l.b16 %v9258
        %v9601 = vunpack.c.l.b16 %v9259
        %v9602 = vunpack.c.l.b16 %v9260
        %v9603 = vunpack.c.l.b16 %v9261
        %v9604 = vunpack.c.l.b16 %v9262
        %v9605 = vunpack.c.l.b16 %v9263
        %v9606 = vunpack.c.l.b16 %v9264
        %v9607 = vunpack.c.l.b16 %v9265
        %v9608 = vunpack.c.l.b16 %v9266
        %v9609 = vunpack.c.l.b16 %v9267
        %v9610 = vunpack.c.l.b16 %v9268
        %v9611 = vunpack.c.l.b16 %v9269
        %v9612 = vunpack.c.l.b16 %v9270
        %v9613 = vunpack.c.l.b16 %v9271
        %v9614 = vunpack.c.l.b16 %v9272
        %v9615 = vunpack.c.l.b16 %v9273
        %v9616 = vunpack.c.l.b16 %v9274
        %v9617 = vunpack.c.l.b16 %v9275
        %v9618 = vunpack.c.l.b16 %v9276
        %v9619 = vunpack.c.l.b16 %v9277
        %v9620 = vunpack.c.l.b16 %v9278
        %v9621 = vunpack.c.l.b16 %v9279
        %v9622 = vunpack.c.l.b16 %v9280
        %v9623 = vunpack.c.l.b16 %v9281
        %v9624 = vunpack.c.l.b16 %v9282
        %v9625 = vunpack.c.l.b16 %v9283
        %v9626 = vunpack.c.l.b16 %v9284
        %v9627 = vunpack.c.l.b16 %v9285
        %v9628 = vunpack.c.l.b16 %v9286
        %v9629 = vunpack.c.l.b16 %v9287
        %v9630 = vunpack.c.l.b16 %v9288
        %v9631 = vunpack.c.l.b16 %v9289
        %v9632 = vunpack.c.l.b16 %v9290
        %v9633 = vunpack.c.l.b16 %v9291
        %v9634 = vunpack.c.l.b16 %v9292
        %v9635 = vunpack.c.l.b16 %v9293
        %v9636 = vunpack.c.l.b16 %v9294
        %v9637 = vunpack.c.l.b16 %v9295
        %v9638 = vunpack.c.l.b16 %v9296
        %v9639 = vunpack.c.l.b16 %v9297
        %v9640 = vunpack.c.l.b16 %v9298
        %v9641 = vunpack.c.l.b16 %v9299
        %v9642 = vunpack.c.l.b16 %v9300
        %v9643 = vunpack.c.l.b16 %v9301
        %v9644 = vunpack.c.l.b16 %v9302
        %v9645 = vunpack.c.l.b16 %v9303
        %v9646 = vunpack.c.l.b16 %v9304
        %v9647 = vunpack.c.l.b16 %v9305
        %v9648 = vunpack.c.l.b16 %v9306
        %v9649 = vunpack.c.l.b16 %v9307
        %v9650 = vunpack.c.l.b16 %v9308
        %v9651 = vunpack.c.l.b16 %v9309
        %v9652 = vunpack.c.l.b16 %v9310
        %v9653 = vunpack.c.l.b16 %v9311
        %v9654 = vunpack.c.l.b16 %v9312
        %v9655 = vunpack.c.l.b16 %v9313
        %v9656 = vunpack.c.l.b16 %v9314
        %v9657 = vunpack.c.l.b16 %v9315
        %v9658 = vunpack.c.l.b16 %v9316
        %v9659 = vunpack.c.l.b16 %v9317
        %v9660 = vunpack.c.l.b16 %v9318
        %v9661 = vunpack.c.l.b16 %v9319
        %v9662 = vunpack.c.l.b16 %v9320
        %v9663 = vunpack.c.l.b16 %v9321
        %v9664 = vunpack.c.l.b16 %v9322
        %v9665 = vunpack.c.l.b16 %v9323
        %v9666 = vunpack.c.l.b16 %v9324
        %v9667 = vunpack.c.l.b16 %v9325
        %v9668 = vunpack.c.l.b16 %v9326
        %v9669 = vunpack.c.l.b16 %v9327
        %v9670 = vunpack.c.l.b16 %v9328
        %v9671 = vunpack.c.l.b16 %v9329
        %v9672 = vunpack.c.l.b16 %v9330
        %v9673 = vunpack.c.l.b16 %v9331
        %v9674 = vunpack.c.l.b16 %v9332
        %v9675 = vunpack.c.l.b16 %v9333
        %v9676 = vunpack.c.l.b16 %v9334
        %v9677 = vunpack.c.l.b16 %v9335
        %v9678 = vunpack.c.l.b16 %v9336
        %v9679 = vunpack.c.l.b16 %v9337
        %v9680 = vunpack.c.l.b16 %v9338
        %v9681 = vunpack.c.l.b16 %v9339
        %v9682 = vunpack.c.l.b16 %v9340
        %v9683 = vunpack.c.l.b16 %v9341
        %v9684 = vunpack.c.l.b16 %v9342
        %v9685 = vunpack.c.l.b16 %v9343
        %v9686 = vunpack.c.l.b16 %v9344
        %v9687 = vunpack.c.l.b16 %v9345
        %v9688 = vunpack.c.l.b16 %v9346
        %v9689 = vunpack.c.l.b16 %v9347
        %v9690 = vunpack.c.l.b16 %v9348
        %v9691 = vunpack.c.l.b16 %v9349
        %v9692 = vunpack.c.l.b16 %v9350
        %v9693 = vunpack.c.l.b16 %v9351
        %v9694 = vunpack.c.l.b16 %v9352
        %v9695 = vunpack.c.l.b16 %v9353
        %v9696 = vunpack.c.l.b16 %v9354
        %v9697 = vunpack.c.l.b16 %v9355
        %v9698 = vunpack.c.l.b16 %v9356
        %v9699 = vunpack.c.l.b16 %v9357
        %v9700 = vunpack.c.l.b16 %v9358
        %v9701 = vunpack.c.l.b16 %v9359
        %v9702 = vunpack.c.l.b16 %v9360
        %v9703 = vunpack.c.l.b16 %v9361
        %v9704 = vunpack.c.l.b16 %v9362
        %v9705 = vunpack.c.l.b16 %v9363
        %v9706 = vunpack.c.l.b16 %v9364
        %v9707 = vunpack.c.l.b16 %v9365
        %v9708 = vunpack.c.l.b16 %v9366
        %v9709 = vunpack.c.l.b16 %v9367
        %v9710 = vunpack.c.l.b16 %v9368
        %v9711 = vunpack.c.l.b16 %v9369
        %v9712 = vunpack.c.l.b16 %v9370
        %v9713 = vunpack.c.l.b16 %v9371
        %v9714 = vunpack.c.l.b16 %v9372
        %v9715 = vunpack.c.l.b16 %v9373
        %v9716 = vunpack.c.l.b16 %v9374
        %v9717 = vunpack.c.l.b16 %v9375
        %v9718 = vunpack.c.l.b16 %v9376
        %v9719 = vunpack.c.l.b16 %v9377
        %v9720 = vunpack.c.l.b16 %v9378
        %v9721 = vunpack.c.l.b16 %v9379
        %v9722 = vunpack.c.l.b16 %v9380
        %v9723 = vunpack.c.l.b16 %v9381
        %v9724 = vunpack.c.l.b16 %v9382
        %v9725 = vunpack.c.l.b16 %v9383
        %v9726 = vunpack.c.l.b16 %v9384
        %v9727 = vunpack.c.l.b16 %v9385
        %v9728 = vunpack.c.l.b16 %v9386
        %v9729 = vunpack.c.l.b16 %v9387
        %v9730 = vunpack.c.l.b16 %v9388
        %v9731 = vunpack.c.l.b16 %v9389
        %v9732 = vunpack.c.l.b16 %v9390
        %v9733 = vunpack.c.l.b16 %v9391
        %v9734 = vunpack.c.l.b16 %v9392
        %v9735 = vunpack.c.l.b16 %v9393
        %v9736 = vpack.c.b16 %v9593, %v9592
        %v9737 = vpack.c.b16 %v9595, %v9594
        %v9738 = vpack.c.b16 %v9597, %v9596
        %v9739 = vpack.c.b16 %v9599, %v9598
        %v9740 = vpack.c.b16 %v9601, %v9600
        %v9741 = vpack.c.b16 %v9603, %v9602
        %v9742 = vpack.c.b16 %v9605, %v9604
        %v9743 = vpack.c.b16 %v9607, %v9606
        %v9744 = vpack.c.b16 %v9609, %v9608
        %v9745 = vpack.c.b16 %v9611, %v9610
        %v9746 = vpack.c.b16 %v9613, %v9612
        %v9747 = vpack.c.b16 %v9615, %v9614
        %v9748 = vpack.c.b16 %v9617, %v9616
        %v9749 = vpack.c.b16 %v9619, %v9618
        %v9750 = vpack.c.b16 %v9621, %v9620
        %v9751 = vpack.c.b16 %v9623, %v9622
        %v9752 = vpack.c.b16 %v9625, %v9624
        %v9753 = vpack.c.b16 %v9627, %v9626
        %v9754 = vpack.c.b16 %v9629, %v9628
        %v9755 = vpack.c.b16 %v9631, %v9630
        %v9756 = vpack.c.b16 %v9633, %v9632
        %v9757 = vpack.c.b16 %v9635, %v9634
        %v9758 = vpack.c.b16 %v9637, %v9636
        %v9759 = vpack.c.b16 %v9639, %v9638
        %v9760 = vpack.c.b16 %v9641, %v9640
        %v9761 = vpack.c.b16 %v9643, %v9642
        %v9762 = vpack.c.b16 %v9645, %v9644
        %v9763 = vpack.c.b16 %v9647, %v9646
        %v9764 = vpack.c.b16 %v9649, %v9648
        %v9765 = vpack.c.b16 %v9651, %v9650
        %v9766 = vpack.c.b16 %v9653, %v9652
        %v9767 = vpack.c.b16 %v9655, %v9654
        %v9768 = vpack.c.b16 %v9657, %v9656
        %v9769 = vpack.c.b16 %v9659, %v9658
        %v9770 = vpack.c.b16 %v9661, %v9660
        %v9771 = vpack.c.b16 %v9663, %v9662
        %v9772 = vpack.c.b16 %v9665, %v9664
        %v9773 = vpack.c.b16 %v9667, %v9666
        %v9774 = vpack.c.b16 %v9669, %v9668
        %v9775 = vpack.c.b16 %v9671, %v9670
        %v9776 = vpack.c.b16 %v9673, %v9672
        %v9777 = vpack.c.b16 %v9675, %v9674
        %v9778 = vpack.c.b16 %v9677, %v9676
        %v9779 = vpack.c.b16 %v9679, %v9678
        %v9780 = vpack.c.b16 %v9681, %v9680
        %v9781 = vpack.c.b16 %v9683, %v9682
        %v9782 = vpack.c.b16 %v9685, %v9684
        %v9783 = vpack.c.b16 %v9687, %v9686
        %v9784 = vpack.c.b16 %v9689, %v9688
        %v9785 = vpack.c.b16 %v9691, %v9690
        %v9786 = vpack.c.b16 %v9693, %v9692
        %v9787 = vpack.c.b16 %v9695, %v9694
        %v9788 = vpack.c.b16 %v9697, %v9696
        %v9789 = vpack.c.b16 %v9699, %v9698
        %v9790 = vpack.c.b16 %v9701, %v9700
        %v9791 = vpack.c.b16 %v9703, %v9702
        %v9792 = vpack.c.b16 %v9705, %v9704
        %v9793 = vpack.c.b16 %v9707, %v9706
        %v9794 = vpack.c.b16 %v9709, %v9708
        %v9795 = vpack.c.b16 %v9711, %v9710
        %v9796 = vpack.c.b16 %v9713, %v9712
        %v9797 = vpack.c.b16 %v9715, %v9714
        %v9798 = vpack.c.b16 %v9717, %v9716
        %v9799 = vpack.c.b16 %v9719, %v9718
        %v9800 = vpack.c.b16 %v9721, %v9720
        %v9801 = vpack.c.b16 %v9723, %v9722
        %v9802 = vpack.c.b16 %v9725, %v9724
        %v9803 = vpack.c.b16 %v9727, %v9726
        %v9804 = vpack.c.b16 %v9729, %v9728
        %v9805 = vpack.c.b16 %v9731, %v9730
        %v9806 = vpack.c.b16 %v9733, %v9732
        %v9807 = vpack.c.b16 %v9735, %v9734
        %9880 = vmatpush.bf16.msra.mxu0 %v9743
        %9881 = vmatpush.bf16.msra.mxu0 %v9742
        %9882 = vmatpush.bf16.msra.mxu0 %v9741
        %9883 = vmatpush.bf16.msra.mxu0 %v9740
        %9884 = vmatpush.bf16.msra.mxu0 %v9739
        %9885 = vmatpush.bf16.msra.mxu0 %v9738
        %9886 = vmatpush.bf16.msra.mxu0 %v9737
        %9887 = vmatpush.bf16.msra.mxu0 %v9736
        %9888 = vmatmul.bf16.gmra.mxu0 %v9394
        %v9889 = vpop.f32.mrf.mxu0
        %v9890 = vadd.f32 0.0, %v9889
        %v9891 = vpop.f32.mrf.mxu0
        %v9892 = vadd.f32 0.0, %v9891
        %9893 = vmatmul.bf16.gmra.mxu0 %v9400
        %v9894 = vpop.f32.mrf.mxu0
        %v9895 = vadd.f32 0.0, %v9894
        %v9896 = vpop.f32.mrf.mxu0
        %v9897 = vadd.f32 0.0, %v9896
        %9898 = vmatmul.bf16.gmra.mxu0 %v9406
        %v9899 = vpop.f32.mrf.mxu0
        %v9900 = vadd.f32 0.0, %v9899
        %v9901 = vpop.f32.mrf.mxu0
        %v9902 = vadd.f32 0.0, %v9901
        %9903 = vmatmul.bf16.gmra.mxu0 %v9412
        %v9904 = vpop.f32.mrf.mxu0
        %v9905 = vadd.f32 0.0, %v9904
        %v9906 = vpop.f32.mrf.mxu0
        %v9907 = vadd.f32 0.0, %v9906
        %9908 = vdwg.mxu0
        %9909 = vmatpush.bf16.msra.mxu0 %v9751
        %9910 = vmatpush.bf16.msra.mxu0 %v9750
        %9911 = vmatpush.bf16.msra.mxu0 %v9749
        %9912 = vmatpush.bf16.msra.mxu0 %v9748
        %9913 = vmatpush.bf16.msra.mxu0 %v9747
        %9914 = vmatpush.bf16.msra.mxu0 %v9746
        %9915 = vmatpush.bf16.msra.mxu0 %v9745
        %9916 = vmatpush.bf16.msra.mxu0 %v9744
        %9917 = vmatmul.bf16.gmra.mxu0 %v9395
        %v9918 = vpop.f32.mrf.mxu0
        %v9919 = vadd.f32 %v9890, %v9918
        %v9920 = vpop.f32.mrf.mxu0
        %v9921 = vadd.f32 %v9892, %v9920
        %9922 = vmatmul.bf16.gmra.mxu0 %v9401
        %v9923 = vpop.f32.mrf.mxu0
        %v9924 = vadd.f32 %v9895, %v9923
        %v9925 = vpop.f32.mrf.mxu0
        %v9926 = vadd.f32 %v9897, %v9925
        %9927 = vmatmul.bf16.gmra.mxu0 %v9407
        %v9928 = vpop.f32.mrf.mxu0
        %v9929 = vadd.f32 %v9900, %v9928
        %v9930 = vpop.f32.mrf.mxu0
        %v9931 = vadd.f32 %v9902, %v9930
        %9932 = vmatmul.bf16.gmra.mxu0 %v9413
        %v9933 = vpop.f32.mrf.mxu0
        %v9934 = vadd.f32 %v9905, %v9933
        %v9935 = vpop.f32.mrf.mxu0
        %v9936 = vadd.f32 %v9907, %v9935
        %9937 = vdwg.mxu0
        %9938 = vmatpush.bf16.msra.mxu0 %v9759
        %9939 = vmatpush.bf16.msra.mxu0 %v9758
        %9940 = vmatpush.bf16.msra.mxu0 %v9757
        %9941 = vmatpush.bf16.msra.mxu0 %v9756
        %9942 = vmatpush.bf16.msra.mxu0 %v9755
        %9943 = vmatpush.bf16.msra.mxu0 %v9754
        %9944 = vmatpush.bf16.msra.mxu0 %v9753
        %9945 = vmatpush.bf16.msra.mxu0 %v9752
        %9946 = vmatmul.bf16.gmra.mxu0 %v9396
        %v9947 = vpop.f32.mrf.mxu0
        %v9948 = vadd.f32 %v9919, %v9947
        %v9949 = vpop.f32.mrf.mxu0
        %v9950 = vadd.f32 %v9921, %v9949
        %9951 = vmatmul.bf16.gmra.mxu0 %v9402
        %v9952 = vpop.f32.mrf.mxu0
        %v9953 = vadd.f32 %v9924, %v9952
        %v9954 = vpop.f32.mrf.mxu0
        %v9955 = vadd.f32 %v9926, %v9954
        %9956 = vmatmul.bf16.gmra.mxu0 %v9408
        %v9957 = vpop.f32.mrf.mxu0
        %v9958 = vadd.f32 %v9929, %v9957
        %v9959 = vpop.f32.mrf.mxu0
        %v9960 = vadd.f32 %v9931, %v9959
        %9961 = vmatmul.bf16.gmra.mxu0 %v9414
        %v9962 = vpop.f32.mrf.mxu0
        %v9963 = vadd.f32 %v9934, %v9962
        %v9964 = vpop.f32.mrf.mxu0
        %v9965 = vadd.f32 %v9936, %v9964
        %9966 = vdwg.mxu0
        %9967 = vmatpush.bf16.msra.mxu0 %v9767
        %9968 = vmatpush.bf16.msra.mxu0 %v9766
        %9969 = vmatpush.bf16.msra.mxu0 %v9765
        %9970 = vmatpush.bf16.msra.mxu0 %v9764
        %9971 = vmatpush.bf16.msra.mxu0 %v9763
        %9972 = vmatpush.bf16.msra.mxu0 %v9762
        %9973 = vmatpush.bf16.msra.mxu0 %v9761
        %9974 = vmatpush.bf16.msra.mxu0 %v9760
        %9975 = vmatmul.bf16.gmra.mxu0 %v9397
        %v9976 = vpop.f32.mrf.mxu0
        %v9977 = vadd.f32 %v9948, %v9976
        %v9978 = vpop.f32.mrf.mxu0
        %v9979 = vadd.f32 %v9950, %v9978
        %9980 = vmatmul.bf16.gmra.mxu0 %v9403
        %v9981 = vpop.f32.mrf.mxu0
        %v9982 = vadd.f32 %v9953, %v9981
        %v9983 = vpop.f32.mrf.mxu0
        %v9984 = vadd.f32 %v9955, %v9983
        %9985 = vmatmul.bf16.gmra.mxu0 %v9409
        %v9986 = vpop.f32.mrf.mxu0
        %v9987 = vadd.f32 %v9958, %v9986
        %v9988 = vpop.f32.mrf.mxu0
        %v9989 = vadd.f32 %v9960, %v9988
        %9990 = vmatmul.bf16.gmra.mxu0 %v9415
        %v9991 = vpop.f32.mrf.mxu0
        %v9992 = vadd.f32 %v9963, %v9991
        %v9993 = vpop.f32.mrf.mxu0
        %v9994 = vadd.f32 %v9965, %v9993
        %9995 = vdwg.mxu0
        %9996 = vmatpush.bf16.msra.mxu0 %v9775
        %9997 = vmatpush.bf16.msra.mxu0 %v9774
        %9998 = vmatpush.bf16.msra.mxu0 %v9773
        %9999 = vmatpush.bf16.msra.mxu0 %v9772
        %10000 = vmatpush.bf16.msra.mxu0 %v9771
        %10001 = vmatpush.bf16.msra.mxu0 %v9770
        %10002 = vmatpush.bf16.msra.mxu0 %v9769
        %10003 = vmatpush.bf16.msra.mxu0 %v9768
        %10004 = vmatmul.bf16.gmra.mxu0 %v9398
        %v10005 = vpop.f32.mrf.mxu0
        %v10006 = vadd.f32 %v9977, %v10005
        %v10007 = vpop.f32.mrf.mxu0
        %v10008 = vadd.f32 %v9979, %v10007
        %10009 = vmatmul.bf16.gmra.mxu0 %v9404
        %v10010 = vpop.f32.mrf.mxu0
        %v10011 = vadd.f32 %v9982, %v10010
        %v10012 = vpop.f32.mrf.mxu0
        %v10013 = vadd.f32 %v9984, %v10012
        %10014 = vmatmul.bf16.gmra.mxu0 %v9410
        %v10015 = vpop.f32.mrf.mxu0
        %v10016 = vadd.f32 %v9987, %v10015
        %v10017 = vpop.f32.mrf.mxu0
        %v10018 = vadd.f32 %v9989, %v10017
        %10019 = vmatmul.bf16.gmra.mxu0 %v9416
        %v10020 = vpop.f32.mrf.mxu0
        %v10021 = vadd.f32 %v9992, %v10020
        %v10022 = vpop.f32.mrf.mxu0
        %v10023 = vadd.f32 %v9994, %v10022
        %10024 = vdwg.mxu0
        %10025 = vmatpush.bf16.msra.mxu0 %v9783
        %10026 = vmatpush.bf16.msra.mxu0 %v9782
        %10027 = vmatpush.bf16.msra.mxu0 %v9781
        %10028 = vmatpush.bf16.msra.mxu0 %v9780
        %10029 = vmatpush.bf16.msra.mxu0 %v9779
        %10030 = vmatpush.bf16.msra.mxu0 %v9778
        %10031 = vmatpush.bf16.msra.mxu0 %v9777
        %10032 = vmatpush.bf16.msra.mxu0 %v9776
        %10033 = vmatmul.bf16.gmra.mxu0 %v9399
        %v10034 = vpop.f32.mrf.mxu0
        %v10035 = vadd.f32 %v10006, %v10034
        %v10036 = vpop.f32.mrf.mxu0
        %v10037 = vadd.f32 %v10008, %v10036
        %10038 = vmatmul.bf16.gmra.mxu0 %v9405
        %v10039 = vpop.f32.mrf.mxu0
        %v10040 = vadd.f32 %v10011, %v10039
        %v10041 = vpop.f32.mrf.mxu0
        %v10042 = vadd.f32 %v10013, %v10041
        %10043 = vmatmul.bf16.gmra.mxu0 %v9411
        %v10044 = vpop.f32.mrf.mxu0
        %v10045 = vadd.f32 %v10016, %v10044
        %v10046 = vpop.f32.mrf.mxu0
        %v10047 = vadd.f32 %v10018, %v10046
        %10048 = vmatmul.bf16.gmra.mxu0 %v9417
        %v10049 = vpop.f32.mrf.mxu0
        %v10050 = vadd.f32 %v10021, %v10049
        %v10051 = vpop.f32.mrf.mxu0
        %v10052 = vadd.f32 %v10023, %v10051
        %10053 = vdwg.mxu0
        %10054 = vmatpush.bf16.msra.mxu0 %v9791
        %10055 = vmatpush.bf16.msra.mxu0 %v9790
        %10056 = vmatpush.bf16.msra.mxu0 %v9789
        %10057 = vmatpush.bf16.msra.mxu0 %v9788
        %10058 = vmatpush.bf16.msra.mxu0 %v9787
        %10059 = vmatpush.bf16.msra.mxu0 %v9786
        %10060 = vmatpush.bf16.msra.mxu0 %v9785
        %10061 = vmatpush.bf16.msra.mxu0 %v9784
        %10062 = vmatmul.bf16.gmra.mxu0 %v9400
        %v10063 = vpop.f32.mrf.mxu0
        %v10064 = vadd.f32 %v10035, %v10063
        %v10065 = vpop.f32.mrf.mxu0
        %v10066 = vadd.f32 %v10037, %v10065
        %10067 = vmatmul.bf16.gmra.mxu0 %v9406
        %v10068 = vpop.f32.mrf.mxu0
        %v10069 = vadd.f32 %v10040, %v10068
        %v10070 = vpop.f32.mrf.mxu0
        %v10071 = vadd.f32 %v10042, %v10070
        %10072 = vmatmul.bf16.gmra.mxu0 %v9412
        %v10073 = vpop.f32.mrf.mxu0
        %v10074 = vadd.f32 %v10045, %v10073
        %v10075 = vpop.f32.mrf.mxu0
        %v10076 = vadd.f32 %v10047, %v10075
        %10077 = vmatmul.bf16.gmra.mxu0 %v9418
        %v10078 = vpop.f32.mrf.mxu0
        %v10079 = vadd.f32 %v10050, %v10078
        %v10080 = vpop.f32.mrf.mxu0
        %v10081 = vadd.f32 %v10052, %v10080
        %10082 = vdwg.mxu0
        %10083 = vmatpush.bf16.msra.mxu0 %v9799
        %10084 = vmatpush.bf16.msra.mxu0 %v9798
        %10085 = vmatpush.bf16.msra.mxu0 %v9797
        %10086 = vmatpush.bf16.msra.mxu0 %v9796
        %10087 = vmatpush.bf16.msra.mxu0 %v9795
        %10088 = vmatpush.bf16.msra.mxu0 %v9794
        %10089 = vmatpush.bf16.msra.mxu0 %v9793
        %10090 = vmatpush.bf16.msra.mxu0 %v9792
        %10091 = vmatmul.bf16.gmra.mxu0 %v9401
        %v10092 = vpop.f32.mrf.mxu0
        %v10093 = vadd.f32 %v10064, %v10092
        %v10094 = vpop.f32.mrf.mxu0
        %v10095 = vadd.f32 %v10066, %v10094
        %10096 = vmatmul.bf16.gmra.mxu0 %v9407
        %v10097 = vpop.f32.mrf.mxu0
        %v10098 = vadd.f32 %v10069, %v10097
        %v10099 = vpop.f32.mrf.mxu0
        %v10100 = vadd.f32 %v10071, %v10099
        %10101 = vmatmul.bf16.gmra.mxu0 %v9413
        %v10102 = vpop.f32.mrf.mxu0
        %v10103 = vadd.f32 %v10074, %v10102
        %v10104 = vpop.f32.mrf.mxu0
        %v10105 = vadd.f32 %v10076, %v10104
        %10106 = vmatmul.bf16.gmra.mxu0 %v9419
        %v10107 = vpop.f32.mrf.mxu0
        %v10108 = vadd.f32 %v10079, %v10107
        %v10109 = vpop.f32.mrf.mxu0
        %v10110 = vadd.f32 %v10081, %v10109
        %10111 = vdwg.mxu0
        %10112 = vmatpush.bf16.msra.mxu0 %v9807
        %10113 = vmatpush.bf16.msra.mxu0 %v9806
        %10114 = vmatpush.bf16.msra.mxu0 %v9805
        %10115 = vmatpush.bf16.msra.mxu0 %v9804
        %10116 = vmatpush.bf16.msra.mxu0 %v9803
        %10117 = vmatpush.bf16.msra.mxu0 %v9802
        %10118 = vmatpush.bf16.msra.mxu0 %v9801
        %10119 = vmatpush.bf16.msra.mxu0 %v9800
        %10120 = vmatmul.bf16.gmra.mxu0 %v9402
        %v10121 = vpop.f32.mrf.mxu0
        %v10122 = vadd.f32 %v10093, %v10121
        %v10123 = vpop.f32.mrf.mxu0
        %v10124 = vadd.f32 %v10095, %v10123
        %10125 = vmatmul.bf16.gmra.mxu0 %v9408
        %v10126 = vpop.f32.mrf.mxu0
        %v10127 = vadd.f32 %v10098, %v10126
        %v10128 = vpop.f32.mrf.mxu0
        %v10129 = vadd.f32 %v10100, %v10128
        %10130 = vmatmul.bf16.gmra.mxu0 %v9414
        %v10131 = vpop.f32.mrf.mxu0
        %v10132 = vadd.f32 %v10103, %v10131
        %v10133 = vpop.f32.mrf.mxu0
        %v10134 = vadd.f32 %v10105, %v10133
        %10135 = vmatmul.bf16.gmra.mxu0 %v9420
        %v10136 = vpop.f32.mrf.mxu0
        %v10137 = vadd.f32 %v10108, %v10136
        %v10138 = vpop.f32.mrf.mxu0
        %v10139 = vadd.f32 %v10110, %v10138
        %10140 = vdwg.mxu0
        %s10141 = sld [smem:[#allocation4 + $0x7]]
        %vm10142 = vcmp.ge.f32.partialorder %v10122, 0.0
        %vm10143 = vcmp.ge.f32.partialorder %v10124, 0.0
        %vm10144 = vcmp.ge.f32.partialorder %v10127, 0.0
        %vm10145 = vcmp.ge.f32.partialorder %v10129, 0.0
        %vm10146 = vcmp.ge.f32.partialorder %v10132, 0.0
        %vm10147 = vcmp.ge.f32.partialorder %v10134, 0.0
        %vm10148 = vcmp.ge.f32.partialorder %v10137, 0.0
        %vm10149 = vcmp.ge.f32.partialorder %v10139, 0.0
        %v10150 = vstv %s10141
        %v10151 = vmul.f32 %v10150, %v10122
        %v10152 = vmul.f32 %v10150, %v10124
        %v10153 = vmul.f32 %v10150, %v10127
        %v10154 = vmul.f32 %v10150, %v10129
        %v10155 = vmul.f32 %v10150, %v10132
        %v10156 = vmul.f32 %v10150, %v10134
        %v10157 = vmul.f32 %v10150, %v10137
        %v10158 = vmul.f32 %v10150, %v10139
        %v10159 = vsel %vm10142, %v10122, %v10151
        %v10160 = vsel %vm10143, %v10124, %v10152
        %v10161 = vsel %vm10144, %v10127, %v10153
        %v10162 = vsel %vm10145, %v10129, %v10154
        %v10163 = vsel %vm10146, %v10132, %v10155
        %v10164 = vsel %vm10147, %v10134, %v10156
        %v10165 = vsel %vm10148, %v10137, %v10157
        %v10166 = vsel %vm10149, %v10139, %v10158
        %v10167 = vld [vmem:[#allocation3] sm:$0xff]
        %v10168 = vld [vmem:[#allocation3 + $0x8] sm:$0xff]
        %v10169 = vld [vmem:[#allocation3 + $0x10] sm:$0xff]
        %v10170 = vld [vmem:[#allocation3 + $0x18] sm:$0xff]
        %v10171 = vld [vmem:[#allocation3 + $0x20] sm:$0xff]
        %v10172 = vld [vmem:[#allocation3 + $0x28] sm:$0xff]
        %v10173 = vld [vmem:[#allocation3 + $0x30] sm:$0xff]
        %v10174 = vld [vmem:[#allocation3 + $0x38] sm:$0xff]
        %v10175 = vadd.f32 %v10159, %v10167
        %v10176 = vadd.f32 %v10160, %v10168
        %v10177 = vadd.f32 %v10161, %v10169
        %v10178 = vadd.f32 %v10162, %v10170
        %v10179 = vadd.f32 %v10163, %v10171
        %v10180 = vadd.f32 %v10164, %v10172
        %v10181 = vadd.f32 %v10165, %v10173
        %v10182 = vadd.f32 %v10166, %v10174
        %v10183 = vpack.c.bf16 %v10175, %v10175
        %v10184 = vpack.c.bf16 %v10176, %v10176
        %v10185 = vpack.c.bf16 %v10177, %v10177
        %v10186 = vpack.c.bf16 %v10178, %v10178
        %v10187 = vpack.c.bf16 %v10179, %v10179
        %v10188 = vpack.c.bf16 %v10180, %v10180
        %v10189 = vpack.c.bf16 %v10181, %v10181
        %v10190 = vpack.c.bf16 %v10182, %v10182
        %v10192 = vshrl.u32 %v10183, 16
        %v10194 = vrot.slane %v10192, 7
        %v10195 = vshll.u32 %v10183, 16
        %v10197 = vor.u32 %v10194, %v10195
        %v10198 = vrot.slane %v10194, 4
        %v10200 = vshrl.u32 %v10184, 16
        %v10202 = vrot.slane %v10200, 7
        %v10203 = vshll.u32 %v10184, 16
        %v10205 = vor.u32 %v10202, %v10203
        %v10206 = vrot.slane %v10202, 4
        %v10208 = vshrl.u32 %v10185, 16
        %v10210 = vrot.slane %v10208, 7
        %v10211 = vshll.u32 %v10185, 16
        %v10213 = vor.u32 %v10210, %v10211
        %v10214 = vrot.slane %v10210, 4
        %v10216 = vshrl.u32 %v10186, 16
        %v10218 = vrot.slane %v10216, 7
        %v10219 = vshll.u32 %v10186, 16
        %v10221 = vor.u32 %v10218, %v10219
        %v10222 = vrot.slane %v10218, 4
        %v10224 = vshrl.u32 %v10187, 16
        %v10226 = vrot.slane %v10224, 7
        %v10227 = vshll.u32 %v10187, 16
        %v10229 = vor.u32 %v10226, %v10227
        %v10230 = vrot.slane %v10226, 4
        %v10232 = vshrl.u32 %v10188, 16
        %v10234 = vrot.slane %v10232, 7
        %v10235 = vshll.u32 %v10188, 16
        %v10237 = vor.u32 %v10234, %v10235
        %v10238 = vrot.slane %v10234, 4
        %v10240 = vshrl.u32 %v10189, 16
        %v10242 = vrot.slane %v10240, 7
        %v10243 = vshll.u32 %v10189, 16
        %v10245 = vor.u32 %v10242, %v10243
        %v10246 = vrot.slane %v10242, 4
        %v10248 = vshrl.u32 %v10190, 16
        %v10250 = vrot.slane %v10248, 7
        %v10251 = vshll.u32 %v10190, 16
        %v10253 = vor.u32 %v10250, %v10251
        %v10254 = vrot.slane %v10250, 4
        %v10271 = vld [vmem:[%s389] sm:$0xf]
        %v10272 = vsel %vm391, %v10197, %v10271
        %10273 = vst [vmem:[%s389] sm:$0xf] %v10272
        %v10274 = vld [vmem:[%s389 + $0x4] sm:$0x1]
        %v10275 = vsel %vm230, %v10198, %v10274
        %10276 = vst [vmem:[%s389 + $0x4] sm:$0x1] %v10275
        %v10277 = vld [vmem:[%s389 + $0x8] sm:$0xf]
        %v10278 = vsel %vm391, %v10205, %v10277
        %10279 = vst [vmem:[%s389 + $0x8] sm:$0xf] %v10278
        %v10280 = vld [vmem:[%s389 + $0xc] sm:$0x1]
        %v10281 = vsel %vm230, %v10206, %v10280
        %10282 = vst [vmem:[%s389 + $0xc] sm:$0x1] %v10281
        %v10283 = vld [vmem:[%s389 + $0x10] sm:$0xf]
        %v10284 = vsel %vm391, %v10213, %v10283
        %10285 = vst [vmem:[%s389 + $0x10] sm:$0xf] %v10284
        %v10286 = vld [vmem:[%s389 + $0x14] sm:$0x1]
        %v10287 = vsel %vm230, %v10214, %v10286
        %10288 = vst [vmem:[%s389 + $0x14] sm:$0x1] %v10287
        %v10289 = vld [vmem:[%s389 + $0x18] sm:$0xf]
        %v10290 = vsel %vm391, %v10221, %v10289
        %10291 = vst [vmem:[%s389 + $0x18] sm:$0xf] %v10290
        %v10292 = vld [vmem:[%s389 + $0x1c] sm:$0x1]
        %v10293 = vsel %vm230, %v10222, %v10292
        %10294 = vst [vmem:[%s389 + $0x1c] sm:$0x1] %v10293
        %v10295 = vld [vmem:[%s389 + $0x20] sm:$0xf]
        %v10296 = vsel %vm391, %v10229, %v10295
        %10297 = vst [vmem:[%s389 + $0x20] sm:$0xf] %v10296
        %v10298 = vld [vmem:[%s389 + $0x24] sm:$0x1]
        %v10299 = vsel %vm230, %v10230, %v10298
        %10300 = vst [vmem:[%s389 + $0x24] sm:$0x1] %v10299
        %v10301 = vld [vmem:[%s389 + $0x28] sm:$0xf]
        %v10302 = vsel %vm391, %v10237, %v10301
        %10303 = vst [vmem:[%s389 + $0x28] sm:$0xf] %v10302
        %v10304 = vld [vmem:[%s389 + $0x2c] sm:$0x1]
        %v10305 = vsel %vm230, %v10238, %v10304
        %10306 = vst [vmem:[%s389 + $0x2c] sm:$0x1] %v10305
        %v10307 = vld [vmem:[%s389 + $0x30] sm:$0xf]
        %v10308 = vsel %vm391, %v10245, %v10307
        %10309 = vst [vmem:[%s389 + $0x30] sm:$0xf] %v10308
        %v10310 = vld [vmem:[%s389 + $0x34] sm:$0x1]
        %v10311 = vsel %vm230, %v10246, %v10310
        %10312 = vst [vmem:[%s389 + $0x34] sm:$0x1] %v10311
        %v10313 = vld [vmem:[%s389 + $0x38] sm:$0xf]
        %v10314 = vsel %vm391, %v10253, %v10313
        %10315 = vst [vmem:[%s389 + $0x38] sm:$0xf] %v10314
        %v10316 = vld [vmem:[%s389 + $0x3c] sm:$0x1]
        %v10317 = vsel %vm230, %v10254, %v10316
        %10318 = vst [vmem:[%s389 + $0x3c] sm:$0x1] %v10317
        %v10319 = vld [vmem:[#allocation2] sm:$0xf]
        %v10320 = vld [vmem:[#allocation2 + $0x4] sm:$0x1]
        %v10321 = vld [vmem:[#allocation2 + $0x8] sm:$0xf]
        %v10322 = vld [vmem:[#allocation2 + $0xc] sm:$0x1]
        %v10323 = vld [vmem:[#allocation2 + $0x10] sm:$0xf]
        %v10324 = vld [vmem:[#allocation2 + $0x14] sm:$0x1]
        %v10325 = vld [vmem:[#allocation2 + $0x18] sm:$0xf]
        %v10326 = vld [vmem:[#allocation2 + $0x1c] sm:$0x1]
        %v10327 = vld [vmem:[#allocation2 + $0x20] sm:$0xf]
        %v10328 = vld [vmem:[#allocation2 + $0x24] sm:$0x1]
        %v10329 = vld [vmem:[#allocation2 + $0x28] sm:$0xf]
        %v10330 = vld [vmem:[#allocation2 + $0x2c] sm:$0x1]
        %v10331 = vld [vmem:[#allocation2 + $0x30] sm:$0xf]
        %v10332 = vld [vmem:[#allocation2 + $0x34] sm:$0x1]
        %v10333 = vld [vmem:[#allocation2 + $0x38] sm:$0xf]
        %v10334 = vld [vmem:[#allocation2 + $0x3c] sm:$0x1]
        %v10335 = vld [vmem:[#allocation2 + $0x40] sm:$0xf]
        %v10336 = vld [vmem:[#allocation2 + $0x44] sm:$0x1]
        %v10337 = vld [vmem:[#allocation2 + $0x48] sm:$0xf]
        %v10338 = vld [vmem:[#allocation2 + $0x4c] sm:$0x1]
        %v10355 = vunpack.c.l.b16 %v10319
        %v10356 = vunpack.c.l.b16 %v10320
        %v10357 = vunpack.c.l.b16 %v10321
        %v10358 = vunpack.c.l.b16 %v10322
        %v10359 = vunpack.c.l.b16 %v10323
        %v10360 = vunpack.c.l.b16 %v10324
        %v10361 = vunpack.c.l.b16 %v10325
        %v10362 = vunpack.c.l.b16 %v10326
        %v10363 = vunpack.c.l.b16 %v10327
        %v10364 = vunpack.c.l.b16 %v10328
        %v10365 = vunpack.c.l.b16 %v10329
        %v10366 = vunpack.c.l.b16 %v10330
        %v10367 = vunpack.c.l.b16 %v10331
        %v10368 = vunpack.c.l.b16 %v10332
        %v10369 = vunpack.c.l.b16 %v10333
        %v10370 = vunpack.c.l.b16 %v10334
        %v10371 = vpack.c.b16 %v10356, %v10355
        %v10372 = vpack.c.b16 %v10358, %v10357
        %v10373 = vpack.c.b16 %v10360, %v10359
        %v10374 = vpack.c.b16 %v10362, %v10361
        %v10375 = vpack.c.b16 %v10364, %v10363
        %v10376 = vpack.c.b16 %v10366, %v10365
        %v10377 = vpack.c.b16 %v10368, %v10367
        %v10378 = vpack.c.b16 %v10370, %v10369
        %v10380 = vshrl.u32 %v10371, 16
        %v10382 = vshll.u32 %v10371, 16
        %v10384 = vrot.slane %v10382, 1
        %v10385 = vor.u32 %v10380, %v10384
        %v10387 = vshrl.u32 %v10372, 16
        %v10389 = vshll.u32 %v10372, 16
        %v10391 = vrot.slane %v10389, 1
        %v10392 = vor.u32 %v10387, %v10391
        %v10394 = vshrl.u32 %v10373, 16
        %v10396 = vshll.u32 %v10373, 16
        %v10398 = vrot.slane %v10396, 1
        %v10399 = vor.u32 %v10394, %v10398
        %v10401 = vshrl.u32 %v10374, 16
        %v10403 = vshll.u32 %v10374, 16
        %v10405 = vrot.slane %v10403, 1
        %v10406 = vor.u32 %v10401, %v10405
        %v10408 = vshrl.u32 %v10375, 16
        %v10410 = vshll.u32 %v10375, 16
        %v10412 = vrot.slane %v10410, 1
        %v10413 = vor.u32 %v10408, %v10412
        %v10415 = vshrl.u32 %v10376, 16
        %v10417 = vshll.u32 %v10376, 16
        %v10419 = vrot.slane %v10417, 1
        %v10420 = vor.u32 %v10415, %v10419
        %v10422 = vshrl.u32 %v10377, 16
        %v10424 = vshll.u32 %v10377, 16
        %v10426 = vrot.slane %v10424, 1
        %v10427 = vor.u32 %v10422, %v10426
        %v10429 = vshrl.u32 %v10378, 16
        %v10431 = vshll.u32 %v10378, 16
        %v10433 = vrot.slane %v10431, 1
        %v10434 = vor.u32 %v10429, %v10433
        %v10435 = vrot.slane %v10371, 1
        %v10436 = vrot.slane %v10372, 1
        %v10437 = vrot.slane %v10373, 1
        %v10438 = vrot.slane %v10374, 1
        %v10439 = vrot.slane %v10375, 1
        %v10440 = vrot.slane %v10376, 1
        %v10441 = vrot.slane %v10377, 1
        %v10442 = vrot.slane %v10378, 1
        %v10445 = vunpack.c.l.b16 %v10335
        %v10446 = vunpack.c.l.b16 %v10336
        %v10447 = vpack.c.b16 %v10446, %v10445
        %v10449 = vshrl.u32 %v10447, 16
        %v10451 = vshll.u32 %v10447, 16
        %v10453 = vrot.slane %v10451, 1
        %v10454 = vor.u32 %v10449, %v10453
        %v10455 = vrot.slane %v10447, 1
        %v10458 = vunpack.c.l.b16 %v10337
        %v10459 = vunpack.c.l.b16 %v10338
        %v10460 = vpack.c.b16 %v10459, %v10458
        %v10462 = vshrl.u32 %v10460, 16
        %v10464 = vshll.u32 %v10460, 16
        %v10466 = vrot.slane %v10464, 1
        %v10467 = vor.u32 %v10462, %v10466
        %v10468 = vrot.slane %v10460, 1
        %v10469 = vunpack.c.l.b16 %v10385
        %v10470 = vunpack.c.l.b16 %v10435
        %v10471 = vunpack.c.l.b16 %v10392
        %v10472 = vunpack.c.l.b16 %v10436
        %v10473 = vunpack.c.l.b16 %v10399
        %v10474 = vunpack.c.l.b16 %v10437
        %v10475 = vunpack.c.l.b16 %v10406
        %v10476 = vunpack.c.l.b16 %v10438
        %v10477 = vunpack.c.l.b16 %v10413
        %v10478 = vunpack.c.l.b16 %v10439
        %v10479 = vunpack.c.l.b16 %v10420
        %v10480 = vunpack.c.l.b16 %v10440
        %v10481 = vunpack.c.l.b16 %v10427
        %v10482 = vunpack.c.l.b16 %v10441
        %v10483 = vunpack.c.l.b16 %v10434
        %v10484 = vunpack.c.l.b16 %v10442
        %v10485 = vunpack.c.l.b16 %v10454
        %v10486 = vunpack.c.l.b16 %v10455
        %v10487 = vunpack.c.l.b16 %v10467
        %v10488 = vunpack.c.l.b16 %v10468
        %s10489 = scalar_lea.vmem [#allocation9], 4608
        %v10490 = vld [vmem:[%s10489] sm:$0xf]
        %v10491 = vld [vmem:[%s10489 + $0x4] sm:$0xf]
        %v10492 = vld [vmem:[%s10489 + $0x8] sm:$0xf]
        %v10493 = vld [vmem:[%s10489 + $0xc] sm:$0xf]
        %v10494 = vld [vmem:[%s10489 + $0x10] sm:$0xf]
        %v10495 = vld [vmem:[%s10489 + $0x14] sm:$0xf]
        %v10496 = vld [vmem:[%s10489 + $0x18] sm:$0xf]
        %v10497 = vld [vmem:[%s10489 + $0x1c] sm:$0xf]
        %v10498 = vld [vmem:[%s10489 + $0x20] sm:$0xf]
        %v10499 = vld [vmem:[%s10489 + $0x24] sm:$0xf]
        %v10500 = vld [vmem:[%s10489 + $0x28] sm:$0xf]
        %v10501 = vld [vmem:[%s10489 + $0x2c] sm:$0xf]
        %v10502 = vld [vmem:[%s10489 + $0x30] sm:$0xf]
        %v10503 = vld [vmem:[%s10489 + $0x34] sm:$0xf]
        %v10504 = vld [vmem:[%s10489 + $0x38] sm:$0xf]
        %v10505 = vld [vmem:[%s10489 + $0x3c] sm:$0xf]
        %v10506 = vld [vmem:[%s10489 + $0x40] sm:$0xf]
        %v10507 = vld [vmem:[%s10489 + $0x44] sm:$0xf]
        %v10508 = vld [vmem:[%s10489 + $0x48] sm:$0xf]
        %v10509 = vld [vmem:[%s10489 + $0x4c] sm:$0xf]
        %v10510 = vld [vmem:[%s10489 + $0x50] sm:$0xf]
        %v10511 = vld [vmem:[%s10489 + $0x54] sm:$0xf]
        %v10512 = vld [vmem:[%s10489 + $0x58] sm:$0xf]
        %v10513 = vld [vmem:[%s10489 + $0x5c] sm:$0xf]
        %v10514 = vld [vmem:[%s10489 + $0x60] sm:$0xf]
        %v10515 = vld [vmem:[%s10489 + $0x64] sm:$0xf]
        %v10516 = vld [vmem:[%s10489 + $0x68] sm:$0xf]
        %v10517 = vld [vmem:[%s10489 + $0x6c] sm:$0xf]
        %v10518 = vld [vmem:[%s10489 + $0x70] sm:$0xf]
        %v10519 = vld [vmem:[%s10489 + $0x74] sm:$0xf]
        %v10520 = vld [vmem:[%s10489 + $0x78] sm:$0xf]
        %v10521 = vld [vmem:[%s10489 + $0x7c] sm:$0xf]
        %v10522 = vld [vmem:[%s10489 + $0x80] sm:$0xf]
        %v10523 = vld [vmem:[%s10489 + $0x84] sm:$0xf]
        %v10524 = vld [vmem:[%s10489 + $0x88] sm:$0xf]
        %v10525 = vld [vmem:[%s10489 + $0x8c] sm:$0xf]
        %v10526 = vld [vmem:[%s10489 + $0x90] sm:$0xf]
        %v10527 = vld [vmem:[%s10489 + $0x94] sm:$0xf]
        %v10528 = vld [vmem:[%s10489 + $0x98] sm:$0xf]
        %v10529 = vld [vmem:[%s10489 + $0x9c] sm:$0xf]
        %v10530 = vld [vmem:[%s10489 + $0xa0] sm:$0xf]
        %v10531 = vld [vmem:[%s10489 + $0xa4] sm:$0xf]
        %v10532 = vld [vmem:[%s10489 + $0xa8] sm:$0xf]
        %v10533 = vld [vmem:[%s10489 + $0xac] sm:$0xf]
        %v10534 = vld [vmem:[%s10489 + $0xb0] sm:$0xf]
        %v10535 = vld [vmem:[%s10489 + $0xb4] sm:$0xf]
        %v10536 = vld [vmem:[%s10489 + $0xb8] sm:$0xf]
        %v10537 = vld [vmem:[%s10489 + $0xbc] sm:$0xf]
        %v10538 = vld [vmem:[%s10489 + $0xc0] sm:$0xf]
        %v10539 = vld [vmem:[%s10489 + $0xc4] sm:$0xf]
        %v10540 = vld [vmem:[%s10489 + $0xc8] sm:$0xf]
        %v10541 = vld [vmem:[%s10489 + $0xcc] sm:$0xf]
        %v10542 = vld [vmem:[%s10489 + $0xd0] sm:$0xf]
        %v10543 = vld [vmem:[%s10489 + $0xd4] sm:$0xf]
        %v10544 = vld [vmem:[%s10489 + $0xd8] sm:$0xf]
        %v10545 = vld [vmem:[%s10489 + $0xdc] sm:$0xf]
        %v10546 = vld [vmem:[%s10489 + $0xe0] sm:$0xf]
        %v10547 = vld [vmem:[%s10489 + $0xe4] sm:$0xf]
        %v10548 = vld [vmem:[%s10489 + $0xe8] sm:$0xf]
        %v10549 = vld [vmem:[%s10489 + $0xec] sm:$0xf]
        %v10550 = vld [vmem:[%s10489 + $0xf0] sm:$0xf]
        %v10551 = vld [vmem:[%s10489 + $0xf4] sm:$0xf]
        %v10552 = vld [vmem:[%s10489 + $0xf8] sm:$0xf]
        %v10553 = vld [vmem:[%s10489 + $0xfc] sm:$0xf]
        %v10554 = vld [vmem:[%s10489 + $0x100] sm:$0xf]
        %v10555 = vld [vmem:[%s10489 + $0x104] sm:$0xf]
        %v10556 = vld [vmem:[%s10489 + $0x108] sm:$0xf]
        %v10557 = vld [vmem:[%s10489 + $0x10c] sm:$0xf]
        %v10558 = vld [vmem:[%s10489 + $0x110] sm:$0xf]
        %v10559 = vld [vmem:[%s10489 + $0x114] sm:$0xf]
        %v10560 = vld [vmem:[%s10489 + $0x118] sm:$0xf]
        %v10561 = vld [vmem:[%s10489 + $0x11c] sm:$0xf]
        %v10562 = vld [vmem:[%s10489 + $0x120] sm:$0xf]
        %v10563 = vld [vmem:[%s10489 + $0x124] sm:$0xf]
        %v10564 = vld [vmem:[%s10489 + $0x128] sm:$0xf]
        %v10565 = vld [vmem:[%s10489 + $0x12c] sm:$0xf]
        %v10566 = vld [vmem:[%s10489 + $0x130] sm:$0xf]
        %v10567 = vld [vmem:[%s10489 + $0x134] sm:$0xf]
        %v10568 = vld [vmem:[%s10489 + $0x138] sm:$0xf]
        %v10569 = vld [vmem:[%s10489 + $0x13c] sm:$0xf]
        %v10570 = vld [vmem:[%s10489 + $0x140] sm:$0xf]
        %v10571 = vld [vmem:[%s10489 + $0x144] sm:$0xf]
        %v10572 = vld [vmem:[%s10489 + $0x148] sm:$0xf]
        %v10573 = vld [vmem:[%s10489 + $0x14c] sm:$0xf]
        %v10574 = vld [vmem:[%s10489 + $0x150] sm:$0xf]
        %v10575 = vld [vmem:[%s10489 + $0x154] sm:$0xf]
        %v10576 = vld [vmem:[%s10489 + $0x158] sm:$0xf]
        %v10577 = vld [vmem:[%s10489 + $0x15c] sm:$0xf]
        %v10578 = vld [vmem:[%s10489 + $0x160] sm:$0xf]
        %v10579 = vld [vmem:[%s10489 + $0x164] sm:$0xf]
        %v10580 = vld [vmem:[%s10489 + $0x168] sm:$0xf]
        %v10581 = vld [vmem:[%s10489 + $0x16c] sm:$0xf]
        %v10582 = vld [vmem:[%s10489 + $0x170] sm:$0xf]
        %v10583 = vld [vmem:[%s10489 + $0x174] sm:$0xf]
        %v10584 = vld [vmem:[%s10489 + $0x178] sm:$0xf]
        %v10585 = vld [vmem:[%s10489 + $0x17c] sm:$0xf]
        %v10586 = vld [vmem:[%s10489 + $0x180] sm:$0xf]
        %v10587 = vld [vmem:[%s10489 + $0x184] sm:$0xf]
        %v10588 = vld [vmem:[%s10489 + $0x188] sm:$0xf]
        %v10589 = vld [vmem:[%s10489 + $0x18c] sm:$0xf]
        %v10590 = vld [vmem:[%s10489 + $0x190] sm:$0xf]
        %v10591 = vld [vmem:[%s10489 + $0x194] sm:$0xf]
        %v10592 = vld [vmem:[%s10489 + $0x198] sm:$0xf]
        %v10593 = vld [vmem:[%s10489 + $0x19c] sm:$0xf]
        %v10594 = vld [vmem:[%s10489 + $0x1a0] sm:$0xf]
        %v10595 = vld [vmem:[%s10489 + $0x1a4] sm:$0xf]
        %v10596 = vld [vmem:[%s10489 + $0x1a8] sm:$0xf]
        %v10597 = vld [vmem:[%s10489 + $0x1ac] sm:$0xf]
        %v10598 = vld [vmem:[%s10489 + $0x1b0] sm:$0xf]
        %v10599 = vld [vmem:[%s10489 + $0x1b4] sm:$0xf]
        %v10600 = vld [vmem:[%s10489 + $0x1b8] sm:$0xf]
        %v10601 = vld [vmem:[%s10489 + $0x1bc] sm:$0xf]
        %v10602 = vld [vmem:[%s10489 + $0x1c0] sm:$0xf]
        %v10603 = vld [vmem:[%s10489 + $0x1c4] sm:$0xf]
        %v10604 = vld [vmem:[%s10489 + $0x1c8] sm:$0xf]
        %v10605 = vld [vmem:[%s10489 + $0x1cc] sm:$0xf]
        %v10606 = vld [vmem:[%s10489 + $0x1d0] sm:$0xf]
        %v10607 = vld [vmem:[%s10489 + $0x1d4] sm:$0xf]
        %v10608 = vld [vmem:[%s10489 + $0x1d8] sm:$0xf]
        %v10609 = vld [vmem:[%s10489 + $0x1dc] sm:$0xf]
        %v10610 = vld [vmem:[%s10489 + $0x1e0] sm:$0xf]
        %v10611 = vld [vmem:[%s10489 + $0x1e4] sm:$0xf]
        %v10612 = vld [vmem:[%s10489 + $0x1e8] sm:$0xf]
        %v10613 = vld [vmem:[%s10489 + $0x1ec] sm:$0xf]
        %v10614 = vld [vmem:[%s10489 + $0x1f0] sm:$0xf]
        %v10615 = vld [vmem:[%s10489 + $0x1f4] sm:$0xf]
        %v10616 = vld [vmem:[%s10489 + $0x1f8] sm:$0xf]
        %v10617 = vld [vmem:[%s10489 + $0x1fc] sm:$0xf]
        %v10618 = vld [vmem:[%s10489 + $0x200] sm:$0xf]
        %v10619 = vld [vmem:[%s10489 + $0x204] sm:$0xf]
        %v10620 = vld [vmem:[%s10489 + $0x208] sm:$0xf]
        %v10621 = vld [vmem:[%s10489 + $0x20c] sm:$0xf]
        %v10622 = vld [vmem:[%s10489 + $0x210] sm:$0xf]
        %v10623 = vld [vmem:[%s10489 + $0x214] sm:$0xf]
        %v10624 = vld [vmem:[%s10489 + $0x218] sm:$0xf]
        %v10625 = vld [vmem:[%s10489 + $0x21c] sm:$0xf]
        %v10626 = vld [vmem:[%s10489 + $0x220] sm:$0xf]
        %v10627 = vld [vmem:[%s10489 + $0x224] sm:$0xf]
        %v10628 = vld [vmem:[%s10489 + $0x228] sm:$0xf]
        %v10629 = vld [vmem:[%s10489 + $0x22c] sm:$0xf]
        %v10630 = vld [vmem:[%s10489 + $0x230] sm:$0xf]
        %v10631 = vld [vmem:[%s10489 + $0x234] sm:$0xf]
        %v10632 = vld [vmem:[%s10489 + $0x238] sm:$0xf]
        %v10633 = vld [vmem:[%s10489 + $0x23c] sm:$0xf]
        %v10634 = vpack.c.b16 %v10357, %v10355
        %v10635 = vpack.c.b16 %v10471, %v10469
        %v10636 = vpack.c.b16 %v10472, %v10470
        %v10637 = vpack.c.b16 %v10359, %v10357
        %v10638 = vpack.c.b16 %v10473, %v10471
        %v10639 = vpack.c.b16 %v10474, %v10472
        %v10640 = vpack.c.b16 %v10361, %v10359
        %v10641 = vpack.c.b16 %v10475, %v10473
        %v10642 = vpack.c.b16 %v10476, %v10474
        %v10643 = vpack.c.b16 %v10363, %v10361
        %v10644 = vpack.c.b16 %v10477, %v10475
        %v10645 = vpack.c.b16 %v10478, %v10476
        %v10646 = vpack.c.b16 %v10365, %v10363
        %v10647 = vpack.c.b16 %v10479, %v10477
        %v10648 = vpack.c.b16 %v10480, %v10478
        %v10649 = vpack.c.b16 %v10367, %v10365
        %v10650 = vpack.c.b16 %v10481, %v10479
        %v10651 = vpack.c.b16 %v10482, %v10480
        %v10652 = vpack.c.b16 %v10369, %v10367
        %v10653 = vpack.c.b16 %v10483, %v10481
        %v10654 = vpack.c.b16 %v10484, %v10482
        %v10655 = vpack.c.b16 %v10445, %v10369
        %v10656 = vpack.c.b16 %v10485, %v10483
        %v10657 = vpack.c.b16 %v10486, %v10484
        %v10658 = vpack.c.b16 %v10458, %v10445
        %v10659 = vpack.c.b16 %v10487, %v10485
        %v10660 = vpack.c.b16 %v10488, %v10486
        %v10832 = vunpack.c.l.b16 %v10490
        %v10833 = vunpack.c.l.b16 %v10491
        %v10834 = vunpack.c.l.b16 %v10492
        %v10835 = vunpack.c.l.b16 %v10493
        %v10836 = vunpack.c.l.b16 %v10494
        %v10837 = vunpack.c.l.b16 %v10495
        %v10838 = vunpack.c.l.b16 %v10496
        %v10839 = vunpack.c.l.b16 %v10497
        %v10840 = vunpack.c.l.b16 %v10498
        %v10841 = vunpack.c.l.b16 %v10499
        %v10842 = vunpack.c.l.b16 %v10500
        %v10843 = vunpack.c.l.b16 %v10501
        %v10844 = vunpack.c.l.b16 %v10502
        %v10845 = vunpack.c.l.b16 %v10503
        %v10846 = vunpack.c.l.b16 %v10504
        %v10847 = vunpack.c.l.b16 %v10505
        %v10848 = vunpack.c.l.b16 %v10506
        %v10849 = vunpack.c.l.b16 %v10507
        %v10850 = vunpack.c.l.b16 %v10508
        %v10851 = vunpack.c.l.b16 %v10509
        %v10852 = vunpack.c.l.b16 %v10510
        %v10853 = vunpack.c.l.b16 %v10511
        %v10854 = vunpack.c.l.b16 %v10512
        %v10855 = vunpack.c.l.b16 %v10513
        %v10856 = vunpack.c.l.b16 %v10514
        %v10857 = vunpack.c.l.b16 %v10515
        %v10858 = vunpack.c.l.b16 %v10516
        %v10859 = vunpack.c.l.b16 %v10517
        %v10860 = vunpack.c.l.b16 %v10518
        %v10861 = vunpack.c.l.b16 %v10519
        %v10862 = vunpack.c.l.b16 %v10520
        %v10863 = vunpack.c.l.b16 %v10521
        %v10864 = vunpack.c.l.b16 %v10522
        %v10865 = vunpack.c.l.b16 %v10523
        %v10866 = vunpack.c.l.b16 %v10524
        %v10867 = vunpack.c.l.b16 %v10525
        %v10868 = vunpack.c.l.b16 %v10526
        %v10869 = vunpack.c.l.b16 %v10527
        %v10870 = vunpack.c.l.b16 %v10528
        %v10871 = vunpack.c.l.b16 %v10529
        %v10872 = vunpack.c.l.b16 %v10530
        %v10873 = vunpack.c.l.b16 %v10531
        %v10874 = vunpack.c.l.b16 %v10532
        %v10875 = vunpack.c.l.b16 %v10533
        %v10876 = vunpack.c.l.b16 %v10534
        %v10877 = vunpack.c.l.b16 %v10535
        %v10878 = vunpack.c.l.b16 %v10536
        %v10879 = vunpack.c.l.b16 %v10537
        %v10880 = vunpack.c.l.b16 %v10538
        %v10881 = vunpack.c.l.b16 %v10539
        %v10882 = vunpack.c.l.b16 %v10540
        %v10883 = vunpack.c.l.b16 %v10541
        %v10884 = vunpack.c.l.b16 %v10542
        %v10885 = vunpack.c.l.b16 %v10543
        %v10886 = vunpack.c.l.b16 %v10544
        %v10887 = vunpack.c.l.b16 %v10545
        %v10888 = vunpack.c.l.b16 %v10546
        %v10889 = vunpack.c.l.b16 %v10547
        %v10890 = vunpack.c.l.b16 %v10548
        %v10891 = vunpack.c.l.b16 %v10549
        %v10892 = vunpack.c.l.b16 %v10550
        %v10893 = vunpack.c.l.b16 %v10551
        %v10894 = vunpack.c.l.b16 %v10552
        %v10895 = vunpack.c.l.b16 %v10553
        %v10896 = vunpack.c.l.b16 %v10554
        %v10897 = vunpack.c.l.b16 %v10555
        %v10898 = vunpack.c.l.b16 %v10556
        %v10899 = vunpack.c.l.b16 %v10557
        %v10900 = vunpack.c.l.b16 %v10558
        %v10901 = vunpack.c.l.b16 %v10559
        %v10902 = vunpack.c.l.b16 %v10560
        %v10903 = vunpack.c.l.b16 %v10561
        %v10904 = vunpack.c.l.b16 %v10562
        %v10905 = vunpack.c.l.b16 %v10563
        %v10906 = vunpack.c.l.b16 %v10564
        %v10907 = vunpack.c.l.b16 %v10565
        %v10908 = vunpack.c.l.b16 %v10566
        %v10909 = vunpack.c.l.b16 %v10567
        %v10910 = vunpack.c.l.b16 %v10568
        %v10911 = vunpack.c.l.b16 %v10569
        %v10912 = vunpack.c.l.b16 %v10570
        %v10913 = vunpack.c.l.b16 %v10571
        %v10914 = vunpack.c.l.b16 %v10572
        %v10915 = vunpack.c.l.b16 %v10573
        %v10916 = vunpack.c.l.b16 %v10574
        %v10917 = vunpack.c.l.b16 %v10575
        %v10918 = vunpack.c.l.b16 %v10576
        %v10919 = vunpack.c.l.b16 %v10577
        %v10920 = vunpack.c.l.b16 %v10578
        %v10921 = vunpack.c.l.b16 %v10579
        %v10922 = vunpack.c.l.b16 %v10580
        %v10923 = vunpack.c.l.b16 %v10581
        %v10924 = vunpack.c.l.b16 %v10582
        %v10925 = vunpack.c.l.b16 %v10583
        %v10926 = vunpack.c.l.b16 %v10584
        %v10927 = vunpack.c.l.b16 %v10585
        %v10928 = vunpack.c.l.b16 %v10586
        %v10929 = vunpack.c.l.b16 %v10587
        %v10930 = vunpack.c.l.b16 %v10588
        %v10931 = vunpack.c.l.b16 %v10589
        %v10932 = vunpack.c.l.b16 %v10590
        %v10933 = vunpack.c.l.b16 %v10591
        %v10934 = vunpack.c.l.b16 %v10592
        %v10935 = vunpack.c.l.b16 %v10593
        %v10936 = vunpack.c.l.b16 %v10594
        %v10937 = vunpack.c.l.b16 %v10595
        %v10938 = vunpack.c.l.b16 %v10596
        %v10939 = vunpack.c.l.b16 %v10597
        %v10940 = vunpack.c.l.b16 %v10598
        %v10941 = vunpack.c.l.b16 %v10599
        %v10942 = vunpack.c.l.b16 %v10600
        %v10943 = vunpack.c.l.b16 %v10601
        %v10944 = vunpack.c.l.b16 %v10602
        %v10945 = vunpack.c.l.b16 %v10603
        %v10946 = vunpack.c.l.b16 %v10604
        %v10947 = vunpack.c.l.b16 %v10605
        %v10948 = vunpack.c.l.b16 %v10606
        %v10949 = vunpack.c.l.b16 %v10607
        %v10950 = vunpack.c.l.b16 %v10608
        %v10951 = vunpack.c.l.b16 %v10609
        %v10952 = vunpack.c.l.b16 %v10610
        %v10953 = vunpack.c.l.b16 %v10611
        %v10954 = vunpack.c.l.b16 %v10612
        %v10955 = vunpack.c.l.b16 %v10613
        %v10956 = vunpack.c.l.b16 %v10614
        %v10957 = vunpack.c.l.b16 %v10615
        %v10958 = vunpack.c.l.b16 %v10616
        %v10959 = vunpack.c.l.b16 %v10617
        %v10960 = vunpack.c.l.b16 %v10618
        %v10961 = vunpack.c.l.b16 %v10619
        %v10962 = vunpack.c.l.b16 %v10620
        %v10963 = vunpack.c.l.b16 %v10621
        %v10964 = vunpack.c.l.b16 %v10622
        %v10965 = vunpack.c.l.b16 %v10623
        %v10966 = vunpack.c.l.b16 %v10624
        %v10967 = vunpack.c.l.b16 %v10625
        %v10968 = vunpack.c.l.b16 %v10626
        %v10969 = vunpack.c.l.b16 %v10627
        %v10970 = vunpack.c.l.b16 %v10628
        %v10971 = vunpack.c.l.b16 %v10629
        %v10972 = vunpack.c.l.b16 %v10630
        %v10973 = vunpack.c.l.b16 %v10631
        %v10974 = vunpack.c.l.b16 %v10632
        %v10975 = vunpack.c.l.b16 %v10633
        %v10976 = vpack.c.b16 %v10833, %v10832
        %v10977 = vpack.c.b16 %v10835, %v10834
        %v10978 = vpack.c.b16 %v10837, %v10836
        %v10979 = vpack.c.b16 %v10839, %v10838
        %v10980 = vpack.c.b16 %v10841, %v10840
        %v10981 = vpack.c.b16 %v10843, %v10842
        %v10982 = vpack.c.b16 %v10845, %v10844
        %v10983 = vpack.c.b16 %v10847, %v10846
        %v10984 = vpack.c.b16 %v10849, %v10848
        %v10985 = vpack.c.b16 %v10851, %v10850
        %v10986 = vpack.c.b16 %v10853, %v10852
        %v10987 = vpack.c.b16 %v10855, %v10854
        %v10988 = vpack.c.b16 %v10857, %v10856
        %v10989 = vpack.c.b16 %v10859, %v10858
        %v10990 = vpack.c.b16 %v10861, %v10860
        %v10991 = vpack.c.b16 %v10863, %v10862
        %v10992 = vpack.c.b16 %v10865, %v10864
        %v10993 = vpack.c.b16 %v10867, %v10866
        %v10994 = vpack.c.b16 %v10869, %v10868
        %v10995 = vpack.c.b16 %v10871, %v10870
        %v10996 = vpack.c.b16 %v10873, %v10872
        %v10997 = vpack.c.b16 %v10875, %v10874
        %v10998 = vpack.c.b16 %v10877, %v10876
        %v10999 = vpack.c.b16 %v10879, %v10878
        %v11000 = vpack.c.b16 %v10881, %v10880
        %v11001 = vpack.c.b16 %v10883, %v10882
        %v11002 = vpack.c.b16 %v10885, %v10884
        %v11003 = vpack.c.b16 %v10887, %v10886
        %v11004 = vpack.c.b16 %v10889, %v10888
        %v11005 = vpack.c.b16 %v10891, %v10890
        %v11006 = vpack.c.b16 %v10893, %v10892
        %v11007 = vpack.c.b16 %v10895, %v10894
        %v11008 = vpack.c.b16 %v10897, %v10896
        %v11009 = vpack.c.b16 %v10899, %v10898
        %v11010 = vpack.c.b16 %v10901, %v10900
        %v11011 = vpack.c.b16 %v10903, %v10902
        %v11012 = vpack.c.b16 %v10905, %v10904
        %v11013 = vpack.c.b16 %v10907, %v10906
        %v11014 = vpack.c.b16 %v10909, %v10908
        %v11015 = vpack.c.b16 %v10911, %v10910
        %v11016 = vpack.c.b16 %v10913, %v10912
        %v11017 = vpack.c.b16 %v10915, %v10914
        %v11018 = vpack.c.b16 %v10917, %v10916
        %v11019 = vpack.c.b16 %v10919, %v10918
        %v11020 = vpack.c.b16 %v10921, %v10920
        %v11021 = vpack.c.b16 %v10923, %v10922
        %v11022 = vpack.c.b16 %v10925, %v10924
        %v11023 = vpack.c.b16 %v10927, %v10926
        %v11024 = vpack.c.b16 %v10929, %v10928
        %v11025 = vpack.c.b16 %v10931, %v10930
        %v11026 = vpack.c.b16 %v10933, %v10932
        %v11027 = vpack.c.b16 %v10935, %v10934
        %v11028 = vpack.c.b16 %v10937, %v10936
        %v11029 = vpack.c.b16 %v10939, %v10938
        %v11030 = vpack.c.b16 %v10941, %v10940
        %v11031 = vpack.c.b16 %v10943, %v10942
        %v11032 = vpack.c.b16 %v10945, %v10944
        %v11033 = vpack.c.b16 %v10947, %v10946
        %v11034 = vpack.c.b16 %v10949, %v10948
        %v11035 = vpack.c.b16 %v10951, %v10950
        %v11036 = vpack.c.b16 %v10953, %v10952
        %v11037 = vpack.c.b16 %v10955, %v10954
        %v11038 = vpack.c.b16 %v10957, %v10956
        %v11039 = vpack.c.b16 %v10959, %v10958
        %v11040 = vpack.c.b16 %v10961, %v10960
        %v11041 = vpack.c.b16 %v10963, %v10962
        %v11042 = vpack.c.b16 %v10965, %v10964
        %v11043 = vpack.c.b16 %v10967, %v10966
        %v11044 = vpack.c.b16 %v10969, %v10968
        %v11045 = vpack.c.b16 %v10971, %v10970
        %v11046 = vpack.c.b16 %v10973, %v10972
        %v11047 = vpack.c.b16 %v10975, %v10974
        %11120 = vmatpush.bf16.msra.mxu0 %v10983
        %11121 = vmatpush.bf16.msra.mxu0 %v10982
        %11122 = vmatpush.bf16.msra.mxu0 %v10981
        %11123 = vmatpush.bf16.msra.mxu0 %v10980
        %11124 = vmatpush.bf16.msra.mxu0 %v10979
        %11125 = vmatpush.bf16.msra.mxu0 %v10978
        %11126 = vmatpush.bf16.msra.mxu0 %v10977
        %11127 = vmatpush.bf16.msra.mxu0 %v10976
        %11128 = vmatmul.bf16.gmra.mxu0 %v10634
        %v11129 = vpop.f32.mrf.mxu0
        %v11130 = vadd.f32 0.0, %v11129
        %v11131 = vpop.f32.mrf.mxu0
        %v11132 = vadd.f32 0.0, %v11131
        %11133 = vmatmul.bf16.gmra.mxu0 %v10640
        %v11134 = vpop.f32.mrf.mxu0
        %v11135 = vadd.f32 0.0, %v11134
        %v11136 = vpop.f32.mrf.mxu0
        %v11137 = vadd.f32 0.0, %v11136
        %11138 = vmatmul.bf16.gmra.mxu0 %v10646
        %v11139 = vpop.f32.mrf.mxu0
        %v11140 = vadd.f32 0.0, %v11139
        %v11141 = vpop.f32.mrf.mxu0
        %v11142 = vadd.f32 0.0, %v11141
        %11143 = vmatmul.bf16.gmra.mxu0 %v10652
        %v11144 = vpop.f32.mrf.mxu0
        %v11145 = vadd.f32 0.0, %v11144
        %v11146 = vpop.f32.mrf.mxu0
        %v11147 = vadd.f32 0.0, %v11146
        %11148 = vdwg.mxu0
        %11149 = vmatpush.bf16.msra.mxu0 %v10991
        %11150 = vmatpush.bf16.msra.mxu0 %v10990
        %11151 = vmatpush.bf16.msra.mxu0 %v10989
        %11152 = vmatpush.bf16.msra.mxu0 %v10988
        %11153 = vmatpush.bf16.msra.mxu0 %v10987
        %11154 = vmatpush.bf16.msra.mxu0 %v10986
        %11155 = vmatpush.bf16.msra.mxu0 %v10985
        %11156 = vmatpush.bf16.msra.mxu0 %v10984
        %11157 = vmatmul.bf16.gmra.mxu0 %v10635
        %v11158 = vpop.f32.mrf.mxu0
        %v11159 = vadd.f32 %v11130, %v11158
        %v11160 = vpop.f32.mrf.mxu0
        %v11161 = vadd.f32 %v11132, %v11160
        %11162 = vmatmul.bf16.gmra.mxu0 %v10641
        %v11163 = vpop.f32.mrf.mxu0
        %v11164 = vadd.f32 %v11135, %v11163
        %v11165 = vpop.f32.mrf.mxu0
        %v11166 = vadd.f32 %v11137, %v11165
        %11167 = vmatmul.bf16.gmra.mxu0 %v10647
        %v11168 = vpop.f32.mrf.mxu0
        %v11169 = vadd.f32 %v11140, %v11168
        %v11170 = vpop.f32.mrf.mxu0
        %v11171 = vadd.f32 %v11142, %v11170
        %11172 = vmatmul.bf16.gmra.mxu0 %v10653
        %v11173 = vpop.f32.mrf.mxu0
        %v11174 = vadd.f32 %v11145, %v11173
        %v11175 = vpop.f32.mrf.mxu0
        %v11176 = vadd.f32 %v11147, %v11175
        %11177 = vdwg.mxu0
        %11178 = vmatpush.bf16.msra.mxu0 %v10999
        %11179 = vmatpush.bf16.msra.mxu0 %v10998
        %11180 = vmatpush.bf16.msra.mxu0 %v10997
        %11181 = vmatpush.bf16.msra.mxu0 %v10996
        %11182 = vmatpush.bf16.msra.mxu0 %v10995
        %11183 = vmatpush.bf16.msra.mxu0 %v10994
        %11184 = vmatpush.bf16.msra.mxu0 %v10993
        %11185 = vmatpush.bf16.msra.mxu0 %v10992
        %11186 = vmatmul.bf16.gmra.mxu0 %v10636
        %v11187 = vpop.f32.mrf.mxu0
        %v11188 = vadd.f32 %v11159, %v11187
        %v11189 = vpop.f32.mrf.mxu0
        %v11190 = vadd.f32 %v11161, %v11189
        %11191 = vmatmul.bf16.gmra.mxu0 %v10642
        %v11192 = vpop.f32.mrf.mxu0
        %v11193 = vadd.f32 %v11164, %v11192
        %v11194 = vpop.f32.mrf.mxu0
        %v11195 = vadd.f32 %v11166, %v11194
        %11196 = vmatmul.bf16.gmra.mxu0 %v10648
        %v11197 = vpop.f32.mrf.mxu0
        %v11198 = vadd.f32 %v11169, %v11197
        %v11199 = vpop.f32.mrf.mxu0
        %v11200 = vadd.f32 %v11171, %v11199
        %11201 = vmatmul.bf16.gmra.mxu0 %v10654
        %v11202 = vpop.f32.mrf.mxu0
        %v11203 = vadd.f32 %v11174, %v11202
        %v11204 = vpop.f32.mrf.mxu0
        %v11205 = vadd.f32 %v11176, %v11204
        %11206 = vdwg.mxu0
        %11207 = vmatpush.bf16.msra.mxu0 %v11007
        %11208 = vmatpush.bf16.msra.mxu0 %v11006
        %11209 = vmatpush.bf16.msra.mxu0 %v11005
        %11210 = vmatpush.bf16.msra.mxu0 %v11004
        %11211 = vmatpush.bf16.msra.mxu0 %v11003
        %11212 = vmatpush.bf16.msra.mxu0 %v11002
        %11213 = vmatpush.bf16.msra.mxu0 %v11001
        %11214 = vmatpush.bf16.msra.mxu0 %v11000
        %11215 = vmatmul.bf16.gmra.mxu0 %v10637
        %v11216 = vpop.f32.mrf.mxu0
        %v11217 = vadd.f32 %v11188, %v11216
        %v11218 = vpop.f32.mrf.mxu0
        %v11219 = vadd.f32 %v11190, %v11218
        %11220 = vmatmul.bf16.gmra.mxu0 %v10643
        %v11221 = vpop.f32.mrf.mxu0
        %v11222 = vadd.f32 %v11193, %v11221
        %v11223 = vpop.f32.mrf.mxu0
        %v11224 = vadd.f32 %v11195, %v11223
        %11225 = vmatmul.bf16.gmra.mxu0 %v10649
        %v11226 = vpop.f32.mrf.mxu0
        %v11227 = vadd.f32 %v11198, %v11226
        %v11228 = vpop.f32.mrf.mxu0
        %v11229 = vadd.f32 %v11200, %v11228
        %11230 = vmatmul.bf16.gmra.mxu0 %v10655
        %v11231 = vpop.f32.mrf.mxu0
        %v11232 = vadd.f32 %v11203, %v11231
        %v11233 = vpop.f32.mrf.mxu0
        %v11234 = vadd.f32 %v11205, %v11233
        %11235 = vdwg.mxu0
        %11236 = vmatpush.bf16.msra.mxu0 %v11015
        %11237 = vmatpush.bf16.msra.mxu0 %v11014
        %11238 = vmatpush.bf16.msra.mxu0 %v11013
        %11239 = vmatpush.bf16.msra.mxu0 %v11012
        %11240 = vmatpush.bf16.msra.mxu0 %v11011
        %11241 = vmatpush.bf16.msra.mxu0 %v11010
        %11242 = vmatpush.bf16.msra.mxu0 %v11009
        %11243 = vmatpush.bf16.msra.mxu0 %v11008
        %11244 = vmatmul.bf16.gmra.mxu0 %v10638
        %v11245 = vpop.f32.mrf.mxu0
        %v11246 = vadd.f32 %v11217, %v11245
        %v11247 = vpop.f32.mrf.mxu0
        %v11248 = vadd.f32 %v11219, %v11247
        %11249 = vmatmul.bf16.gmra.mxu0 %v10644
        %v11250 = vpop.f32.mrf.mxu0
        %v11251 = vadd.f32 %v11222, %v11250
        %v11252 = vpop.f32.mrf.mxu0
        %v11253 = vadd.f32 %v11224, %v11252
        %11254 = vmatmul.bf16.gmra.mxu0 %v10650
        %v11255 = vpop.f32.mrf.mxu0
        %v11256 = vadd.f32 %v11227, %v11255
        %v11257 = vpop.f32.mrf.mxu0
        %v11258 = vadd.f32 %v11229, %v11257
        %11259 = vmatmul.bf16.gmra.mxu0 %v10656
        %v11260 = vpop.f32.mrf.mxu0
        %v11261 = vadd.f32 %v11232, %v11260
        %v11262 = vpop.f32.mrf.mxu0
        %v11263 = vadd.f32 %v11234, %v11262
        %11264 = vdwg.mxu0
        %11265 = vmatpush.bf16.msra.mxu0 %v11023
        %11266 = vmatpush.bf16.msra.mxu0 %v11022
        %11267 = vmatpush.bf16.msra.mxu0 %v11021
        %11268 = vmatpush.bf16.msra.mxu0 %v11020
        %11269 = vmatpush.bf16.msra.mxu0 %v11019
        %11270 = vmatpush.bf16.msra.mxu0 %v11018
        %11271 = vmatpush.bf16.msra.mxu0 %v11017
        %11272 = vmatpush.bf16.msra.mxu0 %v11016
        %11273 = vmatmul.bf16.gmra.mxu0 %v10639
        %v11274 = vpop.f32.mrf.mxu0
        %v11275 = vadd.f32 %v11246, %v11274
        %v11276 = vpop.f32.mrf.mxu0
        %v11277 = vadd.f32 %v11248, %v11276
        %11278 = vmatmul.bf16.gmra.mxu0 %v10645
        %v11279 = vpop.f32.mrf.mxu0
        %v11280 = vadd.f32 %v11251, %v11279
        %v11281 = vpop.f32.mrf.mxu0
        %v11282 = vadd.f32 %v11253, %v11281
        %11283 = vmatmul.bf16.gmra.mxu0 %v10651
        %v11284 = vpop.f32.mrf.mxu0
        %v11285 = vadd.f32 %v11256, %v11284
        %v11286 = vpop.f32.mrf.mxu0
        %v11287 = vadd.f32 %v11258, %v11286
        %11288 = vmatmul.bf16.gmra.mxu0 %v10657
        %v11289 = vpop.f32.mrf.mxu0
        %v11290 = vadd.f32 %v11261, %v11289
        %v11291 = vpop.f32.mrf.mxu0
        %v11292 = vadd.f32 %v11263, %v11291
        %11293 = vdwg.mxu0
        %11294 = vmatpush.bf16.msra.mxu0 %v11031
        %11295 = vmatpush.bf16.msra.mxu0 %v11030
        %11296 = vmatpush.bf16.msra.mxu0 %v11029
        %11297 = vmatpush.bf16.msra.mxu0 %v11028
        %11298 = vmatpush.bf16.msra.mxu0 %v11027
        %11299 = vmatpush.bf16.msra.mxu0 %v11026
        %11300 = vmatpush.bf16.msra.mxu0 %v11025
        %11301 = vmatpush.bf16.msra.mxu0 %v11024
        %11302 = vmatmul.bf16.gmra.mxu0 %v10640
        %v11303 = vpop.f32.mrf.mxu0
        %v11304 = vadd.f32 %v11275, %v11303
        %v11305 = vpop.f32.mrf.mxu0
        %v11306 = vadd.f32 %v11277, %v11305
        %11307 = vmatmul.bf16.gmra.mxu0 %v10646
        %v11308 = vpop.f32.mrf.mxu0
        %v11309 = vadd.f32 %v11280, %v11308
        %v11310 = vpop.f32.mrf.mxu0
        %v11311 = vadd.f32 %v11282, %v11310
        %11312 = vmatmul.bf16.gmra.mxu0 %v10652
        %v11313 = vpop.f32.mrf.mxu0
        %v11314 = vadd.f32 %v11285, %v11313
        %v11315 = vpop.f32.mrf.mxu0
        %v11316 = vadd.f32 %v11287, %v11315
        %11317 = vmatmul.bf16.gmra.mxu0 %v10658
        %v11318 = vpop.f32.mrf.mxu0
        %v11319 = vadd.f32 %v11290, %v11318
        %v11320 = vpop.f32.mrf.mxu0
        %v11321 = vadd.f32 %v11292, %v11320
        %11322 = vdwg.mxu0
        %11323 = vmatpush.bf16.msra.mxu0 %v11039
        %11324 = vmatpush.bf16.msra.mxu0 %v11038
        %11325 = vmatpush.bf16.msra.mxu0 %v11037
        %11326 = vmatpush.bf16.msra.mxu0 %v11036
        %11327 = vmatpush.bf16.msra.mxu0 %v11035
        %11328 = vmatpush.bf16.msra.mxu0 %v11034
        %11329 = vmatpush.bf16.msra.mxu0 %v11033
        %11330 = vmatpush.bf16.msra.mxu0 %v11032
        %11331 = vmatmul.bf16.gmra.mxu0 %v10641
        %v11332 = vpop.f32.mrf.mxu0
        %v11333 = vadd.f32 %v11304, %v11332
        %v11334 = vpop.f32.mrf.mxu0
        %v11335 = vadd.f32 %v11306, %v11334
        %11336 = vmatmul.bf16.gmra.mxu0 %v10647
        %v11337 = vpop.f32.mrf.mxu0
        %v11338 = vadd.f32 %v11309, %v11337
        %v11339 = vpop.f32.mrf.mxu0
        %v11340 = vadd.f32 %v11311, %v11339
        %11341 = vmatmul.bf16.gmra.mxu0 %v10653
        %v11342 = vpop.f32.mrf.mxu0
        %v11343 = vadd.f32 %v11314, %v11342
        %v11344 = vpop.f32.mrf.mxu0
        %v11345 = vadd.f32 %v11316, %v11344
        %11346 = vmatmul.bf16.gmra.mxu0 %v10659
        %v11347 = vpop.f32.mrf.mxu0
        %v11348 = vadd.f32 %v11319, %v11347
        %v11349 = vpop.f32.mrf.mxu0
        %v11350 = vadd.f32 %v11321, %v11349
        %11351 = vdwg.mxu0
        %11352 = vmatpush.bf16.msra.mxu0 %v11047
        %11353 = vmatpush.bf16.msra.mxu0 %v11046
        %11354 = vmatpush.bf16.msra.mxu0 %v11045
        %11355 = vmatpush.bf16.msra.mxu0 %v11044
        %11356 = vmatpush.bf16.msra.mxu0 %v11043
        %11357 = vmatpush.bf16.msra.mxu0 %v11042
        %11358 = vmatpush.bf16.msra.mxu0 %v11041
        %11359 = vmatpush.bf16.msra.mxu0 %v11040
        %11360 = vmatmul.bf16.gmra.mxu0 %v10642
        %v11361 = vpop.f32.mrf.mxu0
        %v11362 = vadd.f32 %v11333, %v11361
        %v11363 = vpop.f32.mrf.mxu0
        %v11364 = vadd.f32 %v11335, %v11363
        %11365 = vmatmul.bf16.gmra.mxu0 %v10648
        %v11366 = vpop.f32.mrf.mxu0
        %v11367 = vadd.f32 %v11338, %v11366
        %v11368 = vpop.f32.mrf.mxu0
        %v11369 = vadd.f32 %v11340, %v11368
        %11370 = vmatmul.bf16.gmra.mxu0 %v10654
        %v11371 = vpop.f32.mrf.mxu0
        %v11372 = vadd.f32 %v11343, %v11371
        %v11373 = vpop.f32.mrf.mxu0
        %v11374 = vadd.f32 %v11345, %v11373
        %11375 = vmatmul.bf16.gmra.mxu0 %v10660
        %v11376 = vpop.f32.mrf.mxu0
        %v11377 = vadd.f32 %v11348, %v11376
        %v11378 = vpop.f32.mrf.mxu0
        %v11379 = vadd.f32 %v11350, %v11378
        %11380 = vdwg.mxu0
        %v11381 = vld [vmem:[%s192] sm:$0xff]
        %v11382 = vld [vmem:[%s192 + $0x8] sm:$0xff]
        %v11383 = vld [vmem:[%s192 + $0x10] sm:$0xff]
        %v11384 = vld [vmem:[%s192 + $0x18] sm:$0xff]
        %v11385 = vld [vmem:[%s192 + $0x20] sm:$0xff]
        %v11386 = vld [vmem:[%s192 + $0x28] sm:$0xff]
        %v11387 = vld [vmem:[%s192 + $0x30] sm:$0xff]
        %v11388 = vld [vmem:[%s192 + $0x38] sm:$0xff]
        %v11389 = vadd.f32 %v11362, %v11381
        %v11390 = vadd.f32 %v11364, %v11382
        %v11391 = vadd.f32 %v11367, %v11383
        %v11392 = vadd.f32 %v11369, %v11384
        %v11393 = vadd.f32 %v11372, %v11385
        %v11394 = vadd.f32 %v11374, %v11386
        %v11395 = vadd.f32 %v11377, %v11387
        %v11396 = vadd.f32 %v11379, %v11388
        %11397 = vst [vmem:[%s221] sm:$0xff] %v11389
        %11398 = vst [vmem:[%s221 + $0x8] sm:$0xff] %v11390
        %11399 = vst [vmem:[%s221 + $0x10] sm:$0xff] %v11391
        %11400 = vst [vmem:[%s221 + $0x18] sm:$0xff] %v11392
        %11401 = vst [vmem:[%s221 + $0x20] sm:$0xff] %v11393
        %11402 = vst [vmem:[%s221 + $0x28] sm:$0xff] %v11394
        %11403 = vst [vmem:[%s221 + $0x30] sm:$0xff] %v11395
        %11404 = vst [vmem:[%s221 + $0x38] sm:$0xff] %v11396
        %s11405 = sand.u32 %s98, 1
        %s11406 = scalar_lea.sflag [#allocation6], %s11405
        %s11407 = sand.u32 %s98, 1
        %s11408 = smul.addr %s11407, 64
        %s11409 = scalar_lea.vmem [#allocation11], %s11408
        // Predicated region
        $region45: #{tpu_custom_call.1} parent=31 // pred_check
          %p11410 = pneg %p108
        $region46: #{tpu_custom_call.1} parent=31 // pred_check_branch
          %11412 = sbr.rel (%p11410) target = $region48
        $region47: #{tpu_custom_call.1} parent=31 // pred_region
          %11414 = vsyncadd %s11406, 0
          %s11415 = smul.addr %s22, 8
          %s11416 = smul.addr %s11415, 8
          %s11417 = scalar_lea.hbm %s3, %s11416
          %s11418 = sshll.u32 %s11409, 4
          %s11419 = int_to_ptr.vmem [resolvable:$true] %s11418
          %s11420 = sshll.u32 %s11417, 4
          %s11421 = int_to_ptr.hbm [resolvable:$true] %s11420
          %11426 = dma.vmem_to_hbm [thread:$0]  %s11419, 1024, %s11421, %s11406, 128, 128, 8
        $region48: #{tpu_custom_call.1} parent=31 // pred_fallthru
          _
      $region32: #{tpu_custom_call.1} parent=5 // pred_fallthru
        _
      %p11427 = scmp.le.s32.totalorder 2, %s17
      // Predicated region
      $region49: #{tpu_custom_call.1} parent=5 // pred_check
        %p11428 = pneg %p11427
      $region50: #{tpu_custom_call.1} parent=5 // pred_check_branch
        %11430 = sbr.rel (%p11428) target = $region52
      $region51: #{tpu_custom_call.1} parent=5 // pred_region
        %s11431 = ssub.s32 %s17, 2
        // Predicated region
        $region53: #{tpu_custom_call.1} parent=51 // pred_check
          %p11432 = pneg %p114
        $region54: #{tpu_custom_call.1} parent=51 // pred_check_branch
          %11434 = sbr.rel (%p11432) target = $region56
        $region55: #{tpu_custom_call.1} parent=51 // pred_region
          %s11435 = sand.u32 %s99, 1
          %s11436 = scalar_lea.sflag [#allocation6], %s11435
          %s11437 = sand.u32 %s99, 1
          %s11438 = smul.addr %s11437, 64
          %s11439 = scalar_lea.vmem [#allocation11], %s11438
          %11441 = dma.done %s11436, 1024
        $region56: #{tpu_custom_call.1} parent=51 // pred_fallthru
          _
      $region52: #{tpu_custom_call.1} parent=5 // pred_fallthru
        _
    $region6: #{tpu_custom_call.1} parent=1 // loop_footer
      %s21 = sadd.s32 1, %s17
    $region7: #{tpu_custom_call.1} parent=1 // loop_footer_branch
      %16 = sbr.rel target = $region3
    $region8: #{tpu_custom_call.1} parent=1 // loop_exit
      _
    %11442 = vsyncpa [#allocation5], 1
    %s11443 = scalar_lea.sflag [#allocation5], 1
    %11444 = vsyncpa %s11443, 1
    %11445 = vsyncpa [#allocation10], 1
    %11446 = vsyncpa [#allocation6], 1
    %s11447 = scalar_lea.sflag [#allocation6], 1
    %11448 = vsyncpa %s11447, 1
    %11449 = vsyncpa [#allocation7], 1
    %s11450 = scalar_lea.sflag [#allocation7], 1
    %11451 = vsyncpa %s11450, 1

</llo_original>
